<compile_context>
chip_gen: v5e
topology: v5e:2x2
jax: 0.10.0
libtpu: 0.0.40
codegen_flags: <defaults>
</compile_context>

<pallas_src>
import functools

import jax
import jax.numpy as jnp
from jax.experimental import pallas as pl
from jax.experimental.pallas import tpu as pltpu

_EPS = 1e-5
_TPAD = 128  # lane-dense padding for the 9-wide trans row


# -----------------------------------------------------------------------------------------------
# Fused kernel: one grid step == one batch element (point cloud of N points, C=3 channels).
# -----------------------------------------------------------------------------------------------
def _pointnet_fused_kernel(
    x_ref,
    sw1_ref, sb1_ref, sw2_ref, sb2_ref, sw3_ref, sb3_ref,            # STN3d conv stack
    fw1_ref, fb1_ref, fw2_ref, fb2_ref, fw3_ref, fb3_ref,            # STN3d FC head (fc3 permuted+padded)
    k_ref, ew1r_ref, eb1_ref, ew2_ref, eb2_ref, ew3_ref, eb3_ref,    # encoder conv stack (w1 row-replicated)
    g_ref, trans_ref,
    *, eps):
    f32 = jnp.float32
    bf16 = jnp.bfloat16

    x = x_ref[0].astype(bf16)                                        # [N, C] point-major rows

    def norm_points_relu(h):
        """InstanceNorm over the points axis (per channel), one-pass mean/var, then ReLU.
        bf16 cast happens before the ReLU (cast and ReLU commute) for the next MXU matmul."""
        inv_n = 1.0 / h.shape[0]
        mean = jnp.sum(h, axis=0, keepdims=True) * inv_n
        ex2 = jnp.sum(h * h, axis=0, keepdims=True) * inv_n
        hn = (h - mean) * jax.lax.rsqrt(ex2 - mean * mean + eps)
        return jnp.maximum(hn.astype(bf16), 0.0)

    def layer3_pooled(h_bf, w_ref, b_ref, relu):
        """conv3 + InstanceNorm (+ReLU) + max-over-points WITHOUT materializing the normalized
        [N,1024] activation: max-pool commutes with the positive-scale per-channel norm and with
        ReLU, so only per-channel max / sum / sum-of-squares reductions over N are needed."""
        h = jnp.dot(h_bf, w_ref[...], preferred_element_type=f32) + b_ref[...]
        inv_n = 1.0 / h.shape[0]
        mx = jnp.max(h, axis=0, keepdims=True)
        mean = jnp.sum(h, axis=0, keepdims=True) * inv_n
        ex2 = jnp.sum(h * h, axis=0, keepdims=True) * inv_n
        pooled = (mx - mean) * jax.lax.rsqrt(ex2 - mean * mean + eps)
        return jnp.maximum(pooled, 0.0) if relu else pooled          # [1, 1024] f32

    def row_norm_relu(h):
        """PyTorch InstanceNorm1d on a 2-D [rows, F] input == per-row normalization over F."""
        mean = jnp.mean(h, axis=-1, keepdims=True)
        ex2 = jnp.mean(h * h, axis=-1, keepdims=True)
        hn = (h - mean) * jax.lax.rsqrt(ex2 - mean * mean + eps)
        return jnp.maximum(hn.astype(bf16), 0.0)

    # ---------------- STN3d: conv stack -> max-pool -> FC head -> trans row ---------------------
    h = jnp.dot(x, sw1_ref[...], preferred_element_type=f32) + sb1_ref[...]
    h = norm_points_relu(h)                                          # [N, 64]
    h = jnp.dot(h, sw2_ref[...], preferred_element_type=f32) + sb2_ref[...]
    h = norm_points_relu(h)                                          # [N, 128]
    g_stn = layer3_pooled(h, sw3_ref, sb3_ref, relu=True)            # [1, 1024]

    h = jnp.dot(g_stn.astype(bf16), fw1_ref[...], preferred_element_type=f32) + fb1_ref[...]
    h = row_norm_relu(h)                                             # [1, 512]
    h = jnp.dot(h, fw2_ref[...], preferred_element_type=f32) + fb2_ref[...]
    h = row_norm_relu(h)                                             # [1, 256]
    t_row = jnp.dot(h, fw3_ref[...], preferred_element_type=f32) + fb3_ref[...]
    # t_row[0, 3*d + c] = trans[c, d] (+identity folded into the bias); lanes 9.. are zero.
    trans_ref[0] = t_row                                             # lane-dense [1, 128] store

    # ---------------- Encoder conv stack with the 3x3 transform folded into layer 1 -------------
    #   (x @ trans) @ w1  ==  ((x @ K) * t_row) @ w1_rep    (K, w1_rep prepared in the wrapper)
    x9 = jnp.dot(x, k_ref[...], preferred_element_type=f32)          # [N, 128]: lane 3d+c = x[:, c]
    xt = (x9 * t_row).astype(bf16)                                   # [N, 128]: x[:, c] * trans[c, d]
    h = jnp.dot(xt, ew1r_ref[...], preferred_element_type=f32) + eb1_ref[...]
    h = norm_points_relu(h)                                          # [N, 64]
    h = jnp.dot(h, ew2_ref[...], preferred_element_type=f32) + eb2_ref[...]
    h = norm_points_relu(h)                                          # [N, 128]
    g_ref[0] = layer3_pooled(h, ew3_ref, eb3_ref, relu=False)        # [1, 1024], no ReLU after bn3


def _whole(a):
    """Full-array block, resident in VMEM and reused across the (batch) grid."""
    return pl.BlockSpec(a.shape, lambda b: (0,) * a.ndim)


def pointnet_encoder_forward(x, params, *, eps=_EPS):
    """x: [B, C, N] channels-first. Returns (global_feature [B,1024], trans [B,3,3], None)."""
    B, C, N = x.shape
    if C != 3:
        raise NotImplementedError("TODO(synk): D>3 extra-feature split not implemented.")
    scp, sfp, ecp = params["stn"]["conv"], params["stn"]["fc"], params["enc"]["conv"]

    # Point-major rows (tiny transpose HLO; negligible once everything is a single fused call).
    x_bnc = jnp.transpose(x, (0, 2, 1))                              # [B, N, C]

    # --- wrapper-side constant folding (keeps the kernel free of reshapes/slicing) --------------
    # STN fc3: permute the 9 output columns to trans^T order (out[3d+c] = trans[c,d]), fold "+I3"
    # into the bias, pad to a lane-dense 128 columns.
    iden = jnp.eye(3, dtype=jnp.float32).reshape(1, 9)
    fw3_perm = sfp["w3"].reshape(-1, 3, 3).transpose(0, 2, 1).reshape(-1, 9)
    fb3_perm = sfp["b3"].reshape(1, 3, 3).transpose(0, 2, 1).reshape(1, 9) + iden
    fw3p = jnp.zeros((sfp["w3"].shape[0], _TPAD), sfp["w3"].dtype).at[:, :9].set(fw3_perm)
    fb3p = jnp.zeros((1, _TPAD), jnp.float32).at[:, :9].set(fb3_perm)
    # Column-replication matrix K (x @ K copies x[:, c] into lane 3d+c) and the row-replicated
    # encoder conv1 weight, together implementing (x @ trans) @ w1 == ((x@K) * t_row) @ w1_rep.
    k_tab = jnp.zeros((C, _TPAD), jnp.bfloat16).at[:, :9].set(
        jnp.tile(jnp.eye(C, dtype=jnp.bfloat16), (1, 3)))
    ew1r = jnp.zeros((_TPAD, ecp["w1"].shape[1]), ecp["w1"].dtype).at[:9, :].set(
        jnp.repeat(ecp["w1"], 3, axis=0))

    c_out = ecp["w3"].shape[1]                                       # 1024
    operands = [(x_bnc, pl.BlockSpec((1, N, C), lambda b: (b, 0, 0)))] + [
        (a, _whole(a)) for a in (
            scp["w1"], scp["b1"], scp["w2"], scp["b2"], scp["w3"], scp["b3"],
            sfp["w1"], sfp["b1"], sfp["w2"], sfp["b2"], fw3p, fb3p,
            k_tab, ew1r, ecp["b1"], ecp["w2"], ecp["b2"], ecp["w3"], ecp["b3"],
        )
    ]
    arrays = [a for a, _ in operands]
    in_specs = [s for _, s in operands]

    g_out, t_out = pl.pallas_call(
        functools.partial(_pointnet_fused_kernel, eps=eps),
        out_shape=(jax.ShapeDtypeStruct((B, 1, c_out), jnp.float32),
                   jax.ShapeDtypeStruct((B, 1, _TPAD), jnp.float32)),
        grid_spec=pltpu.PrefetchScalarGridSpec(
            num_scalar_prefetch=0,
            grid=(B,),
            in_specs=in_specs,
            out_specs=[pl.BlockSpec((1, 1, c_out), lambda b: (b, 0, 0)),
                       pl.BlockSpec((1, 1, _TPAD), lambda b: (b, 0, 0))],
        ),
        compiler_params=pltpu.CompilerParams(dimension_semantics=("parallel",)),
    )(*arrays)

    g = g_out[:, 0, :]                                               # [B, 1024]
    trans = t_out[:, 0, :9].reshape(B, 3, 3).transpose(0, 2, 1)      # undo the trans^T ordering
    return g, trans, None                                            # trans_feat is None


# -----------------------------------------------------------------------------------------------
# Parameters (synthetic, PyTorch-style init): bf16 weights, f32 biases.
# -----------------------------------------------------------------------------------------------
def init_params(key, channel=3, weight_dtype=jnp.bfloat16):
    def linear(k, fan_in, fan_out):
        kw, kb = jax.random.split(k)
        s = 1.0 / jnp.sqrt(jnp.float32(fan_in))
        w = (jax.random.uniform(kw, (fan_in, fan_out), jnp.float32, -1.0, 1.0) * s).astype(weight_dtype)
        b = jax.random.uniform(kb, (1, fan_out), jnp.float32, -1.0, 1.0) * s
        return w, b

    ks = jax.random.split(key, 9)

    def conv_block(k3):
        w1, b1 = linear(k3[0], channel, 64)
        w2, b2 = linear(k3[1], 64, 128)
        w3, b3 = linear(k3[2], 128, 1024)
        return {"w1": w1, "b1": b1, "w2": w2, "b2": b2, "w3": w3, "b3": b3}

    fw1, fb1 = linear(ks[3], 1024, 512)
    fw2, fb2 = linear(ks[4], 512, 256)
    fw3, fb3 = linear(ks[5], 256, 9)
    return {
        "stn": {"conv": conv_block(ks[0:3]),
                "fc": {"w1": fw1, "b1": fb1, "w2": fw2, "b2": fb2, "w3": fw3, "b3": fb3}},
        "enc": {"conv": conv_block(ks[6:9])},
    }


# -----------------------------------------------------------------------------------------------
# Pure-JAX reference mirroring the PyTorch forward (bf16-in / f32-acc dots like the kernel).
# -----------------------------------------------------------------------------------------------
def reference_forward(x, params, *, eps=_EPS):
    bf = jnp.bfloat16

    def dot(a, w):
        return jnp.dot(a.astype(bf), w.astype(bf), preferred_element_type=jnp.float32)

    def inorm(h, axis, relu):
        mean = jnp.mean(h, axis=axis, keepdims=True)
        var = jnp.mean(jnp.square(h - mean), axis=axis, keepdims=True)
        h = (h - mean) * jax.lax.rsqrt(var + eps)
        return jnp.maximum(h, 0.0) if relu else h

    def conv_tail(h1, cp, final_relu):
        h = inorm(h1, axis=1, relu=True)
        h = inorm(dot(h, cp["w2"]) + cp["b2"][None], axis=1, relu=True)
        h = inorm(dot(h, cp["w3"]) + cp["b3"][None], axis=1, relu=final_relu)
        return jnp.max(h, axis=1)                                    # max over points -> [B, 1024]

    scp, sfp, ecp = params["stn"]["conv"], params["stn"]["fc"], params["enc"]["conv"]
    x_bnc = jnp.transpose(x, (0, 2, 1))                              # [B, N, C]

    # STN3d
    g_stn = conv_tail(dot(x_bnc, scp["w1"]) + scp["b1"][None], scp, final_relu=True)
    h = inorm(dot(g_stn, sfp["w1"]) + sfp["b1"], axis=-1, relu=True)   # 2-D InstanceNorm quirk
    h = inorm(dot(h, sfp["w2"]) + sfp["b2"], axis=-1, relu=True)
    t9 = dot(h, sfp["w3"]) + sfp["b3"] + jnp.eye(3, dtype=jnp.float32).reshape(1, 9)
    trans = t9.reshape(-1, 3, 3)                                     # [B, 3, 3]

    # Encoder: bmm(x, trans) folded into conv1 -- mathematically identical to x@trans then conv1,
    # with the same per-product bf16 rounding the kernel uses.
    xq = x_bnc.astype(bf).astype(jnp.float32)
    prod = (xq[:, :, :, None] * trans[:, None, :, :]).astype(bf)     # [B, N, 3, 3]
    h1 = jnp.einsum("bncd,dk->bnk", prod, ecp["w1"].astype(bf),
                    preferred_element_type=jnp.float32) + ecp["b1"][None]
    g = conv_tail(h1, ecp, final_relu=False)
    return g, trans, None


if __name__ == "__main__":
    # Small but MXU-friendly shapes: batch=2 (2 grid steps -> both v7x TensorCores), 3 channels,
    # 256 points (matmul M = 256 per grid step).
    B, C, N = 2, 3, 256
    key = jax.random.PRNGKey(0)
    kx, kp = jax.random.split(key)
    x = jax.random.normal(kx, (B, C, N), jnp.float32)
    params = init_params(kp, channel=C)

    fwd = jax.jit(pointnet_encoder_forward)
    g, trans, trans_feat = fwd(x, params)
    g = jax.block_until_ready(g)
    trans = jax.block_until_ready(trans)

    g_ref, trans_ref, _ = reference_forward(x, params)

    assert g.shape == (B, 1024) and trans.shape == (B, 3, 3) and trans_feat is None
    assert jnp.allclose(trans, trans_ref, atol=2e-2, rtol=2e-2), "trans mismatch vs reference"
    assert jnp.allclose(g, g_ref, atol=2e-2, rtol=2e-2), "global feature mismatch vs reference"
    print("KERNEL_OK")
</pallas_src>

<mosaic_0001>
module attributes {stable_mosaic.version = 11 : i64} {
  func.func @_pointnet_fused_kernel(%arg0: i32, %arg1: memref<1x256x3xf32, #tpu.memory_space<vmem>>, %arg2: memref<3x64xbf16, #tpu.memory_space<vmem>>, %arg3: memref<1x64xf32, #tpu.memory_space<vmem>>, %arg4: memref<64x128xbf16, #tpu.memory_space<vmem>>, %arg5: memref<1x128xf32, #tpu.memory_space<vmem>>, %arg6: memref<128x1024xbf16, #tpu.memory_space<vmem>>, %arg7: memref<1x1024xf32, #tpu.memory_space<vmem>>, %arg8: memref<1024x512xbf16, #tpu.memory_space<vmem>>, %arg9: memref<1x512xf32, #tpu.memory_space<vmem>>, %arg10: memref<512x256xbf16, #tpu.memory_space<vmem>>, %arg11: memref<1x256xf32, #tpu.memory_space<vmem>>, %arg12: memref<256x128xbf16, #tpu.memory_space<vmem>>, %arg13: memref<1x128xf32, #tpu.memory_space<vmem>>, %arg14: memref<3x128xbf16, #tpu.memory_space<vmem>>, %arg15: memref<128x64xbf16, #tpu.memory_space<vmem>>, %arg16: memref<1x64xf32, #tpu.memory_space<vmem>>, %arg17: memref<64x128xbf16, #tpu.memory_space<vmem>>, %arg18: memref<1x128xf32, #tpu.memory_space<vmem>>, %arg19: memref<128x1024xbf16, #tpu.memory_space<vmem>>, %arg20: memref<1x1024xf32, #tpu.memory_space<vmem>>, %arg21: memref<1x1x1024xf32, #tpu.memory_space<vmem>>, %arg22: memref<1x1x128xf32, #tpu.memory_space<vmem>>) attributes {dimension_semantics = [#tpu.dimension_semantics<parallel>], iteration_bounds = array<i64: 2>, scalar_prefetch = 0 : i64, scratch_operands = 0 : i64, tpu.core_type = #tpu.core_type<tc>, window_params = [{transform_indices = @transform_0, window_bounds = array<i64: 1, 256, 3>}, {pipeline_mode = #tpu.pipeline_mode<synchronous>, transform_indices = @transform_1, window_bounds = array<i64: 3, 64>}, {pipeline_mode = #tpu.pipeline_mode<synchronous>, transform_indices = @transform_2, window_bounds = array<i64: 1, 64>}, {pipeline_mode = #tpu.pipeline_mode<synchronous>, transform_indices = @transform_3, window_bounds = array<i64: 64, 128>}, {pipeline_mode = #tpu.pipeline_mode<synchronous>, transform_indices = @transform_4, window_bounds = array<i64: 1, 128>}, {pipeline_mode = #tpu.pipeline_mode<synchronous>, transform_indices = @transform_5, window_bounds = array<i64: 128, 1024>}, {pipeline_mode = #tpu.pipeline_mode<synchronous>, transform_indices = @transform_6, window_bounds = array<i64: 1, 1024>}, {pipeline_mode = #tpu.pipeline_mode<synchronous>, transform_indices = @transform_7, window_bounds = array<i64: 1024, 512>}, {pipeline_mode = #tpu.pipeline_mode<synchronous>, transform_indices = @transform_8, window_bounds = array<i64: 1, 512>}, {pipeline_mode = #tpu.pipeline_mode<synchronous>, transform_indices = @transform_9, window_bounds = array<i64: 512, 256>}, {pipeline_mode = #tpu.pipeline_mode<synchronous>, transform_indices = @transform_10, window_bounds = array<i64: 1, 256>}, {pipeline_mode = #tpu.pipeline_mode<synchronous>, transform_indices = @transform_11, window_bounds = array<i64: 256, 128>}, {pipeline_mode = #tpu.pipeline_mode<synchronous>, transform_indices = @transform_12, window_bounds = array<i64: 1, 128>}, {pipeline_mode = #tpu.pipeline_mode<synchronous>, transform_indices = @transform_13, window_bounds = array<i64: 3, 128>}, {pipeline_mode = #tpu.pipeline_mode<synchronous>, transform_indices = @transform_14, window_bounds = array<i64: 128, 64>}, {pipeline_mode = #tpu.pipeline_mode<synchronous>, transform_indices = @transform_15, window_bounds = array<i64: 1, 64>}, {pipeline_mode = #tpu.pipeline_mode<synchronous>, transform_indices = @transform_16, window_bounds = array<i64: 64, 128>}, {pipeline_mode = #tpu.pipeline_mode<synchronous>, transform_indices = @transform_17, window_bounds = array<i64: 1, 128>}, {pipeline_mode = #tpu.pipeline_mode<synchronous>, transform_indices = @transform_18, window_bounds = array<i64: 128, 1024>}, {pipeline_mode = #tpu.pipeline_mode<synchronous>, transform_indices = @transform_19, window_bounds = array<i64: 1, 1024>}, {transform_indices = @transform_20, window_bounds = array<i64: 1, 1, 1024>}, {transform_indices = @transform_21, window_bounds = array<i64: 1, 1, 128>}]} {
    %c0 = arith.constant 0 : index
    %c0_0 = arith.constant 0 : index
    %c0_1 = arith.constant 0 : index
    %0 = vector.load %arg1[%c0, %c0_0, %c0_1] : memref<1x256x3xf32, #tpu.memory_space<vmem>>, vector<1x256x3xf32>
    %1 = vector.shape_cast %0 : vector<1x256x3xf32> to vector<256x3xf32>
    %2 = arith.truncf %1 : vector<256x3xf32> to vector<256x3xbf16>
    %c0_2 = arith.constant 0 : index
    %c0_3 = arith.constant 0 : index
    %3 = vector.load %arg2[%c0_2, %c0_3] : memref<3x64xbf16, #tpu.memory_space<vmem>>, vector<3x64xbf16>
    %cst = arith.constant dense<0.000000e+00> : vector<256x64xf32>
    %4 = tpu.matmul %2, %3, %cst {dimension_numbers = #tpu.dot_dimension_numbers<[1], [0], [0], [1], [0, 0, 1, 1], [], []>} : vector<256x3xbf16>, vector<3x64xbf16>, vector<256x64xf32> -> vector<256x64xf32>
    %c0_4 = arith.constant 0 : index
    %c0_5 = arith.constant 0 : index
    %5 = vector.load %arg3[%c0_4, %c0_5] : memref<1x64xf32, #tpu.memory_space<vmem>>, vector<1x64xf32>
    %6 = vector.broadcast %5 : vector<1x64xf32> to vector<256x64xf32>
    %7 = arith.addf %4, %6 : vector<256x64xf32>
    %cst_6 = arith.constant dense<0.000000e+00> : vector<64xf32>
    %8 = vector.multi_reduction <add>, %7, %cst_6 [0] : vector<256x64xf32> to vector<64xf32>
    %9 = vector.shape_cast %8 : vector<64xf32> to vector<1x64xf32>
    %cst_7 = arith.constant 3.906250e-03 : f32
    %10 = vector.broadcast %cst_7 : f32 to vector<1x64xf32>
    %11 = arith.mulf %9, %10 : vector<1x64xf32>
    %12 = arith.mulf %7, %7 : vector<256x64xf32>
    %cst_8 = arith.constant dense<0.000000e+00> : vector<64xf32>
    %13 = vector.multi_reduction <add>, %12, %cst_8 [0] : vector<256x64xf32> to vector<64xf32>
    %14 = vector.shape_cast %13 : vector<64xf32> to vector<1x64xf32>
    %cst_9 = arith.constant 3.906250e-03 : f32
    %15 = vector.broadcast %cst_9 : f32 to vector<1x64xf32>
    %16 = arith.mulf %14, %15 : vector<1x64xf32>
    %17 = vector.broadcast %11 : vector<1x64xf32> to vector<256x64xf32>
    %18 = arith.subf %7, %17 : vector<256x64xf32>
    %19 = arith.mulf %11, %11 : vector<1x64xf32>
    %20 = arith.subf %16, %19 : vector<1x64xf32>
    %cst_10 = arith.constant 9.99999974E-6 : f32
    %21 = vector.broadcast %cst_10 : f32 to vector<1x64xf32>
    %22 = arith.addf %20, %21 : vector<1x64xf32>
    %23 = math.rsqrt %22 : vector<1x64xf32>
    %24 = vector.broadcast %23 : vector<1x64xf32> to vector<256x64xf32>
    %25 = arith.mulf %18, %24 : vector<256x64xf32>
    %26 = arith.truncf %25 : vector<256x64xf32> to vector<256x64xbf16>
    %cst_11 = arith.constant 0.000000e+00 : bf16
    %27 = vector.broadcast %cst_11 : bf16 to vector<256x64xbf16>
    %28 = arith.maximumf %26, %27 : vector<256x64xbf16>
    %c0_12 = arith.constant 0 : index
    %c0_13 = arith.constant 0 : index
    %29 = vector.load %arg4[%c0_12, %c0_13] : memref<64x128xbf16, #tpu.memory_space<vmem>>, vector<64x128xbf16>
    %cst_14 = arith.constant dense<0.000000e+00> : vector<256x128xf32>
    %30 = tpu.matmul %28, %29, %cst_14 {dimension_numbers = #tpu.dot_dimension_numbers<[1], [0], [0], [1], [0, 0, 1, 1], [], []>} : vector<256x64xbf16>, vector<64x128xbf16>, vector<256x128xf32> -> vector<256x128xf32>
    %c0_15 = arith.constant 0 : index
    %c0_16 = arith.constant 0 : index
    %31 = vector.load %arg5[%c0_15, %c0_16] : memref<1x128xf32, #tpu.memory_space<vmem>>, vector<1x128xf32>
    %32 = vector.broadcast %31 : vector<1x128xf32> to vector<256x128xf32>
    %33 = arith.addf %30, %32 : vector<256x128xf32>
    %cst_17 = arith.constant dense<0.000000e+00> : vector<128xf32>
    %34 = vector.multi_reduction <add>, %33, %cst_17 [0] : vector<256x128xf32> to vector<128xf32>
    %35 = vector.shape_cast %34 : vector<128xf32> to vector<1x128xf32>
    %cst_18 = arith.constant 3.906250e-03 : f32
    %36 = vector.broadcast %cst_18 : f32 to vector<1x128xf32>
    %37 = arith.mulf %35, %36 : vector<1x128xf32>
    %38 = arith.mulf %33, %33 : vector<256x128xf32>
    %cst_19 = arith.constant dense<0.000000e+00> : vector<128xf32>
    %39 = vector.multi_reduction <add>, %38, %cst_19 [0] : vector<256x128xf32> to vector<128xf32>
    %40 = vector.shape_cast %39 : vector<128xf32> to vector<1x128xf32>
    %cst_20 = arith.constant 3.906250e-03 : f32
    %41 = vector.broadcast %cst_20 : f32 to vector<1x128xf32>
    %42 = arith.mulf %40, %41 : vector<1x128xf32>
    %43 = vector.broadcast %37 : vector<1x128xf32> to vector<256x128xf32>
    %44 = arith.subf %33, %43 : vector<256x128xf32>
    %45 = arith.mulf %37, %37 : vector<1x128xf32>
    %46 = arith.subf %42, %45 : vector<1x128xf32>
    %cst_21 = arith.constant 9.99999974E-6 : f32
    %47 = vector.broadcast %cst_21 : f32 to vector<1x128xf32>
    %48 = arith.addf %46, %47 : vector<1x128xf32>
    %49 = math.rsqrt %48 : vector<1x128xf32>
    %50 = vector.broadcast %49 : vector<1x128xf32> to vector<256x128xf32>
    %51 = arith.mulf %44, %50 : vector<256x128xf32>
    %52 = arith.truncf %51 : vector<256x128xf32> to vector<256x128xbf16>
    %cst_22 = arith.constant 0.000000e+00 : bf16
    %53 = vector.broadcast %cst_22 : bf16 to vector<256x128xbf16>
    %54 = arith.maximumf %52, %53 : vector<256x128xbf16>
    %c0_23 = arith.constant 0 : index
    %c0_24 = arith.constant 0 : index
    %55 = vector.load %arg6[%c0_23, %c0_24] : memref<128x1024xbf16, #tpu.memory_space<vmem>>, vector<128x1024xbf16>
    %cst_25 = arith.constant dense<0.000000e+00> : vector<256x1024xf32>
    %56 = tpu.matmul %54, %55, %cst_25 {dimension_numbers = #tpu.dot_dimension_numbers<[1], [0], [0], [1], [0, 0, 1, 1], [], []>} : vector<256x128xbf16>, vector<128x1024xbf16>, vector<256x1024xf32> -> vector<256x1024xf32>
    %c0_26 = arith.constant 0 : index
    %c0_27 = arith.constant 0 : index
    %57 = vector.load %arg7[%c0_26, %c0_27] : memref<1x1024xf32, #tpu.memory_space<vmem>>, vector<1x1024xf32>
    %58 = vector.broadcast %57 : vector<1x1024xf32> to vector<256x1024xf32>
    %59 = arith.addf %56, %58 : vector<256x1024xf32>
    %cst_28 = arith.constant dense<0xFF800000> : vector<1024xf32>
    %60 = vector.multi_reduction <maximumf>, %59, %cst_28 [0] : vector<256x1024xf32> to vector<1024xf32>
    %61 = vector.shape_cast %60 : vector<1024xf32> to vector<1x1024xf32>
    %cst_29 = arith.constant dense<0.000000e+00> : vector<1024xf32>
    %62 = vector.multi_reduction <add>, %59, %cst_29 [0] : vector<256x1024xf32> to vector<1024xf32>
    %63 = vector.shape_cast %62 : vector<1024xf32> to vector<1x1024xf32>
    %cst_30 = arith.constant 3.906250e-03 : f32
    %64 = vector.broadcast %cst_30 : f32 to vector<1x1024xf32>
    %65 = arith.mulf %63, %64 : vector<1x1024xf32>
    %66 = arith.mulf %59, %59 : vector<256x1024xf32>
    %cst_31 = arith.constant dense<0.000000e+00> : vector<1024xf32>
    %67 = vector.multi_reduction <add>, %66, %cst_31 [0] : vector<256x1024xf32> to vector<1024xf32>
    %68 = vector.shape_cast %67 : vector<1024xf32> to vector<1x1024xf32>
    %cst_32 = arith.constant 3.906250e-03 : f32
    %69 = vector.broadcast %cst_32 : f32 to vector<1x1024xf32>
    %70 = arith.mulf %68, %69 : vector<1x1024xf32>
    %71 = arith.subf %61, %65 : vector<1x1024xf32>
    %72 = arith.mulf %65, %65 : vector<1x1024xf32>
    %73 = arith.subf %70, %72 : vector<1x1024xf32>
    %cst_33 = arith.constant 9.99999974E-6 : f32
    %74 = vector.broadcast %cst_33 : f32 to vector<1x1024xf32>
    %75 = arith.addf %73, %74 : vector<1x1024xf32>
    %76 = math.rsqrt %75 : vector<1x1024xf32>
    %77 = arith.mulf %71, %76 : vector<1x1024xf32>
    %cst_34 = arith.constant 0.000000e+00 : f32
    %78 = vector.broadcast %cst_34 : f32 to vector<1x1024xf32>
    %79 = arith.maximumf %77, %78 : vector<1x1024xf32>
    %80 = arith.truncf %79 : vector<1x1024xf32> to vector<1x1024xbf16>
    %c0_35 = arith.constant 0 : index
    %c0_36 = arith.constant 0 : index
    %81 = vector.load %arg8[%c0_35, %c0_36] : memref<1024x512xbf16, #tpu.memory_space<vmem>>, vector<1024x512xbf16>
    %cst_37 = arith.constant dense<0.000000e+00> : vector<1x512xf32>
    %82 = tpu.matmul %80, %81, %cst_37 {dimension_numbers = #tpu.dot_dimension_numbers<[1], [0], [0], [1], [0, 0, 1, 1], [], []>} : vector<1x1024xbf16>, vector<1024x512xbf16>, vector<1x512xf32> -> vector<1x512xf32>
    %c0_38 = arith.constant 0 : index
    %c0_39 = arith.constant 0 : index
    %83 = vector.load %arg9[%c0_38, %c0_39] : memref<1x512xf32, #tpu.memory_space<vmem>>, vector<1x512xf32>
    %84 = arith.addf %82, %83 : vector<1x512xf32>
    %cst_40 = arith.constant dense<0.000000e+00> : vector<1xf32>
    %85 = vector.multi_reduction <add>, %84, %cst_40 [1] : vector<1x512xf32> to vector<1xf32>
    %86 = vector.shape_cast %85 : vector<1xf32> to vector<1x1xf32>
    %cst_41 = arith.constant 5.120000e+02 : f32
    %87 = vector.broadcast %cst_41 : f32 to vector<1x1xf32>
    %88 = arith.divf %86, %87 : vector<1x1xf32>
    %89 = arith.mulf %84, %84 : vector<1x512xf32>
    %cst_42 = arith.constant dense<0.000000e+00> : vector<1xf32>
    %90 = vector.multi_reduction <add>, %89, %cst_42 [1] : vector<1x512xf32> to vector<1xf32>
    %91 = vector.shape_cast %90 : vector<1xf32> to vector<1x1xf32>
    %cst_43 = arith.constant 5.120000e+02 : f32
    %92 = vector.broadcast %cst_43 : f32 to vector<1x1xf32>
    %93 = arith.divf %91, %92 : vector<1x1xf32>
    %94 = vector.broadcast %88 : vector<1x1xf32> to vector<1x512xf32>
    %95 = arith.subf %84, %94 : vector<1x512xf32>
    %96 = arith.mulf %88, %88 : vector<1x1xf32>
    %97 = arith.subf %93, %96 : vector<1x1xf32>
    %cst_44 = arith.constant 9.99999974E-6 : f32
    %98 = vector.broadcast %cst_44 : f32 to vector<1x1xf32>
    %99 = arith.addf %97, %98 : vector<1x1xf32>
    %100 = math.rsqrt %99 : vector<1x1xf32>
    %101 = vector.broadcast %100 : vector<1x1xf32> to vector<1x512xf32>
    %102 = arith.mulf %95, %101 : vector<1x512xf32>
    %103 = arith.truncf %102 : vector<1x512xf32> to vector<1x512xbf16>
    %cst_45 = arith.constant 0.000000e+00 : bf16
    %104 = vector.broadcast %cst_45 : bf16 to vector<1x512xbf16>
    %105 = arith.maximumf %103, %104 : vector<1x512xbf16>
    %c0_46 = arith.constant 0 : index
    %c0_47 = arith.constant 0 : index
    %106 = vector.load %arg10[%c0_46, %c0_47] : memref<512x256xbf16, #tpu.memory_space<vmem>>, vector<512x256xbf16>
    %cst_48 = arith.constant dense<0.000000e+00> : vector<1x256xf32>
    %107 = tpu.matmul %105, %106, %cst_48 {dimension_numbers = #tpu.dot_dimension_numbers<[1], [0], [0], [1], [0, 0, 1, 1], [], []>} : vector<1x512xbf16>, vector<512x256xbf16>, vector<1x256xf32> -> vector<1x256xf32>
    %c0_49 = arith.constant 0 : index
    %c0_50 = arith.constant 0 : index
    %108 = vector.load %arg11[%c0_49, %c0_50] : memref<1x256xf32, #tpu.memory_space<vmem>>, vector<1x256xf32>
    %109 = arith.addf %107, %108 : vector<1x256xf32>
    %cst_51 = arith.constant dense<0.000000e+00> : vector<1xf32>
    %110 = vector.multi_reduction <add>, %109, %cst_51 [1] : vector<1x256xf32> to vector<1xf32>
    %111 = vector.shape_cast %110 : vector<1xf32> to vector<1x1xf32>
    %cst_52 = arith.constant 2.560000e+02 : f32
    %112 = vector.broadcast %cst_52 : f32 to vector<1x1xf32>
    %113 = arith.divf %111, %112 : vector<1x1xf32>
    %114 = arith.mulf %109, %109 : vector<1x256xf32>
    %cst_53 = arith.constant dense<0.000000e+00> : vector<1xf32>
    %115 = vector.multi_reduction <add>, %114, %cst_53 [1] : vector<1x256xf32> to vector<1xf32>
    %116 = vector.shape_cast %115 : vector<1xf32> to vector<1x1xf32>
    %cst_54 = arith.constant 2.560000e+02 : f32
    %117 = vector.broadcast %cst_54 : f32 to vector<1x1xf32>
    %118 = arith.divf %116, %117 : vector<1x1xf32>
    %119 = vector.broadcast %113 : vector<1x1xf32> to vector<1x256xf32>
    %120 = arith.subf %109, %119 : vector<1x256xf32>
    %121 = arith.mulf %113, %113 : vector<1x1xf32>
    %122 = arith.subf %118, %121 : vector<1x1xf32>
    %cst_55 = arith.constant 9.99999974E-6 : f32
    %123 = vector.broadcast %cst_55 : f32 to vector<1x1xf32>
    %124 = arith.addf %122, %123 : vector<1x1xf32>
    %125 = math.rsqrt %124 : vector<1x1xf32>
    %126 = vector.broadcast %125 : vector<1x1xf32> to vector<1x256xf32>
    %127 = arith.mulf %120, %126 : vector<1x256xf32>
    %128 = arith.truncf %127 : vector<1x256xf32> to vector<1x256xbf16>
    %cst_56 = arith.constant 0.000000e+00 : bf16
    %129 = vector.broadcast %cst_56 : bf16 to vector<1x256xbf16>
    %130 = arith.maximumf %128, %129 : vector<1x256xbf16>
    %c0_57 = arith.constant 0 : index
    %c0_58 = arith.constant 0 : index
    %131 = vector.load %arg12[%c0_57, %c0_58] : memref<256x128xbf16, #tpu.memory_space<vmem>>, vector<256x128xbf16>
    %cst_59 = arith.constant dense<0.000000e+00> : vector<1x128xf32>
    %132 = tpu.matmul %130, %131, %cst_59 {dimension_numbers = #tpu.dot_dimension_numbers<[1], [0], [0], [1], [0, 0, 1, 1], [], []>} : vector<1x256xbf16>, vector<256x128xbf16>, vector<1x128xf32> -> vector<1x128xf32>
    %c0_60 = arith.constant 0 : index
    %c0_61 = arith.constant 0 : index
    %133 = vector.load %arg13[%c0_60, %c0_61] : memref<1x128xf32, #tpu.memory_space<vmem>>, vector<1x128xf32>
    %134 = arith.addf %132, %133 : vector<1x128xf32>
    %c0_62 = arith.constant 0 : index
    %c0_63 = arith.constant 0 : index
    %c0_64 = arith.constant 0 : index
    %135 = vector.load %arg22[%c0_62, %c0_63, %c0_64] : memref<1x1x128xf32, #tpu.memory_space<vmem>>, vector<1x1x128xf32>
    %136 = vector.shape_cast %135 : vector<1x1x128xf32> to vector<1x128xf32>
    %137 = vector.shape_cast %134 : vector<1x128xf32> to vector<1x1x128xf32>
    tpu.vector_store %arg22[%c0_62, %c0_63, %c0_64], %137 {strides = array<i32>} : memref<1x1x128xf32, #tpu.memory_space<vmem>>, vector<1x1x128xf32>,
    %c0_65 = arith.constant 0 : index
    %c0_66 = arith.constant 0 : index
    %138 = vector.load %arg14[%c0_65, %c0_66] : memref<3x128xbf16, #tpu.memory_space<vmem>>, vector<3x128xbf16>
    %cst_67 = arith.constant dense<0.000000e+00> : vector<256x128xf32>
    %139 = tpu.matmul %2, %138, %cst_67 {dimension_numbers = #tpu.dot_dimension_numbers<[1], [0], [0], [1], [0, 0, 1, 1], [], []>} : vector<256x3xbf16>, vector<3x128xbf16>, vector<256x128xf32> -> vector<256x128xf32>
    %140 = vector.broadcast %134 : vector<1x128xf32> to vector<256x128xf32>
    %141 = arith.mulf %139, %140 : vector<256x128xf32>
    %142 = arith.truncf %141 : vector<256x128xf32> to vector<256x128xbf16>
    %c0_68 = arith.constant 0 : index
    %c0_69 = arith.constant 0 : index
    %143 = vector.load %arg15[%c0_68, %c0_69] : memref<128x64xbf16, #tpu.memory_space<vmem>>, vector<128x64xbf16>
    %cst_70 = arith.constant dense<0.000000e+00> : vector<256x64xf32>
    %144 = tpu.matmul %142, %143, %cst_70 {dimension_numbers = #tpu.dot_dimension_numbers<[1], [0], [0], [1], [0, 0, 1, 1], [], []>} : vector<256x128xbf16>, vector<128x64xbf16>, vector<256x64xf32> -> vector<256x64xf32>
    %c0_71 = arith.constant 0 : index
    %c0_72 = arith.constant 0 : index
    %145 = vector.load %arg16[%c0_71, %c0_72] : memref<1x64xf32, #tpu.memory_space<vmem>>, vector<1x64xf32>
    %146 = vector.broadcast %145 : vector<1x64xf32> to vector<256x64xf32>
    %147 = arith.addf %144, %146 : vector<256x64xf32>
    %cst_73 = arith.constant dense<0.000000e+00> : vector<64xf32>
    %148 = vector.multi_reduction <add>, %147, %cst_73 [0] : vector<256x64xf32> to vector<64xf32>
    %149 = vector.shape_cast %148 : vector<64xf32> to vector<1x64xf32>
    %cst_74 = arith.constant 3.906250e-03 : f32
    %150 = vector.broadcast %cst_74 : f32 to vector<1x64xf32>
    %151 = arith.mulf %149, %150 : vector<1x64xf32>
    %152 = arith.mulf %147, %147 : vector<256x64xf32>
    %cst_75 = arith.constant dense<0.000000e+00> : vector<64xf32>
    %153 = vector.multi_reduction <add>, %152, %cst_75 [0] : vector<256x64xf32> to vector<64xf32>
    %154 = vector.shape_cast %153 : vector<64xf32> to vector<1x64xf32>
    %cst_76 = arith.constant 3.906250e-03 : f32
    %155 = vector.broadcast %cst_76 : f32 to vector<1x64xf32>
    %156 = arith.mulf %154, %155 : vector<1x64xf32>
    %157 = vector.broadcast %151 : vector<1x64xf32> to vector<256x64xf32>
    %158 = arith.subf %147, %157 : vector<256x64xf32>
    %159 = arith.mulf %151, %151 : vector<1x64xf32>
    %160 = arith.subf %156, %159 : vector<1x64xf32>
    %cst_77 = arith.constant 9.99999974E-6 : f32
    %161 = vector.broadcast %cst_77 : f32 to vector<1x64xf32>
    %162 = arith.addf %160, %161 : vector<1x64xf32>
    %163 = math.rsqrt %162 : vector<1x64xf32>
    %164 = vector.broadcast %163 : vector<1x64xf32> to vector<256x64xf32>
    %165 = arith.mulf %158, %164 : vector<256x64xf32>
    %166 = arith.truncf %165 : vector<256x64xf32> to vector<256x64xbf16>
    %cst_78 = arith.constant 0.000000e+00 : bf16
    %167 = vector.broadcast %cst_78 : bf16 to vector<256x64xbf16>
    %168 = arith.maximumf %166, %167 : vector<256x64xbf16>
    %c0_79 = arith.constant 0 : index
    %c0_80 = arith.constant 0 : index
    %169 = vector.load %arg17[%c0_79, %c0_80] : memref<64x128xbf16, #tpu.memory_space<vmem>>, vector<64x128xbf16>
    %cst_81 = arith.constant dense<0.000000e+00> : vector<256x128xf32>
    %170 = tpu.matmul %168, %169, %cst_81 {dimension_numbers = #tpu.dot_dimension_numbers<[1], [0], [0], [1], [0, 0, 1, 1], [], []>} : vector<256x64xbf16>, vector<64x128xbf16>, vector<256x128xf32> -> vector<256x128xf32>
    %c0_82 = arith.constant 0 : index
    %c0_83 = arith.constant 0 : index
    %171 = vector.load %arg18[%c0_82, %c0_83] : memref<1x128xf32, #tpu.memory_space<vmem>>, vector<1x128xf32>
    %172 = vector.broadcast %171 : vector<1x128xf32> to vector<256x128xf32>
    %173 = arith.addf %170, %172 : vector<256x128xf32>
    %cst_84 = arith.constant dense<0.000000e+00> : vector<128xf32>
    %174 = vector.multi_reduction <add>, %173, %cst_84 [0] : vector<256x128xf32> to vector<128xf32>
    %175 = vector.shape_cast %174 : vector<128xf32> to vector<1x128xf32>
    %cst_85 = arith.constant 3.906250e-03 : f32
    %176 = vector.broadcast %cst_85 : f32 to vector<1x128xf32>
    %177 = arith.mulf %175, %176 : vector<1x128xf32>
    %178 = arith.mulf %173, %173 : vector<256x128xf32>
    %cst_86 = arith.constant dense<0.000000e+00> : vector<128xf32>
    %179 = vector.multi_reduction <add>, %178, %cst_86 [0] : vector<256x128xf32> to vector<128xf32>
    %180 = vector.shape_cast %179 : vector<128xf32> to vector<1x128xf32>
    %cst_87 = arith.constant 3.906250e-03 : f32
    %181 = vector.broadcast %cst_87 : f32 to vector<1x128xf32>
    %182 = arith.mulf %180, %181 : vector<1x128xf32>
    %183 = vector.broadcast %177 : vector<1x128xf32> to vector<256x128xf32>
    %184 = arith.subf %173, %183 : vector<256x128xf32>
    %185 = arith.mulf %177, %177 : vector<1x128xf32>
    %186 = arith.subf %182, %185 : vector<1x128xf32>
    %cst_88 = arith.constant 9.99999974E-6 : f32
    %187 = vector.broadcast %cst_88 : f32 to vector<1x128xf32>
    %188 = arith.addf %186, %187 : vector<1x128xf32>
    %189 = math.rsqrt %188 : vector<1x128xf32>
    %190 = vector.broadcast %189 : vector<1x128xf32> to vector<256x128xf32>
    %191 = arith.mulf %184, %190 : vector<256x128xf32>
    %192 = arith.truncf %191 : vector<256x128xf32> to vector<256x128xbf16>
    %cst_89 = arith.constant 0.000000e+00 : bf16
    %193 = vector.broadcast %cst_89 : bf16 to vector<256x128xbf16>
    %194 = arith.maximumf %192, %193 : vector<256x128xbf16>
    %c0_90 = arith.constant 0 : index
    %c0_91 = arith.constant 0 : index
    %195 = vector.load %arg19[%c0_90, %c0_91] : memref<128x1024xbf16, #tpu.memory_space<vmem>>, vector<128x1024xbf16>
    %cst_92 = arith.constant dense<0.000000e+00> : vector<256x1024xf32>
    %196 = tpu.matmul %194, %195, %cst_92 {dimension_numbers = #tpu.dot_dimension_numbers<[1], [0], [0], [1], [0, 0, 1, 1], [], []>} : vector<256x128xbf16>, vector<128x1024xbf16>, vector<256x1024xf32> -> vector<256x1024xf32>
    %c0_93 = arith.constant 0 : index
    %c0_94 = arith.constant 0 : index
    %197 = vector.load %arg20[%c0_93, %c0_94] : memref<1x1024xf32, #tpu.memory_space<vmem>>, vector<1x1024xf32>
    %198 = vector.broadcast %197 : vector<1x1024xf32> to vector<256x1024xf32>
    %199 = arith.addf %196, %198 : vector<256x1024xf32>
    %cst_95 = arith.constant dense<0xFF800000> : vector<1024xf32>
    %200 = vector.multi_reduction <maximumf>, %199, %cst_95 [0] : vector<256x1024xf32> to vector<1024xf32>
    %201 = vector.shape_cast %200 : vector<1024xf32> to vector<1x1024xf32>
    %cst_96 = arith.constant dense<0.000000e+00> : vector<1024xf32>
    %202 = vector.multi_reduction <add>, %199, %cst_96 [0] : vector<256x1024xf32> to vector<1024xf32>
    %203 = vector.shape_cast %202 : vector<1024xf32> to vector<1x1024xf32>
    %cst_97 = arith.constant 3.906250e-03 : f32
    %204 = vector.broadcast %cst_97 : f32 to vector<1x1024xf32>
    %205 = arith.mulf %203, %204 : vector<1x1024xf32>
    %206 = arith.mulf %199, %199 : vector<256x1024xf32>
    %cst_98 = arith.constant dense<0.000000e+00> : vector<1024xf32>
    %207 = vector.multi_reduction <add>, %206, %cst_98 [0] : vector<256x1024xf32> to vector<1024xf32>
    %208 = vector.shape_cast %207 : vector<1024xf32> to vector<1x1024xf32>
    %cst_99 = arith.constant 3.906250e-03 : f32
    %209 = vector.broadcast %cst_99 : f32 to vector<1x1024xf32>
    %210 = arith.mulf %208, %209 : vector<1x1024xf32>
    %211 = arith.subf %201, %205 : vector<1x1024xf32>
    %212 = arith.mulf %205, %205 : vector<1x1024xf32>
    %213 = arith.subf %210, %212 : vector<1x1024xf32>
    %cst_100 = arith.constant 9.99999974E-6 : f32
    %214 = vector.broadcast %cst_100 : f32 to vector<1x1024xf32>
    %215 = arith.addf %213, %214 : vector<1x1024xf32>
    %216 = math.rsqrt %215 : vector<1x1024xf32>
    %217 = arith.mulf %211, %216 : vector<1x1024xf32>
    %c0_101 = arith.constant 0 : index
    %c0_102 = arith.constant 0 : index
    %c0_103 = arith.constant 0 : index
    %218 = vector.load %arg21[%c0_101, %c0_102, %c0_103] : memref<1x1x1024xf32, #tpu.memory_space<vmem>>, vector<1x1x1024xf32>
    %219 = vector.shape_cast %218 : vector<1x1x1024xf32> to vector<1x1024xf32>
    %220 = vector.shape_cast %217 : vector<1x1024xf32> to vector<1x1x1024xf32>
    tpu.vector_store %arg21[%c0_101, %c0_102, %c0_103], %220 {strides = array<i32>} : memref<1x1x1024xf32, #tpu.memory_space<vmem>>, vector<1x1x1024xf32>,
    return
  }
  func.func @transform_0(%arg0: i32) -> (i32, i32, i32) {
    %c0_i32 = arith.constant 0 : i32
    %c0_i32_0 = arith.constant 0 : i32
    %c0_i32_1 = arith.constant 0 : i32
    return %arg0, %c0_i32, %c0_i32_0 : i32, i32, i32
  }
  func.func @transform_1(%arg0: i32) -> (i32, i32) {
    %c0_i32 = arith.constant 0 : i32
    %c0_i32_0 = arith.constant 0 : i32
    %c0_i32_1 = arith.constant 0 : i32
    return %c0_i32, %c0_i32_0 : i32, i32
  }
  func.func @transform_2(%arg0: i32) -> (i32, i32) {
    %c0_i32 = arith.constant 0 : i32
    %c0_i32_0 = arith.constant 0 : i32
    %c0_i32_1 = arith.constant 0 : i32
    return %c0_i32, %c0_i32_0 : i32, i32
  }
  func.func @transform_3(%arg0: i32) -> (i32, i32) {
    %c0_i32 = arith.constant 0 : i32
    %c0_i32_0 = arith.constant 0 : i32
    %c0_i32_1 = arith.constant 0 : i32
    return %c0_i32, %c0_i32_0 : i32, i32
  }
  func.func @transform_4(%arg0: i32) -> (i32, i32) {
    %c0_i32 = arith.constant 0 : i32
    %c0_i32_0 = arith.constant 0 : i32
    %c0_i32_1 = arith.constant 0 : i32
    return %c0_i32, %c0_i32_0 : i32, i32
  }
  func.func @transform_5(%arg0: i32) -> (i32, i32) {
    %c0_i32 = arith.constant 0 : i32
    %c0_i32_0 = arith.constant 0 : i32
    %c0_i32_1 = arith.constant 0 : i32
    return %c0_i32, %c0_i32_0 : i32, i32
  }
  func.func @transform_6(%arg0: i32) -> (i32, i32) {
    %c0_i32 = arith.constant 0 : i32
    %c0_i32_0 = arith.constant 0 : i32
    %c0_i32_1 = arith.constant 0 : i32
    return %c0_i32, %c0_i32_0 : i32, i32
  }
  func.func @transform_7(%arg0: i32) -> (i32, i32) {
    %c0_i32 = arith.constant 0 : i32
    %c0_i32_0 = arith.constant 0 : i32
    %c0_i32_1 = arith.constant 0 : i32
    return %c0_i32, %c0_i32_0 : i32, i32
  }
  func.func @transform_8(%arg0: i32) -> (i32, i32) {
    %c0_i32 = arith.constant 0 : i32
    %c0_i32_0 = arith.constant 0 : i32
    %c0_i32_1 = arith.constant 0 : i32
    return %c0_i32, %c0_i32_0 : i32, i32
  }
  func.func @transform_9(%arg0: i32) -> (i32, i32) {
    %c0_i32 = arith.constant 0 : i32
    %c0_i32_0 = arith.constant 0 : i32
    %c0_i32_1 = arith.constant 0 : i32
    return %c0_i32, %c0_i32_0 : i32, i32
  }
  func.func @transform_10(%arg0: i32) -> (i32, i32) {
    %c0_i32 = arith.constant 0 : i32
    %c0_i32_0 = arith.constant 0 : i32
    %c0_i32_1 = arith.constant 0 : i32
    return %c0_i32, %c0_i32_0 : i32, i32
  }
  func.func @transform_11(%arg0: i32) -> (i32, i32) {
    %c0_i32 = arith.constant 0 : i32
    %c0_i32_0 = arith.constant 0 : i32
    %c0_i32_1 = arith.constant 0 : i32
    return %c0_i32, %c0_i32_0 : i32, i32
  }
  func.func @transform_12(%arg0: i32) -> (i32, i32) {
    %c0_i32 = arith.constant 0 : i32
    %c0_i32_0 = arith.constant 0 : i32
    %c0_i32_1 = arith.constant 0 : i32
    return %c0_i32, %c0_i32_0 : i32, i32
  }
  func.func @transform_13(%arg0: i32) -> (i32, i32) {
    %c0_i32 = arith.constant 0 : i32
    %c0_i32_0 = arith.constant 0 : i32
    %c0_i32_1 = arith.constant 0 : i32
    return %c0_i32, %c0_i32_0 : i32, i32
  }
  func.func @transform_14(%arg0: i32) -> (i32, i32) {
    %c0_i32 = arith.constant 0 : i32
    %c0_i32_0 = arith.constant 0 : i32
    %c0_i32_1 = arith.constant 0 : i32
    return %c0_i32, %c0_i32_0 : i32, i32
  }
  func.func @transform_15(%arg0: i32) -> (i32, i32) {
    %c0_i32 = arith.constant 0 : i32
    %c0_i32_0 = arith.constant 0 : i32
    %c0_i32_1 = arith.constant 0 : i32
    return %c0_i32, %c0_i32_0 : i32, i32
  }
  func.func @transform_16(%arg0: i32) -> (i32, i32) {
    %c0_i32 = arith.constant 0 : i32
    %c0_i32_0 = arith.constant 0 : i32
    %c0_i32_1 = arith.constant 0 : i32
    return %c0_i32, %c0_i32_0 : i32, i32
  }
  func.func @transform_17(%arg0: i32) -> (i32, i32) {
    %c0_i32 = arith.constant 0 : i32
    %c0_i32_0 = arith.constant 0 : i32
    %c0_i32_1 = arith.constant 0 : i32
    return %c0_i32, %c0_i32_0 : i32, i32
  }
  func.func @transform_18(%arg0: i32) -> (i32, i32) {
    %c0_i32 = arith.constant 0 : i32
    %c0_i32_0 = arith.constant 0 : i32
    %c0_i32_1 = arith.constant 0 : i32
    return %c0_i32, %c0_i32_0 : i32, i32
  }
  func.func @transform_19(%arg0: i32) -> (i32, i32) {
    %c0_i32 = arith.constant 0 : i32
    %c0_i32_0 = arith.constant 0 : i32
    %c0_i32_1 = arith.constant 0 : i32
    return %c0_i32, %c0_i32_0 : i32, i32
  }
  func.func @transform_20(%arg0: i32) -> (i32, i32, i32) {
    %c0_i32 = arith.constant 0 : i32
    %c0_i32_0 = arith.constant 0 : i32
    %c0_i32_1 = arith.constant 0 : i32
    return %arg0, %c0_i32, %c0_i32_0 : i32, i32, i32
  }
  func.func @transform_21(%arg0: i32) -> (i32, i32, i32) {
    %c0_i32 = arith.constant 0 : i32
    %c0_i32_0 = arith.constant 0 : i32
    %c0_i32_1 = arith.constant 0 : i32
    return %arg0, %c0_i32, %c0_i32_0 : i32, i32, i32
  }
}

</mosaic_0001>

<llo_original>
// kernel: squeeze.3
$region0: #{squeeze.3}
  %s0 = inlined_call_operand.vmem [shape: f32[2,9], index: 0, kind: input, shape index: {}]
  %s1 = inlined_call_operand.vmem [shape: f32[2,3,3], index: 1, kind: output, shape index: {}]
  $region1: #{squeeze.3} parent=0
    #allocation0 [shape = 'u8[8192]{0}', space=vmem, size = 0x2000, scoped, tag = 'scoped mem for output reshape']
    #allocation1 [shape = 'u8[4096]{0}', space=vmem, size = 0x1000, scoped, tag = 'scoped mem for input reshape']
    %s3 = ssub.s32 4, 1
    %v4 = vld [vmem:[%s0] sm:%s3]
    %5 = vst [vmem:[#allocation1] sm:%s3] %v4
    %v6 = vld [vmem:[#allocation1] sm:$0x3]
    %vm7 = vcmask 23552
    %8 = vst.msk [vmem:[#allocation0] ss:$8 sm:$0x3] %vm7, %v6
    %v9 = vld [vmem:[#allocation1] sm:$0x3]
    %10 = vrot.lane.b32.xlu0 %v9, 125
    %v11 = vpop.permute.xlu0 %10
    %vm12 = vcmask 23552
    %s13 = scalar_lea.vmem [#allocation0], 1
    %14 = vst.msk [vmem:[%s13] ss:$8 sm:$0x3] %vm12, %v11
    %v15 = vld [vmem:[#allocation1] sm:$0x3]
    %16 = vrot.lane.b32.xlu0 %v15, 122
    %v17 = vpop.permute.xlu0 %16
    %vm18 = vcmask 23552
    %s19 = scalar_lea.vmem [#allocation0], 2
    %20 = vst.msk [vmem:[%s19] ss:$8 sm:$0x3] %vm18, %v17
    %s22 = ssub.s32 16, 1
    %v23 = vld [vmem:[#allocation0] sm:%s22]
    %s25 = ssub.s32 16, 1
    %26 = vst [vmem:[%s1] sm:%s25] %v23
    %s27 = scalar_lea.vmem [#allocation0], 8
    %v28 = vld [vmem:[%s27] sm:%s22]
    %s30 = ssub.s32 16, 1
    %s31 = scalar_lea.vmem %s1, 4
    %32 = vst [vmem:[%s31] sm:%s30] %v28

// kernel: pointnet_encoder_forward.1
$region0: #{pointnet_encoder_forward.1}
  #allocation0 [shape = 'u32[]', space=smem, size = 0x4, offset = 0x4, fixed_abs, tag = 'smem constant byte address 0x4 - core index']
  #allocation1 [shape = 'u32[72,128]{1,0:T(1,128)}', space=vmem, size = 0x9000, scoped, tag = 'internal scratch']
  %s0 = inlined_call_operand.vmem [shape: f32[2,256,3], index: 0, kind: input, shape index: {}]
  %s1 = inlined_call_operand.vmem [shape: bf16[3,64], index: 1, kind: input, shape index: {}]
  %s2 = inlined_call_operand.vmem [shape: f32[1,64], index: 2, kind: input, shape index: {}]
  %s3 = inlined_call_operand.vmem [shape: bf16[64,128], index: 3, kind: input, shape index: {}]
  %s4 = inlined_call_operand.vmem [shape: f32[1,128], index: 4, kind: input, shape index: {}]
  %s5 = inlined_call_operand.vmem [shape: bf16[128,1024], index: 5, kind: input, shape index: {}]
  %s6 = inlined_call_operand.vmem [shape: f32[1,1024], index: 6, kind: input, shape index: {}]
  %s7 = inlined_call_operand.hbm [shape: bf16[1024,512], index: 7, kind: input, shape index: {}]
  %s8 = inlined_call_operand.vmem [shape: f32[1,512], index: 8, kind: input, shape index: {}]
  %s9 = inlined_call_operand.vmem [shape: bf16[512,256], index: 9, kind: input, shape index: {}]
  %s10 = inlined_call_operand.vmem [shape: f32[1,256], index: 10, kind: input, shape index: {}]
  %s11 = inlined_call_operand.vmem [shape: bf16[256,128], index: 11, kind: input, shape index: {}]
  %s12 = inlined_call_operand.vmem [shape: f32[1,128], index: 12, kind: input, shape index: {}]
  %s13 = inlined_call_operand.vmem [shape: bf16[3,128], index: 13, kind: input, shape index: {}]
  %s14 = inlined_call_operand.vmem [shape: bf16[128,64], index: 14, kind: input, shape index: {}]
  %s15 = inlined_call_operand.vmem [shape: f32[1,64], index: 15, kind: input, shape index: {}]
  %s16 = inlined_call_operand.vmem [shape: bf16[64,128], index: 16, kind: input, shape index: {}]
  %s17 = inlined_call_operand.vmem [shape: f32[1,128], index: 17, kind: input, shape index: {}]
  %s18 = inlined_call_operand.hbm [shape: bf16[128,1024], index: 18, kind: input, shape index: {}]
  %s19 = inlined_call_operand.vmem [shape: f32[1,1024], index: 19, kind: input, shape index: {}]
  %s20 = inlined_call_operand.vmem [shape: f32[2,1,1024], index: 20, kind: output, shape index: {0}]
  %s21 = inlined_call_operand.vmem [shape: f32[2,1,128], index: 21, kind: output, shape index: {1}]
  %22 = xla_tuple %s20, %s21
  %s23 = sld [smem:[#allocation0]]
  $region129: #{pointnet_encoder_forward.1} parent=0
    _
  %s25 = ssub.s32 1, %s23
  %s26 = scalar_select 0, %s25, %s23
  $region1: #{pointnet_encoder_forward.1} parent=0
    #allocation2 [shape = 'u8[1048576]{0}', space=vmem, size = 0x100000, scoped, tag = 'input window, operand 7, single buffered']
    #allocation3 [shape = 's32[2]{0}', space=sflag, size = 0x8, scoped, tag = 'scoped memory for pointnet_encoder_forward.1']
    #allocation4 [shape = 'u8[262144]{0}', space=vmem, size = 0x40000, scoped, tag = 'input window, operand 18, single buffered']
    #allocation5 [shape = 's32[1]{0}', space=sflag, size = 0x4, scoped, tag = 'scoped memory for pointnet_encoder_forward.1']
    %27 = vsyncpa [#allocation3], 0
    %28 = vsyncpa [#allocation5], 0
    loop: start=0, step=1, limit=4
    $region2: #{pointnet_encoder_forward.1} parent=1 // loop_pre_header
      _
    $region3: #{pointnet_encoder_forward.1} parent=1 // loop_header
      %s30 = sphi 0, %s34
      %p31 = scmp.ge.s32.totalorder %s30, 4
      %s40 = sphi 0, %s42
      %s43 = sphi 0, %s40
      %s44 = sphi 0, %s43
      %s60 = sphi 0, %s44
      %s64 = sphi 0, %s64
      %s66 = sphi 0, %s64
      %s67 = sphi 0, %s66
      %s81 = sphi 0, %s67
      %s85 = sphi 0, %s85
      %s87 = sphi 0, %s85
      %s88 = sphi 0, %s87
      %s102 = sphi 0, %s88
      %s106 = sphi 0, %s106
      %s108 = sphi 0, %s106
      %s109 = sphi 0, %s108
      %s123 = sphi 0, %s109
      %s127 = sphi 0, %s127
      %s129 = sphi 0, %s127
      %s130 = sphi 0, %s129
      %s144 = sphi 0, %s130
      %s148 = sphi 0, %s148
      %s150 = sphi 0, %s148
      %s151 = sphi 0, %s150
      %s165 = sphi 0, %s151
      %s169 = sphi 0, %s169
      %s171 = sphi 0, %s169
      %s172 = sphi 0, %s171
      %s186 = sphi 0, %s172
      %s190 = sphi 0, %s190
      %s192 = sphi 0, %s190
      %s193 = sphi 0, %s192
      %s207 = sphi 0, %s193
      %s211 = sphi 0, %s211
      %s213 = sphi 0, %s211
      %s214 = sphi 0, %s213
      %s228 = sphi 0, %s214
      %s232 = sphi 0, %s232
      %s234 = sphi 0, %s232
      %s235 = sphi 0, %s234
      %s249 = sphi 0, %s235
      %s253 = sphi 0, %s253
      %s255 = sphi 0, %s253
      %s256 = sphi 0, %s255
      %s270 = sphi 0, %s256
      %s274 = sphi 0, %s274
      %s276 = sphi 0, %s274
      %s277 = sphi 0, %s276
      %s291 = sphi 0, %s277
      %s295 = sphi 0, %s295
      %s297 = sphi 0, %s295
      %s298 = sphi 0, %s297
      %s312 = sphi 0, %s298
      %s316 = sphi 0, %s316
      %s318 = sphi 0, %s316
      %s319 = sphi 0, %s318
      %s333 = sphi 0, %s319
      %s337 = sphi 0, %s337
      %s339 = sphi 0, %s337
      %s340 = sphi 0, %s339
      %s354 = sphi 0, %s340
      %s358 = sphi 0, %s358
      %s360 = sphi 0, %s358
      %s361 = sphi 0, %s360
      %s375 = sphi 0, %s361
      %s379 = sphi 0, %s379
      %s381 = sphi 0, %s379
      %s382 = sphi 0, %s381
      %s396 = sphi 0, %s382
      %s400 = sphi 0, %s400
      %s402 = sphi 0, %s400
      %s403 = sphi 0, %s402
      %s417 = sphi 0, %s403
      %s421 = sphi 0, %s421
      %s423 = sphi 0, %s421
      %s424 = sphi 0, %s423
      %s438 = sphi 0, %s424
      %s442 = sphi 0, %s442
      %s444 = sphi 0, %s442
      %s445 = sphi 0, %s444
      %s459 = sphi 0, %s445
      %s465 = sphi 0, %s467
      %s468 = sphi 0, %s465
      %s469 = sphi 0, %s468
      %s485 = sphi 0, %s469
      %s491 = sphi 0, %s493
      %s494 = sphi 0, %s491
      %s495 = sphi 0, %s494
      %s511 = sphi 0, %s495
    $region4: #{pointnet_encoder_forward.1} parent=1 // loop_header_branch
      %33 = sbr.rel (%p31) target = $region8
    $region5: #{pointnet_encoder_forward.1} parent=1 // loop_body
      %s35 = ssub.s32 %s30, 1
      %s36 = ssub.s32 %s30, 2
      %s37 = sadd.s32 %s30, 1
      %s38 = ssub.s32 %s30, %s37
      %p39 = scmp.eq.s32.totalorder %s38, 0
      %s41 = sadd.s32 %s40, 1
      %s42 = scalar_select %p39, %s40, %s41
      %p45 = pneg %p39
      %p46 = scmp.eq.s32.totalorder %s30, 1
      %p47 = por %p45, %p46
      %p48 = scmp.ne.s32.totalorder %s40, %s43
      %p49 = scmp.eq.s32.totalorder %s30, 0
      %p50 = por %p48, %p49
      %p51 = scmp.ne.s32.totalorder %s40, %s43
      %p52 = scmp.eq.s32.totalorder %s35, 1
      %p53 = por %p51, %p52
      %p54 = scmp.ne.s32.totalorder %s43, %s44
      %p55 = scmp.eq.s32.totalorder %s35, 0
      %p56 = por %p54, %p55
      %p57 = scmp.ne.s32.totalorder %s43, %s44
      %p58 = scmp.eq.s32.totalorder %s36, 1
      %p59 = por %p57, %p58
      %p61 = scmp.ne.s32.totalorder %s44, %s60
      %p62 = scmp.eq.s32.totalorder %s36, 0
      %p63 = por %p61, %p62
      %s65 = sadd.s32 %s64, 1
      %p68 = scmp.eq.s32.totalorder %s30, 1
      %p69 = scmp.ne.s32.totalorder %s64, %s66
      %p70 = scmp.eq.s32.totalorder %s30, 0
      %p71 = por %p69, %p70
      %p72 = scmp.ne.s32.totalorder %s64, %s66
      %p73 = scmp.eq.s32.totalorder %s35, 1
      %p74 = por %p72, %p73
      %p75 = scmp.ne.s32.totalorder %s66, %s67
      %p76 = scmp.eq.s32.totalorder %s35, 0
      %p77 = por %p75, %p76
      %p78 = scmp.ne.s32.totalorder %s66, %s67
      %p79 = scmp.eq.s32.totalorder %s36, 1
      %p80 = por %p78, %p79
      %p82 = scmp.ne.s32.totalorder %s67, %s81
      %p83 = scmp.eq.s32.totalorder %s36, 0
      %p84 = por %p82, %p83
      %s86 = sadd.s32 %s85, 1
      %p89 = scmp.eq.s32.totalorder %s30, 1
      %p90 = scmp.ne.s32.totalorder %s85, %s87
      %p91 = scmp.eq.s32.totalorder %s30, 0
      %p92 = por %p90, %p91
      %p93 = scmp.ne.s32.totalorder %s85, %s87
      %p94 = scmp.eq.s32.totalorder %s35, 1
      %p95 = por %p93, %p94
      %p96 = scmp.ne.s32.totalorder %s87, %s88
      %p97 = scmp.eq.s32.totalorder %s35, 0
      %p98 = por %p96, %p97
      %p99 = scmp.ne.s32.totalorder %s87, %s88
      %p100 = scmp.eq.s32.totalorder %s36, 1
      %p101 = por %p99, %p100
      %p103 = scmp.ne.s32.totalorder %s88, %s102
      %p104 = scmp.eq.s32.totalorder %s36, 0
      %p105 = por %p103, %p104
      %s107 = sadd.s32 %s106, 1
      %p110 = scmp.eq.s32.totalorder %s30, 1
      %p111 = scmp.ne.s32.totalorder %s106, %s108
      %p112 = scmp.eq.s32.totalorder %s30, 0
      %p113 = por %p111, %p112
      %p114 = scmp.ne.s32.totalorder %s106, %s108
      %p115 = scmp.eq.s32.totalorder %s35, 1
      %p116 = por %p114, %p115
      %p117 = scmp.ne.s32.totalorder %s108, %s109
      %p118 = scmp.eq.s32.totalorder %s35, 0
      %p119 = por %p117, %p118
      %p120 = scmp.ne.s32.totalorder %s108, %s109
      %p121 = scmp.eq.s32.totalorder %s36, 1
      %p122 = por %p120, %p121
      %p124 = scmp.ne.s32.totalorder %s109, %s123
      %p125 = scmp.eq.s32.totalorder %s36, 0
      %p126 = por %p124, %p125
      %s128 = sadd.s32 %s127, 1
      %p131 = scmp.eq.s32.totalorder %s30, 1
      %p132 = scmp.ne.s32.totalorder %s127, %s129
      %p133 = scmp.eq.s32.totalorder %s30, 0
      %p134 = por %p132, %p133
      %p135 = scmp.ne.s32.totalorder %s127, %s129
      %p136 = scmp.eq.s32.totalorder %s35, 1
      %p137 = por %p135, %p136
      %p138 = scmp.ne.s32.totalorder %s129, %s130
      %p139 = scmp.eq.s32.totalorder %s35, 0
      %p140 = por %p138, %p139
      %p141 = scmp.ne.s32.totalorder %s129, %s130
      %p142 = scmp.eq.s32.totalorder %s36, 1
      %p143 = por %p141, %p142
      %p145 = scmp.ne.s32.totalorder %s130, %s144
      %p146 = scmp.eq.s32.totalorder %s36, 0
      %p147 = por %p145, %p146
      %s149 = sadd.s32 %s148, 1
      %p152 = scmp.eq.s32.totalorder %s30, 1
      %p153 = scmp.ne.s32.totalorder %s148, %s150
      %p154 = scmp.eq.s32.totalorder %s30, 0
      %p155 = por %p153, %p154
      %p156 = scmp.ne.s32.totalorder %s148, %s150
      %p157 = scmp.eq.s32.totalorder %s35, 1
      %p158 = por %p156, %p157
      %p159 = scmp.ne.s32.totalorder %s150, %s151
      %p160 = scmp.eq.s32.totalorder %s35, 0
      %p161 = por %p159, %p160
      %p162 = scmp.ne.s32.totalorder %s150, %s151
      %p163 = scmp.eq.s32.totalorder %s36, 1
      %p164 = por %p162, %p163
      %p166 = scmp.ne.s32.totalorder %s151, %s165
      %p167 = scmp.eq.s32.totalorder %s36, 0
      %p168 = por %p166, %p167
      %s170 = sadd.s32 %s169, 1
      %p173 = scmp.eq.s32.totalorder %s30, 1
      %p174 = scmp.ne.s32.totalorder %s169, %s171
      %p175 = scmp.eq.s32.totalorder %s30, 0
      %p176 = por %p174, %p175
      %p177 = scmp.ne.s32.totalorder %s169, %s171
      %p178 = scmp.eq.s32.totalorder %s35, 1
      %p179 = por %p177, %p178
      %p180 = scmp.ne.s32.totalorder %s171, %s172
      %p181 = scmp.eq.s32.totalorder %s35, 0
      %p182 = por %p180, %p181
      %p183 = scmp.ne.s32.totalorder %s171, %s172
      %p184 = scmp.eq.s32.totalorder %s36, 1
      %p185 = por %p183, %p184
      %p187 = scmp.ne.s32.totalorder %s172, %s186
      %p188 = scmp.eq.s32.totalorder %s36, 0
      %p189 = por %p187, %p188
      %s191 = sadd.s32 %s190, 1
      %p194 = scmp.eq.s32.totalorder %s30, 1
      %p195 = scmp.ne.s32.totalorder %s190, %s192
      %p196 = scmp.eq.s32.totalorder %s30, 0
      %p197 = por %p195, %p196
      %p198 = scmp.ne.s32.totalorder %s190, %s192
      %p199 = scmp.eq.s32.totalorder %s35, 1
      %p200 = por %p198, %p199
      %p201 = scmp.ne.s32.totalorder %s192, %s193
      %p202 = scmp.eq.s32.totalorder %s35, 0
      %p203 = por %p201, %p202
      %p204 = scmp.ne.s32.totalorder %s192, %s193
      %p205 = scmp.eq.s32.totalorder %s36, 1
      %p206 = por %p204, %p205
      %p208 = scmp.ne.s32.totalorder %s193, %s207
      %p209 = scmp.eq.s32.totalorder %s36, 0
      %p210 = por %p208, %p209
      %s212 = sadd.s32 %s211, 1
      %p215 = scmp.eq.s32.totalorder %s30, 1
      %p216 = scmp.ne.s32.totalorder %s211, %s213
      %p217 = scmp.eq.s32.totalorder %s30, 0
      %p218 = por %p216, %p217
      %p219 = scmp.ne.s32.totalorder %s211, %s213
      %p220 = scmp.eq.s32.totalorder %s35, 1
      %p221 = por %p219, %p220
      %p222 = scmp.ne.s32.totalorder %s213, %s214
      %p223 = scmp.eq.s32.totalorder %s35, 0
      %p224 = por %p222, %p223
      %p225 = scmp.ne.s32.totalorder %s213, %s214
      %p226 = scmp.eq.s32.totalorder %s36, 1
      %p227 = por %p225, %p226
      %p229 = scmp.ne.s32.totalorder %s214, %s228
      %p230 = scmp.eq.s32.totalorder %s36, 0
      %p231 = por %p229, %p230
      %s233 = sadd.s32 %s232, 1
      %p236 = scmp.eq.s32.totalorder %s30, 1
      %p237 = scmp.ne.s32.totalorder %s232, %s234
      %p238 = scmp.eq.s32.totalorder %s30, 0
      %p239 = por %p237, %p238
      %p240 = scmp.ne.s32.totalorder %s232, %s234
      %p241 = scmp.eq.s32.totalorder %s35, 1
      %p242 = por %p240, %p241
      %p243 = scmp.ne.s32.totalorder %s234, %s235
      %p244 = scmp.eq.s32.totalorder %s35, 0
      %p245 = por %p243, %p244
      %p246 = scmp.ne.s32.totalorder %s234, %s235
      %p247 = scmp.eq.s32.totalorder %s36, 1
      %p248 = por %p246, %p247
      %p250 = scmp.ne.s32.totalorder %s235, %s249
      %p251 = scmp.eq.s32.totalorder %s36, 0
      %p252 = por %p250, %p251
      %s254 = sadd.s32 %s253, 1
      %p257 = scmp.eq.s32.totalorder %s30, 1
      %p258 = scmp.ne.s32.totalorder %s253, %s255
      %p259 = scmp.eq.s32.totalorder %s30, 0
      %p260 = por %p258, %p259
      %p261 = scmp.ne.s32.totalorder %s253, %s255
      %p262 = scmp.eq.s32.totalorder %s35, 1
      %p263 = por %p261, %p262
      %p264 = scmp.ne.s32.totalorder %s255, %s256
      %p265 = scmp.eq.s32.totalorder %s35, 0
      %p266 = por %p264, %p265
      %p267 = scmp.ne.s32.totalorder %s255, %s256
      %p268 = scmp.eq.s32.totalorder %s36, 1
      %p269 = por %p267, %p268
      %p271 = scmp.ne.s32.totalorder %s256, %s270
      %p272 = scmp.eq.s32.totalorder %s36, 0
      %p273 = por %p271, %p272
      %s275 = sadd.s32 %s274, 1
      %p278 = scmp.eq.s32.totalorder %s30, 1
      %p279 = scmp.ne.s32.totalorder %s274, %s276
      %p280 = scmp.eq.s32.totalorder %s30, 0
      %p281 = por %p279, %p280
      %p282 = scmp.ne.s32.totalorder %s274, %s276
      %p283 = scmp.eq.s32.totalorder %s35, 1
      %p284 = por %p282, %p283
      %p285 = scmp.ne.s32.totalorder %s276, %s277
      %p286 = scmp.eq.s32.totalorder %s35, 0
      %p287 = por %p285, %p286
      %p288 = scmp.ne.s32.totalorder %s276, %s277
      %p289 = scmp.eq.s32.totalorder %s36, 1
      %p290 = por %p288, %p289
      %p292 = scmp.ne.s32.totalorder %s277, %s291
      %p293 = scmp.eq.s32.totalorder %s36, 0
      %p294 = por %p292, %p293
      %s296 = sadd.s32 %s295, 1
      %p299 = scmp.eq.s32.totalorder %s30, 1
      %p300 = scmp.ne.s32.totalorder %s295, %s297
      %p301 = scmp.eq.s32.totalorder %s30, 0
      %p302 = por %p300, %p301
      %p303 = scmp.ne.s32.totalorder %s295, %s297
      %p304 = scmp.eq.s32.totalorder %s35, 1
      %p305 = por %p303, %p304
      %p306 = scmp.ne.s32.totalorder %s297, %s298
      %p307 = scmp.eq.s32.totalorder %s35, 0
      %p308 = por %p306, %p307
      %p309 = scmp.ne.s32.totalorder %s297, %s298
      %p310 = scmp.eq.s32.totalorder %s36, 1
      %p311 = por %p309, %p310
      %p313 = scmp.ne.s32.totalorder %s298, %s312
      %p314 = scmp.eq.s32.totalorder %s36, 0
      %p315 = por %p313, %p314
      %s317 = sadd.s32 %s316, 1
      %p320 = scmp.eq.s32.totalorder %s30, 1
      %p321 = scmp.ne.s32.totalorder %s316, %s318
      %p322 = scmp.eq.s32.totalorder %s30, 0
      %p323 = por %p321, %p322
      %p324 = scmp.ne.s32.totalorder %s316, %s318
      %p325 = scmp.eq.s32.totalorder %s35, 1
      %p326 = por %p324, %p325
      %p327 = scmp.ne.s32.totalorder %s318, %s319
      %p328 = scmp.eq.s32.totalorder %s35, 0
      %p329 = por %p327, %p328
      %p330 = scmp.ne.s32.totalorder %s318, %s319
      %p331 = scmp.eq.s32.totalorder %s36, 1
      %p332 = por %p330, %p331
      %p334 = scmp.ne.s32.totalorder %s319, %s333
      %p335 = scmp.eq.s32.totalorder %s36, 0
      %p336 = por %p334, %p335
      %s338 = sadd.s32 %s337, 1
      %p341 = scmp.eq.s32.totalorder %s30, 1
      %p342 = scmp.ne.s32.totalorder %s337, %s339
      %p343 = scmp.eq.s32.totalorder %s30, 0
      %p344 = por %p342, %p343
      %p345 = scmp.ne.s32.totalorder %s337, %s339
      %p346 = scmp.eq.s32.totalorder %s35, 1
      %p347 = por %p345, %p346
      %p348 = scmp.ne.s32.totalorder %s339, %s340
      %p349 = scmp.eq.s32.totalorder %s35, 0
      %p350 = por %p348, %p349
      %p351 = scmp.ne.s32.totalorder %s339, %s340
      %p352 = scmp.eq.s32.totalorder %s36, 1
      %p353 = por %p351, %p352
      %p355 = scmp.ne.s32.totalorder %s340, %s354
      %p356 = scmp.eq.s32.totalorder %s36, 0
      %p357 = por %p355, %p356
      %s359 = sadd.s32 %s358, 1
      %p362 = scmp.eq.s32.totalorder %s30, 1
      %p363 = scmp.ne.s32.totalorder %s358, %s360
      %p364 = scmp.eq.s32.totalorder %s30, 0
      %p365 = por %p363, %p364
      %p366 = scmp.ne.s32.totalorder %s358, %s360
      %p367 = scmp.eq.s32.totalorder %s35, 1
      %p368 = por %p366, %p367
      %p369 = scmp.ne.s32.totalorder %s360, %s361
      %p370 = scmp.eq.s32.totalorder %s35, 0
      %p371 = por %p369, %p370
      %p372 = scmp.ne.s32.totalorder %s360, %s361
      %p373 = scmp.eq.s32.totalorder %s36, 1
      %p374 = por %p372, %p373
      %p376 = scmp.ne.s32.totalorder %s361, %s375
      %p377 = scmp.eq.s32.totalorder %s36, 0
      %p378 = por %p376, %p377
      %s380 = sadd.s32 %s379, 1
      %p383 = scmp.eq.s32.totalorder %s30, 1
      %p384 = scmp.ne.s32.totalorder %s379, %s381
      %p385 = scmp.eq.s32.totalorder %s30, 0
      %p386 = por %p384, %p385
      %p387 = scmp.ne.s32.totalorder %s379, %s381
      %p388 = scmp.eq.s32.totalorder %s35, 1
      %p389 = por %p387, %p388
      %p390 = scmp.ne.s32.totalorder %s381, %s382
      %p391 = scmp.eq.s32.totalorder %s35, 0
      %p392 = por %p390, %p391
      %p393 = scmp.ne.s32.totalorder %s381, %s382
      %p394 = scmp.eq.s32.totalorder %s36, 1
      %p395 = por %p393, %p394
      %p397 = scmp.ne.s32.totalorder %s382, %s396
      %p398 = scmp.eq.s32.totalorder %s36, 0
      %p399 = por %p397, %p398
      %s401 = sadd.s32 %s400, 1
      %p404 = scmp.eq.s32.totalorder %s30, 1
      %p405 = scmp.ne.s32.totalorder %s400, %s402
      %p406 = scmp.eq.s32.totalorder %s30, 0
      %p407 = por %p405, %p406
      %p408 = scmp.ne.s32.totalorder %s400, %s402
      %p409 = scmp.eq.s32.totalorder %s35, 1
      %p410 = por %p408, %p409
      %p411 = scmp.ne.s32.totalorder %s402, %s403
      %p412 = scmp.eq.s32.totalorder %s35, 0
      %p413 = por %p411, %p412
      %p414 = scmp.ne.s32.totalorder %s402, %s403
      %p415 = scmp.eq.s32.totalorder %s36, 1
      %p416 = por %p414, %p415
      %p418 = scmp.ne.s32.totalorder %s403, %s417
      %p419 = scmp.eq.s32.totalorder %s36, 0
      %p420 = por %p418, %p419
      %s422 = sadd.s32 %s421, 1
      %p425 = scmp.eq.s32.totalorder %s30, 1
      %p426 = scmp.ne.s32.totalorder %s421, %s423
      %p427 = scmp.eq.s32.totalorder %s30, 0
      %p428 = por %p426, %p427
      %p429 = scmp.ne.s32.totalorder %s421, %s423
      %p430 = scmp.eq.s32.totalorder %s35, 1
      %p431 = por %p429, %p430
      %p432 = scmp.ne.s32.totalorder %s423, %s424
      %p433 = scmp.eq.s32.totalorder %s35, 0
      %p434 = por %p432, %p433
      %p435 = scmp.ne.s32.totalorder %s423, %s424
      %p436 = scmp.eq.s32.totalorder %s36, 1
      %p437 = por %p435, %p436
      %p439 = scmp.ne.s32.totalorder %s424, %s438
      %p440 = scmp.eq.s32.totalorder %s36, 0
      %p441 = por %p439, %p440
      %s443 = sadd.s32 %s442, 1
      %p446 = scmp.eq.s32.totalorder %s30, 1
      %p447 = scmp.ne.s32.totalorder %s442, %s444
      %p448 = scmp.eq.s32.totalorder %s30, 0
      %p449 = por %p447, %p448
      %p450 = scmp.ne.s32.totalorder %s442, %s444
      %p451 = scmp.eq.s32.totalorder %s35, 1
      %p452 = por %p450, %p451
      %p453 = scmp.ne.s32.totalorder %s444, %s445
      %p454 = scmp.eq.s32.totalorder %s35, 0
      %p455 = por %p453, %p454
      %p456 = scmp.ne.s32.totalorder %s444, %s445
      %p457 = scmp.eq.s32.totalorder %s36, 1
      %p458 = por %p456, %p457
      %p460 = scmp.ne.s32.totalorder %s445, %s459
      %p461 = scmp.eq.s32.totalorder %s36, 0
      %p462 = por %p460, %p461
      %s463 = ssub.s32 %s30, %s37
      %p464 = scmp.eq.s32.totalorder %s463, 0
      %s466 = sadd.s32 %s465, 1
      %s467 = scalar_select %p464, %s465, %s466
      %p470 = pneg %p464
      %p471 = scmp.eq.s32.totalorder %s30, 1
      %p472 = por %p470, %p471
      %p473 = scmp.ne.s32.totalorder %s465, %s468
      %p474 = scmp.eq.s32.totalorder %s30, 0
      %p475 = por %p473, %p474
      %p476 = scmp.ne.s32.totalorder %s465, %s468
      %p477 = scmp.eq.s32.totalorder %s35, 1
      %p478 = por %p476, %p477
      %p479 = scmp.ne.s32.totalorder %s468, %s469
      %p480 = scmp.eq.s32.totalorder %s35, 0
      %p481 = por %p479, %p480
      %p482 = scmp.ne.s32.totalorder %s468, %s469
      %p483 = scmp.eq.s32.totalorder %s36, 1
      %p484 = por %p482, %p483
      %p486 = scmp.ne.s32.totalorder %s469, %s485
      %p487 = scmp.eq.s32.totalorder %s36, 0
      %p488 = por %p486, %p487
      %s489 = ssub.s32 %s30, %s37
      %p490 = scmp.eq.s32.totalorder %s489, 0
      %s492 = sadd.s32 %s491, 1
      %s493 = scalar_select %p490, %s491, %s492
      %p496 = pneg %p490
      %p497 = scmp.eq.s32.totalorder %s30, 1
      %p498 = por %p496, %p497
      %p499 = scmp.ne.s32.totalorder %s491, %s494
      %p500 = scmp.eq.s32.totalorder %s30, 0
      %p501 = por %p499, %p500
      %p502 = scmp.ne.s32.totalorder %s491, %s494
      %p503 = scmp.eq.s32.totalorder %s35, 1
      %p504 = por %p502, %p503
      %p505 = scmp.ne.s32.totalorder %s494, %s495
      %p506 = scmp.eq.s32.totalorder %s35, 0
      %p507 = por %p505, %p506
      %p508 = scmp.ne.s32.totalorder %s494, %s495
      %p509 = scmp.eq.s32.totalorder %s36, 1
      %p510 = por %p508, %p509
      %p512 = scmp.ne.s32.totalorder %s495, %s511
      %p513 = scmp.eq.s32.totalorder %s36, 0
      %p514 = por %p512, %p513
      %p515 = scmp.le.s32.totalorder 1, %s30
      %p516 = scmp.lt.s32.totalorder %s30, 3
      %p517 = pnand %p515, %p516
      %p518 = pneg %p517
      // Predicated region
      $region9: #{pointnet_encoder_forward.1} parent=5 // pred_check
        _
      $region10: #{pointnet_encoder_forward.1} parent=5 // pred_check_branch
        %520 = sbr.rel (%p517) target = $region12
      $region11: #{pointnet_encoder_forward.1} parent=5 // pred_region
        %s521 = ssub.s32 %s30, 1
        // Predicated region
        $region13: #{pointnet_encoder_forward.1} parent=11 // pred_check
          %p522 = pneg %p77
        $region14: #{pointnet_encoder_forward.1} parent=11 // pred_check_branch
          %524 = sbr.rel (%p522) target = $region16
        $region15: #{pointnet_encoder_forward.1} parent=11 // pred_region
          _
        $region16: #{pointnet_encoder_forward.1} parent=11 // pred_fallthru
          _
        // Predicated region
        $region17: #{pointnet_encoder_forward.1} parent=11 // pred_check
          %p525 = pneg %p98
        $region18: #{pointnet_encoder_forward.1} parent=11 // pred_check_branch
          %527 = sbr.rel (%p525) target = $region20
        $region19: #{pointnet_encoder_forward.1} parent=11 // pred_region
          _
        $region20: #{pointnet_encoder_forward.1} parent=11 // pred_fallthru
          _
        // Predicated region
        $region21: #{pointnet_encoder_forward.1} parent=11 // pred_check
          %p528 = pneg %p119
        $region22: #{pointnet_encoder_forward.1} parent=11 // pred_check_branch
          %530 = sbr.rel (%p528) target = $region24
        $region23: #{pointnet_encoder_forward.1} parent=11 // pred_region
          _
        $region24: #{pointnet_encoder_forward.1} parent=11 // pred_fallthru
          _
        // Predicated region
        $region25: #{pointnet_encoder_forward.1} parent=11 // pred_check
          %p531 = pneg %p140
        $region26: #{pointnet_encoder_forward.1} parent=11 // pred_check_branch
          %533 = sbr.rel (%p531) target = $region28
        $region27: #{pointnet_encoder_forward.1} parent=11 // pred_region
          _
        $region28: #{pointnet_encoder_forward.1} parent=11 // pred_fallthru
          _
        // Predicated region
        $region29: #{pointnet_encoder_forward.1} parent=11 // pred_check
          %p534 = pneg %p161
        $region30: #{pointnet_encoder_forward.1} parent=11 // pred_check_branch
          %536 = sbr.rel (%p534) target = $region32
        $region31: #{pointnet_encoder_forward.1} parent=11 // pred_region
          _
        $region32: #{pointnet_encoder_forward.1} parent=11 // pred_fallthru
          _
        // Predicated region
        $region33: #{pointnet_encoder_forward.1} parent=11 // pred_check
          %p537 = pneg %p182
        $region34: #{pointnet_encoder_forward.1} parent=11 // pred_check_branch
          %539 = sbr.rel (%p537) target = $region36
        $region35: #{pointnet_encoder_forward.1} parent=11 // pred_region
          _
        $region36: #{pointnet_encoder_forward.1} parent=11 // pred_fallthru
          _
        // Predicated region
        $region37: #{pointnet_encoder_forward.1} parent=11 // pred_check
          %p540 = pneg %p203
        $region38: #{pointnet_encoder_forward.1} parent=11 // pred_check_branch
          %542 = sbr.rel (%p540) target = $region40
        $region39: #{pointnet_encoder_forward.1} parent=11 // pred_region
          %544 = vsyncadd [#allocation3], 0
          %s545 = sshll.u32 %s7, 4
          %s546 = int_to_ptr.hbm [resolvable:$true] %s545
          %s547 = sshll.u32 [#allocation2], 4
          %s548 = int_to_ptr.vmem [resolvable:$true] %s547
          %553 = dma.hbm_to_vmem [thread:$0]  %s546, 32768, %s548, [#allocation3], 256, 256, 16
        $region40: #{pointnet_encoder_forward.1} parent=11 // pred_fallthru
          _
        // Predicated region
        $region41: #{pointnet_encoder_forward.1} parent=11 // pred_check
          %p554 = pneg %p224
        $region42: #{pointnet_encoder_forward.1} parent=11 // pred_check_branch
          %556 = sbr.rel (%p554) target = $region44
        $region43: #{pointnet_encoder_forward.1} parent=11 // pred_region
          _
        $region44: #{pointnet_encoder_forward.1} parent=11 // pred_fallthru
          _
        // Predicated region
        $region45: #{pointnet_encoder_forward.1} parent=11 // pred_check
          %p557 = pneg %p245
        $region46: #{pointnet_encoder_forward.1} parent=11 // pred_check_branch
          %559 = sbr.rel (%p557) target = $region48
        $region47: #{pointnet_encoder_forward.1} parent=11 // pred_region
          _
        $region48: #{pointnet_encoder_forward.1} parent=11 // pred_fallthru
          _
        // Predicated region
        $region49: #{pointnet_encoder_forward.1} parent=11 // pred_check
          %p560 = pneg %p266
        $region50: #{pointnet_encoder_forward.1} parent=11 // pred_check_branch
          %562 = sbr.rel (%p560) target = $region52
        $region51: #{pointnet_encoder_forward.1} parent=11 // pred_region
          _
        $region52: #{pointnet_encoder_forward.1} parent=11 // pred_fallthru
          _
        // Predicated region
        $region53: #{pointnet_encoder_forward.1} parent=11 // pred_check
          %p563 = pneg %p287
        $region54: #{pointnet_encoder_forward.1} parent=11 // pred_check_branch
          %565 = sbr.rel (%p563) target = $region56
        $region55: #{pointnet_encoder_forward.1} parent=11 // pred_region
          _
        $region56: #{pointnet_encoder_forward.1} parent=11 // pred_fallthru
          _
        // Predicated region
        $region57: #{pointnet_encoder_forward.1} parent=11 // pred_check
          %p566 = pneg %p308
        $region58: #{pointnet_encoder_forward.1} parent=11 // pred_check_branch
          %568 = sbr.rel (%p566) target = $region60
        $region59: #{pointnet_encoder_forward.1} parent=11 // pred_region
          _
        $region60: #{pointnet_encoder_forward.1} parent=11 // pred_fallthru
          _
        // Predicated region
        $region61: #{pointnet_encoder_forward.1} parent=11 // pred_check
          %p569 = pneg %p329
        $region62: #{pointnet_encoder_forward.1} parent=11 // pred_check_branch
          %571 = sbr.rel (%p569) target = $region64
        $region63: #{pointnet_encoder_forward.1} parent=11 // pred_region
          _
        $region64: #{pointnet_encoder_forward.1} parent=11 // pred_fallthru
          _
        // Predicated region
        $region65: #{pointnet_encoder_forward.1} parent=11 // pred_check
          %p572 = pneg %p350
        $region66: #{pointnet_encoder_forward.1} parent=11 // pred_check_branch
          %574 = sbr.rel (%p572) target = $region68
        $region67: #{pointnet_encoder_forward.1} parent=11 // pred_region
          _
        $region68: #{pointnet_encoder_forward.1} parent=11 // pred_fallthru
          _
        // Predicated region
        $region69: #{pointnet_encoder_forward.1} parent=11 // pred_check
          %p575 = pneg %p371
        $region70: #{pointnet_encoder_forward.1} parent=11 // pred_check_branch
          %577 = sbr.rel (%p575) target = $region72
        $region71: #{pointnet_encoder_forward.1} parent=11 // pred_region
          _
        $region72: #{pointnet_encoder_forward.1} parent=11 // pred_fallthru
          _
        // Predicated region
        $region73: #{pointnet_encoder_forward.1} parent=11 // pred_check
          %p578 = pneg %p392
        $region74: #{pointnet_encoder_forward.1} parent=11 // pred_check_branch
          %580 = sbr.rel (%p578) target = $region76
        $region75: #{pointnet_encoder_forward.1} parent=11 // pred_region
          _
        $region76: #{pointnet_encoder_forward.1} parent=11 // pred_fallthru
          _
        // Predicated region
        $region77: #{pointnet_encoder_forward.1} parent=11 // pred_check
          %p581 = pneg %p413
        $region78: #{pointnet_encoder_forward.1} parent=11 // pred_check_branch
          %583 = sbr.rel (%p581) target = $region80
        $region79: #{pointnet_encoder_forward.1} parent=11 // pred_region
          _
        $region80: #{pointnet_encoder_forward.1} parent=11 // pred_fallthru
          _
        // Predicated region
        $region81: #{pointnet_encoder_forward.1} parent=11 // pred_check
          %p584 = pneg %p434
        $region82: #{pointnet_encoder_forward.1} parent=11 // pred_check_branch
          %586 = sbr.rel (%p584) target = $region84
        $region83: #{pointnet_encoder_forward.1} parent=11 // pred_region
          %588 = vsyncadd [#allocation5], 0
          %s589 = sshll.u32 %s18, 4
          %s590 = int_to_ptr.hbm [resolvable:$true] %s589
          %s591 = sshll.u32 [#allocation4], 4
          %s592 = int_to_ptr.vmem [resolvable:$true] %s591
          %597 = dma.hbm_to_vmem [thread:$0]  %s590, 8192, %s592, [#allocation5], 512, 512, 32
        $region84: #{pointnet_encoder_forward.1} parent=11 // pred_fallthru
          _
        // Predicated region
        $region85: #{pointnet_encoder_forward.1} parent=11 // pred_check
          %p598 = pneg %p455
        $region86: #{pointnet_encoder_forward.1} parent=11 // pred_check_branch
          %600 = sbr.rel (%p598) target = $region88
        $region87: #{pointnet_encoder_forward.1} parent=11 // pred_region
          _
        $region88: #{pointnet_encoder_forward.1} parent=11 // pred_fallthru
          _
      $region12: #{pointnet_encoder_forward.1} parent=5 // pred_fallthru
        _
      %p601 = scmp.lt.s32.totalorder %s30, 2
      // Predicated region
      $region89: #{pointnet_encoder_forward.1} parent=5 // pred_check
        %p602 = pneg %p601
      $region90: #{pointnet_encoder_forward.1} parent=5 // pred_check_branch
        %604 = sbr.rel (%p602) target = $region92
      $region91: #{pointnet_encoder_forward.1} parent=5 // pred_region
        // Predicated region
        $region93: #{pointnet_encoder_forward.1} parent=91 // pred_check
          %p605 = pneg %p50
        $region94: #{pointnet_encoder_forward.1} parent=91 // pred_check_branch
          %607 = sbr.rel (%p605) target = $region96
        $region95: #{pointnet_encoder_forward.1} parent=91 // pred_region
          %p608 = scmp.lt.s32.totalorder %s30, 1
          %s609 = scalar_select %p608, %s30, 1
          %s610 = smul.addr %s609, 32
          %s611 = smul.addr %s610, 8
          %s612 = scalar_lea.vmem %s0, %s611
        $region96: #{pointnet_encoder_forward.1} parent=91 // pred_fallthru
          _
      $region92: #{pointnet_encoder_forward.1} parent=5 // pred_fallthru
        _
      %p613 = scmp.le.s32.totalorder 1, %s30
      %p614 = scmp.lt.s32.totalorder %s30, 3
      %p615 = pnand %p613, %p614
      %p616 = pneg %p615
      // Predicated region
      $region97: #{pointnet_encoder_forward.1} parent=5 // pred_check
        _
      $region98: #{pointnet_encoder_forward.1} parent=5 // pred_check_branch
        %618 = sbr.rel (%p615) target = $region100
      $region99: #{pointnet_encoder_forward.1} parent=5 // pred_region
        %s619 = ssub.s32 %s30, 1
        // Predicated region
        $region101: #{pointnet_encoder_forward.1} parent=99 // pred_check
          %p620 = pneg %p203
        $region102: #{pointnet_encoder_forward.1} parent=99 // pred_check_branch
          %622 = sbr.rel (%p620) target = $region104
        $region103: #{pointnet_encoder_forward.1} parent=99 // pred_region
          %624 = dma.done [#allocation3], 32768
        $region104: #{pointnet_encoder_forward.1} parent=99 // pred_fallthru
          _
        // Predicated region
        $region105: #{pointnet_encoder_forward.1} parent=99 // pred_check
          %p625 = pneg %p434
        $region106: #{pointnet_encoder_forward.1} parent=99 // pred_check_branch
          %627 = sbr.rel (%p625) target = $region108
        $region107: #{pointnet_encoder_forward.1} parent=99 // pred_region
          %629 = dma.done [#allocation5], 8192
        $region108: #{pointnet_encoder_forward.1} parent=99 // pred_fallthru
          _
        %p630 = scmp.lt.s32.totalorder %s35, 1
        %s631 = scalar_select %p630, %s35, 1
        %s632 = smul.addr %s631, 32
        %s633 = smul.addr %s632, 8
        %s634 = scalar_lea.vmem %s0, %s633
        %p635 = pneg %p56
        %p636 = pneg %p53
        %p637 = pneg %p77
        %p638 = pneg %p74
        %p639 = pneg %p98
        %p640 = pneg %p95
        %p641 = pneg %p119
        %p642 = pneg %p116
        %p643 = pneg %p140
        %p644 = pneg %p137
        %p645 = pneg %p161
        %p646 = pneg %p158
        %p647 = pneg %p182
        %p648 = pneg %p179
        %p649 = pneg %p203
        %p650 = pneg %p200
        %p651 = pneg %p224
        %p652 = pneg %p221
        %p653 = pneg %p245
        %p654 = pneg %p242
        %p655 = pneg %p266
        %p656 = pneg %p263
        %p657 = pneg %p287
        %p658 = pneg %p284
        %p659 = pneg %p308
        %p660 = pneg %p305
        %p661 = pneg %p329
        %p662 = pneg %p326
        %p663 = pneg %p350
        %p664 = pneg %p347
        %p665 = pneg %p371
        %p666 = pneg %p368
        %p667 = pneg %p392
        %p668 = pneg %p389
        %p669 = pneg %p413
        %p670 = pneg %p410
        %p671 = pneg %p434
        %p672 = pneg %p431
        %p673 = pneg %p455
        %p674 = pneg %p452
        %p675 = pneg %p481
        %p676 = pneg %p478
        %p677 = scmp.lt.s32.totalorder %s35, 1
        %s678 = scalar_select %p677, %s35, 1
        %s679 = smul.addr %s678, 8
        %s680 = scalar_lea.vmem %s20, %s679
        %p681 = pneg %p507
        %p682 = pneg %p504
        %p683 = scmp.lt.s32.totalorder %s35, 1
        %s684 = scalar_select %p683, %s35, 1
        %s685 = scalar_lea.vmem %s21, %s684
        %p686 = scmp.lt.s32.totalorder %s35, 1
        %s687 = scalar_select %p686, %s35, 1
        %s688 = smul.addr %s687, 32
        %s689 = smul.addr %s688, 8
        %s690 = scalar_lea.vmem %s0, %s689
        %p691 = scmp.lt.s32.totalorder %s35, 1
        %s692 = scalar_select %p691, %s35, 1
        %s693 = smul.addr %s692, 8
        %s694 = scalar_lea.vmem %s20, %s693
        %p695 = scmp.lt.s32.totalorder %s35, 1
        %s696 = scalar_select %p695, %s35, 1
        %s697 = scalar_lea.vmem %s21, %s696
        %v699 = vld [vmem:[%s690] sm:$0xff]
        %v700 = vld [vmem:[%s690 + $0x8] sm:$0xff]
        %v701 = vld [vmem:[%s690 + $0x10] sm:$0xff]
        %v702 = vld [vmem:[%s690 + $0x18] sm:$0xff]
        %v703 = vld [vmem:[%s690 + $0x20] sm:$0xff]
        %v704 = vld [vmem:[%s690 + $0x28] sm:$0xff]
        %v705 = vld [vmem:[%s690 + $0x30] sm:$0xff]
        %v706 = vld [vmem:[%s690 + $0x38] sm:$0xff]
        %v707 = vld [vmem:[%s690 + $0x40] sm:$0xff]
        %v708 = vld [vmem:[%s690 + $0x48] sm:$0xff]
        %v709 = vld [vmem:[%s690 + $0x50] sm:$0xff]
        %v710 = vld [vmem:[%s690 + $0x58] sm:$0xff]
        %v711 = vld [vmem:[%s690 + $0x60] sm:$0xff]
        %v712 = vld [vmem:[%s690 + $0x68] sm:$0xff]
        %v713 = vld [vmem:[%s690 + $0x70] sm:$0xff]
        %v714 = vld [vmem:[%s690 + $0x78] sm:$0xff]
        %v715 = vld [vmem:[%s690 + $0x80] sm:$0xff]
        %v716 = vld [vmem:[%s690 + $0x88] sm:$0xff]
        %v717 = vld [vmem:[%s690 + $0x90] sm:$0xff]
        %v718 = vld [vmem:[%s690 + $0x98] sm:$0xff]
        %v719 = vld [vmem:[%s690 + $0xa0] sm:$0xff]
        %v720 = vld [vmem:[%s690 + $0xa8] sm:$0xff]
        %v721 = vld [vmem:[%s690 + $0xb0] sm:$0xff]
        %v722 = vld [vmem:[%s690 + $0xb8] sm:$0xff]
        %v723 = vld [vmem:[%s690 + $0xc0] sm:$0xff]
        %v724 = vld [vmem:[%s690 + $0xc8] sm:$0xff]
        %v725 = vld [vmem:[%s690 + $0xd0] sm:$0xff]
        %v726 = vld [vmem:[%s690 + $0xd8] sm:$0xff]
        %v727 = vld [vmem:[%s690 + $0xe0] sm:$0xff]
        %v728 = vld [vmem:[%s690 + $0xe8] sm:$0xff]
        %v729 = vld [vmem:[%s690 + $0xf0] sm:$0xff]
        %v730 = vld [vmem:[%s690 + $0xf8] sm:$0xff]
        %v731 = vpack.c.bf16 %v700, %v699
        %v732 = vpack.c.bf16 %v702, %v701
        %v733 = vpack.c.bf16 %v704, %v703
        %v734 = vpack.c.bf16 %v706, %v705
        %v735 = vpack.c.bf16 %v708, %v707
        %v736 = vpack.c.bf16 %v710, %v709
        %v737 = vpack.c.bf16 %v712, %v711
        %v738 = vpack.c.bf16 %v714, %v713
        %v739 = vpack.c.bf16 %v716, %v715
        %v740 = vpack.c.bf16 %v718, %v717
        %v741 = vpack.c.bf16 %v720, %v719
        %v742 = vpack.c.bf16 %v722, %v721
        %v743 = vpack.c.bf16 %v724, %v723
        %v744 = vpack.c.bf16 %v726, %v725
        %v745 = vpack.c.bf16 %v728, %v727
        %v746 = vpack.c.bf16 %v730, %v729
        %v747 = vld [vmem:[%s1] sm:$0x3]
        %v748 = vld [vmem:[%s2] sm:$0x1]
        %v750 = vperm.slane %v748, 0
        %vm752 = vcmask 23552
        %v754 = vsel %vm752, %v731, 0
        %v757 = vsel %vm752, %v732, 0
        %v760 = vsel %vm752, %v733, 0
        %v763 = vsel %vm752, %v734, 0
        %v766 = vsel %vm752, %v735, 0
        %v769 = vsel %vm752, %v736, 0
        %v772 = vsel %vm752, %v737, 0
        %v775 = vsel %vm752, %v738, 0
        %v778 = vsel %vm752, %v739, 0
        %v781 = vsel %vm752, %v740, 0
        %v784 = vsel %vm752, %v741, 0
        %v787 = vsel %vm752, %v742, 0
        %v790 = vsel %vm752, %v743, 0
        %v793 = vsel %vm752, %v744, 0
        %v796 = vsel %vm752, %v745, 0
        %v799 = vsel %vm752, %v746, 0
        %vm801 = vcmask 1040384
        %vm802 = vcmask 1041408
        %v803 = vsel %vm801, 4294967295, 65535
        %v804 = vsel %vm802, %v803, 0
        %v806 = vand.u32 %v747, %v804
        %808 = vmatpush.bf16.msra.mxu0 0
        %809 = vmatpush.bf16.msra.mxu0 0
        %810 = vmatpush.bf16.msra.mxu0 0
        %811 = vmatpush.bf16.msra.mxu0 0
        %812 = vmatpush.bf16.msra.mxu0 0
        %813 = vmatpush.bf16.msra.mxu0 0
        %814 = vmatpush.bf16.msra.mxu0 0
        %815 = vmatpush.bf16.msra.mxu0 %v806
        %816 = vmatmul.bf16.gmra.mxu0 %v754
        %v817 = vpop.f32.mrf.mxu0
        %v818 = vadd.f32 %v750, %v817
        %v819 = vpop.f32.mrf.mxu0
        %v820 = vadd.f32 %v750, %v819
        %821 = vmatmul.bf16.gmra.mxu0 %v757
        %v822 = vpop.f32.mrf.mxu0
        %v823 = vadd.f32 %v750, %v822
        %v824 = vpop.f32.mrf.mxu0
        %v825 = vadd.f32 %v750, %v824
        %826 = vmatmul.bf16.gmra.mxu0 %v760
        %v827 = vpop.f32.mrf.mxu0
        %v828 = vadd.f32 %v750, %v827
        %v829 = vpop.f32.mrf.mxu0
        %v830 = vadd.f32 %v750, %v829
        %831 = vmatmul.bf16.gmra.mxu0 %v763
        %v832 = vpop.f32.mrf.mxu0
        %v833 = vadd.f32 %v750, %v832
        %v834 = vpop.f32.mrf.mxu0
        %v835 = vadd.f32 %v750, %v834
        %836 = vmatmul.bf16.gmra.mxu0 %v766
        %v837 = vpop.f32.mrf.mxu0
        %v838 = vadd.f32 %v750, %v837
        %v839 = vpop.f32.mrf.mxu0
        %v840 = vadd.f32 %v750, %v839
        %841 = vmatmul.bf16.gmra.mxu0 %v769
        %v842 = vpop.f32.mrf.mxu0
        %v843 = vadd.f32 %v750, %v842
        %v844 = vpop.f32.mrf.mxu0
        %v845 = vadd.f32 %v750, %v844
        %846 = vmatmul.bf16.gmra.mxu0 %v772
        %v847 = vpop.f32.mrf.mxu0
        %v848 = vadd.f32 %v750, %v847
        %v849 = vpop.f32.mrf.mxu0
        %v850 = vadd.f32 %v750, %v849
        %851 = vmatmul.bf16.gmra.mxu0 %v775
        %v852 = vpop.f32.mrf.mxu0
        %v853 = vadd.f32 %v750, %v852
        %v854 = vpop.f32.mrf.mxu0
        %v855 = vadd.f32 %v750, %v854
        %856 = vmatmul.bf16.gmra.mxu0 %v778
        %v857 = vpop.f32.mrf.mxu0
        %v858 = vadd.f32 %v750, %v857
        %v859 = vpop.f32.mrf.mxu0
        %v860 = vadd.f32 %v750, %v859
        %861 = vmatmul.bf16.gmra.mxu0 %v781
        %v862 = vpop.f32.mrf.mxu0
        %v863 = vadd.f32 %v750, %v862
        %v864 = vpop.f32.mrf.mxu0
        %v865 = vadd.f32 %v750, %v864
        %866 = vmatmul.bf16.gmra.mxu0 %v784
        %v867 = vpop.f32.mrf.mxu0
        %v868 = vadd.f32 %v750, %v867
        %v869 = vpop.f32.mrf.mxu0
        %v870 = vadd.f32 %v750, %v869
        %871 = vmatmul.bf16.gmra.mxu0 %v787
        %v872 = vpop.f32.mrf.mxu0
        %v873 = vadd.f32 %v750, %v872
        %v874 = vpop.f32.mrf.mxu0
        %v875 = vadd.f32 %v750, %v874
        %876 = vmatmul.bf16.gmra.mxu0 %v790
        %v877 = vpop.f32.mrf.mxu0
        %v878 = vadd.f32 %v750, %v877
        %v879 = vpop.f32.mrf.mxu0
        %v880 = vadd.f32 %v750, %v879
        %881 = vmatmul.bf16.gmra.mxu0 %v793
        %v882 = vpop.f32.mrf.mxu0
        %v883 = vadd.f32 %v750, %v882
        %v884 = vpop.f32.mrf.mxu0
        %v885 = vadd.f32 %v750, %v884
        %886 = vmatmul.bf16.gmra.mxu0 %v796
        %v887 = vpop.f32.mrf.mxu0
        %v888 = vadd.f32 %v750, %v887
        %v889 = vpop.f32.mrf.mxu0
        %v890 = vadd.f32 %v750, %v889
        %891 = vmatmul.bf16.gmra.mxu0 %v799
        %v892 = vpop.f32.mrf.mxu0
        %v893 = vadd.f32 %v750, %v892
        %v894 = vpop.f32.mrf.mxu0
        %v895 = vadd.f32 %v750, %v894
        %896 = vdwg.mxu0
        %vm897 = vcmask 523264
        %v898 = vsel %vm897, %v818, 0.0
        %v899 = vsel %vm897, %v820, 0.0
        %v900 = vadd.f32 %v898, %v899
        %v901 = vsel %vm897, %v823, 0.0
        %v902 = vadd.f32 %v900, %v901
        %v903 = vsel %vm897, %v825, 0.0
        %v904 = vadd.f32 %v902, %v903
        %v905 = vsel %vm897, %v828, 0.0
        %v906 = vadd.f32 %v904, %v905
        %v907 = vsel %vm897, %v830, 0.0
        %v908 = vadd.f32 %v906, %v907
        %v909 = vsel %vm897, %v833, 0.0
        %v910 = vadd.f32 %v908, %v909
        %v911 = vsel %vm897, %v835, 0.0
        %v912 = vadd.f32 %v910, %v911
        %v913 = vsel %vm897, %v838, 0.0
        %v914 = vadd.f32 %v912, %v913
        %v915 = vsel %vm897, %v840, 0.0
        %v916 = vadd.f32 %v914, %v915
        %v917 = vsel %vm897, %v843, 0.0
        %v918 = vadd.f32 %v916, %v917
        %v919 = vsel %vm897, %v845, 0.0
        %v920 = vadd.f32 %v918, %v919
        %v921 = vsel %vm897, %v848, 0.0
        %v922 = vadd.f32 %v920, %v921
        %v923 = vsel %vm897, %v850, 0.0
        %v924 = vadd.f32 %v922, %v923
        %v925 = vsel %vm897, %v853, 0.0
        %v926 = vadd.f32 %v924, %v925
        %v927 = vsel %vm897, %v855, 0.0
        %v928 = vadd.f32 %v926, %v927
        %v929 = vsel %vm897, %v858, 0.0
        %v930 = vadd.f32 %v928, %v929
        %v931 = vsel %vm897, %v860, 0.0
        %v932 = vadd.f32 %v930, %v931
        %v933 = vsel %vm897, %v863, 0.0
        %v934 = vadd.f32 %v932, %v933
        %v935 = vsel %vm897, %v865, 0.0
        %v936 = vadd.f32 %v934, %v935
        %v937 = vsel %vm897, %v868, 0.0
        %v938 = vadd.f32 %v936, %v937
        %v939 = vsel %vm897, %v870, 0.0
        %v940 = vadd.f32 %v938, %v939
        %v941 = vsel %vm897, %v873, 0.0
        %v942 = vadd.f32 %v940, %v941
        %v943 = vsel %vm897, %v875, 0.0
        %v944 = vadd.f32 %v942, %v943
        %v945 = vsel %vm897, %v878, 0.0
        %v946 = vadd.f32 %v944, %v945
        %v947 = vsel %vm897, %v880, 0.0
        %v948 = vadd.f32 %v946, %v947
        %v949 = vsel %vm897, %v883, 0.0
        %v950 = vadd.f32 %v948, %v949
        %v951 = vsel %vm897, %v885, 0.0
        %v952 = vadd.f32 %v950, %v951
        %v953 = vsel %vm897, %v888, 0.0
        %v954 = vadd.f32 %v952, %v953
        %v955 = vsel %vm897, %v890, 0.0
        %v956 = vadd.f32 %v954, %v955
        %v957 = vsel %vm897, %v893, 0.0
        %v958 = vadd.f32 %v956, %v957
        %v959 = vsel %vm897, %v895, 0.0
        %v960 = vadd.f32 %v958, %v959
        %v961 = vrot.slane %v960, 4
        %v962 = vadd.f32 %v960, %v961
        %v963 = vrot.slane %v962, 2
        %v964 = vadd.f32 %v962, %v963
        %v965 = vrot.slane %v964, 1
        %v966 = vadd.f32 %v964, %v965
        %v967 = vmul.f32 %v966, 0.00390625
        %v968 = vmul.f32 %v818, %v818
        %v969 = vmul.f32 %v820, %v820
        %v970 = vmul.f32 %v823, %v823
        %v971 = vmul.f32 %v825, %v825
        %v972 = vmul.f32 %v828, %v828
        %v973 = vmul.f32 %v830, %v830
        %v974 = vmul.f32 %v833, %v833
        %v975 = vmul.f32 %v835, %v835
        %v976 = vmul.f32 %v838, %v838
        %v977 = vmul.f32 %v840, %v840
        %v978 = vmul.f32 %v843, %v843
        %v979 = vmul.f32 %v845, %v845
        %v980 = vmul.f32 %v848, %v848
        %v981 = vmul.f32 %v850, %v850
        %v982 = vmul.f32 %v853, %v853
        %v983 = vmul.f32 %v855, %v855
        %v984 = vmul.f32 %v858, %v858
        %v985 = vmul.f32 %v860, %v860
        %v986 = vmul.f32 %v863, %v863
        %v987 = vmul.f32 %v865, %v865
        %v988 = vmul.f32 %v868, %v868
        %v989 = vmul.f32 %v870, %v870
        %v990 = vmul.f32 %v873, %v873
        %v991 = vmul.f32 %v875, %v875
        %v992 = vmul.f32 %v878, %v878
        %v993 = vmul.f32 %v880, %v880
        %v994 = vmul.f32 %v883, %v883
        %v995 = vmul.f32 %v885, %v885
        %v996 = vmul.f32 %v888, %v888
        %v997 = vmul.f32 %v890, %v890
        %v998 = vmul.f32 %v893, %v893
        %v999 = vmul.f32 %v895, %v895
        %v1000 = vsel %vm897, %v968, 0.0
        %v1001 = vsel %vm897, %v969, 0.0
        %v1002 = vadd.f32 %v1000, %v1001
        %v1003 = vsel %vm897, %v970, 0.0
        %v1004 = vadd.f32 %v1002, %v1003
        %v1005 = vsel %vm897, %v971, 0.0
        %v1006 = vadd.f32 %v1004, %v1005
        %v1007 = vsel %vm897, %v972, 0.0
        %v1008 = vadd.f32 %v1006, %v1007
        %v1009 = vsel %vm897, %v973, 0.0
        %v1010 = vadd.f32 %v1008, %v1009
        %v1011 = vsel %vm897, %v974, 0.0
        %v1012 = vadd.f32 %v1010, %v1011
        %v1013 = vsel %vm897, %v975, 0.0
        %v1014 = vadd.f32 %v1012, %v1013
        %v1015 = vsel %vm897, %v976, 0.0
        %v1016 = vadd.f32 %v1014, %v1015
        %v1017 = vsel %vm897, %v977, 0.0
        %v1018 = vadd.f32 %v1016, %v1017
        %v1019 = vsel %vm897, %v978, 0.0
        %v1020 = vadd.f32 %v1018, %v1019
        %v1021 = vsel %vm897, %v979, 0.0
        %v1022 = vadd.f32 %v1020, %v1021
        %v1023 = vsel %vm897, %v980, 0.0
        %v1024 = vadd.f32 %v1022, %v1023
        %v1025 = vsel %vm897, %v981, 0.0
        %v1026 = vadd.f32 %v1024, %v1025
        %v1027 = vsel %vm897, %v982, 0.0
        %v1028 = vadd.f32 %v1026, %v1027
        %v1029 = vsel %vm897, %v983, 0.0
        %v1030 = vadd.f32 %v1028, %v1029
        %v1031 = vsel %vm897, %v984, 0.0
        %v1032 = vadd.f32 %v1030, %v1031
        %v1033 = vsel %vm897, %v985, 0.0
        %v1034 = vadd.f32 %v1032, %v1033
        %v1035 = vsel %vm897, %v986, 0.0
        %v1036 = vadd.f32 %v1034, %v1035
        %v1037 = vsel %vm897, %v987, 0.0
        %v1038 = vadd.f32 %v1036, %v1037
        %v1039 = vsel %vm897, %v988, 0.0
        %v1040 = vadd.f32 %v1038, %v1039
        %v1041 = vsel %vm897, %v989, 0.0
        %v1042 = vadd.f32 %v1040, %v1041
        %v1043 = vsel %vm897, %v990, 0.0
        %v1044 = vadd.f32 %v1042, %v1043
        %v1045 = vsel %vm897, %v991, 0.0
        %v1046 = vadd.f32 %v1044, %v1045
        %v1047 = vsel %vm897, %v992, 0.0
        %v1048 = vadd.f32 %v1046, %v1047
        %v1049 = vsel %vm897, %v993, 0.0
        %v1050 = vadd.f32 %v1048, %v1049
        %v1051 = vsel %vm897, %v994, 0.0
        %v1052 = vadd.f32 %v1050, %v1051
        %v1053 = vsel %vm897, %v995, 0.0
        %v1054 = vadd.f32 %v1052, %v1053
        %v1055 = vsel %vm897, %v996, 0.0
        %v1056 = vadd.f32 %v1054, %v1055
        %v1057 = vsel %vm897, %v997, 0.0
        %v1058 = vadd.f32 %v1056, %v1057
        %v1059 = vsel %vm897, %v998, 0.0
        %v1060 = vadd.f32 %v1058, %v1059
        %v1061 = vsel %vm897, %v999, 0.0
        %v1062 = vadd.f32 %v1060, %v1061
        %v1063 = vrot.slane %v1062, 4
        %v1064 = vadd.f32 %v1062, %v1063
        %v1065 = vrot.slane %v1064, 2
        %v1066 = vadd.f32 %v1064, %v1065
        %v1067 = vrot.slane %v1066, 1
        %v1068 = vadd.f32 %v1066, %v1067
        %v1069 = vmul.f32 %v1068, 0.00390625
        %v1070 = vsub.f32 %v818, %v967
        %v1071 = vsub.f32 %v820, %v967
        %v1072 = vsub.f32 %v823, %v967
        %v1073 = vsub.f32 %v825, %v967
        %v1074 = vsub.f32 %v828, %v967
        %v1075 = vsub.f32 %v830, %v967
        %v1076 = vsub.f32 %v833, %v967
        %v1077 = vsub.f32 %v835, %v967
        %v1078 = vsub.f32 %v838, %v967
        %v1079 = vsub.f32 %v840, %v967
        %v1080 = vsub.f32 %v843, %v967
        %v1081 = vsub.f32 %v845, %v967
        %v1082 = vsub.f32 %v848, %v967
        %v1083 = vsub.f32 %v850, %v967
        %v1084 = vsub.f32 %v853, %v967
        %v1085 = vsub.f32 %v855, %v967
        %v1086 = vsub.f32 %v858, %v967
        %v1087 = vsub.f32 %v860, %v967
        %v1088 = vsub.f32 %v863, %v967
        %v1089 = vsub.f32 %v865, %v967
        %v1090 = vsub.f32 %v868, %v967
        %v1091 = vsub.f32 %v870, %v967
        %v1092 = vsub.f32 %v873, %v967
        %v1093 = vsub.f32 %v875, %v967
        %v1094 = vsub.f32 %v878, %v967
        %v1095 = vsub.f32 %v880, %v967
        %v1096 = vsub.f32 %v883, %v967
        %v1097 = vsub.f32 %v885, %v967
        %v1098 = vsub.f32 %v888, %v967
        %v1099 = vsub.f32 %v890, %v967
        %v1100 = vsub.f32 %v893, %v967
        %v1101 = vsub.f32 %v895, %v967
        %v1102 = vmul.f32 %v967, %v967
        %v1103 = vsub.f32 %v1069, %v1102
        %v1104 = vadd.f32 %v1103, 1e-05
        %v1105 = vrsqrt.pop %v1104
        %v1106 = vmul.f32 %v1105, %v1104
        %v1107 = vmul.f32 %v1106, %v1105
        %v1108 = vmul.f32 0.5, %v1107
        %v1109 = vsub.f32 1.5, %v1108
        %v1110 = vmul.f32 %v1105, %v1109
        %vm1111 = vweird.f32 %v1104
        %vm1112 = vweird.f32 %v1105
        %vm1113 = vmor %vm1111, %vm1112
        %v1114 = vsel %vm1113, %v1105, %v1110
        %v1115 = vmul.f32 %v1070, %v1114
        %v1116 = vmul.f32 %v1071, %v1114
        %v1117 = vmul.f32 %v1072, %v1114
        %v1118 = vmul.f32 %v1073, %v1114
        %v1119 = vmul.f32 %v1074, %v1114
        %v1120 = vmul.f32 %v1075, %v1114
        %v1121 = vmul.f32 %v1076, %v1114
        %v1122 = vmul.f32 %v1077, %v1114
        %v1123 = vmul.f32 %v1078, %v1114
        %v1124 = vmul.f32 %v1079, %v1114
        %v1125 = vmul.f32 %v1080, %v1114
        %v1126 = vmul.f32 %v1081, %v1114
        %v1127 = vmul.f32 %v1082, %v1114
        %v1128 = vmul.f32 %v1083, %v1114
        %v1129 = vmul.f32 %v1084, %v1114
        %v1130 = vmul.f32 %v1085, %v1114
        %v1131 = vmul.f32 %v1086, %v1114
        %v1132 = vmul.f32 %v1087, %v1114
        %v1133 = vmul.f32 %v1088, %v1114
        %v1134 = vmul.f32 %v1089, %v1114
        %v1135 = vmul.f32 %v1090, %v1114
        %v1136 = vmul.f32 %v1091, %v1114
        %v1137 = vmul.f32 %v1092, %v1114
        %v1138 = vmul.f32 %v1093, %v1114
        %v1139 = vmul.f32 %v1094, %v1114
        %v1140 = vmul.f32 %v1095, %v1114
        %v1141 = vmul.f32 %v1096, %v1114
        %v1142 = vmul.f32 %v1097, %v1114
        %v1143 = vmul.f32 %v1098, %v1114
        %v1144 = vmul.f32 %v1099, %v1114
        %v1145 = vmul.f32 %v1100, %v1114
        %v1146 = vmul.f32 %v1101, %v1114
        %v1147 = vpack.c.bf16 %v1115, %v1115
        %v1148 = vpack.c.bf16 %v1116, %v1116
        %v1149 = vpack.c.bf16 %v1117, %v1117
        %v1150 = vpack.c.bf16 %v1118, %v1118
        %v1151 = vpack.c.bf16 %v1119, %v1119
        %v1152 = vpack.c.bf16 %v1120, %v1120
        %v1153 = vpack.c.bf16 %v1121, %v1121
        %v1154 = vpack.c.bf16 %v1122, %v1122
        %v1155 = vpack.c.bf16 %v1123, %v1123
        %v1156 = vpack.c.bf16 %v1124, %v1124
        %v1157 = vpack.c.bf16 %v1125, %v1125
        %v1158 = vpack.c.bf16 %v1126, %v1126
        %v1159 = vpack.c.bf16 %v1127, %v1127
        %v1160 = vpack.c.bf16 %v1128, %v1128
        %v1161 = vpack.c.bf16 %v1129, %v1129
        %v1162 = vpack.c.bf16 %v1130, %v1130
        %v1163 = vpack.c.bf16 %v1131, %v1131
        %v1164 = vpack.c.bf16 %v1132, %v1132
        %v1165 = vpack.c.bf16 %v1133, %v1133
        %v1166 = vpack.c.bf16 %v1134, %v1134
        %v1167 = vpack.c.bf16 %v1135, %v1135
        %v1168 = vpack.c.bf16 %v1136, %v1136
        %v1169 = vpack.c.bf16 %v1137, %v1137
        %v1170 = vpack.c.bf16 %v1138, %v1138
        %v1171 = vpack.c.bf16 %v1139, %v1139
        %v1172 = vpack.c.bf16 %v1140, %v1140
        %v1173 = vpack.c.bf16 %v1141, %v1141
        %v1174 = vpack.c.bf16 %v1142, %v1142
        %v1175 = vpack.c.bf16 %v1143, %v1143
        %v1176 = vpack.c.bf16 %v1144, %v1144
        %v1177 = vpack.c.bf16 %v1145, %v1145
        %v1178 = vpack.c.bf16 %v1146, %v1146
        %v1179 = vunpack.c.l.bf16 %v1147
        %v1180 = vunpack.c.l.bf16 %v1148
        %v1181 = vunpack.c.l.bf16 %v1149
        %v1182 = vunpack.c.l.bf16 %v1150
        %v1183 = vunpack.c.l.bf16 %v1151
        %v1184 = vunpack.c.l.bf16 %v1152
        %v1185 = vunpack.c.l.bf16 %v1153
        %v1186 = vunpack.c.l.bf16 %v1154
        %v1187 = vunpack.c.l.bf16 %v1155
        %v1188 = vunpack.c.l.bf16 %v1156
        %v1189 = vunpack.c.l.bf16 %v1157
        %v1190 = vunpack.c.l.bf16 %v1158
        %v1191 = vunpack.c.l.bf16 %v1159
        %v1192 = vunpack.c.l.bf16 %v1160
        %v1193 = vunpack.c.l.bf16 %v1161
        %v1194 = vunpack.c.l.bf16 %v1162
        %v1195 = vunpack.c.l.bf16 %v1163
        %v1196 = vunpack.c.l.bf16 %v1164
        %v1197 = vunpack.c.l.bf16 %v1165
        %v1198 = vunpack.c.l.bf16 %v1166
        %v1199 = vunpack.c.l.bf16 %v1167
        %v1200 = vunpack.c.l.bf16 %v1168
        %v1201 = vunpack.c.l.bf16 %v1169
        %v1202 = vunpack.c.l.bf16 %v1170
        %v1203 = vunpack.c.l.bf16 %v1171
        %v1204 = vunpack.c.l.bf16 %v1172
        %v1205 = vunpack.c.l.bf16 %v1173
        %v1206 = vunpack.c.l.bf16 %v1174
        %v1207 = vunpack.c.l.bf16 %v1175
        %v1208 = vunpack.c.l.bf16 %v1176
        %v1209 = vunpack.c.l.bf16 %v1177
        %v1210 = vunpack.c.l.bf16 %v1178
        %v1211 = vmax.f32 %v1179, 0.0
        %v1212 = vmax.f32 %v1180, 0.0
        %v1213 = vmax.f32 %v1181, 0.0
        %v1214 = vmax.f32 %v1182, 0.0
        %v1215 = vmax.f32 %v1183, 0.0
        %v1216 = vmax.f32 %v1184, 0.0
        %v1217 = vmax.f32 %v1185, 0.0
        %v1218 = vmax.f32 %v1186, 0.0
        %v1219 = vmax.f32 %v1187, 0.0
        %v1220 = vmax.f32 %v1188, 0.0
        %v1221 = vmax.f32 %v1189, 0.0
        %v1222 = vmax.f32 %v1190, 0.0
        %v1223 = vmax.f32 %v1191, 0.0
        %v1224 = vmax.f32 %v1192, 0.0
        %v1225 = vmax.f32 %v1193, 0.0
        %v1226 = vmax.f32 %v1194, 0.0
        %v1227 = vmax.f32 %v1195, 0.0
        %v1228 = vmax.f32 %v1196, 0.0
        %v1229 = vmax.f32 %v1197, 0.0
        %v1230 = vmax.f32 %v1198, 0.0
        %v1231 = vmax.f32 %v1199, 0.0
        %v1232 = vmax.f32 %v1200, 0.0
        %v1233 = vmax.f32 %v1201, 0.0
        %v1234 = vmax.f32 %v1202, 0.0
        %v1235 = vmax.f32 %v1203, 0.0
        %v1236 = vmax.f32 %v1204, 0.0
        %v1237 = vmax.f32 %v1205, 0.0
        %v1238 = vmax.f32 %v1206, 0.0
        %v1239 = vmax.f32 %v1207, 0.0
        %v1240 = vmax.f32 %v1208, 0.0
        %v1241 = vmax.f32 %v1209, 0.0
        %v1242 = vmax.f32 %v1210, 0.0
        %v1243 = vpack.c.bf16 %v1212, %v1211
        %v1244 = vpack.c.bf16 %v1214, %v1213
        %v1245 = vpack.c.bf16 %v1216, %v1215
        %v1246 = vpack.c.bf16 %v1218, %v1217
        %v1247 = vpack.c.bf16 %v1220, %v1219
        %v1248 = vpack.c.bf16 %v1222, %v1221
        %v1249 = vpack.c.bf16 %v1224, %v1223
        %v1250 = vpack.c.bf16 %v1226, %v1225
        %v1251 = vpack.c.bf16 %v1228, %v1227
        %v1252 = vpack.c.bf16 %v1230, %v1229
        %v1253 = vpack.c.bf16 %v1232, %v1231
        %v1254 = vpack.c.bf16 %v1234, %v1233
        %v1255 = vpack.c.bf16 %v1236, %v1235
        %v1256 = vpack.c.bf16 %v1238, %v1237
        %v1257 = vpack.c.bf16 %v1240, %v1239
        %v1258 = vpack.c.bf16 %v1242, %v1241
        %v1259 = vld [vmem:[%s3] sm:$0xf]
        %v1260 = vld [vmem:[%s3 + $0x4] sm:$0xf]
        %v1261 = vld [vmem:[%s3 + $0x8] sm:$0xf]
        %v1262 = vld [vmem:[%s3 + $0xc] sm:$0xf]
        %v1263 = vld [vmem:[%s3 + $0x10] sm:$0xf]
        %v1264 = vld [vmem:[%s3 + $0x14] sm:$0xf]
        %v1265 = vld [vmem:[%s3 + $0x18] sm:$0xf]
        %v1266 = vld [vmem:[%s3 + $0x1c] sm:$0xf]
        %v1267 = vld [vmem:[%s4] sm:$0x1]
        %v1269 = vperm.slane %v1267, 0
        %v1279 = vunpack.c.l.b16 %v1259
        %v1280 = vunpack.c.l.b16 %v1260
        %v1281 = vunpack.c.l.b16 %v1261
        %v1282 = vunpack.c.l.b16 %v1262
        %v1283 = vunpack.c.l.b16 %v1263
        %v1284 = vunpack.c.l.b16 %v1264
        %v1285 = vunpack.c.l.b16 %v1265
        %v1286 = vunpack.c.l.b16 %v1266
        %v1287 = vpack.c.b16 %v1280, %v1279
        %v1288 = vpack.c.b16 %v1282, %v1281
        %v1289 = vpack.c.b16 %v1284, %v1283
        %v1290 = vpack.c.b16 %v1286, %v1285
        %v1296 = vsel %vm897, %v1243, 0
        %v1299 = vsel %vm897, %v1244, 0
        %v1302 = vsel %vm897, %v1245, 0
        %v1305 = vsel %vm897, %v1246, 0
        %v1308 = vsel %vm897, %v1247, 0
        %v1311 = vsel %vm897, %v1248, 0
        %v1314 = vsel %vm897, %v1249, 0
        %v1317 = vsel %vm897, %v1250, 0
        %v1320 = vsel %vm897, %v1251, 0
        %v1323 = vsel %vm897, %v1252, 0
        %v1326 = vsel %vm897, %v1253, 0
        %v1329 = vsel %vm897, %v1254, 0
        %v1332 = vsel %vm897, %v1255, 0
        %v1335 = vsel %vm897, %v1256, 0
        %v1338 = vsel %vm897, %v1257, 0
        %v1341 = vsel %vm897, %v1258, 0
        %1343 = vmatpush.bf16.msra.mxu0 0
        %1344 = vmatpush.bf16.msra.mxu0 0
        %1345 = vmatpush.bf16.msra.mxu0 0
        %1346 = vmatpush.bf16.msra.mxu0 0
        %1347 = vmatpush.bf16.msra.mxu0 %v1290
        %1348 = vmatpush.bf16.msra.mxu0 %v1289
        %1349 = vmatpush.bf16.msra.mxu0 %v1288
        %1350 = vmatpush.bf16.msra.mxu0 %v1287
        %1351 = vmatmul.bf16.gmra.mxu0 %v1296
        %v1352 = vpop.f32.mrf.mxu0
        %v1353 = vadd.f32 %v1269, %v1352
        %v1354 = vpop.f32.mrf.mxu0
        %v1355 = vadd.f32 %v1269, %v1354
        %1356 = vmatmul.bf16.gmra.mxu0 %v1299
        %v1357 = vpop.f32.mrf.mxu0
        %v1358 = vadd.f32 %v1269, %v1357
        %v1359 = vpop.f32.mrf.mxu0
        %v1360 = vadd.f32 %v1269, %v1359
        %1361 = vmatmul.bf16.gmra.mxu0 %v1302
        %v1362 = vpop.f32.mrf.mxu0
        %v1363 = vadd.f32 %v1269, %v1362
        %v1364 = vpop.f32.mrf.mxu0
        %v1365 = vadd.f32 %v1269, %v1364
        %1366 = vmatmul.bf16.gmra.mxu0 %v1305
        %v1367 = vpop.f32.mrf.mxu0
        %v1368 = vadd.f32 %v1269, %v1367
        %v1369 = vpop.f32.mrf.mxu0
        %v1370 = vadd.f32 %v1269, %v1369
        %1371 = vmatmul.bf16.gmra.mxu0 %v1308
        %v1372 = vpop.f32.mrf.mxu0
        %v1373 = vadd.f32 %v1269, %v1372
        %v1374 = vpop.f32.mrf.mxu0
        %v1375 = vadd.f32 %v1269, %v1374
        %1376 = vmatmul.bf16.gmra.mxu0 %v1311
        %v1377 = vpop.f32.mrf.mxu0
        %v1378 = vadd.f32 %v1269, %v1377
        %v1379 = vpop.f32.mrf.mxu0
        %v1380 = vadd.f32 %v1269, %v1379
        %1381 = vmatmul.bf16.gmra.mxu0 %v1314
        %v1382 = vpop.f32.mrf.mxu0
        %v1383 = vadd.f32 %v1269, %v1382
        %v1384 = vpop.f32.mrf.mxu0
        %v1385 = vadd.f32 %v1269, %v1384
        %1386 = vmatmul.bf16.gmra.mxu0 %v1317
        %v1387 = vpop.f32.mrf.mxu0
        %v1388 = vadd.f32 %v1269, %v1387
        %v1389 = vpop.f32.mrf.mxu0
        %v1390 = vadd.f32 %v1269, %v1389
        %1391 = vmatmul.bf16.gmra.mxu0 %v1320
        %v1392 = vpop.f32.mrf.mxu0
        %v1393 = vadd.f32 %v1269, %v1392
        %v1394 = vpop.f32.mrf.mxu0
        %v1395 = vadd.f32 %v1269, %v1394
        %1396 = vmatmul.bf16.gmra.mxu0 %v1323
        %v1397 = vpop.f32.mrf.mxu0
        %v1398 = vadd.f32 %v1269, %v1397
        %v1399 = vpop.f32.mrf.mxu0
        %v1400 = vadd.f32 %v1269, %v1399
        %1401 = vmatmul.bf16.gmra.mxu0 %v1326
        %v1402 = vpop.f32.mrf.mxu0
        %v1403 = vadd.f32 %v1269, %v1402
        %v1404 = vpop.f32.mrf.mxu0
        %v1405 = vadd.f32 %v1269, %v1404
        %1406 = vmatmul.bf16.gmra.mxu0 %v1329
        %v1407 = vpop.f32.mrf.mxu0
        %v1408 = vadd.f32 %v1269, %v1407
        %v1409 = vpop.f32.mrf.mxu0
        %v1410 = vadd.f32 %v1269, %v1409
        %1411 = vmatmul.bf16.gmra.mxu0 %v1332
        %v1412 = vpop.f32.mrf.mxu0
        %v1413 = vadd.f32 %v1269, %v1412
        %v1414 = vpop.f32.mrf.mxu0
        %v1415 = vadd.f32 %v1269, %v1414
        %1416 = vmatmul.bf16.gmra.mxu0 %v1335
        %v1417 = vpop.f32.mrf.mxu0
        %v1418 = vadd.f32 %v1269, %v1417
        %v1419 = vpop.f32.mrf.mxu0
        %v1420 = vadd.f32 %v1269, %v1419
        %1421 = vmatmul.bf16.gmra.mxu0 %v1338
        %v1422 = vpop.f32.mrf.mxu0
        %v1423 = vadd.f32 %v1269, %v1422
        %v1424 = vpop.f32.mrf.mxu0
        %v1425 = vadd.f32 %v1269, %v1424
        %1426 = vmatmul.bf16.gmra.mxu0 %v1341
        %v1427 = vpop.f32.mrf.mxu0
        %v1428 = vadd.f32 %v1269, %v1427
        %v1429 = vpop.f32.mrf.mxu0
        %v1430 = vadd.f32 %v1269, %v1429
        %1431 = vdwg.mxu0
        %v1432 = vadd.f32 %v1353, %v1355
        %v1433 = vadd.f32 %v1432, %v1358
        %v1434 = vadd.f32 %v1433, %v1360
        %v1435 = vadd.f32 %v1434, %v1363
        %v1436 = vadd.f32 %v1435, %v1365
        %v1437 = vadd.f32 %v1436, %v1368
        %v1438 = vadd.f32 %v1437, %v1370
        %v1439 = vadd.f32 %v1438, %v1373
        %v1440 = vadd.f32 %v1439, %v1375
        %v1441 = vadd.f32 %v1440, %v1378
        %v1442 = vadd.f32 %v1441, %v1380
        %v1443 = vadd.f32 %v1442, %v1383
        %v1444 = vadd.f32 %v1443, %v1385
        %v1445 = vadd.f32 %v1444, %v1388
        %v1446 = vadd.f32 %v1445, %v1390
        %v1447 = vadd.f32 %v1446, %v1393
        %v1448 = vadd.f32 %v1447, %v1395
        %v1449 = vadd.f32 %v1448, %v1398
        %v1450 = vadd.f32 %v1449, %v1400
        %v1451 = vadd.f32 %v1450, %v1403
        %v1452 = vadd.f32 %v1451, %v1405
        %v1453 = vadd.f32 %v1452, %v1408
        %v1454 = vadd.f32 %v1453, %v1410
        %v1455 = vadd.f32 %v1454, %v1413
        %v1456 = vadd.f32 %v1455, %v1415
        %v1457 = vadd.f32 %v1456, %v1418
        %v1458 = vadd.f32 %v1457, %v1420
        %v1459 = vadd.f32 %v1458, %v1423
        %v1460 = vadd.f32 %v1459, %v1425
        %v1461 = vadd.f32 %v1460, %v1428
        %v1462 = vadd.f32 %v1461, %v1430
        %v1463 = vrot.slane %v1462, 4
        %v1464 = vadd.f32 %v1462, %v1463
        %v1465 = vrot.slane %v1464, 2
        %v1466 = vadd.f32 %v1464, %v1465
        %v1467 = vrot.slane %v1466, 1
        %v1468 = vadd.f32 %v1466, %v1467
        %v1469 = vmul.f32 %v1468, 0.00390625
        %v1470 = vmul.f32 %v1353, %v1353
        %v1471 = vmul.f32 %v1355, %v1355
        %v1472 = vmul.f32 %v1358, %v1358
        %v1473 = vmul.f32 %v1360, %v1360
        %v1474 = vmul.f32 %v1363, %v1363
        %v1475 = vmul.f32 %v1365, %v1365
        %v1476 = vmul.f32 %v1368, %v1368
        %v1477 = vmul.f32 %v1370, %v1370
        %v1478 = vmul.f32 %v1373, %v1373
        %v1479 = vmul.f32 %v1375, %v1375
        %v1480 = vmul.f32 %v1378, %v1378
        %v1481 = vmul.f32 %v1380, %v1380
        %v1482 = vmul.f32 %v1383, %v1383
        %v1483 = vmul.f32 %v1385, %v1385
        %v1484 = vmul.f32 %v1388, %v1388
        %v1485 = vmul.f32 %v1390, %v1390
        %v1486 = vmul.f32 %v1393, %v1393
        %v1487 = vmul.f32 %v1395, %v1395
        %v1488 = vmul.f32 %v1398, %v1398
        %v1489 = vmul.f32 %v1400, %v1400
        %v1490 = vmul.f32 %v1403, %v1403
        %v1491 = vmul.f32 %v1405, %v1405
        %v1492 = vmul.f32 %v1408, %v1408
        %v1493 = vmul.f32 %v1410, %v1410
        %v1494 = vmul.f32 %v1413, %v1413
        %v1495 = vmul.f32 %v1415, %v1415
        %v1496 = vmul.f32 %v1418, %v1418
        %v1497 = vmul.f32 %v1420, %v1420
        %v1498 = vmul.f32 %v1423, %v1423
        %v1499 = vmul.f32 %v1425, %v1425
        %v1500 = vmul.f32 %v1428, %v1428
        %v1501 = vmul.f32 %v1430, %v1430
        %v1502 = vadd.f32 %v1470, %v1471
        %v1503 = vadd.f32 %v1502, %v1472
        %v1504 = vadd.f32 %v1503, %v1473
        %v1505 = vadd.f32 %v1504, %v1474
        %v1506 = vadd.f32 %v1505, %v1475
        %v1507 = vadd.f32 %v1506, %v1476
        %v1508 = vadd.f32 %v1507, %v1477
        %v1509 = vadd.f32 %v1508, %v1478
        %v1510 = vadd.f32 %v1509, %v1479
        %v1511 = vadd.f32 %v1510, %v1480
        %v1512 = vadd.f32 %v1511, %v1481
        %v1513 = vadd.f32 %v1512, %v1482
        %v1514 = vadd.f32 %v1513, %v1483
        %v1515 = vadd.f32 %v1514, %v1484
        %v1516 = vadd.f32 %v1515, %v1485
        %v1517 = vadd.f32 %v1516, %v1486
        %v1518 = vadd.f32 %v1517, %v1487
        %v1519 = vadd.f32 %v1518, %v1488
        %v1520 = vadd.f32 %v1519, %v1489
        %v1521 = vadd.f32 %v1520, %v1490
        %v1522 = vadd.f32 %v1521, %v1491
        %v1523 = vadd.f32 %v1522, %v1492
        %v1524 = vadd.f32 %v1523, %v1493
        %v1525 = vadd.f32 %v1524, %v1494
        %v1526 = vadd.f32 %v1525, %v1495
        %v1527 = vadd.f32 %v1526, %v1496
        %v1528 = vadd.f32 %v1527, %v1497
        %v1529 = vadd.f32 %v1528, %v1498
        %v1530 = vadd.f32 %v1529, %v1499
        %v1531 = vadd.f32 %v1530, %v1500
        %v1532 = vadd.f32 %v1531, %v1501
        %v1533 = vrot.slane %v1532, 4
        %v1534 = vadd.f32 %v1532, %v1533
        %v1535 = vrot.slane %v1534, 2
        %v1536 = vadd.f32 %v1534, %v1535
        %v1537 = vrot.slane %v1536, 1
        %v1538 = vadd.f32 %v1536, %v1537
        %v1539 = vmul.f32 %v1538, 0.00390625
        %v1540 = vsub.f32 %v1353, %v1469
        %v1541 = vsub.f32 %v1355, %v1469
        %v1542 = vsub.f32 %v1358, %v1469
        %v1543 = vsub.f32 %v1360, %v1469
        %v1544 = vsub.f32 %v1363, %v1469
        %v1545 = vsub.f32 %v1365, %v1469
        %v1546 = vsub.f32 %v1368, %v1469
        %v1547 = vsub.f32 %v1370, %v1469
        %v1548 = vsub.f32 %v1373, %v1469
        %v1549 = vsub.f32 %v1375, %v1469
        %v1550 = vsub.f32 %v1378, %v1469
        %v1551 = vsub.f32 %v1380, %v1469
        %v1552 = vsub.f32 %v1383, %v1469
        %v1553 = vsub.f32 %v1385, %v1469
        %v1554 = vsub.f32 %v1388, %v1469
        %v1555 = vsub.f32 %v1390, %v1469
        %v1556 = vsub.f32 %v1393, %v1469
        %v1557 = vsub.f32 %v1395, %v1469
        %v1558 = vsub.f32 %v1398, %v1469
        %v1559 = vsub.f32 %v1400, %v1469
        %v1560 = vsub.f32 %v1403, %v1469
        %v1561 = vsub.f32 %v1405, %v1469
        %v1562 = vsub.f32 %v1408, %v1469
        %v1563 = vsub.f32 %v1410, %v1469
        %v1564 = vsub.f32 %v1413, %v1469
        %v1565 = vsub.f32 %v1415, %v1469
        %v1566 = vsub.f32 %v1418, %v1469
        %v1567 = vsub.f32 %v1420, %v1469
        %v1568 = vsub.f32 %v1423, %v1469
        %v1569 = vsub.f32 %v1425, %v1469
        %v1570 = vsub.f32 %v1428, %v1469
        %v1571 = vsub.f32 %v1430, %v1469
        %v1572 = vmul.f32 %v1469, %v1469
        %v1573 = vsub.f32 %v1539, %v1572
        %v1574 = vadd.f32 %v1573, 1e-05
        %v1575 = vrsqrt.pop %v1574
        %v1576 = vmul.f32 %v1575, %v1574
        %v1577 = vmul.f32 %v1576, %v1575
        %v1578 = vmul.f32 0.5, %v1577
        %v1579 = vsub.f32 1.5, %v1578
        %v1580 = vmul.f32 %v1575, %v1579
        %vm1581 = vweird.f32 %v1574
        %vm1582 = vweird.f32 %v1575
        %vm1583 = vmor %vm1581, %vm1582
        %v1584 = vsel %vm1583, %v1575, %v1580
        %v1585 = vmul.f32 %v1540, %v1584
        %v1586 = vmul.f32 %v1541, %v1584
        %v1587 = vmul.f32 %v1542, %v1584
        %v1588 = vmul.f32 %v1543, %v1584
        %v1589 = vmul.f32 %v1544, %v1584
        %v1590 = vmul.f32 %v1545, %v1584
        %v1591 = vmul.f32 %v1546, %v1584
        %v1592 = vmul.f32 %v1547, %v1584
        %v1593 = vmul.f32 %v1548, %v1584
        %v1594 = vmul.f32 %v1549, %v1584
        %v1595 = vmul.f32 %v1550, %v1584
        %v1596 = vmul.f32 %v1551, %v1584
        %v1597 = vmul.f32 %v1552, %v1584
        %v1598 = vmul.f32 %v1553, %v1584
        %v1599 = vmul.f32 %v1554, %v1584
        %v1600 = vmul.f32 %v1555, %v1584
        %v1601 = vmul.f32 %v1556, %v1584
        %v1602 = vmul.f32 %v1557, %v1584
        %v1603 = vmul.f32 %v1558, %v1584
        %v1604 = vmul.f32 %v1559, %v1584
        %v1605 = vmul.f32 %v1560, %v1584
        %v1606 = vmul.f32 %v1561, %v1584
        %v1607 = vmul.f32 %v1562, %v1584
        %v1608 = vmul.f32 %v1563, %v1584
        %v1609 = vmul.f32 %v1564, %v1584
        %v1610 = vmul.f32 %v1565, %v1584
        %v1611 = vmul.f32 %v1566, %v1584
        %v1612 = vmul.f32 %v1567, %v1584
        %v1613 = vmul.f32 %v1568, %v1584
        %v1614 = vmul.f32 %v1569, %v1584
        %v1615 = vmul.f32 %v1570, %v1584
        %v1616 = vmul.f32 %v1571, %v1584
        %v1617 = vpack.c.bf16 %v1585, %v1585
        %v1618 = vpack.c.bf16 %v1586, %v1586
        %v1619 = vpack.c.bf16 %v1587, %v1587
        %v1620 = vpack.c.bf16 %v1588, %v1588
        %v1621 = vpack.c.bf16 %v1589, %v1589
        %v1622 = vpack.c.bf16 %v1590, %v1590
        %v1623 = vpack.c.bf16 %v1591, %v1591
        %v1624 = vpack.c.bf16 %v1592, %v1592
        %v1625 = vpack.c.bf16 %v1593, %v1593
        %v1626 = vpack.c.bf16 %v1594, %v1594
        %v1627 = vpack.c.bf16 %v1595, %v1595
        %v1628 = vpack.c.bf16 %v1596, %v1596
        %v1629 = vpack.c.bf16 %v1597, %v1597
        %v1630 = vpack.c.bf16 %v1598, %v1598
        %v1631 = vpack.c.bf16 %v1599, %v1599
        %v1632 = vpack.c.bf16 %v1600, %v1600
        %v1633 = vpack.c.bf16 %v1601, %v1601
        %v1634 = vpack.c.bf16 %v1602, %v1602
        %v1635 = vpack.c.bf16 %v1603, %v1603
        %v1636 = vpack.c.bf16 %v1604, %v1604
        %v1637 = vpack.c.bf16 %v1605, %v1605
        %v1638 = vpack.c.bf16 %v1606, %v1606
        %v1639 = vpack.c.bf16 %v1607, %v1607
        %v1640 = vpack.c.bf16 %v1608, %v1608
        %v1641 = vpack.c.bf16 %v1609, %v1609
        %v1642 = vpack.c.bf16 %v1610, %v1610
        %v1643 = vpack.c.bf16 %v1611, %v1611
        %v1644 = vpack.c.bf16 %v1612, %v1612
        %v1645 = vpack.c.bf16 %v1613, %v1613
        %v1646 = vpack.c.bf16 %v1614, %v1614
        %v1647 = vpack.c.bf16 %v1615, %v1615
        %v1648 = vpack.c.bf16 %v1616, %v1616
        %v1649 = vunpack.c.l.bf16 %v1617
        %v1650 = vunpack.c.l.bf16 %v1618
        %v1651 = vunpack.c.l.bf16 %v1619
        %v1652 = vunpack.c.l.bf16 %v1620
        %v1653 = vunpack.c.l.bf16 %v1621
        %v1654 = vunpack.c.l.bf16 %v1622
        %v1655 = vunpack.c.l.bf16 %v1623
        %v1656 = vunpack.c.l.bf16 %v1624
        %v1657 = vunpack.c.l.bf16 %v1625
        %v1658 = vunpack.c.l.bf16 %v1626
        %v1659 = vunpack.c.l.bf16 %v1627
        %v1660 = vunpack.c.l.bf16 %v1628
        %v1661 = vunpack.c.l.bf16 %v1629
        %v1662 = vunpack.c.l.bf16 %v1630
        %v1663 = vunpack.c.l.bf16 %v1631
        %v1664 = vunpack.c.l.bf16 %v1632
        %v1665 = vunpack.c.l.bf16 %v1633
        %v1666 = vunpack.c.l.bf16 %v1634
        %v1667 = vunpack.c.l.bf16 %v1635
        %v1668 = vunpack.c.l.bf16 %v1636
        %v1669 = vunpack.c.l.bf16 %v1637
        %v1670 = vunpack.c.l.bf16 %v1638
        %v1671 = vunpack.c.l.bf16 %v1639
        %v1672 = vunpack.c.l.bf16 %v1640
        %v1673 = vunpack.c.l.bf16 %v1641
        %v1674 = vunpack.c.l.bf16 %v1642
        %v1675 = vunpack.c.l.bf16 %v1643
        %v1676 = vunpack.c.l.bf16 %v1644
        %v1677 = vunpack.c.l.bf16 %v1645
        %v1678 = vunpack.c.l.bf16 %v1646
        %v1679 = vunpack.c.l.bf16 %v1647
        %v1680 = vunpack.c.l.bf16 %v1648
        %v1681 = vmax.f32 %v1649, 0.0
        %v1682 = vmax.f32 %v1650, 0.0
        %v1683 = vmax.f32 %v1651, 0.0
        %v1684 = vmax.f32 %v1652, 0.0
        %v1685 = vmax.f32 %v1653, 0.0
        %v1686 = vmax.f32 %v1654, 0.0
        %v1687 = vmax.f32 %v1655, 0.0
        %v1688 = vmax.f32 %v1656, 0.0
        %v1689 = vmax.f32 %v1657, 0.0
        %v1690 = vmax.f32 %v1658, 0.0
        %v1691 = vmax.f32 %v1659, 0.0
        %v1692 = vmax.f32 %v1660, 0.0
        %v1693 = vmax.f32 %v1661, 0.0
        %v1694 = vmax.f32 %v1662, 0.0
        %v1695 = vmax.f32 %v1663, 0.0
        %v1696 = vmax.f32 %v1664, 0.0
        %v1697 = vmax.f32 %v1665, 0.0
        %v1698 = vmax.f32 %v1666, 0.0
        %v1699 = vmax.f32 %v1667, 0.0
        %v1700 = vmax.f32 %v1668, 0.0
        %v1701 = vmax.f32 %v1669, 0.0
        %v1702 = vmax.f32 %v1670, 0.0
        %v1703 = vmax.f32 %v1671, 0.0
        %v1704 = vmax.f32 %v1672, 0.0
        %v1705 = vmax.f32 %v1673, 0.0
        %v1706 = vmax.f32 %v1674, 0.0
        %v1707 = vmax.f32 %v1675, 0.0
        %v1708 = vmax.f32 %v1676, 0.0
        %v1709 = vmax.f32 %v1677, 0.0
        %v1710 = vmax.f32 %v1678, 0.0
        %v1711 = vmax.f32 %v1679, 0.0
        %v1712 = vmax.f32 %v1680, 0.0
        %v1713 = vpack.c.bf16 %v1682, %v1681
        %v1714 = vpack.c.bf16 %v1684, %v1683
        %v1715 = vpack.c.bf16 %v1686, %v1685
        %v1716 = vpack.c.bf16 %v1688, %v1687
        %v1717 = vpack.c.bf16 %v1690, %v1689
        %v1718 = vpack.c.bf16 %v1692, %v1691
        %v1719 = vpack.c.bf16 %v1694, %v1693
        %v1720 = vpack.c.bf16 %v1696, %v1695
        %v1721 = vpack.c.bf16 %v1698, %v1697
        %v1722 = vpack.c.bf16 %v1700, %v1699
        %v1723 = vpack.c.bf16 %v1702, %v1701
        %v1724 = vpack.c.bf16 %v1704, %v1703
        %v1725 = vpack.c.bf16 %v1706, %v1705
        %v1726 = vpack.c.bf16 %v1708, %v1707
        %v1727 = vpack.c.bf16 %v1710, %v1709
        %v1728 = vpack.c.bf16 %v1712, %v1711
        %v1729 = vld [vmem:[%s5] sm:$0xff]
        %v1730 = vld [vmem:[%s5 + $0x8] sm:$0xff]
        %v1731 = vld [vmem:[%s5 + $0x10] sm:$0xff]
        %v1732 = vld [vmem:[%s5 + $0x18] sm:$0xff]
        %v1733 = vld [vmem:[%s5 + $0x20] sm:$0xff]
        %v1734 = vld [vmem:[%s5 + $0x28] sm:$0xff]
        %v1735 = vld [vmem:[%s5 + $0x30] sm:$0xff]
        %v1736 = vld [vmem:[%s5 + $0x38] sm:$0xff]
        %v1737 = vld [vmem:[%s5 + $0x40] sm:$0xff]
        %v1738 = vld [vmem:[%s5 + $0x48] sm:$0xff]
        %v1739 = vld [vmem:[%s5 + $0x50] sm:$0xff]
        %v1740 = vld [vmem:[%s5 + $0x58] sm:$0xff]
        %v1741 = vld [vmem:[%s5 + $0x60] sm:$0xff]
        %v1742 = vld [vmem:[%s5 + $0x68] sm:$0xff]
        %v1743 = vld [vmem:[%s5 + $0x70] sm:$0xff]
        %v1744 = vld [vmem:[%s5 + $0x78] sm:$0xff]
        %v1745 = vld [vmem:[%s5 + $0x80] sm:$0xff]
        %v1746 = vld [vmem:[%s5 + $0x88] sm:$0xff]
        %v1747 = vld [vmem:[%s5 + $0x90] sm:$0xff]
        %v1748 = vld [vmem:[%s5 + $0x98] sm:$0xff]
        %v1749 = vld [vmem:[%s5 + $0xa0] sm:$0xff]
        %v1750 = vld [vmem:[%s5 + $0xa8] sm:$0xff]
        %v1751 = vld [vmem:[%s5 + $0xb0] sm:$0xff]
        %v1752 = vld [vmem:[%s5 + $0xb8] sm:$0xff]
        %v1753 = vld [vmem:[%s5 + $0xc0] sm:$0xff]
        %v1754 = vld [vmem:[%s5 + $0xc8] sm:$0xff]
        %v1755 = vld [vmem:[%s5 + $0xd0] sm:$0xff]
        %v1756 = vld [vmem:[%s5 + $0xd8] sm:$0xff]
        %v1757 = vld [vmem:[%s5 + $0xe0] sm:$0xff]
        %v1758 = vld [vmem:[%s5 + $0xe8] sm:$0xff]
        %v1759 = vld [vmem:[%s5 + $0xf0] sm:$0xff]
        %v1760 = vld [vmem:[%s5 + $0xf8] sm:$0xff]
        %v1761 = vld [vmem:[%s5 + $0x100] sm:$0xff]
        %v1762 = vld [vmem:[%s5 + $0x108] sm:$0xff]
        %v1763 = vld [vmem:[%s5 + $0x110] sm:$0xff]
        %v1764 = vld [vmem:[%s5 + $0x118] sm:$0xff]
        %v1765 = vld [vmem:[%s5 + $0x120] sm:$0xff]
        %v1766 = vld [vmem:[%s5 + $0x128] sm:$0xff]
        %v1767 = vld [vmem:[%s5 + $0x130] sm:$0xff]
        %v1768 = vld [vmem:[%s5 + $0x138] sm:$0xff]
        %v1769 = vld [vmem:[%s5 + $0x140] sm:$0xff]
        %v1770 = vld [vmem:[%s5 + $0x148] sm:$0xff]
        %v1771 = vld [vmem:[%s5 + $0x150] sm:$0xff]
        %v1772 = vld [vmem:[%s5 + $0x158] sm:$0xff]
        %v1773 = vld [vmem:[%s5 + $0x160] sm:$0xff]
        %v1774 = vld [vmem:[%s5 + $0x168] sm:$0xff]
        %v1775 = vld [vmem:[%s5 + $0x170] sm:$0xff]
        %v1776 = vld [vmem:[%s5 + $0x178] sm:$0xff]
        %v1777 = vld [vmem:[%s5 + $0x180] sm:$0xff]
        %v1778 = vld [vmem:[%s5 + $0x188] sm:$0xff]
        %v1779 = vld [vmem:[%s5 + $0x190] sm:$0xff]
        %v1780 = vld [vmem:[%s5 + $0x198] sm:$0xff]
        %v1781 = vld [vmem:[%s5 + $0x1a0] sm:$0xff]
        %v1782 = vld [vmem:[%s5 + $0x1a8] sm:$0xff]
        %v1783 = vld [vmem:[%s5 + $0x1b0] sm:$0xff]
        %v1784 = vld [vmem:[%s5 + $0x1b8] sm:$0xff]
        %v1785 = vld [vmem:[%s5 + $0x1c0] sm:$0xff]
        %v1786 = vld [vmem:[%s5 + $0x1c8] sm:$0xff]
        %v1787 = vld [vmem:[%s5 + $0x1d0] sm:$0xff]
        %v1788 = vld [vmem:[%s5 + $0x1d8] sm:$0xff]
        %v1789 = vld [vmem:[%s5 + $0x1e0] sm:$0xff]
        %v1790 = vld [vmem:[%s5 + $0x1e8] sm:$0xff]
        %v1791 = vld [vmem:[%s5 + $0x1f0] sm:$0xff]
        %v1792 = vld [vmem:[%s5 + $0x1f8] sm:$0xff]
        %v1793 = vld [vmem:[%s6] sm:$0xff]
        %v1795 = vperm.slane %v1793, 0
        %v1796 = vperm.slane %v1793, 1
        %v1797 = vperm.slane %v1793, 2
        %v1798 = vperm.slane %v1793, 3
        %v1799 = vperm.slane %v1793, 4
        %v1800 = vperm.slane %v1793, 5
        %v1801 = vperm.slane %v1793, 6
        %v1802 = vperm.slane %v1793, 7
        %v1875 = vunpack.c.l.b16 %v1729
        %v1876 = vunpack.c.h.b16 %v1729
        %v1877 = vunpack.c.l.b16 %v1730
        %v1878 = vunpack.c.h.b16 %v1730
        %v1879 = vunpack.c.l.b16 %v1731
        %v1880 = vunpack.c.h.b16 %v1731
        %v1881 = vunpack.c.l.b16 %v1732
        %v1882 = vunpack.c.h.b16 %v1732
        %v1883 = vunpack.c.l.b16 %v1733
        %v1884 = vunpack.c.h.b16 %v1733
        %v1885 = vunpack.c.l.b16 %v1734
        %v1886 = vunpack.c.h.b16 %v1734
        %v1887 = vunpack.c.l.b16 %v1735
        %v1888 = vunpack.c.h.b16 %v1735
        %v1889 = vunpack.c.l.b16 %v1736
        %v1890 = vunpack.c.h.b16 %v1736
        %v1891 = vunpack.c.l.b16 %v1737
        %v1892 = vunpack.c.h.b16 %v1737
        %v1893 = vunpack.c.l.b16 %v1738
        %v1894 = vunpack.c.h.b16 %v1738
        %v1895 = vunpack.c.l.b16 %v1739
        %v1896 = vunpack.c.h.b16 %v1739
        %v1897 = vunpack.c.l.b16 %v1740
        %v1898 = vunpack.c.h.b16 %v1740
        %v1899 = vunpack.c.l.b16 %v1741
        %v1900 = vunpack.c.h.b16 %v1741
        %v1901 = vunpack.c.l.b16 %v1742
        %v1902 = vunpack.c.h.b16 %v1742
        %v1903 = vunpack.c.l.b16 %v1743
        %v1904 = vunpack.c.h.b16 %v1743
        %v1905 = vunpack.c.l.b16 %v1744
        %v1906 = vunpack.c.h.b16 %v1744
        %v1907 = vunpack.c.l.b16 %v1745
        %v1908 = vunpack.c.h.b16 %v1745
        %v1909 = vunpack.c.l.b16 %v1746
        %v1910 = vunpack.c.h.b16 %v1746
        %v1911 = vunpack.c.l.b16 %v1747
        %v1912 = vunpack.c.h.b16 %v1747
        %v1913 = vunpack.c.l.b16 %v1748
        %v1914 = vunpack.c.h.b16 %v1748
        %v1915 = vunpack.c.l.b16 %v1749
        %v1916 = vunpack.c.h.b16 %v1749
        %v1917 = vunpack.c.l.b16 %v1750
        %v1918 = vunpack.c.h.b16 %v1750
        %v1919 = vunpack.c.l.b16 %v1751
        %v1920 = vunpack.c.h.b16 %v1751
        %v1921 = vunpack.c.l.b16 %v1752
        %v1922 = vunpack.c.h.b16 %v1752
        %v1923 = vunpack.c.l.b16 %v1753
        %v1924 = vunpack.c.h.b16 %v1753
        %v1925 = vunpack.c.l.b16 %v1754
        %v1926 = vunpack.c.h.b16 %v1754
        %v1927 = vunpack.c.l.b16 %v1755
        %v1928 = vunpack.c.h.b16 %v1755
        %v1929 = vunpack.c.l.b16 %v1756
        %v1930 = vunpack.c.h.b16 %v1756
        %v1931 = vunpack.c.l.b16 %v1757
        %v1932 = vunpack.c.h.b16 %v1757
        %v1933 = vunpack.c.l.b16 %v1758
        %v1934 = vunpack.c.h.b16 %v1758
        %v1935 = vunpack.c.l.b16 %v1759
        %v1936 = vunpack.c.h.b16 %v1759
        %v1937 = vunpack.c.l.b16 %v1760
        %v1938 = vunpack.c.h.b16 %v1760
        %v1939 = vunpack.c.l.b16 %v1761
        %v1940 = vunpack.c.h.b16 %v1761
        %v1941 = vunpack.c.l.b16 %v1762
        %v1942 = vunpack.c.h.b16 %v1762
        %v1943 = vunpack.c.l.b16 %v1763
        %v1944 = vunpack.c.h.b16 %v1763
        %v1945 = vunpack.c.l.b16 %v1764
        %v1946 = vunpack.c.h.b16 %v1764
        %v1947 = vunpack.c.l.b16 %v1765
        %v1948 = vunpack.c.h.b16 %v1765
        %v1949 = vunpack.c.l.b16 %v1766
        %v1950 = vunpack.c.h.b16 %v1766
        %v1951 = vunpack.c.l.b16 %v1767
        %v1952 = vunpack.c.h.b16 %v1767
        %v1953 = vunpack.c.l.b16 %v1768
        %v1954 = vunpack.c.h.b16 %v1768
        %v1955 = vunpack.c.l.b16 %v1769
        %v1956 = vunpack.c.h.b16 %v1769
        %v1957 = vunpack.c.l.b16 %v1770
        %v1958 = vunpack.c.h.b16 %v1770
        %v1959 = vunpack.c.l.b16 %v1771
        %v1960 = vunpack.c.h.b16 %v1771
        %v1961 = vunpack.c.l.b16 %v1772
        %v1962 = vunpack.c.h.b16 %v1772
        %v1963 = vunpack.c.l.b16 %v1773
        %v1964 = vunpack.c.h.b16 %v1773
        %v1965 = vunpack.c.l.b16 %v1774
        %v1966 = vunpack.c.h.b16 %v1774
        %v1967 = vunpack.c.l.b16 %v1775
        %v1968 = vunpack.c.h.b16 %v1775
        %v1969 = vunpack.c.l.b16 %v1776
        %v1970 = vunpack.c.h.b16 %v1776
        %v1971 = vunpack.c.l.b16 %v1777
        %v1972 = vunpack.c.h.b16 %v1777
        %v1973 = vunpack.c.l.b16 %v1778
        %v1974 = vunpack.c.h.b16 %v1778
        %v1975 = vunpack.c.l.b16 %v1779
        %v1976 = vunpack.c.h.b16 %v1779
        %v1977 = vunpack.c.l.b16 %v1780
        %v1978 = vunpack.c.h.b16 %v1780
        %v1979 = vunpack.c.l.b16 %v1781
        %v1980 = vunpack.c.h.b16 %v1781
        %v1981 = vunpack.c.l.b16 %v1782
        %v1982 = vunpack.c.h.b16 %v1782
        %v1983 = vunpack.c.l.b16 %v1783
        %v1984 = vunpack.c.h.b16 %v1783
        %v1985 = vunpack.c.l.b16 %v1784
        %v1986 = vunpack.c.h.b16 %v1784
        %v1987 = vunpack.c.l.b16 %v1785
        %v1988 = vunpack.c.h.b16 %v1785
        %v1989 = vunpack.c.l.b16 %v1786
        %v1990 = vunpack.c.h.b16 %v1786
        %v1991 = vunpack.c.l.b16 %v1787
        %v1992 = vunpack.c.h.b16 %v1787
        %v1993 = vunpack.c.l.b16 %v1788
        %v1994 = vunpack.c.h.b16 %v1788
        %v1995 = vunpack.c.l.b16 %v1789
        %v1996 = vunpack.c.h.b16 %v1789
        %v1997 = vunpack.c.l.b16 %v1790
        %v1998 = vunpack.c.h.b16 %v1790
        %v1999 = vunpack.c.l.b16 %v1791
        %v2000 = vunpack.c.h.b16 %v1791
        %v2001 = vunpack.c.l.b16 %v1792
        %v2002 = vunpack.c.h.b16 %v1792
        %v2003 = vpack.c.b16 %v1883, %v1875
        %v2004 = vpack.c.b16 %v1884, %v1876
        %v2005 = vpack.c.b16 %v1885, %v1877
        %v2006 = vpack.c.b16 %v1886, %v1878
        %v2007 = vpack.c.b16 %v1887, %v1879
        %v2008 = vpack.c.b16 %v1888, %v1880
        %v2009 = vpack.c.b16 %v1889, %v1881
        %v2010 = vpack.c.b16 %v1890, %v1882
        %v2011 = vpack.c.b16 %v1899, %v1891
        %v2012 = vpack.c.b16 %v1900, %v1892
        %v2013 = vpack.c.b16 %v1901, %v1893
        %v2014 = vpack.c.b16 %v1902, %v1894
        %v2015 = vpack.c.b16 %v1903, %v1895
        %v2016 = vpack.c.b16 %v1904, %v1896
        %v2017 = vpack.c.b16 %v1905, %v1897
        %v2018 = vpack.c.b16 %v1906, %v1898
        %v2019 = vpack.c.b16 %v1915, %v1907
        %v2020 = vpack.c.b16 %v1916, %v1908
        %v2021 = vpack.c.b16 %v1917, %v1909
        %v2022 = vpack.c.b16 %v1918, %v1910
        %v2023 = vpack.c.b16 %v1919, %v1911
        %v2024 = vpack.c.b16 %v1920, %v1912
        %v2025 = vpack.c.b16 %v1921, %v1913
        %v2026 = vpack.c.b16 %v1922, %v1914
        %v2027 = vpack.c.b16 %v1931, %v1923
        %v2028 = vpack.c.b16 %v1932, %v1924
        %v2029 = vpack.c.b16 %v1933, %v1925
        %v2030 = vpack.c.b16 %v1934, %v1926
        %v2031 = vpack.c.b16 %v1935, %v1927
        %v2032 = vpack.c.b16 %v1936, %v1928
        %v2033 = vpack.c.b16 %v1937, %v1929
        %v2034 = vpack.c.b16 %v1938, %v1930
        %v2035 = vpack.c.b16 %v1947, %v1939
        %v2036 = vpack.c.b16 %v1948, %v1940
        %v2037 = vpack.c.b16 %v1949, %v1941
        %v2038 = vpack.c.b16 %v1950, %v1942
        %v2039 = vpack.c.b16 %v1951, %v1943
        %v2040 = vpack.c.b16 %v1952, %v1944
        %v2041 = vpack.c.b16 %v1953, %v1945
        %v2042 = vpack.c.b16 %v1954, %v1946
        %v2043 = vpack.c.b16 %v1963, %v1955
        %v2044 = vpack.c.b16 %v1964, %v1956
        %v2045 = vpack.c.b16 %v1965, %v1957
        %v2046 = vpack.c.b16 %v1966, %v1958
        %v2047 = vpack.c.b16 %v1967, %v1959
        %v2048 = vpack.c.b16 %v1968, %v1960
        %v2049 = vpack.c.b16 %v1969, %v1961
        %v2050 = vpack.c.b16 %v1970, %v1962
        %v2051 = vpack.c.b16 %v1979, %v1971
        %v2052 = vpack.c.b16 %v1980, %v1972
        %v2053 = vpack.c.b16 %v1981, %v1973
        %v2054 = vpack.c.b16 %v1982, %v1974
        %v2055 = vpack.c.b16 %v1983, %v1975
        %v2056 = vpack.c.b16 %v1984, %v1976
        %v2057 = vpack.c.b16 %v1985, %v1977
        %v2058 = vpack.c.b16 %v1986, %v1978
        %v2059 = vpack.c.b16 %v1995, %v1987
        %v2060 = vpack.c.b16 %v1996, %v1988
        %v2061 = vpack.c.b16 %v1997, %v1989
        %v2062 = vpack.c.b16 %v1998, %v1990
        %v2063 = vpack.c.b16 %v1999, %v1991
        %v2064 = vpack.c.b16 %v2000, %v1992
        %v2065 = vpack.c.b16 %v2001, %v1993
        %v2066 = vpack.c.b16 %v2002, %v1994
        %2131 = vmatpush.bf16.msra.mxu0 %v2059
        %2132 = vmatpush.bf16.msra.mxu0 %v2051
        %2133 = vmatpush.bf16.msra.mxu0 %v2043
        %2134 = vmatpush.bf16.msra.mxu0 %v2035
        %2135 = vmatpush.bf16.msra.mxu0 %v2027
        %2136 = vmatpush.bf16.msra.mxu0 %v2019
        %2137 = vmatpush.bf16.msra.mxu0 %v2011
        %2138 = vmatpush.bf16.msra.mxu0 %v2003
        %2139 = vmatmul.bf16.gmra.mxu0 %v1713
        %v2140 = vpop.f32.mrf.mxu0
        %v2141 = vadd.f32 %v1795, %v2140
        %v2142 = vpop.f32.mrf.mxu0
        %v2143 = vadd.f32 %v1795, %v2142
        %2144 = vmatmul.bf16.gmra.mxu0 %v1714
        %v2145 = vpop.f32.mrf.mxu0
        %v2146 = vadd.f32 %v1795, %v2145
        %v2147 = vpop.f32.mrf.mxu0
        %v2148 = vadd.f32 %v1795, %v2147
        %2149 = vmatmul.bf16.gmra.mxu0 %v1715
        %v2150 = vpop.f32.mrf.mxu0
        %v2151 = vadd.f32 %v1795, %v2150
        %v2152 = vpop.f32.mrf.mxu0
        %v2153 = vadd.f32 %v1795, %v2152
        %2154 = vmatmul.bf16.gmra.mxu0 %v1716
        %v2155 = vpop.f32.mrf.mxu0
        %v2156 = vadd.f32 %v1795, %v2155
        %v2157 = vpop.f32.mrf.mxu0
        %v2158 = vadd.f32 %v1795, %v2157
        %2159 = vmatmul.bf16.gmra.mxu0 %v1717
        %v2160 = vpop.f32.mrf.mxu0
        %v2161 = vadd.f32 %v1795, %v2160
        %v2162 = vpop.f32.mrf.mxu0
        %v2163 = vadd.f32 %v1795, %v2162
        %2164 = vmatmul.bf16.gmra.mxu0 %v1718
        %v2165 = vpop.f32.mrf.mxu0
        %v2166 = vadd.f32 %v1795, %v2165
        %v2167 = vpop.f32.mrf.mxu0
        %v2168 = vadd.f32 %v1795, %v2167
        %2169 = vmatmul.bf16.gmra.mxu0 %v1719
        %v2170 = vpop.f32.mrf.mxu0
        %v2171 = vadd.f32 %v1795, %v2170
        %v2172 = vpop.f32.mrf.mxu0
        %v2173 = vadd.f32 %v1795, %v2172
        %2174 = vmatmul.bf16.gmra.mxu0 %v1720
        %v2175 = vpop.f32.mrf.mxu0
        %v2176 = vadd.f32 %v1795, %v2175
        %v2177 = vpop.f32.mrf.mxu0
        %v2178 = vadd.f32 %v1795, %v2177
        %2179 = vmatmul.bf16.gmra.mxu0 %v1721
        %v2180 = vpop.f32.mrf.mxu0
        %v2181 = vadd.f32 %v1795, %v2180
        %v2182 = vpop.f32.mrf.mxu0
        %v2183 = vadd.f32 %v1795, %v2182
        %2184 = vmatmul.bf16.gmra.mxu0 %v1722
        %v2185 = vpop.f32.mrf.mxu0
        %v2186 = vadd.f32 %v1795, %v2185
        %v2187 = vpop.f32.mrf.mxu0
        %v2188 = vadd.f32 %v1795, %v2187
        %2189 = vmatmul.bf16.gmra.mxu0 %v1723
        %v2190 = vpop.f32.mrf.mxu0
        %v2191 = vadd.f32 %v1795, %v2190
        %v2192 = vpop.f32.mrf.mxu0
        %v2193 = vadd.f32 %v1795, %v2192
        %2194 = vmatmul.bf16.gmra.mxu0 %v1724
        %v2195 = vpop.f32.mrf.mxu0
        %v2196 = vadd.f32 %v1795, %v2195
        %v2197 = vpop.f32.mrf.mxu0
        %v2198 = vadd.f32 %v1795, %v2197
        %2199 = vmatmul.bf16.gmra.mxu0 %v1725
        %v2200 = vpop.f32.mrf.mxu0
        %v2201 = vadd.f32 %v1795, %v2200
        %v2202 = vpop.f32.mrf.mxu0
        %v2203 = vadd.f32 %v1795, %v2202
        %2204 = vmatmul.bf16.gmra.mxu0 %v1726
        %v2205 = vpop.f32.mrf.mxu0
        %v2206 = vadd.f32 %v1795, %v2205
        %v2207 = vpop.f32.mrf.mxu0
        %v2208 = vadd.f32 %v1795, %v2207
        %2209 = vmatmul.bf16.gmra.mxu0 %v1727
        %v2210 = vpop.f32.mrf.mxu0
        %v2211 = vadd.f32 %v1795, %v2210
        %v2212 = vpop.f32.mrf.mxu0
        %v2213 = vadd.f32 %v1795, %v2212
        %2214 = vmatmul.bf16.gmra.mxu0 %v1728
        %v2215 = vpop.f32.mrf.mxu0
        %v2216 = vadd.f32 %v1795, %v2215
        %v2217 = vpop.f32.mrf.mxu0
        %v2218 = vadd.f32 %v1795, %v2217
        %2219 = vdwg.mxu0
        %2220 = vmatpush.bf16.msra.mxu0 %v2060
        %2221 = vmatpush.bf16.msra.mxu0 %v2052
        %2222 = vmatpush.bf16.msra.mxu0 %v2044
        %2223 = vmatpush.bf16.msra.mxu0 %v2036
        %2224 = vmatpush.bf16.msra.mxu0 %v2028
        %2225 = vmatpush.bf16.msra.mxu0 %v2020
        %2226 = vmatpush.bf16.msra.mxu0 %v2012
        %2227 = vmatpush.bf16.msra.mxu0 %v2004
        %2228 = vmatmul.bf16.gmra.mxu0 %v1713
        %v2229 = vpop.f32.mrf.mxu0
        %v2230 = vadd.f32 %v1796, %v2229
        %v2231 = vpop.f32.mrf.mxu0
        %v2232 = vadd.f32 %v1796, %v2231
        %2233 = vmatmul.bf16.gmra.mxu0 %v1714
        %v2234 = vpop.f32.mrf.mxu0
        %v2235 = vadd.f32 %v1796, %v2234
        %v2236 = vpop.f32.mrf.mxu0
        %v2237 = vadd.f32 %v1796, %v2236
        %2238 = vmatmul.bf16.gmra.mxu0 %v1715
        %v2239 = vpop.f32.mrf.mxu0
        %v2240 = vadd.f32 %v1796, %v2239
        %v2241 = vpop.f32.mrf.mxu0
        %v2242 = vadd.f32 %v1796, %v2241
        %2243 = vmatmul.bf16.gmra.mxu0 %v1716
        %v2244 = vpop.f32.mrf.mxu0
        %v2245 = vadd.f32 %v1796, %v2244
        %v2246 = vpop.f32.mrf.mxu0
        %v2247 = vadd.f32 %v1796, %v2246
        %2248 = vmatmul.bf16.gmra.mxu0 %v1717
        %v2249 = vpop.f32.mrf.mxu0
        %v2250 = vadd.f32 %v1796, %v2249
        %v2251 = vpop.f32.mrf.mxu0
        %v2252 = vadd.f32 %v1796, %v2251
        %2253 = vmatmul.bf16.gmra.mxu0 %v1718
        %v2254 = vpop.f32.mrf.mxu0
        %v2255 = vadd.f32 %v1796, %v2254
        %v2256 = vpop.f32.mrf.mxu0
        %v2257 = vadd.f32 %v1796, %v2256
        %2258 = vmatmul.bf16.gmra.mxu0 %v1719
        %v2259 = vpop.f32.mrf.mxu0
        %v2260 = vadd.f32 %v1796, %v2259
        %v2261 = vpop.f32.mrf.mxu0
        %v2262 = vadd.f32 %v1796, %v2261
        %2263 = vmatmul.bf16.gmra.mxu0 %v1720
        %v2264 = vpop.f32.mrf.mxu0
        %v2265 = vadd.f32 %v1796, %v2264
        %v2266 = vpop.f32.mrf.mxu0
        %v2267 = vadd.f32 %v1796, %v2266
        %2268 = vmatmul.bf16.gmra.mxu0 %v1721
        %v2269 = vpop.f32.mrf.mxu0
        %v2270 = vadd.f32 %v1796, %v2269
        %v2271 = vpop.f32.mrf.mxu0
        %v2272 = vadd.f32 %v1796, %v2271
        %2273 = vmatmul.bf16.gmra.mxu0 %v1722
        %v2274 = vpop.f32.mrf.mxu0
        %v2275 = vadd.f32 %v1796, %v2274
        %v2276 = vpop.f32.mrf.mxu0
        %v2277 = vadd.f32 %v1796, %v2276
        %2278 = vmatmul.bf16.gmra.mxu0 %v1723
        %v2279 = vpop.f32.mrf.mxu0
        %v2280 = vadd.f32 %v1796, %v2279
        %v2281 = vpop.f32.mrf.mxu0
        %v2282 = vadd.f32 %v1796, %v2281
        %2283 = vmatmul.bf16.gmra.mxu0 %v1724
        %v2284 = vpop.f32.mrf.mxu0
        %v2285 = vadd.f32 %v1796, %v2284
        %v2286 = vpop.f32.mrf.mxu0
        %v2287 = vadd.f32 %v1796, %v2286
        %2288 = vmatmul.bf16.gmra.mxu0 %v1725
        %v2289 = vpop.f32.mrf.mxu0
        %v2290 = vadd.f32 %v1796, %v2289
        %v2291 = vpop.f32.mrf.mxu0
        %v2292 = vadd.f32 %v1796, %v2291
        %2293 = vmatmul.bf16.gmra.mxu0 %v1726
        %v2294 = vpop.f32.mrf.mxu0
        %v2295 = vadd.f32 %v1796, %v2294
        %v2296 = vpop.f32.mrf.mxu0
        %v2297 = vadd.f32 %v1796, %v2296
        %2298 = vmatmul.bf16.gmra.mxu0 %v1727
        %v2299 = vpop.f32.mrf.mxu0
        %v2300 = vadd.f32 %v1796, %v2299
        %v2301 = vpop.f32.mrf.mxu0
        %v2302 = vadd.f32 %v1796, %v2301
        %2303 = vmatmul.bf16.gmra.mxu0 %v1728
        %v2304 = vpop.f32.mrf.mxu0
        %v2305 = vadd.f32 %v1796, %v2304
        %v2306 = vpop.f32.mrf.mxu0
        %v2307 = vadd.f32 %v1796, %v2306
        %2308 = vdwg.mxu0
        %2309 = vmatpush.bf16.msra.mxu0 %v2061
        %2310 = vmatpush.bf16.msra.mxu0 %v2053
        %2311 = vmatpush.bf16.msra.mxu0 %v2045
        %2312 = vmatpush.bf16.msra.mxu0 %v2037
        %2313 = vmatpush.bf16.msra.mxu0 %v2029
        %2314 = vmatpush.bf16.msra.mxu0 %v2021
        %2315 = vmatpush.bf16.msra.mxu0 %v2013
        %2316 = vmatpush.bf16.msra.mxu0 %v2005
        %2317 = vmatmul.bf16.gmra.mxu0 %v1713
        %v2318 = vpop.f32.mrf.mxu0
        %v2319 = vadd.f32 %v1797, %v2318
        %v2320 = vpop.f32.mrf.mxu0
        %v2321 = vadd.f32 %v1797, %v2320
        %2322 = vmatmul.bf16.gmra.mxu0 %v1714
        %v2323 = vpop.f32.mrf.mxu0
        %v2324 = vadd.f32 %v1797, %v2323
        %v2325 = vpop.f32.mrf.mxu0
        %v2326 = vadd.f32 %v1797, %v2325
        %2327 = vmatmul.bf16.gmra.mxu0 %v1715
        %v2328 = vpop.f32.mrf.mxu0
        %v2329 = vadd.f32 %v1797, %v2328
        %v2330 = vpop.f32.mrf.mxu0
        %v2331 = vadd.f32 %v1797, %v2330
        %2332 = vmatmul.bf16.gmra.mxu0 %v1716
        %v2333 = vpop.f32.mrf.mxu0
        %v2334 = vadd.f32 %v1797, %v2333
        %v2335 = vpop.f32.mrf.mxu0
        %v2336 = vadd.f32 %v1797, %v2335
        %2337 = vmatmul.bf16.gmra.mxu0 %v1717
        %v2338 = vpop.f32.mrf.mxu0
        %v2339 = vadd.f32 %v1797, %v2338
        %v2340 = vpop.f32.mrf.mxu0
        %v2341 = vadd.f32 %v1797, %v2340
        %2342 = vmatmul.bf16.gmra.mxu0 %v1718
        %v2343 = vpop.f32.mrf.mxu0
        %v2344 = vadd.f32 %v1797, %v2343
        %v2345 = vpop.f32.mrf.mxu0
        %v2346 = vadd.f32 %v1797, %v2345
        %2347 = vmatmul.bf16.gmra.mxu0 %v1719
        %v2348 = vpop.f32.mrf.mxu0
        %v2349 = vadd.f32 %v1797, %v2348
        %v2350 = vpop.f32.mrf.mxu0
        %v2351 = vadd.f32 %v1797, %v2350
        %2352 = vmatmul.bf16.gmra.mxu0 %v1720
        %v2353 = vpop.f32.mrf.mxu0
        %v2354 = vadd.f32 %v1797, %v2353
        %v2355 = vpop.f32.mrf.mxu0
        %v2356 = vadd.f32 %v1797, %v2355
        %2357 = vmatmul.bf16.gmra.mxu0 %v1721
        %v2358 = vpop.f32.mrf.mxu0
        %v2359 = vadd.f32 %v1797, %v2358
        %v2360 = vpop.f32.mrf.mxu0
        %v2361 = vadd.f32 %v1797, %v2360
        %2362 = vmatmul.bf16.gmra.mxu0 %v1722
        %v2363 = vpop.f32.mrf.mxu0
        %v2364 = vadd.f32 %v1797, %v2363
        %v2365 = vpop.f32.mrf.mxu0
        %v2366 = vadd.f32 %v1797, %v2365
        %2367 = vmatmul.bf16.gmra.mxu0 %v1723
        %v2368 = vpop.f32.mrf.mxu0
        %v2369 = vadd.f32 %v1797, %v2368
        %v2370 = vpop.f32.mrf.mxu0
        %v2371 = vadd.f32 %v1797, %v2370
        %2372 = vmatmul.bf16.gmra.mxu0 %v1724
        %v2373 = vpop.f32.mrf.mxu0
        %v2374 = vadd.f32 %v1797, %v2373
        %v2375 = vpop.f32.mrf.mxu0
        %v2376 = vadd.f32 %v1797, %v2375
        %2377 = vmatmul.bf16.gmra.mxu0 %v1725
        %v2378 = vpop.f32.mrf.mxu0
        %v2379 = vadd.f32 %v1797, %v2378
        %v2380 = vpop.f32.mrf.mxu0
        %v2381 = vadd.f32 %v1797, %v2380
        %2382 = vmatmul.bf16.gmra.mxu0 %v1726
        %v2383 = vpop.f32.mrf.mxu0
        %v2384 = vadd.f32 %v1797, %v2383
        %v2385 = vpop.f32.mrf.mxu0
        %v2386 = vadd.f32 %v1797, %v2385
        %2387 = vmatmul.bf16.gmra.mxu0 %v1727
        %v2388 = vpop.f32.mrf.mxu0
        %v2389 = vadd.f32 %v1797, %v2388
        %v2390 = vpop.f32.mrf.mxu0
        %v2391 = vadd.f32 %v1797, %v2390
        %2392 = vmatmul.bf16.gmra.mxu0 %v1728
        %v2393 = vpop.f32.mrf.mxu0
        %v2394 = vadd.f32 %v1797, %v2393
        %v2395 = vpop.f32.mrf.mxu0
        %v2396 = vadd.f32 %v1797, %v2395
        %2397 = vdwg.mxu0
        %2398 = vmatpush.bf16.msra.mxu0 %v2062
        %2399 = vmatpush.bf16.msra.mxu0 %v2054
        %2400 = vmatpush.bf16.msra.mxu0 %v2046
        %2401 = vmatpush.bf16.msra.mxu0 %v2038
        %2402 = vmatpush.bf16.msra.mxu0 %v2030
        %2403 = vmatpush.bf16.msra.mxu0 %v2022
        %2404 = vmatpush.bf16.msra.mxu0 %v2014
        %2405 = vmatpush.bf16.msra.mxu0 %v2006
        %2406 = vmatmul.bf16.gmra.mxu0 %v1713
        %v2407 = vpop.f32.mrf.mxu0
        %v2408 = vadd.f32 %v1798, %v2407
        %v2409 = vpop.f32.mrf.mxu0
        %v2410 = vadd.f32 %v1798, %v2409
        %2411 = vmatmul.bf16.gmra.mxu0 %v1714
        %v2412 = vpop.f32.mrf.mxu0
        %v2413 = vadd.f32 %v1798, %v2412
        %v2414 = vpop.f32.mrf.mxu0
        %v2415 = vadd.f32 %v1798, %v2414
        %2416 = vmatmul.bf16.gmra.mxu0 %v1715
        %v2417 = vpop.f32.mrf.mxu0
        %v2418 = vadd.f32 %v1798, %v2417
        %v2419 = vpop.f32.mrf.mxu0
        %v2420 = vadd.f32 %v1798, %v2419
        %2421 = vmatmul.bf16.gmra.mxu0 %v1716
        %v2422 = vpop.f32.mrf.mxu0
        %v2423 = vadd.f32 %v1798, %v2422
        %v2424 = vpop.f32.mrf.mxu0
        %v2425 = vadd.f32 %v1798, %v2424
        %2426 = vmatmul.bf16.gmra.mxu0 %v1717
        %v2427 = vpop.f32.mrf.mxu0
        %v2428 = vadd.f32 %v1798, %v2427
        %v2429 = vpop.f32.mrf.mxu0
        %v2430 = vadd.f32 %v1798, %v2429
        %2431 = vmatmul.bf16.gmra.mxu0 %v1718
        %v2432 = vpop.f32.mrf.mxu0
        %v2433 = vadd.f32 %v1798, %v2432
        %v2434 = vpop.f32.mrf.mxu0
        %v2435 = vadd.f32 %v1798, %v2434
        %2436 = vmatmul.bf16.gmra.mxu0 %v1719
        %v2437 = vpop.f32.mrf.mxu0
        %v2438 = vadd.f32 %v1798, %v2437
        %v2439 = vpop.f32.mrf.mxu0
        %v2440 = vadd.f32 %v1798, %v2439
        %2441 = vmatmul.bf16.gmra.mxu0 %v1720
        %v2442 = vpop.f32.mrf.mxu0
        %v2443 = vadd.f32 %v1798, %v2442
        %v2444 = vpop.f32.mrf.mxu0
        %v2445 = vadd.f32 %v1798, %v2444
        %2446 = vmatmul.bf16.gmra.mxu0 %v1721
        %v2447 = vpop.f32.mrf.mxu0
        %v2448 = vadd.f32 %v1798, %v2447
        %v2449 = vpop.f32.mrf.mxu0
        %v2450 = vadd.f32 %v1798, %v2449
        %2451 = vmatmul.bf16.gmra.mxu0 %v1722
        %v2452 = vpop.f32.mrf.mxu0
        %v2453 = vadd.f32 %v1798, %v2452
        %v2454 = vpop.f32.mrf.mxu0
        %v2455 = vadd.f32 %v1798, %v2454
        %2456 = vmatmul.bf16.gmra.mxu0 %v1723
        %v2457 = vpop.f32.mrf.mxu0
        %v2458 = vadd.f32 %v1798, %v2457
        %v2459 = vpop.f32.mrf.mxu0
        %v2460 = vadd.f32 %v1798, %v2459
        %2461 = vmatmul.bf16.gmra.mxu0 %v1724
        %v2462 = vpop.f32.mrf.mxu0
        %v2463 = vadd.f32 %v1798, %v2462
        %v2464 = vpop.f32.mrf.mxu0
        %v2465 = vadd.f32 %v1798, %v2464
        %2466 = vmatmul.bf16.gmra.mxu0 %v1725
        %v2467 = vpop.f32.mrf.mxu0
        %v2468 = vadd.f32 %v1798, %v2467
        %v2469 = vpop.f32.mrf.mxu0
        %v2470 = vadd.f32 %v1798, %v2469
        %2471 = vmatmul.bf16.gmra.mxu0 %v1726
        %v2472 = vpop.f32.mrf.mxu0
        %v2473 = vadd.f32 %v1798, %v2472
        %v2474 = vpop.f32.mrf.mxu0
        %v2475 = vadd.f32 %v1798, %v2474
        %2476 = vmatmul.bf16.gmra.mxu0 %v1727
        %v2477 = vpop.f32.mrf.mxu0
        %v2478 = vadd.f32 %v1798, %v2477
        %v2479 = vpop.f32.mrf.mxu0
        %v2480 = vadd.f32 %v1798, %v2479
        %2481 = vmatmul.bf16.gmra.mxu0 %v1728
        %v2482 = vpop.f32.mrf.mxu0
        %v2483 = vadd.f32 %v1798, %v2482
        %v2484 = vpop.f32.mrf.mxu0
        %v2485 = vadd.f32 %v1798, %v2484
        %2486 = vdwg.mxu0
        %2487 = vmatpush.bf16.msra.mxu0 %v2063
        %2488 = vmatpush.bf16.msra.mxu0 %v2055
        %2489 = vmatpush.bf16.msra.mxu0 %v2047
        %2490 = vmatpush.bf16.msra.mxu0 %v2039
        %2491 = vmatpush.bf16.msra.mxu0 %v2031
        %2492 = vmatpush.bf16.msra.mxu0 %v2023
        %2493 = vmatpush.bf16.msra.mxu0 %v2015
        %2494 = vmatpush.bf16.msra.mxu0 %v2007
        %2495 = vmatmul.bf16.gmra.mxu0 %v1713
        %v2496 = vpop.f32.mrf.mxu0
        %v2497 = vadd.f32 %v1799, %v2496
        %v2498 = vpop.f32.mrf.mxu0
        %v2499 = vadd.f32 %v1799, %v2498
        %2500 = vmatmul.bf16.gmra.mxu0 %v1714
        %v2501 = vpop.f32.mrf.mxu0
        %v2502 = vadd.f32 %v1799, %v2501
        %v2503 = vpop.f32.mrf.mxu0
        %v2504 = vadd.f32 %v1799, %v2503
        %2505 = vmatmul.bf16.gmra.mxu0 %v1715
        %v2506 = vpop.f32.mrf.mxu0
        %v2507 = vadd.f32 %v1799, %v2506
        %v2508 = vpop.f32.mrf.mxu0
        %v2509 = vadd.f32 %v1799, %v2508
        %2510 = vmatmul.bf16.gmra.mxu0 %v1716
        %v2511 = vpop.f32.mrf.mxu0
        %v2512 = vadd.f32 %v1799, %v2511
        %v2513 = vpop.f32.mrf.mxu0
        %v2514 = vadd.f32 %v1799, %v2513
        %2515 = vmatmul.bf16.gmra.mxu0 %v1717
        %v2516 = vpop.f32.mrf.mxu0
        %v2517 = vadd.f32 %v1799, %v2516
        %v2518 = vpop.f32.mrf.mxu0
        %v2519 = vadd.f32 %v1799, %v2518
        %2520 = vmatmul.bf16.gmra.mxu0 %v1718
        %v2521 = vpop.f32.mrf.mxu0
        %v2522 = vadd.f32 %v1799, %v2521
        %v2523 = vpop.f32.mrf.mxu0
        %v2524 = vadd.f32 %v1799, %v2523
        %2525 = vmatmul.bf16.gmra.mxu0 %v1719
        %v2526 = vpop.f32.mrf.mxu0
        %v2527 = vadd.f32 %v1799, %v2526
        %v2528 = vpop.f32.mrf.mxu0
        %v2529 = vadd.f32 %v1799, %v2528
        %2530 = vmatmul.bf16.gmra.mxu0 %v1720
        %v2531 = vpop.f32.mrf.mxu0
        %v2532 = vadd.f32 %v1799, %v2531
        %v2533 = vpop.f32.mrf.mxu0
        %v2534 = vadd.f32 %v1799, %v2533
        %2535 = vmatmul.bf16.gmra.mxu0 %v1721
        %v2536 = vpop.f32.mrf.mxu0
        %v2537 = vadd.f32 %v1799, %v2536
        %v2538 = vpop.f32.mrf.mxu0
        %v2539 = vadd.f32 %v1799, %v2538
        %2540 = vmatmul.bf16.gmra.mxu0 %v1722
        %v2541 = vpop.f32.mrf.mxu0
        %v2542 = vadd.f32 %v1799, %v2541
        %v2543 = vpop.f32.mrf.mxu0
        %v2544 = vadd.f32 %v1799, %v2543
        %2545 = vmatmul.bf16.gmra.mxu0 %v1723
        %v2546 = vpop.f32.mrf.mxu0
        %v2547 = vadd.f32 %v1799, %v2546
        %v2548 = vpop.f32.mrf.mxu0
        %v2549 = vadd.f32 %v1799, %v2548
        %2550 = vmatmul.bf16.gmra.mxu0 %v1724
        %v2551 = vpop.f32.mrf.mxu0
        %v2552 = vadd.f32 %v1799, %v2551
        %v2553 = vpop.f32.mrf.mxu0
        %v2554 = vadd.f32 %v1799, %v2553
        %2555 = vmatmul.bf16.gmra.mxu0 %v1725
        %v2556 = vpop.f32.mrf.mxu0
        %v2557 = vadd.f32 %v1799, %v2556
        %v2558 = vpop.f32.mrf.mxu0
        %v2559 = vadd.f32 %v1799, %v2558
        %2560 = vmatmul.bf16.gmra.mxu0 %v1726
        %v2561 = vpop.f32.mrf.mxu0
        %v2562 = vadd.f32 %v1799, %v2561
        %v2563 = vpop.f32.mrf.mxu0
        %v2564 = vadd.f32 %v1799, %v2563
        %2565 = vmatmul.bf16.gmra.mxu0 %v1727
        %v2566 = vpop.f32.mrf.mxu0
        %v2567 = vadd.f32 %v1799, %v2566
        %v2568 = vpop.f32.mrf.mxu0
        %v2569 = vadd.f32 %v1799, %v2568
        %2570 = vmatmul.bf16.gmra.mxu0 %v1728
        %v2571 = vpop.f32.mrf.mxu0
        %v2572 = vadd.f32 %v1799, %v2571
        %v2573 = vpop.f32.mrf.mxu0
        %v2574 = vadd.f32 %v1799, %v2573
        %2575 = vdwg.mxu0
        %2576 = vmatpush.bf16.msra.mxu0 %v2064
        %2577 = vmatpush.bf16.msra.mxu0 %v2056
        %2578 = vmatpush.bf16.msra.mxu0 %v2048
        %2579 = vmatpush.bf16.msra.mxu0 %v2040
        %2580 = vmatpush.bf16.msra.mxu0 %v2032
        %2581 = vmatpush.bf16.msra.mxu0 %v2024
        %2582 = vmatpush.bf16.msra.mxu0 %v2016
        %2583 = vmatpush.bf16.msra.mxu0 %v2008
        %2584 = vmatmul.bf16.gmra.mxu0 %v1713
        %v2585 = vpop.f32.mrf.mxu0
        %v2586 = vadd.f32 %v1800, %v2585
        %v2587 = vpop.f32.mrf.mxu0
        %v2588 = vadd.f32 %v1800, %v2587
        %2589 = vmatmul.bf16.gmra.mxu0 %v1714
        %v2590 = vpop.f32.mrf.mxu0
        %v2591 = vadd.f32 %v1800, %v2590
        %v2592 = vpop.f32.mrf.mxu0
        %v2593 = vadd.f32 %v1800, %v2592
        %2594 = vmatmul.bf16.gmra.mxu0 %v1715
        %v2595 = vpop.f32.mrf.mxu0
        %v2596 = vadd.f32 %v1800, %v2595
        %v2597 = vpop.f32.mrf.mxu0
        %v2598 = vadd.f32 %v1800, %v2597
        %2599 = vmatmul.bf16.gmra.mxu0 %v1716
        %v2600 = vpop.f32.mrf.mxu0
        %v2601 = vadd.f32 %v1800, %v2600
        %v2602 = vpop.f32.mrf.mxu0
        %v2603 = vadd.f32 %v1800, %v2602
        %2604 = vmatmul.bf16.gmra.mxu0 %v1717
        %v2605 = vpop.f32.mrf.mxu0
        %v2606 = vadd.f32 %v1800, %v2605
        %v2607 = vpop.f32.mrf.mxu0
        %v2608 = vadd.f32 %v1800, %v2607
        %2609 = vmatmul.bf16.gmra.mxu0 %v1718
        %v2610 = vpop.f32.mrf.mxu0
        %v2611 = vadd.f32 %v1800, %v2610
        %v2612 = vpop.f32.mrf.mxu0
        %v2613 = vadd.f32 %v1800, %v2612
        %2614 = vmatmul.bf16.gmra.mxu0 %v1719
        %v2615 = vpop.f32.mrf.mxu0
        %v2616 = vadd.f32 %v1800, %v2615
        %v2617 = vpop.f32.mrf.mxu0
        %v2618 = vadd.f32 %v1800, %v2617
        %2619 = vmatmul.bf16.gmra.mxu0 %v1720
        %v2620 = vpop.f32.mrf.mxu0
        %v2621 = vadd.f32 %v1800, %v2620
        %v2622 = vpop.f32.mrf.mxu0
        %v2623 = vadd.f32 %v1800, %v2622
        %2624 = vmatmul.bf16.gmra.mxu0 %v1721
        %v2625 = vpop.f32.mrf.mxu0
        %v2626 = vadd.f32 %v1800, %v2625
        %v2627 = vpop.f32.mrf.mxu0
        %v2628 = vadd.f32 %v1800, %v2627
        %2629 = vmatmul.bf16.gmra.mxu0 %v1722
        %v2630 = vpop.f32.mrf.mxu0
        %v2631 = vadd.f32 %v1800, %v2630
        %v2632 = vpop.f32.mrf.mxu0
        %v2633 = vadd.f32 %v1800, %v2632
        %2634 = vmatmul.bf16.gmra.mxu0 %v1723
        %v2635 = vpop.f32.mrf.mxu0
        %v2636 = vadd.f32 %v1800, %v2635
        %v2637 = vpop.f32.mrf.mxu0
        %v2638 = vadd.f32 %v1800, %v2637
        %2639 = vmatmul.bf16.gmra.mxu0 %v1724
        %v2640 = vpop.f32.mrf.mxu0
        %v2641 = vadd.f32 %v1800, %v2640
        %v2642 = vpop.f32.mrf.mxu0
        %v2643 = vadd.f32 %v1800, %v2642
        %2644 = vmatmul.bf16.gmra.mxu0 %v1725
        %v2645 = vpop.f32.mrf.mxu0
        %v2646 = vadd.f32 %v1800, %v2645
        %v2647 = vpop.f32.mrf.mxu0
        %v2648 = vadd.f32 %v1800, %v2647
        %2649 = vmatmul.bf16.gmra.mxu0 %v1726
        %v2650 = vpop.f32.mrf.mxu0
        %v2651 = vadd.f32 %v1800, %v2650
        %v2652 = vpop.f32.mrf.mxu0
        %v2653 = vadd.f32 %v1800, %v2652
        %2654 = vmatmul.bf16.gmra.mxu0 %v1727
        %v2655 = vpop.f32.mrf.mxu0
        %v2656 = vadd.f32 %v1800, %v2655
        %v2657 = vpop.f32.mrf.mxu0
        %v2658 = vadd.f32 %v1800, %v2657
        %2659 = vmatmul.bf16.gmra.mxu0 %v1728
        %v2660 = vpop.f32.mrf.mxu0
        %v2661 = vadd.f32 %v1800, %v2660
        %v2662 = vpop.f32.mrf.mxu0
        %v2663 = vadd.f32 %v1800, %v2662
        %2664 = vdwg.mxu0
        %2665 = vmatpush.bf16.msra.mxu0 %v2065
        %2666 = vmatpush.bf16.msra.mxu0 %v2057
        %2667 = vmatpush.bf16.msra.mxu0 %v2049
        %2668 = vmatpush.bf16.msra.mxu0 %v2041
        %2669 = vmatpush.bf16.msra.mxu0 %v2033
        %2670 = vmatpush.bf16.msra.mxu0 %v2025
        %2671 = vmatpush.bf16.msra.mxu0 %v2017
        %2672 = vmatpush.bf16.msra.mxu0 %v2009
        %2673 = vmatmul.bf16.gmra.mxu0 %v1713
        %v2674 = vpop.f32.mrf.mxu0
        %v2675 = vadd.f32 %v1801, %v2674
        %v2676 = vpop.f32.mrf.mxu0
        %v2677 = vadd.f32 %v1801, %v2676
        %2678 = vmatmul.bf16.gmra.mxu0 %v1714
        %v2679 = vpop.f32.mrf.mxu0
        %v2680 = vadd.f32 %v1801, %v2679
        %v2681 = vpop.f32.mrf.mxu0
        %v2682 = vadd.f32 %v1801, %v2681
        %2683 = vmatmul.bf16.gmra.mxu0 %v1715
        %v2684 = vpop.f32.mrf.mxu0
        %v2685 = vadd.f32 %v1801, %v2684
        %v2686 = vpop.f32.mrf.mxu0
        %v2687 = vadd.f32 %v1801, %v2686
        %2688 = vmatmul.bf16.gmra.mxu0 %v1716
        %v2689 = vpop.f32.mrf.mxu0
        %v2690 = vadd.f32 %v1801, %v2689
        %v2691 = vpop.f32.mrf.mxu0
        %v2692 = vadd.f32 %v1801, %v2691
        %2693 = vmatmul.bf16.gmra.mxu0 %v1717
        %v2694 = vpop.f32.mrf.mxu0
        %v2695 = vadd.f32 %v1801, %v2694
        %v2696 = vpop.f32.mrf.mxu0
        %v2697 = vadd.f32 %v1801, %v2696
        %2698 = vmatmul.bf16.gmra.mxu0 %v1718
        %v2699 = vpop.f32.mrf.mxu0
        %v2700 = vadd.f32 %v1801, %v2699
        %v2701 = vpop.f32.mrf.mxu0
        %v2702 = vadd.f32 %v1801, %v2701
        %2703 = vmatmul.bf16.gmra.mxu0 %v1719
        %v2704 = vpop.f32.mrf.mxu0
        %v2705 = vadd.f32 %v1801, %v2704
        %v2706 = vpop.f32.mrf.mxu0
        %v2707 = vadd.f32 %v1801, %v2706
        %2708 = vmatmul.bf16.gmra.mxu0 %v1720
        %v2709 = vpop.f32.mrf.mxu0
        %v2710 = vadd.f32 %v1801, %v2709
        %v2711 = vpop.f32.mrf.mxu0
        %v2712 = vadd.f32 %v1801, %v2711
        %2713 = vmatmul.bf16.gmra.mxu0 %v1721
        %v2714 = vpop.f32.mrf.mxu0
        %v2715 = vadd.f32 %v1801, %v2714
        %v2716 = vpop.f32.mrf.mxu0
        %v2717 = vadd.f32 %v1801, %v2716
        %2718 = vmatmul.bf16.gmra.mxu0 %v1722
        %v2719 = vpop.f32.mrf.mxu0
        %v2720 = vadd.f32 %v1801, %v2719
        %v2721 = vpop.f32.mrf.mxu0
        %v2722 = vadd.f32 %v1801, %v2721
        %2723 = vmatmul.bf16.gmra.mxu0 %v1723
        %v2724 = vpop.f32.mrf.mxu0
        %v2725 = vadd.f32 %v1801, %v2724
        %v2726 = vpop.f32.mrf.mxu0
        %v2727 = vadd.f32 %v1801, %v2726
        %2728 = vmatmul.bf16.gmra.mxu0 %v1724
        %v2729 = vpop.f32.mrf.mxu0
        %v2730 = vadd.f32 %v1801, %v2729
        %v2731 = vpop.f32.mrf.mxu0
        %v2732 = vadd.f32 %v1801, %v2731
        %2733 = vmatmul.bf16.gmra.mxu0 %v1725
        %v2734 = vpop.f32.mrf.mxu0
        %v2735 = vadd.f32 %v1801, %v2734
        %v2736 = vpop.f32.mrf.mxu0
        %v2737 = vadd.f32 %v1801, %v2736
        %2738 = vmatmul.bf16.gmra.mxu0 %v1726
        %v2739 = vpop.f32.mrf.mxu0
        %v2740 = vadd.f32 %v1801, %v2739
        %v2741 = vpop.f32.mrf.mxu0
        %v2742 = vadd.f32 %v1801, %v2741
        %2743 = vmatmul.bf16.gmra.mxu0 %v1727
        %v2744 = vpop.f32.mrf.mxu0
        %v2745 = vadd.f32 %v1801, %v2744
        %v2746 = vpop.f32.mrf.mxu0
        %v2747 = vadd.f32 %v1801, %v2746
        %2748 = vmatmul.bf16.gmra.mxu0 %v1728
        %v2749 = vpop.f32.mrf.mxu0
        %v2750 = vadd.f32 %v1801, %v2749
        %v2751 = vpop.f32.mrf.mxu0
        %v2752 = vadd.f32 %v1801, %v2751
        %2753 = vdwg.mxu0
        %2754 = vmatpush.bf16.msra.mxu0 %v2066
        %2755 = vmatpush.bf16.msra.mxu0 %v2058
        %2756 = vmatpush.bf16.msra.mxu0 %v2050
        %2757 = vmatpush.bf16.msra.mxu0 %v2042
        %2758 = vmatpush.bf16.msra.mxu0 %v2034
        %2759 = vmatpush.bf16.msra.mxu0 %v2026
        %2760 = vmatpush.bf16.msra.mxu0 %v2018
        %2761 = vmatpush.bf16.msra.mxu0 %v2010
        %2762 = vmatmul.bf16.gmra.mxu0 %v1713
        %v2763 = vpop.f32.mrf.mxu0
        %v2764 = vadd.f32 %v1802, %v2763
        %v2765 = vpop.f32.mrf.mxu0
        %v2766 = vadd.f32 %v1802, %v2765
        %2767 = vmatmul.bf16.gmra.mxu0 %v1714
        %v2768 = vpop.f32.mrf.mxu0
        %v2769 = vadd.f32 %v1802, %v2768
        %v2770 = vpop.f32.mrf.mxu0
        %v2771 = vadd.f32 %v1802, %v2770
        %2772 = vmatmul.bf16.gmra.mxu0 %v1715
        %v2773 = vpop.f32.mrf.mxu0
        %v2774 = vadd.f32 %v1802, %v2773
        %v2775 = vpop.f32.mrf.mxu0
        %v2776 = vadd.f32 %v1802, %v2775
        %2777 = vmatmul.bf16.gmra.mxu0 %v1716
        %v2778 = vpop.f32.mrf.mxu0
        %v2779 = vadd.f32 %v1802, %v2778
        %v2780 = vpop.f32.mrf.mxu0
        %v2781 = vadd.f32 %v1802, %v2780
        %2782 = vmatmul.bf16.gmra.mxu0 %v1717
        %v2783 = vpop.f32.mrf.mxu0
        %v2784 = vadd.f32 %v1802, %v2783
        %v2785 = vpop.f32.mrf.mxu0
        %v2786 = vadd.f32 %v1802, %v2785
        %2787 = vmatmul.bf16.gmra.mxu0 %v1718
        %v2788 = vpop.f32.mrf.mxu0
        %v2789 = vadd.f32 %v1802, %v2788
        %v2790 = vpop.f32.mrf.mxu0
        %v2791 = vadd.f32 %v1802, %v2790
        %2792 = vmatmul.bf16.gmra.mxu0 %v1719
        %v2793 = vpop.f32.mrf.mxu0
        %v2794 = vadd.f32 %v1802, %v2793
        %v2795 = vpop.f32.mrf.mxu0
        %v2796 = vadd.f32 %v1802, %v2795
        %2797 = vmatmul.bf16.gmra.mxu0 %v1720
        %v2798 = vpop.f32.mrf.mxu0
        %v2799 = vadd.f32 %v1802, %v2798
        %v2800 = vpop.f32.mrf.mxu0
        %v2801 = vadd.f32 %v1802, %v2800
        %2802 = vmatmul.bf16.gmra.mxu0 %v1721
        %v2803 = vpop.f32.mrf.mxu0
        %v2804 = vadd.f32 %v1802, %v2803
        %v2805 = vpop.f32.mrf.mxu0
        %v2806 = vadd.f32 %v1802, %v2805
        %2807 = vmatmul.bf16.gmra.mxu0 %v1722
        %v2808 = vpop.f32.mrf.mxu0
        %v2809 = vadd.f32 %v1802, %v2808
        %v2810 = vpop.f32.mrf.mxu0
        %v2811 = vadd.f32 %v1802, %v2810
        %2812 = vmatmul.bf16.gmra.mxu0 %v1723
        %v2813 = vpop.f32.mrf.mxu0
        %v2814 = vadd.f32 %v1802, %v2813
        %v2815 = vpop.f32.mrf.mxu0
        %v2816 = vadd.f32 %v1802, %v2815
        %2817 = vmatmul.bf16.gmra.mxu0 %v1724
        %v2818 = vpop.f32.mrf.mxu0
        %v2819 = vadd.f32 %v1802, %v2818
        %v2820 = vpop.f32.mrf.mxu0
        %v2821 = vadd.f32 %v1802, %v2820
        %2822 = vmatmul.bf16.gmra.mxu0 %v1725
        %v2823 = vpop.f32.mrf.mxu0
        %v2824 = vadd.f32 %v1802, %v2823
        %v2825 = vpop.f32.mrf.mxu0
        %v2826 = vadd.f32 %v1802, %v2825
        %2827 = vmatmul.bf16.gmra.mxu0 %v1726
        %v2828 = vpop.f32.mrf.mxu0
        %v2829 = vadd.f32 %v1802, %v2828
        %v2830 = vpop.f32.mrf.mxu0
        %v2831 = vadd.f32 %v1802, %v2830
        %2832 = vmatmul.bf16.gmra.mxu0 %v1727
        %v2833 = vpop.f32.mrf.mxu0
        %v2834 = vadd.f32 %v1802, %v2833
        %v2835 = vpop.f32.mrf.mxu0
        %v2836 = vadd.f32 %v1802, %v2835
        %2837 = vmatmul.bf16.gmra.mxu0 %v1728
        %v2838 = vpop.f32.mrf.mxu0
        %v2839 = vadd.f32 %v1802, %v2838
        %v2840 = vpop.f32.mrf.mxu0
        %v2841 = vadd.f32 %v1802, %v2840
        %2842 = vdwg.mxu0
        %v2843 = vmax.f32 %v2141, %v2143
        %v2844 = vmax.f32 %v2843, %v2146
        %v2845 = vmax.f32 %v2844, %v2148
        %v2846 = vmax.f32 %v2845, %v2151
        %v2847 = vmax.f32 %v2846, %v2153
        %v2848 = vmax.f32 %v2847, %v2156
        %v2849 = vmax.f32 %v2848, %v2158
        %v2850 = vmax.f32 %v2849, %v2161
        %v2851 = vmax.f32 %v2850, %v2163
        %v2852 = vmax.f32 %v2851, %v2166
        %v2853 = vmax.f32 %v2852, %v2168
        %v2854 = vmax.f32 %v2853, %v2171
        %v2855 = vmax.f32 %v2854, %v2173
        %v2856 = vmax.f32 %v2855, %v2176
        %v2857 = vmax.f32 %v2856, %v2178
        %v2858 = vmax.f32 %v2857, %v2181
        %v2859 = vmax.f32 %v2858, %v2183
        %v2860 = vmax.f32 %v2859, %v2186
        %v2861 = vmax.f32 %v2860, %v2188
        %v2862 = vmax.f32 %v2861, %v2191
        %v2863 = vmax.f32 %v2862, %v2193
        %v2864 = vmax.f32 %v2863, %v2196
        %v2865 = vmax.f32 %v2864, %v2198
        %v2866 = vmax.f32 %v2865, %v2201
        %v2867 = vmax.f32 %v2866, %v2203
        %v2868 = vmax.f32 %v2867, %v2206
        %v2869 = vmax.f32 %v2868, %v2208
        %v2870 = vmax.f32 %v2869, %v2211
        %v2871 = vmax.f32 %v2870, %v2213
        %v2872 = vmax.f32 %v2871, %v2216
        %v2873 = vmax.f32 %v2872, %v2218
        %v2874 = vrot.slane %v2873, 4
        %v2875 = vmax.f32 %v2873, %v2874
        %v2876 = vrot.slane %v2875, 2
        %v2877 = vmax.f32 %v2875, %v2876
        %v2878 = vrot.slane %v2877, 1
        %v2879 = vmax.f32 %v2877, %v2878
        %v2880 = vmax.f32 %v2230, %v2232
        %v2881 = vmax.f32 %v2880, %v2235
        %v2882 = vmax.f32 %v2881, %v2237
        %v2883 = vmax.f32 %v2882, %v2240
        %v2884 = vmax.f32 %v2883, %v2242
        %v2885 = vmax.f32 %v2884, %v2245
        %v2886 = vmax.f32 %v2885, %v2247
        %v2887 = vmax.f32 %v2886, %v2250
        %v2888 = vmax.f32 %v2887, %v2252
        %v2889 = vmax.f32 %v2888, %v2255
        %v2890 = vmax.f32 %v2889, %v2257
        %v2891 = vmax.f32 %v2890, %v2260
        %v2892 = vmax.f32 %v2891, %v2262
        %v2893 = vmax.f32 %v2892, %v2265
        %v2894 = vmax.f32 %v2893, %v2267
        %v2895 = vmax.f32 %v2894, %v2270
        %v2896 = vmax.f32 %v2895, %v2272
        %v2897 = vmax.f32 %v2896, %v2275
        %v2898 = vmax.f32 %v2897, %v2277
        %v2899 = vmax.f32 %v2898, %v2280
        %v2900 = vmax.f32 %v2899, %v2282
        %v2901 = vmax.f32 %v2900, %v2285
        %v2902 = vmax.f32 %v2901, %v2287
        %v2903 = vmax.f32 %v2902, %v2290
        %v2904 = vmax.f32 %v2903, %v2292
        %v2905 = vmax.f32 %v2904, %v2295
        %v2906 = vmax.f32 %v2905, %v2297
        %v2907 = vmax.f32 %v2906, %v2300
        %v2908 = vmax.f32 %v2907, %v2302
        %v2909 = vmax.f32 %v2908, %v2305
        %v2910 = vmax.f32 %v2909, %v2307
        %v2911 = vrot.slane %v2910, 4
        %v2912 = vmax.f32 %v2910, %v2911
        %v2913 = vrot.slane %v2912, 2
        %v2914 = vmax.f32 %v2912, %v2913
        %v2915 = vrot.slane %v2914, 1
        %v2916 = vmax.f32 %v2914, %v2915
        %v2917 = vmax.f32 %v2319, %v2321
        %v2918 = vmax.f32 %v2917, %v2324
        %v2919 = vmax.f32 %v2918, %v2326
        %v2920 = vmax.f32 %v2919, %v2329
        %v2921 = vmax.f32 %v2920, %v2331
        %v2922 = vmax.f32 %v2921, %v2334
        %v2923 = vmax.f32 %v2922, %v2336
        %v2924 = vmax.f32 %v2923, %v2339
        %v2925 = vmax.f32 %v2924, %v2341
        %v2926 = vmax.f32 %v2925, %v2344
        %v2927 = vmax.f32 %v2926, %v2346
        %v2928 = vmax.f32 %v2927, %v2349
        %v2929 = vmax.f32 %v2928, %v2351
        %v2930 = vmax.f32 %v2929, %v2354
        %v2931 = vmax.f32 %v2930, %v2356
        %v2932 = vmax.f32 %v2931, %v2359
        %v2933 = vmax.f32 %v2932, %v2361
        %v2934 = vmax.f32 %v2933, %v2364
        %v2935 = vmax.f32 %v2934, %v2366
        %v2936 = vmax.f32 %v2935, %v2369
        %v2937 = vmax.f32 %v2936, %v2371
        %v2938 = vmax.f32 %v2937, %v2374
        %v2939 = vmax.f32 %v2938, %v2376
        %v2940 = vmax.f32 %v2939, %v2379
        %v2941 = vmax.f32 %v2940, %v2381
        %v2942 = vmax.f32 %v2941, %v2384
        %v2943 = vmax.f32 %v2942, %v2386
        %v2944 = vmax.f32 %v2943, %v2389
        %v2945 = vmax.f32 %v2944, %v2391
        %v2946 = vmax.f32 %v2945, %v2394
        %v2947 = vmax.f32 %v2946, %v2396
        %v2948 = vrot.slane %v2947, 4
        %v2949 = vmax.f32 %v2947, %v2948
        %v2950 = vrot.slane %v2949, 2
        %v2951 = vmax.f32 %v2949, %v2950
        %v2952 = vrot.slane %v2951, 1
        %v2953 = vmax.f32 %v2951, %v2952
        %v2954 = vmax.f32 %v2408, %v2410
        %v2955 = vmax.f32 %v2954, %v2413
        %v2956 = vmax.f32 %v2955, %v2415
        %v2957 = vmax.f32 %v2956, %v2418
        %v2958 = vmax.f32 %v2957, %v2420
        %v2959 = vmax.f32 %v2958, %v2423
        %v2960 = vmax.f32 %v2959, %v2425
        %v2961 = vmax.f32 %v2960, %v2428
        %v2962 = vmax.f32 %v2961, %v2430
        %v2963 = vmax.f32 %v2962, %v2433
        %v2964 = vmax.f32 %v2963, %v2435
        %v2965 = vmax.f32 %v2964, %v2438
        %v2966 = vmax.f32 %v2965, %v2440
        %v2967 = vmax.f32 %v2966, %v2443
        %v2968 = vmax.f32 %v2967, %v2445
        %v2969 = vmax.f32 %v2968, %v2448
        %v2970 = vmax.f32 %v2969, %v2450
        %v2971 = vmax.f32 %v2970, %v2453
        %v2972 = vmax.f32 %v2971, %v2455
        %v2973 = vmax.f32 %v2972, %v2458
        %v2974 = vmax.f32 %v2973, %v2460
        %v2975 = vmax.f32 %v2974, %v2463
        %v2976 = vmax.f32 %v2975, %v2465
        %v2977 = vmax.f32 %v2976, %v2468
        %v2978 = vmax.f32 %v2977, %v2470
        %v2979 = vmax.f32 %v2978, %v2473
        %v2980 = vmax.f32 %v2979, %v2475
        %v2981 = vmax.f32 %v2980, %v2478
        %v2982 = vmax.f32 %v2981, %v2480
        %v2983 = vmax.f32 %v2982, %v2483
        %v2984 = vmax.f32 %v2983, %v2485
        %v2985 = vrot.slane %v2984, 4
        %v2986 = vmax.f32 %v2984, %v2985
        %v2987 = vrot.slane %v2986, 2
        %v2988 = vmax.f32 %v2986, %v2987
        %v2989 = vrot.slane %v2988, 1
        %v2990 = vmax.f32 %v2988, %v2989
        %v2991 = vmax.f32 %v2497, %v2499
        %v2992 = vmax.f32 %v2991, %v2502
        %v2993 = vmax.f32 %v2992, %v2504
        %v2994 = vmax.f32 %v2993, %v2507
        %v2995 = vmax.f32 %v2994, %v2509
        %v2996 = vmax.f32 %v2995, %v2512
        %v2997 = vmax.f32 %v2996, %v2514
        %v2998 = vmax.f32 %v2997, %v2517
        %v2999 = vmax.f32 %v2998, %v2519
        %v3000 = vmax.f32 %v2999, %v2522
        %v3001 = vmax.f32 %v3000, %v2524
        %v3002 = vmax.f32 %v3001, %v2527
        %v3003 = vmax.f32 %v3002, %v2529
        %v3004 = vmax.f32 %v3003, %v2532
        %v3005 = vmax.f32 %v3004, %v2534
        %v3006 = vmax.f32 %v3005, %v2537
        %v3007 = vmax.f32 %v3006, %v2539
        %v3008 = vmax.f32 %v3007, %v2542
        %v3009 = vmax.f32 %v3008, %v2544
        %v3010 = vmax.f32 %v3009, %v2547
        %v3011 = vmax.f32 %v3010, %v2549
        %v3012 = vmax.f32 %v3011, %v2552
        %v3013 = vmax.f32 %v3012, %v2554
        %v3014 = vmax.f32 %v3013, %v2557
        %v3015 = vmax.f32 %v3014, %v2559
        %v3016 = vmax.f32 %v3015, %v2562
        %v3017 = vmax.f32 %v3016, %v2564
        %v3018 = vmax.f32 %v3017, %v2567
        %v3019 = vmax.f32 %v3018, %v2569
        %v3020 = vmax.f32 %v3019, %v2572
        %v3021 = vmax.f32 %v3020, %v2574
        %v3022 = vrot.slane %v3021, 4
        %v3023 = vmax.f32 %v3021, %v3022
        %v3024 = vrot.slane %v3023, 2
        %v3025 = vmax.f32 %v3023, %v3024
        %v3026 = vrot.slane %v3025, 1
        %v3027 = vmax.f32 %v3025, %v3026
        %v3028 = vmax.f32 %v2586, %v2588
        %v3029 = vmax.f32 %v3028, %v2591
        %v3030 = vmax.f32 %v3029, %v2593
        %v3031 = vmax.f32 %v3030, %v2596
        %v3032 = vmax.f32 %v3031, %v2598
        %v3033 = vmax.f32 %v3032, %v2601
        %v3034 = vmax.f32 %v3033, %v2603
        %v3035 = vmax.f32 %v3034, %v2606
        %v3036 = vmax.f32 %v3035, %v2608
        %v3037 = vmax.f32 %v3036, %v2611
        %v3038 = vmax.f32 %v3037, %v2613
        %v3039 = vmax.f32 %v3038, %v2616
        %v3040 = vmax.f32 %v3039, %v2618
        %v3041 = vmax.f32 %v3040, %v2621
        %v3042 = vmax.f32 %v3041, %v2623
        %v3043 = vmax.f32 %v3042, %v2626
        %v3044 = vmax.f32 %v3043, %v2628
        %v3045 = vmax.f32 %v3044, %v2631
        %v3046 = vmax.f32 %v3045, %v2633
        %v3047 = vmax.f32 %v3046, %v2636
        %v3048 = vmax.f32 %v3047, %v2638
        %v3049 = vmax.f32 %v3048, %v2641
        %v3050 = vmax.f32 %v3049, %v2643
        %v3051 = vmax.f32 %v3050, %v2646
        %v3052 = vmax.f32 %v3051, %v2648
        %v3053 = vmax.f32 %v3052, %v2651
        %v3054 = vmax.f32 %v3053, %v2653
        %v3055 = vmax.f32 %v3054, %v2656
        %v3056 = vmax.f32 %v3055, %v2658
        %v3057 = vmax.f32 %v3056, %v2661
        %v3058 = vmax.f32 %v3057, %v2663
        %v3059 = vrot.slane %v3058, 4
        %v3060 = vmax.f32 %v3058, %v3059
        %v3061 = vrot.slane %v3060, 2
        %v3062 = vmax.f32 %v3060, %v3061
        %v3063 = vrot.slane %v3062, 1
        %v3064 = vmax.f32 %v3062, %v3063
        %v3065 = vmax.f32 %v2675, %v2677
        %v3066 = vmax.f32 %v3065, %v2680
        %v3067 = vmax.f32 %v3066, %v2682
        %v3068 = vmax.f32 %v3067, %v2685
        %v3069 = vmax.f32 %v3068, %v2687
        %v3070 = vmax.f32 %v3069, %v2690
        %v3071 = vmax.f32 %v3070, %v2692
        %v3072 = vmax.f32 %v3071, %v2695
        %v3073 = vmax.f32 %v3072, %v2697
        %v3074 = vmax.f32 %v3073, %v2700
        %v3075 = vmax.f32 %v3074, %v2702
        %v3076 = vmax.f32 %v3075, %v2705
        %v3077 = vmax.f32 %v3076, %v2707
        %v3078 = vmax.f32 %v3077, %v2710
        %v3079 = vmax.f32 %v3078, %v2712
        %v3080 = vmax.f32 %v3079, %v2715
        %v3081 = vmax.f32 %v3080, %v2717
        %v3082 = vmax.f32 %v3081, %v2720
        %v3083 = vmax.f32 %v3082, %v2722
        %v3084 = vmax.f32 %v3083, %v2725
        %v3085 = vmax.f32 %v3084, %v2727
        %v3086 = vmax.f32 %v3085, %v2730
        %v3087 = vmax.f32 %v3086, %v2732
        %v3088 = vmax.f32 %v3087, %v2735
        %v3089 = vmax.f32 %v3088, %v2737
        %v3090 = vmax.f32 %v3089, %v2740
        %v3091 = vmax.f32 %v3090, %v2742
        %v3092 = vmax.f32 %v3091, %v2745
        %v3093 = vmax.f32 %v3092, %v2747
        %v3094 = vmax.f32 %v3093, %v2750
        %v3095 = vmax.f32 %v3094, %v2752
        %v3096 = vrot.slane %v3095, 4
        %v3097 = vmax.f32 %v3095, %v3096
        %v3098 = vrot.slane %v3097, 2
        %v3099 = vmax.f32 %v3097, %v3098
        %v3100 = vrot.slane %v3099, 1
        %v3101 = vmax.f32 %v3099, %v3100
        %v3102 = vmax.f32 %v2764, %v2766
        %v3103 = vmax.f32 %v3102, %v2769
        %v3104 = vmax.f32 %v3103, %v2771
        %v3105 = vmax.f32 %v3104, %v2774
        %v3106 = vmax.f32 %v3105, %v2776
        %v3107 = vmax.f32 %v3106, %v2779
        %v3108 = vmax.f32 %v3107, %v2781
        %v3109 = vmax.f32 %v3108, %v2784
        %v3110 = vmax.f32 %v3109, %v2786
        %v3111 = vmax.f32 %v3110, %v2789
        %v3112 = vmax.f32 %v3111, %v2791
        %v3113 = vmax.f32 %v3112, %v2794
        %v3114 = vmax.f32 %v3113, %v2796
        %v3115 = vmax.f32 %v3114, %v2799
        %v3116 = vmax.f32 %v3115, %v2801
        %v3117 = vmax.f32 %v3116, %v2804
        %v3118 = vmax.f32 %v3117, %v2806
        %v3119 = vmax.f32 %v3118, %v2809
        %v3120 = vmax.f32 %v3119, %v2811
        %v3121 = vmax.f32 %v3120, %v2814
        %v3122 = vmax.f32 %v3121, %v2816
        %v3123 = vmax.f32 %v3122, %v2819
        %v3124 = vmax.f32 %v3123, %v2821
        %v3125 = vmax.f32 %v3124, %v2824
        %v3126 = vmax.f32 %v3125, %v2826
        %v3127 = vmax.f32 %v3126, %v2829
        %v3128 = vmax.f32 %v3127, %v2831
        %v3129 = vmax.f32 %v3128, %v2834
        %v3130 = vmax.f32 %v3129, %v2836
        %v3131 = vmax.f32 %v3130, %v2839
        %v3132 = vmax.f32 %v3131, %v2841
        %v3133 = vrot.slane %v3132, 4
        %v3134 = vmax.f32 %v3132, %v3133
        %v3135 = vrot.slane %v3134, 2
        %v3136 = vmax.f32 %v3134, %v3135
        %v3137 = vrot.slane %v3136, 1
        %v3138 = vmax.f32 %v3136, %v3137
        %v3139 = vadd.f32 %v2141, %v2143
        %v3140 = vadd.f32 %v3139, %v2146
        %v3141 = vadd.f32 %v3140, %v2148
        %v3142 = vadd.f32 %v3141, %v2151
        %v3143 = vadd.f32 %v3142, %v2153
        %v3144 = vadd.f32 %v3143, %v2156
        %v3145 = vadd.f32 %v3144, %v2158
        %v3146 = vadd.f32 %v3145, %v2161
        %v3147 = vadd.f32 %v3146, %v2163
        %v3148 = vadd.f32 %v3147, %v2166
        %v3149 = vadd.f32 %v3148, %v2168
        %v3150 = vadd.f32 %v3149, %v2171
        %v3151 = vadd.f32 %v3150, %v2173
        %v3152 = vadd.f32 %v3151, %v2176
        %v3153 = vadd.f32 %v3152, %v2178
        %v3154 = vadd.f32 %v3153, %v2181
        %v3155 = vadd.f32 %v3154, %v2183
        %v3156 = vadd.f32 %v3155, %v2186
        %v3157 = vadd.f32 %v3156, %v2188
        %v3158 = vadd.f32 %v3157, %v2191
        %v3159 = vadd.f32 %v3158, %v2193
        %v3160 = vadd.f32 %v3159, %v2196
        %v3161 = vadd.f32 %v3160, %v2198
        %v3162 = vadd.f32 %v3161, %v2201
        %v3163 = vadd.f32 %v3162, %v2203
        %v3164 = vadd.f32 %v3163, %v2206
        %v3165 = vadd.f32 %v3164, %v2208
        %v3166 = vadd.f32 %v3165, %v2211
        %v3167 = vadd.f32 %v3166, %v2213
        %v3168 = vadd.f32 %v3167, %v2216
        %v3169 = vadd.f32 %v3168, %v2218
        %v3170 = vrot.slane %v3169, 4
        %v3171 = vadd.f32 %v3169, %v3170
        %v3172 = vrot.slane %v3171, 2
        %v3173 = vadd.f32 %v3171, %v3172
        %v3174 = vrot.slane %v3173, 1
        %v3175 = vadd.f32 %v3173, %v3174
        %v3176 = vadd.f32 %v2230, %v2232
        %v3177 = vadd.f32 %v3176, %v2235
        %v3178 = vadd.f32 %v3177, %v2237
        %v3179 = vadd.f32 %v3178, %v2240
        %v3180 = vadd.f32 %v3179, %v2242
        %v3181 = vadd.f32 %v3180, %v2245
        %v3182 = vadd.f32 %v3181, %v2247
        %v3183 = vadd.f32 %v3182, %v2250
        %v3184 = vadd.f32 %v3183, %v2252
        %v3185 = vadd.f32 %v3184, %v2255
        %v3186 = vadd.f32 %v3185, %v2257
        %v3187 = vadd.f32 %v3186, %v2260
        %v3188 = vadd.f32 %v3187, %v2262
        %v3189 = vadd.f32 %v3188, %v2265
        %v3190 = vadd.f32 %v3189, %v2267
        %v3191 = vadd.f32 %v3190, %v2270
        %v3192 = vadd.f32 %v3191, %v2272
        %v3193 = vadd.f32 %v3192, %v2275
        %v3194 = vadd.f32 %v3193, %v2277
        %v3195 = vadd.f32 %v3194, %v2280
        %v3196 = vadd.f32 %v3195, %v2282
        %v3197 = vadd.f32 %v3196, %v2285
        %v3198 = vadd.f32 %v3197, %v2287
        %v3199 = vadd.f32 %v3198, %v2290
        %v3200 = vadd.f32 %v3199, %v2292
        %v3201 = vadd.f32 %v3200, %v2295
        %v3202 = vadd.f32 %v3201, %v2297
        %v3203 = vadd.f32 %v3202, %v2300
        %v3204 = vadd.f32 %v3203, %v2302
        %v3205 = vadd.f32 %v3204, %v2305
        %v3206 = vadd.f32 %v3205, %v2307
        %v3207 = vrot.slane %v3206, 4
        %v3208 = vadd.f32 %v3206, %v3207
        %v3209 = vrot.slane %v3208, 2
        %v3210 = vadd.f32 %v3208, %v3209
        %v3211 = vrot.slane %v3210, 1
        %v3212 = vadd.f32 %v3210, %v3211
        %v3213 = vadd.f32 %v2319, %v2321
        %v3214 = vadd.f32 %v3213, %v2324
        %v3215 = vadd.f32 %v3214, %v2326
        %v3216 = vadd.f32 %v3215, %v2329
        %v3217 = vadd.f32 %v3216, %v2331
        %v3218 = vadd.f32 %v3217, %v2334
        %v3219 = vadd.f32 %v3218, %v2336
        %v3220 = vadd.f32 %v3219, %v2339
        %v3221 = vadd.f32 %v3220, %v2341
        %v3222 = vadd.f32 %v3221, %v2344
        %v3223 = vadd.f32 %v3222, %v2346
        %v3224 = vadd.f32 %v3223, %v2349
        %v3225 = vadd.f32 %v3224, %v2351
        %v3226 = vadd.f32 %v3225, %v2354
        %v3227 = vadd.f32 %v3226, %v2356
        %v3228 = vadd.f32 %v3227, %v2359
        %v3229 = vadd.f32 %v3228, %v2361
        %v3230 = vadd.f32 %v3229, %v2364
        %v3231 = vadd.f32 %v3230, %v2366
        %v3232 = vadd.f32 %v3231, %v2369
        %v3233 = vadd.f32 %v3232, %v2371
        %v3234 = vadd.f32 %v3233, %v2374
        %v3235 = vadd.f32 %v3234, %v2376
        %v3236 = vadd.f32 %v3235, %v2379
        %v3237 = vadd.f32 %v3236, %v2381
        %v3238 = vadd.f32 %v3237, %v2384
        %v3239 = vadd.f32 %v3238, %v2386
        %v3240 = vadd.f32 %v3239, %v2389
        %v3241 = vadd.f32 %v3240, %v2391
        %v3242 = vadd.f32 %v3241, %v2394
        %v3243 = vadd.f32 %v3242, %v2396
        %v3244 = vrot.slane %v3243, 4
        %v3245 = vadd.f32 %v3243, %v3244
        %v3246 = vrot.slane %v3245, 2
        %v3247 = vadd.f32 %v3245, %v3246
        %v3248 = vrot.slane %v3247, 1
        %v3249 = vadd.f32 %v3247, %v3248
        %v3250 = vadd.f32 %v2408, %v2410
        %v3251 = vadd.f32 %v3250, %v2413
        %v3252 = vadd.f32 %v3251, %v2415
        %v3253 = vadd.f32 %v3252, %v2418
        %v3254 = vadd.f32 %v3253, %v2420
        %v3255 = vadd.f32 %v3254, %v2423
        %v3256 = vadd.f32 %v3255, %v2425
        %v3257 = vadd.f32 %v3256, %v2428
        %v3258 = vadd.f32 %v3257, %v2430
        %v3259 = vadd.f32 %v3258, %v2433
        %v3260 = vadd.f32 %v3259, %v2435
        %v3261 = vadd.f32 %v3260, %v2438
        %v3262 = vadd.f32 %v3261, %v2440
        %v3263 = vadd.f32 %v3262, %v2443
        %v3264 = vadd.f32 %v3263, %v2445
        %v3265 = vadd.f32 %v3264, %v2448
        %v3266 = vadd.f32 %v3265, %v2450
        %v3267 = vadd.f32 %v3266, %v2453
        %v3268 = vadd.f32 %v3267, %v2455
        %v3269 = vadd.f32 %v3268, %v2458
        %v3270 = vadd.f32 %v3269, %v2460
        %v3271 = vadd.f32 %v3270, %v2463
        %v3272 = vadd.f32 %v3271, %v2465
        %v3273 = vadd.f32 %v3272, %v2468
        %v3274 = vadd.f32 %v3273, %v2470
        %v3275 = vadd.f32 %v3274, %v2473
        %v3276 = vadd.f32 %v3275, %v2475
        %v3277 = vadd.f32 %v3276, %v2478
        %v3278 = vadd.f32 %v3277, %v2480
        %v3279 = vadd.f32 %v3278, %v2483
        %v3280 = vadd.f32 %v3279, %v2485
        %v3281 = vrot.slane %v3280, 4
        %v3282 = vadd.f32 %v3280, %v3281
        %v3283 = vrot.slane %v3282, 2
        %v3284 = vadd.f32 %v3282, %v3283
        %v3285 = vrot.slane %v3284, 1
        %v3286 = vadd.f32 %v3284, %v3285
        %v3287 = vadd.f32 %v2497, %v2499
        %v3288 = vadd.f32 %v3287, %v2502
        %v3289 = vadd.f32 %v3288, %v2504
        %v3290 = vadd.f32 %v3289, %v2507
        %v3291 = vadd.f32 %v3290, %v2509
        %v3292 = vadd.f32 %v3291, %v2512
        %v3293 = vadd.f32 %v3292, %v2514
        %v3294 = vadd.f32 %v3293, %v2517
        %v3295 = vadd.f32 %v3294, %v2519
        %v3296 = vadd.f32 %v3295, %v2522
        %v3297 = vadd.f32 %v3296, %v2524
        %v3298 = vadd.f32 %v3297, %v2527
        %v3299 = vadd.f32 %v3298, %v2529
        %v3300 = vadd.f32 %v3299, %v2532
        %v3301 = vadd.f32 %v3300, %v2534
        %v3302 = vadd.f32 %v3301, %v2537
        %v3303 = vadd.f32 %v3302, %v2539
        %v3304 = vadd.f32 %v3303, %v2542
        %v3305 = vadd.f32 %v3304, %v2544
        %v3306 = vadd.f32 %v3305, %v2547
        %v3307 = vadd.f32 %v3306, %v2549
        %v3308 = vadd.f32 %v3307, %v2552
        %v3309 = vadd.f32 %v3308, %v2554
        %v3310 = vadd.f32 %v3309, %v2557
        %v3311 = vadd.f32 %v3310, %v2559
        %v3312 = vadd.f32 %v3311, %v2562
        %v3313 = vadd.f32 %v3312, %v2564
        %v3314 = vadd.f32 %v3313, %v2567
        %v3315 = vadd.f32 %v3314, %v2569
        %v3316 = vadd.f32 %v3315, %v2572
        %v3317 = vadd.f32 %v3316, %v2574
        %v3318 = vrot.slane %v3317, 4
        %v3319 = vadd.f32 %v3317, %v3318
        %v3320 = vrot.slane %v3319, 2
        %v3321 = vadd.f32 %v3319, %v3320
        %v3322 = vrot.slane %v3321, 1
        %v3323 = vadd.f32 %v3321, %v3322
        %v3324 = vadd.f32 %v2586, %v2588
        %v3325 = vadd.f32 %v3324, %v2591
        %v3326 = vadd.f32 %v3325, %v2593
        %v3327 = vadd.f32 %v3326, %v2596
        %v3328 = vadd.f32 %v3327, %v2598
        %v3329 = vadd.f32 %v3328, %v2601
        %v3330 = vadd.f32 %v3329, %v2603
        %v3331 = vadd.f32 %v3330, %v2606
        %v3332 = vadd.f32 %v3331, %v2608
        %v3333 = vadd.f32 %v3332, %v2611
        %v3334 = vadd.f32 %v3333, %v2613
        %v3335 = vadd.f32 %v3334, %v2616
        %v3336 = vadd.f32 %v3335, %v2618
        %v3337 = vadd.f32 %v3336, %v2621
        %v3338 = vadd.f32 %v3337, %v2623
        %v3339 = vadd.f32 %v3338, %v2626
        %v3340 = vadd.f32 %v3339, %v2628
        %v3341 = vadd.f32 %v3340, %v2631
        %v3342 = vadd.f32 %v3341, %v2633
        %v3343 = vadd.f32 %v3342, %v2636
        %v3344 = vadd.f32 %v3343, %v2638
        %v3345 = vadd.f32 %v3344, %v2641
        %v3346 = vadd.f32 %v3345, %v2643
        %v3347 = vadd.f32 %v3346, %v2646
        %v3348 = vadd.f32 %v3347, %v2648
        %v3349 = vadd.f32 %v3348, %v2651
        %v3350 = vadd.f32 %v3349, %v2653
        %v3351 = vadd.f32 %v3350, %v2656
        %v3352 = vadd.f32 %v3351, %v2658
        %v3353 = vadd.f32 %v3352, %v2661
        %v3354 = vadd.f32 %v3353, %v2663
        %v3355 = vrot.slane %v3354, 4
        %v3356 = vadd.f32 %v3354, %v3355
        %v3357 = vrot.slane %v3356, 2
        %v3358 = vadd.f32 %v3356, %v3357
        %v3359 = vrot.slane %v3358, 1
        %v3360 = vadd.f32 %v3358, %v3359
        %v3361 = vadd.f32 %v2675, %v2677
        %v3362 = vadd.f32 %v3361, %v2680
        %v3363 = vadd.f32 %v3362, %v2682
        %v3364 = vadd.f32 %v3363, %v2685
        %v3365 = vadd.f32 %v3364, %v2687
        %v3366 = vadd.f32 %v3365, %v2690
        %v3367 = vadd.f32 %v3366, %v2692
        %v3368 = vadd.f32 %v3367, %v2695
        %v3369 = vadd.f32 %v3368, %v2697
        %v3370 = vadd.f32 %v3369, %v2700
        %v3371 = vadd.f32 %v3370, %v2702
        %v3372 = vadd.f32 %v3371, %v2705
        %v3373 = vadd.f32 %v3372, %v2707
        %v3374 = vadd.f32 %v3373, %v2710
        %v3375 = vadd.f32 %v3374, %v2712
        %v3376 = vadd.f32 %v3375, %v2715
        %v3377 = vadd.f32 %v3376, %v2717
        %v3378 = vadd.f32 %v3377, %v2720
        %v3379 = vadd.f32 %v3378, %v2722
        %v3380 = vadd.f32 %v3379, %v2725
        %v3381 = vadd.f32 %v3380, %v2727
        %v3382 = vadd.f32 %v3381, %v2730
        %v3383 = vadd.f32 %v3382, %v2732
        %v3384 = vadd.f32 %v3383, %v2735
        %v3385 = vadd.f32 %v3384, %v2737
        %v3386 = vadd.f32 %v3385, %v2740
        %v3387 = vadd.f32 %v3386, %v2742
        %v3388 = vadd.f32 %v3387, %v2745
        %v3389 = vadd.f32 %v3388, %v2747
        %v3390 = vadd.f32 %v3389, %v2750
        %v3391 = vadd.f32 %v3390, %v2752
        %v3392 = vrot.slane %v3391, 4
        %v3393 = vadd.f32 %v3391, %v3392
        %v3394 = vrot.slane %v3393, 2
        %v3395 = vadd.f32 %v3393, %v3394
        %v3396 = vrot.slane %v3395, 1
        %v3397 = vadd.f32 %v3395, %v3396
        %v3398 = vadd.f32 %v2764, %v2766
        %v3399 = vadd.f32 %v3398, %v2769
        %v3400 = vadd.f32 %v3399, %v2771
        %v3401 = vadd.f32 %v3400, %v2774
        %v3402 = vadd.f32 %v3401, %v2776
        %v3403 = vadd.f32 %v3402, %v2779
        %v3404 = vadd.f32 %v3403, %v2781
        %v3405 = vadd.f32 %v3404, %v2784
        %v3406 = vadd.f32 %v3405, %v2786
        %v3407 = vadd.f32 %v3406, %v2789
        %v3408 = vadd.f32 %v3407, %v2791
        %v3409 = vadd.f32 %v3408, %v2794
        %v3410 = vadd.f32 %v3409, %v2796
        %v3411 = vadd.f32 %v3410, %v2799
        %v3412 = vadd.f32 %v3411, %v2801
        %v3413 = vadd.f32 %v3412, %v2804
        %v3414 = vadd.f32 %v3413, %v2806
        %v3415 = vadd.f32 %v3414, %v2809
        %v3416 = vadd.f32 %v3415, %v2811
        %v3417 = vadd.f32 %v3416, %v2814
        %v3418 = vadd.f32 %v3417, %v2816
        %v3419 = vadd.f32 %v3418, %v2819
        %v3420 = vadd.f32 %v3419, %v2821
        %v3421 = vadd.f32 %v3420, %v2824
        %v3422 = vadd.f32 %v3421, %v2826
        %v3423 = vadd.f32 %v3422, %v2829
        %v3424 = vadd.f32 %v3423, %v2831
        %v3425 = vadd.f32 %v3424, %v2834
        %v3426 = vadd.f32 %v3425, %v2836
        %v3427 = vadd.f32 %v3426, %v2839
        %v3428 = vadd.f32 %v3427, %v2841
        %v3429 = vrot.slane %v3428, 4
        %v3430 = vadd.f32 %v3428, %v3429
        %v3431 = vrot.slane %v3430, 2
        %v3432 = vadd.f32 %v3430, %v3431
        %v3433 = vrot.slane %v3432, 1
        %v3434 = vadd.f32 %v3432, %v3433
        %v3435 = vmul.f32 %v3175, 0.00390625
        %v3436 = vmul.f32 %v3212, 0.00390625
        %v3437 = vmul.f32 %v3249, 0.00390625
        %v3438 = vmul.f32 %v3286, 0.00390625
        %v3439 = vmul.f32 %v3323, 0.00390625
        %v3440 = vmul.f32 %v3360, 0.00390625
        %v3441 = vmul.f32 %v3397, 0.00390625
        %v3442 = vmul.f32 %v3434, 0.00390625
        %v3443 = vmul.f32 %v2141, %v2141
        %v3444 = vmul.f32 %v2230, %v2230
        %v3445 = vmul.f32 %v2319, %v2319
        %v3446 = vmul.f32 %v2408, %v2408
        %v3447 = vmul.f32 %v2497, %v2497
        %v3448 = vmul.f32 %v2586, %v2586
        %v3449 = vmul.f32 %v2675, %v2675
        %v3450 = vmul.f32 %v2764, %v2764
        %v3451 = vmul.f32 %v2143, %v2143
        %v3452 = vmul.f32 %v2232, %v2232
        %v3453 = vmul.f32 %v2321, %v2321
        %v3454 = vmul.f32 %v2410, %v2410
        %v3455 = vmul.f32 %v2499, %v2499
        %v3456 = vmul.f32 %v2588, %v2588
        %v3457 = vmul.f32 %v2677, %v2677
        %v3458 = vmul.f32 %v2766, %v2766
        %v3459 = vmul.f32 %v2146, %v2146
        %v3460 = vmul.f32 %v2235, %v2235
        %v3461 = vmul.f32 %v2324, %v2324
        %v3462 = vmul.f32 %v2413, %v2413
        %v3463 = vmul.f32 %v2502, %v2502
        %v3464 = vmul.f32 %v2591, %v2591
        %v3465 = vmul.f32 %v2680, %v2680
        %v3466 = vmul.f32 %v2769, %v2769
        %v3467 = vmul.f32 %v2148, %v2148
        %v3468 = vmul.f32 %v2237, %v2237
        %v3469 = vmul.f32 %v2326, %v2326
        %v3470 = vmul.f32 %v2415, %v2415
        %v3471 = vmul.f32 %v2504, %v2504
        %v3472 = vmul.f32 %v2593, %v2593
        %v3473 = vmul.f32 %v2682, %v2682
        %v3474 = vmul.f32 %v2771, %v2771
        %v3475 = vmul.f32 %v2151, %v2151
        %v3476 = vmul.f32 %v2240, %v2240
        %v3477 = vmul.f32 %v2329, %v2329
        %v3478 = vmul.f32 %v2418, %v2418
        %v3479 = vmul.f32 %v2507, %v2507
        %v3480 = vmul.f32 %v2596, %v2596
        %v3481 = vmul.f32 %v2685, %v2685
        %v3482 = vmul.f32 %v2774, %v2774
        %v3483 = vmul.f32 %v2153, %v2153
        %v3484 = vmul.f32 %v2242, %v2242
        %v3485 = vmul.f32 %v2331, %v2331
        %v3486 = vmul.f32 %v2420, %v2420
        %v3487 = vmul.f32 %v2509, %v2509
        %v3488 = vmul.f32 %v2598, %v2598
        %v3489 = vmul.f32 %v2687, %v2687
        %v3490 = vmul.f32 %v2776, %v2776
        %v3491 = vmul.f32 %v2156, %v2156
        %v3492 = vmul.f32 %v2245, %v2245
        %v3493 = vmul.f32 %v2334, %v2334
        %v3494 = vmul.f32 %v2423, %v2423
        %v3495 = vmul.f32 %v2512, %v2512
        %v3496 = vmul.f32 %v2601, %v2601
        %v3497 = vmul.f32 %v2690, %v2690
        %v3498 = vmul.f32 %v2779, %v2779
        %v3499 = vmul.f32 %v2158, %v2158
        %v3500 = vmul.f32 %v2247, %v2247
        %v3501 = vmul.f32 %v2336, %v2336
        %v3502 = vmul.f32 %v2425, %v2425
        %v3503 = vmul.f32 %v2514, %v2514
        %v3504 = vmul.f32 %v2603, %v2603
        %v3505 = vmul.f32 %v2692, %v2692
        %v3506 = vmul.f32 %v2781, %v2781
        %v3507 = vmul.f32 %v2161, %v2161
        %v3508 = vmul.f32 %v2250, %v2250
        %v3509 = vmul.f32 %v2339, %v2339
        %v3510 = vmul.f32 %v2428, %v2428
        %v3511 = vmul.f32 %v2517, %v2517
        %v3512 = vmul.f32 %v2606, %v2606
        %v3513 = vmul.f32 %v2695, %v2695
        %v3514 = vmul.f32 %v2784, %v2784
        %v3515 = vmul.f32 %v2163, %v2163
        %v3516 = vmul.f32 %v2252, %v2252
        %v3517 = vmul.f32 %v2341, %v2341
        %v3518 = vmul.f32 %v2430, %v2430
        %v3519 = vmul.f32 %v2519, %v2519
        %v3520 = vmul.f32 %v2608, %v2608
        %v3521 = vmul.f32 %v2697, %v2697
        %v3522 = vmul.f32 %v2786, %v2786
        %v3523 = vmul.f32 %v2166, %v2166
        %v3524 = vmul.f32 %v2255, %v2255
        %v3525 = vmul.f32 %v2344, %v2344
        %v3526 = vmul.f32 %v2433, %v2433
        %v3527 = vmul.f32 %v2522, %v2522
        %v3528 = vmul.f32 %v2611, %v2611
        %v3529 = vmul.f32 %v2700, %v2700
        %v3530 = vmul.f32 %v2789, %v2789
        %v3531 = vmul.f32 %v2168, %v2168
        %v3532 = vmul.f32 %v2257, %v2257
        %v3533 = vmul.f32 %v2346, %v2346
        %v3534 = vmul.f32 %v2435, %v2435
        %v3535 = vmul.f32 %v2524, %v2524
        %v3536 = vmul.f32 %v2613, %v2613
        %v3537 = vmul.f32 %v2702, %v2702
        %v3538 = vmul.f32 %v2791, %v2791
        %v3539 = vmul.f32 %v2171, %v2171
        %v3540 = vmul.f32 %v2260, %v2260
        %v3541 = vmul.f32 %v2349, %v2349
        %v3542 = vmul.f32 %v2438, %v2438
        %v3543 = vmul.f32 %v2527, %v2527
        %v3544 = vmul.f32 %v2616, %v2616
        %v3545 = vmul.f32 %v2705, %v2705
        %v3546 = vmul.f32 %v2794, %v2794
        %v3547 = vmul.f32 %v2173, %v2173
        %v3548 = vmul.f32 %v2262, %v2262
        %v3549 = vmul.f32 %v2351, %v2351
        %v3550 = vmul.f32 %v2440, %v2440
        %v3551 = vmul.f32 %v2529, %v2529
        %v3552 = vmul.f32 %v2618, %v2618
        %v3553 = vmul.f32 %v2707, %v2707
        %v3554 = vmul.f32 %v2796, %v2796
        %v3555 = vmul.f32 %v2176, %v2176
        %v3556 = vmul.f32 %v2265, %v2265
        %v3557 = vmul.f32 %v2354, %v2354
        %v3558 = vmul.f32 %v2443, %v2443
        %v3559 = vmul.f32 %v2532, %v2532
        %v3560 = vmul.f32 %v2621, %v2621
        %v3561 = vmul.f32 %v2710, %v2710
        %v3562 = vmul.f32 %v2799, %v2799
        %v3563 = vmul.f32 %v2178, %v2178
        %v3564 = vmul.f32 %v2267, %v2267
        %v3565 = vmul.f32 %v2356, %v2356
        %v3566 = vmul.f32 %v2445, %v2445
        %v3567 = vmul.f32 %v2534, %v2534
        %v3568 = vmul.f32 %v2623, %v2623
        %v3569 = vmul.f32 %v2712, %v2712
        %v3570 = vmul.f32 %v2801, %v2801
        %v3571 = vmul.f32 %v2181, %v2181
        %v3572 = vmul.f32 %v2270, %v2270
        %v3573 = vmul.f32 %v2359, %v2359
        %v3574 = vmul.f32 %v2448, %v2448
        %v3575 = vmul.f32 %v2537, %v2537
        %v3576 = vmul.f32 %v2626, %v2626
        %v3577 = vmul.f32 %v2715, %v2715
        %v3578 = vmul.f32 %v2804, %v2804
        %v3579 = vmul.f32 %v2183, %v2183
        %v3580 = vmul.f32 %v2272, %v2272
        %v3581 = vmul.f32 %v2361, %v2361
        %v3582 = vmul.f32 %v2450, %v2450
        %v3583 = vmul.f32 %v2539, %v2539
        %v3584 = vmul.f32 %v2628, %v2628
        %v3585 = vmul.f32 %v2717, %v2717
        %v3586 = vmul.f32 %v2806, %v2806
        %v3587 = vmul.f32 %v2186, %v2186
        %v3588 = vmul.f32 %v2275, %v2275
        %v3589 = vmul.f32 %v2364, %v2364
        %v3590 = vmul.f32 %v2453, %v2453
        %v3591 = vmul.f32 %v2542, %v2542
        %v3592 = vmul.f32 %v2631, %v2631
        %v3593 = vmul.f32 %v2720, %v2720
        %v3594 = vmul.f32 %v2809, %v2809
        %v3595 = vmul.f32 %v2188, %v2188
        %v3596 = vmul.f32 %v2277, %v2277
        %v3597 = vmul.f32 %v2366, %v2366
        %v3598 = vmul.f32 %v2455, %v2455
        %v3599 = vmul.f32 %v2544, %v2544
        %v3600 = vmul.f32 %v2633, %v2633
        %v3601 = vmul.f32 %v2722, %v2722
        %v3602 = vmul.f32 %v2811, %v2811
        %v3603 = vmul.f32 %v2191, %v2191
        %v3604 = vmul.f32 %v2280, %v2280
        %v3605 = vmul.f32 %v2369, %v2369
        %v3606 = vmul.f32 %v2458, %v2458
        %v3607 = vmul.f32 %v2547, %v2547
        %v3608 = vmul.f32 %v2636, %v2636
        %v3609 = vmul.f32 %v2725, %v2725
        %v3610 = vmul.f32 %v2814, %v2814
        %v3611 = vmul.f32 %v2193, %v2193
        %v3612 = vmul.f32 %v2282, %v2282
        %v3613 = vmul.f32 %v2371, %v2371
        %v3614 = vmul.f32 %v2460, %v2460
        %v3615 = vmul.f32 %v2549, %v2549
        %v3616 = vmul.f32 %v2638, %v2638
        %v3617 = vmul.f32 %v2727, %v2727
        %v3618 = vmul.f32 %v2816, %v2816
        %v3619 = vmul.f32 %v2196, %v2196
        %v3620 = vmul.f32 %v2285, %v2285
        %v3621 = vmul.f32 %v2374, %v2374
        %v3622 = vmul.f32 %v2463, %v2463
        %v3623 = vmul.f32 %v2552, %v2552
        %v3624 = vmul.f32 %v2641, %v2641
        %v3625 = vmul.f32 %v2730, %v2730
        %v3626 = vmul.f32 %v2819, %v2819
        %v3627 = vmul.f32 %v2198, %v2198
        %v3628 = vmul.f32 %v2287, %v2287
        %v3629 = vmul.f32 %v2376, %v2376
        %v3630 = vmul.f32 %v2465, %v2465
        %v3631 = vmul.f32 %v2554, %v2554
        %v3632 = vmul.f32 %v2643, %v2643
        %v3633 = vmul.f32 %v2732, %v2732
        %v3634 = vmul.f32 %v2821, %v2821
        %v3635 = vmul.f32 %v2201, %v2201
        %v3636 = vmul.f32 %v2290, %v2290
        %v3637 = vmul.f32 %v2379, %v2379
        %v3638 = vmul.f32 %v2468, %v2468
        %v3639 = vmul.f32 %v2557, %v2557
        %v3640 = vmul.f32 %v2646, %v2646
        %v3641 = vmul.f32 %v2735, %v2735
        %v3642 = vmul.f32 %v2824, %v2824
        %v3643 = vmul.f32 %v2203, %v2203
        %v3644 = vmul.f32 %v2292, %v2292
        %v3645 = vmul.f32 %v2381, %v2381
        %v3646 = vmul.f32 %v2470, %v2470
        %v3647 = vmul.f32 %v2559, %v2559
        %v3648 = vmul.f32 %v2648, %v2648
        %v3649 = vmul.f32 %v2737, %v2737
        %v3650 = vmul.f32 %v2826, %v2826
        %v3651 = vmul.f32 %v2206, %v2206
        %v3652 = vmul.f32 %v2295, %v2295
        %v3653 = vmul.f32 %v2384, %v2384
        %v3654 = vmul.f32 %v2473, %v2473
        %v3655 = vmul.f32 %v2562, %v2562
        %v3656 = vmul.f32 %v2651, %v2651
        %v3657 = vmul.f32 %v2740, %v2740
        %v3658 = vmul.f32 %v2829, %v2829
        %v3659 = vmul.f32 %v2208, %v2208
        %v3660 = vmul.f32 %v2297, %v2297
        %v3661 = vmul.f32 %v2386, %v2386
        %v3662 = vmul.f32 %v2475, %v2475
        %v3663 = vmul.f32 %v2564, %v2564
        %v3664 = vmul.f32 %v2653, %v2653
        %v3665 = vmul.f32 %v2742, %v2742
        %v3666 = vmul.f32 %v2831, %v2831
        %v3667 = vmul.f32 %v2211, %v2211
        %v3668 = vmul.f32 %v2300, %v2300
        %v3669 = vmul.f32 %v2389, %v2389
        %v3670 = vmul.f32 %v2478, %v2478
        %v3671 = vmul.f32 %v2567, %v2567
        %v3672 = vmul.f32 %v2656, %v2656
        %v3673 = vmul.f32 %v2745, %v2745
        %v3674 = vmul.f32 %v2834, %v2834
        %v3675 = vmul.f32 %v2213, %v2213
        %v3676 = vmul.f32 %v2302, %v2302
        %v3677 = vmul.f32 %v2391, %v2391
        %v3678 = vmul.f32 %v2480, %v2480
        %v3679 = vmul.f32 %v2569, %v2569
        %v3680 = vmul.f32 %v2658, %v2658
        %v3681 = vmul.f32 %v2747, %v2747
        %v3682 = vmul.f32 %v2836, %v2836
        %v3683 = vmul.f32 %v2216, %v2216
        %v3684 = vmul.f32 %v2305, %v2305
        %v3685 = vmul.f32 %v2394, %v2394
        %v3686 = vmul.f32 %v2483, %v2483
        %v3687 = vmul.f32 %v2572, %v2572
        %v3688 = vmul.f32 %v2661, %v2661
        %v3689 = vmul.f32 %v2750, %v2750
        %v3690 = vmul.f32 %v2839, %v2839
        %v3691 = vmul.f32 %v2218, %v2218
        %v3692 = vmul.f32 %v2307, %v2307
        %v3693 = vmul.f32 %v2396, %v2396
        %v3694 = vmul.f32 %v2485, %v2485
        %v3695 = vmul.f32 %v2574, %v2574
        %v3696 = vmul.f32 %v2663, %v2663
        %v3697 = vmul.f32 %v2752, %v2752
        %v3698 = vmul.f32 %v2841, %v2841
        %v3699 = vadd.f32 %v3443, %v3451
        %v3700 = vadd.f32 %v3699, %v3459
        %v3701 = vadd.f32 %v3700, %v3467
        %v3702 = vadd.f32 %v3701, %v3475
        %v3703 = vadd.f32 %v3702, %v3483
        %v3704 = vadd.f32 %v3703, %v3491
        %v3705 = vadd.f32 %v3704, %v3499
        %v3706 = vadd.f32 %v3705, %v3507
        %v3707 = vadd.f32 %v3706, %v3515
        %v3708 = vadd.f32 %v3707, %v3523
        %v3709 = vadd.f32 %v3708, %v3531
        %v3710 = vadd.f32 %v3709, %v3539
        %v3711 = vadd.f32 %v3710, %v3547
        %v3712 = vadd.f32 %v3711, %v3555
        %v3713 = vadd.f32 %v3712, %v3563
        %v3714 = vadd.f32 %v3713, %v3571
        %v3715 = vadd.f32 %v3714, %v3579
        %v3716 = vadd.f32 %v3715, %v3587
        %v3717 = vadd.f32 %v3716, %v3595
        %v3718 = vadd.f32 %v3717, %v3603
        %v3719 = vadd.f32 %v3718, %v3611
        %v3720 = vadd.f32 %v3719, %v3619
        %v3721 = vadd.f32 %v3720, %v3627
        %v3722 = vadd.f32 %v3721, %v3635
        %v3723 = vadd.f32 %v3722, %v3643
        %v3724 = vadd.f32 %v3723, %v3651
        %v3725 = vadd.f32 %v3724, %v3659
        %v3726 = vadd.f32 %v3725, %v3667
        %v3727 = vadd.f32 %v3726, %v3675
        %v3728 = vadd.f32 %v3727, %v3683
        %v3729 = vadd.f32 %v3728, %v3691
        %v3730 = vrot.slane %v3729, 4
        %v3731 = vadd.f32 %v3729, %v3730
        %v3732 = vrot.slane %v3731, 2
        %v3733 = vadd.f32 %v3731, %v3732
        %v3734 = vrot.slane %v3733, 1
        %v3735 = vadd.f32 %v3733, %v3734
        %v3736 = vadd.f32 %v3444, %v3452
        %v3737 = vadd.f32 %v3736, %v3460
        %v3738 = vadd.f32 %v3737, %v3468
        %v3739 = vadd.f32 %v3738, %v3476
        %v3740 = vadd.f32 %v3739, %v3484
        %v3741 = vadd.f32 %v3740, %v3492
        %v3742 = vadd.f32 %v3741, %v3500
        %v3743 = vadd.f32 %v3742, %v3508
        %v3744 = vadd.f32 %v3743, %v3516
        %v3745 = vadd.f32 %v3744, %v3524
        %v3746 = vadd.f32 %v3745, %v3532
        %v3747 = vadd.f32 %v3746, %v3540
        %v3748 = vadd.f32 %v3747, %v3548
        %v3749 = vadd.f32 %v3748, %v3556
        %v3750 = vadd.f32 %v3749, %v3564
        %v3751 = vadd.f32 %v3750, %v3572
        %v3752 = vadd.f32 %v3751, %v3580
        %v3753 = vadd.f32 %v3752, %v3588
        %v3754 = vadd.f32 %v3753, %v3596
        %v3755 = vadd.f32 %v3754, %v3604
        %v3756 = vadd.f32 %v3755, %v3612
        %v3757 = vadd.f32 %v3756, %v3620
        %v3758 = vadd.f32 %v3757, %v3628
        %v3759 = vadd.f32 %v3758, %v3636
        %v3760 = vadd.f32 %v3759, %v3644
        %v3761 = vadd.f32 %v3760, %v3652
        %v3762 = vadd.f32 %v3761, %v3660
        %v3763 = vadd.f32 %v3762, %v3668
        %v3764 = vadd.f32 %v3763, %v3676
        %v3765 = vadd.f32 %v3764, %v3684
        %v3766 = vadd.f32 %v3765, %v3692
        %v3767 = vrot.slane %v3766, 4
        %v3768 = vadd.f32 %v3766, %v3767
        %v3769 = vrot.slane %v3768, 2
        %v3770 = vadd.f32 %v3768, %v3769
        %v3771 = vrot.slane %v3770, 1
        %v3772 = vadd.f32 %v3770, %v3771
        %v3773 = vadd.f32 %v3445, %v3453
        %v3774 = vadd.f32 %v3773, %v3461
        %v3775 = vadd.f32 %v3774, %v3469
        %v3776 = vadd.f32 %v3775, %v3477
        %v3777 = vadd.f32 %v3776, %v3485
        %v3778 = vadd.f32 %v3777, %v3493
        %v3779 = vadd.f32 %v3778, %v3501
        %v3780 = vadd.f32 %v3779, %v3509
        %v3781 = vadd.f32 %v3780, %v3517
        %v3782 = vadd.f32 %v3781, %v3525
        %v3783 = vadd.f32 %v3782, %v3533
        %v3784 = vadd.f32 %v3783, %v3541
        %v3785 = vadd.f32 %v3784, %v3549
        %v3786 = vadd.f32 %v3785, %v3557
        %v3787 = vadd.f32 %v3786, %v3565
        %v3788 = vadd.f32 %v3787, %v3573
        %v3789 = vadd.f32 %v3788, %v3581
        %v3790 = vadd.f32 %v3789, %v3589
        %v3791 = vadd.f32 %v3790, %v3597
        %v3792 = vadd.f32 %v3791, %v3605
        %v3793 = vadd.f32 %v3792, %v3613
        %v3794 = vadd.f32 %v3793, %v3621
        %v3795 = vadd.f32 %v3794, %v3629
        %v3796 = vadd.f32 %v3795, %v3637
        %v3797 = vadd.f32 %v3796, %v3645
        %v3798 = vadd.f32 %v3797, %v3653
        %v3799 = vadd.f32 %v3798, %v3661
        %v3800 = vadd.f32 %v3799, %v3669
        %v3801 = vadd.f32 %v3800, %v3677
        %v3802 = vadd.f32 %v3801, %v3685
        %v3803 = vadd.f32 %v3802, %v3693
        %v3804 = vrot.slane %v3803, 4
        %v3805 = vadd.f32 %v3803, %v3804
        %v3806 = vrot.slane %v3805, 2
        %v3807 = vadd.f32 %v3805, %v3806
        %v3808 = vrot.slane %v3807, 1
        %v3809 = vadd.f32 %v3807, %v3808
        %v3810 = vadd.f32 %v3446, %v3454
        %v3811 = vadd.f32 %v3810, %v3462
        %v3812 = vadd.f32 %v3811, %v3470
        %v3813 = vadd.f32 %v3812, %v3478
        %v3814 = vadd.f32 %v3813, %v3486
        %v3815 = vadd.f32 %v3814, %v3494
        %v3816 = vadd.f32 %v3815, %v3502
        %v3817 = vadd.f32 %v3816, %v3510
        %v3818 = vadd.f32 %v3817, %v3518
        %v3819 = vadd.f32 %v3818, %v3526
        %v3820 = vadd.f32 %v3819, %v3534
        %v3821 = vadd.f32 %v3820, %v3542
        %v3822 = vadd.f32 %v3821, %v3550
        %v3823 = vadd.f32 %v3822, %v3558
        %v3824 = vadd.f32 %v3823, %v3566
        %v3825 = vadd.f32 %v3824, %v3574
        %v3826 = vadd.f32 %v3825, %v3582
        %v3827 = vadd.f32 %v3826, %v3590
        %v3828 = vadd.f32 %v3827, %v3598
        %v3829 = vadd.f32 %v3828, %v3606
        %v3830 = vadd.f32 %v3829, %v3614
        %v3831 = vadd.f32 %v3830, %v3622
        %v3832 = vadd.f32 %v3831, %v3630
        %v3833 = vadd.f32 %v3832, %v3638
        %v3834 = vadd.f32 %v3833, %v3646
        %v3835 = vadd.f32 %v3834, %v3654
        %v3836 = vadd.f32 %v3835, %v3662
        %v3837 = vadd.f32 %v3836, %v3670
        %v3838 = vadd.f32 %v3837, %v3678
        %v3839 = vadd.f32 %v3838, %v3686
        %v3840 = vadd.f32 %v3839, %v3694
        %v3841 = vrot.slane %v3840, 4
        %v3842 = vadd.f32 %v3840, %v3841
        %v3843 = vrot.slane %v3842, 2
        %v3844 = vadd.f32 %v3842, %v3843
        %v3845 = vrot.slane %v3844, 1
        %v3846 = vadd.f32 %v3844, %v3845
        %v3847 = vadd.f32 %v3447, %v3455
        %v3848 = vadd.f32 %v3847, %v3463
        %v3849 = vadd.f32 %v3848, %v3471
        %v3850 = vadd.f32 %v3849, %v3479
        %v3851 = vadd.f32 %v3850, %v3487
        %v3852 = vadd.f32 %v3851, %v3495
        %v3853 = vadd.f32 %v3852, %v3503
        %v3854 = vadd.f32 %v3853, %v3511
        %v3855 = vadd.f32 %v3854, %v3519
        %v3856 = vadd.f32 %v3855, %v3527
        %v3857 = vadd.f32 %v3856, %v3535
        %v3858 = vadd.f32 %v3857, %v3543
        %v3859 = vadd.f32 %v3858, %v3551
        %v3860 = vadd.f32 %v3859, %v3559
        %v3861 = vadd.f32 %v3860, %v3567
        %v3862 = vadd.f32 %v3861, %v3575
        %v3863 = vadd.f32 %v3862, %v3583
        %v3864 = vadd.f32 %v3863, %v3591
        %v3865 = vadd.f32 %v3864, %v3599
        %v3866 = vadd.f32 %v3865, %v3607
        %v3867 = vadd.f32 %v3866, %v3615
        %v3868 = vadd.f32 %v3867, %v3623
        %v3869 = vadd.f32 %v3868, %v3631
        %v3870 = vadd.f32 %v3869, %v3639
        %v3871 = vadd.f32 %v3870, %v3647
        %v3872 = vadd.f32 %v3871, %v3655
        %v3873 = vadd.f32 %v3872, %v3663
        %v3874 = vadd.f32 %v3873, %v3671
        %v3875 = vadd.f32 %v3874, %v3679
        %v3876 = vadd.f32 %v3875, %v3687
        %v3877 = vadd.f32 %v3876, %v3695
        %v3878 = vrot.slane %v3877, 4
        %v3879 = vadd.f32 %v3877, %v3878
        %v3880 = vrot.slane %v3879, 2
        %v3881 = vadd.f32 %v3879, %v3880
        %v3882 = vrot.slane %v3881, 1
        %v3883 = vadd.f32 %v3881, %v3882
        %v3884 = vadd.f32 %v3448, %v3456
        %v3885 = vadd.f32 %v3884, %v3464
        %v3886 = vadd.f32 %v3885, %v3472
        %v3887 = vadd.f32 %v3886, %v3480
        %v3888 = vadd.f32 %v3887, %v3488
        %v3889 = vadd.f32 %v3888, %v3496
        %v3890 = vadd.f32 %v3889, %v3504
        %v3891 = vadd.f32 %v3890, %v3512
        %v3892 = vadd.f32 %v3891, %v3520
        %v3893 = vadd.f32 %v3892, %v3528
        %v3894 = vadd.f32 %v3893, %v3536
        %v3895 = vadd.f32 %v3894, %v3544
        %v3896 = vadd.f32 %v3895, %v3552
        %v3897 = vadd.f32 %v3896, %v3560
        %v3898 = vadd.f32 %v3897, %v3568
        %v3899 = vadd.f32 %v3898, %v3576
        %v3900 = vadd.f32 %v3899, %v3584
        %v3901 = vadd.f32 %v3900, %v3592
        %v3902 = vadd.f32 %v3901, %v3600
        %v3903 = vadd.f32 %v3902, %v3608
        %v3904 = vadd.f32 %v3903, %v3616
        %v3905 = vadd.f32 %v3904, %v3624
        %v3906 = vadd.f32 %v3905, %v3632
        %v3907 = vadd.f32 %v3906, %v3640
        %v3908 = vadd.f32 %v3907, %v3648
        %v3909 = vadd.f32 %v3908, %v3656
        %v3910 = vadd.f32 %v3909, %v3664
        %v3911 = vadd.f32 %v3910, %v3672
        %v3912 = vadd.f32 %v3911, %v3680
        %v3913 = vadd.f32 %v3912, %v3688
        %v3914 = vadd.f32 %v3913, %v3696
        %v3915 = vrot.slane %v3914, 4
        %v3916 = vadd.f32 %v3914, %v3915
        %v3917 = vrot.slane %v3916, 2
        %v3918 = vadd.f32 %v3916, %v3917
        %v3919 = vrot.slane %v3918, 1
        %v3920 = vadd.f32 %v3918, %v3919
        %v3921 = vadd.f32 %v3449, %v3457
        %v3922 = vadd.f32 %v3921, %v3465
        %v3923 = vadd.f32 %v3922, %v3473
        %v3924 = vadd.f32 %v3923, %v3481
        %v3925 = vadd.f32 %v3924, %v3489
        %v3926 = vadd.f32 %v3925, %v3497
        %v3927 = vadd.f32 %v3926, %v3505
        %v3928 = vadd.f32 %v3927, %v3513
        %v3929 = vadd.f32 %v3928, %v3521
        %v3930 = vadd.f32 %v3929, %v3529
        %v3931 = vadd.f32 %v3930, %v3537
        %v3932 = vadd.f32 %v3931, %v3545
        %v3933 = vadd.f32 %v3932, %v3553
        %v3934 = vadd.f32 %v3933, %v3561
        %v3935 = vadd.f32 %v3934, %v3569
        %v3936 = vadd.f32 %v3935, %v3577
        %v3937 = vadd.f32 %v3936, %v3585
        %v3938 = vadd.f32 %v3937, %v3593
        %v3939 = vadd.f32 %v3938, %v3601
        %v3940 = vadd.f32 %v3939, %v3609
        %v3941 = vadd.f32 %v3940, %v3617
        %v3942 = vadd.f32 %v3941, %v3625
        %v3943 = vadd.f32 %v3942, %v3633
        %v3944 = vadd.f32 %v3943, %v3641
        %v3945 = vadd.f32 %v3944, %v3649
        %v3946 = vadd.f32 %v3945, %v3657
        %v3947 = vadd.f32 %v3946, %v3665
        %v3948 = vadd.f32 %v3947, %v3673
        %v3949 = vadd.f32 %v3948, %v3681
        %v3950 = vadd.f32 %v3949, %v3689
        %v3951 = vadd.f32 %v3950, %v3697
        %v3952 = vrot.slane %v3951, 4
        %v3953 = vadd.f32 %v3951, %v3952
        %v3954 = vrot.slane %v3953, 2
        %v3955 = vadd.f32 %v3953, %v3954
        %v3956 = vrot.slane %v3955, 1
        %v3957 = vadd.f32 %v3955, %v3956
        %v3958 = vadd.f32 %v3450, %v3458
        %v3959 = vadd.f32 %v3958, %v3466
        %v3960 = vadd.f32 %v3959, %v3474
        %v3961 = vadd.f32 %v3960, %v3482
        %v3962 = vadd.f32 %v3961, %v3490
        %v3963 = vadd.f32 %v3962, %v3498
        %v3964 = vadd.f32 %v3963, %v3506
        %v3965 = vadd.f32 %v3964, %v3514
        %v3966 = vadd.f32 %v3965, %v3522
        %v3967 = vadd.f32 %v3966, %v3530
        %v3968 = vadd.f32 %v3967, %v3538
        %v3969 = vadd.f32 %v3968, %v3546
        %v3970 = vadd.f32 %v3969, %v3554
        %v3971 = vadd.f32 %v3970, %v3562
        %v3972 = vadd.f32 %v3971, %v3570
        %v3973 = vadd.f32 %v3972, %v3578
        %v3974 = vadd.f32 %v3973, %v3586
        %v3975 = vadd.f32 %v3974, %v3594
        %v3976 = vadd.f32 %v3975, %v3602
        %v3977 = vadd.f32 %v3976, %v3610
        %v3978 = vadd.f32 %v3977, %v3618
        %v3979 = vadd.f32 %v3978, %v3626
        %v3980 = vadd.f32 %v3979, %v3634
        %v3981 = vadd.f32 %v3980, %v3642
        %v3982 = vadd.f32 %v3981, %v3650
        %v3983 = vadd.f32 %v3982, %v3658
        %v3984 = vadd.f32 %v3983, %v3666
        %v3985 = vadd.f32 %v3984, %v3674
        %v3986 = vadd.f32 %v3985, %v3682
        %v3987 = vadd.f32 %v3986, %v3690
        %v3988 = vadd.f32 %v3987, %v3698
        %v3989 = vrot.slane %v3988, 4
        %v3990 = vadd.f32 %v3988, %v3989
        %v3991 = vrot.slane %v3990, 2
        %v3992 = vadd.f32 %v3990, %v3991
        %v3993 = vrot.slane %v3992, 1
        %v3994 = vadd.f32 %v3992, %v3993
        %v3995 = vmul.f32 %v3735, 0.00390625
        %v3996 = vmul.f32 %v3772, 0.00390625
        %v3997 = vmul.f32 %v3809, 0.00390625
        %v3998 = vmul.f32 %v3846, 0.00390625
        %v3999 = vmul.f32 %v3883, 0.00390625
        %v4000 = vmul.f32 %v3920, 0.00390625
        %v4001 = vmul.f32 %v3957, 0.00390625
        %v4002 = vmul.f32 %v3994, 0.00390625
        %v4003 = vsub.f32 %v2879, %v3435
        %v4004 = vsub.f32 %v2916, %v3436
        %v4005 = vsub.f32 %v2953, %v3437
        %v4006 = vsub.f32 %v2990, %v3438
        %v4007 = vsub.f32 %v3027, %v3439
        %v4008 = vsub.f32 %v3064, %v3440
        %v4009 = vsub.f32 %v3101, %v3441
        %v4010 = vsub.f32 %v3138, %v3442
        %v4011 = vmul.f32 %v3435, %v3435
        %v4012 = vmul.f32 %v3436, %v3436
        %v4013 = vmul.f32 %v3437, %v3437
        %v4014 = vmul.f32 %v3438, %v3438
        %v4015 = vmul.f32 %v3439, %v3439
        %v4016 = vmul.f32 %v3440, %v3440
        %v4017 = vmul.f32 %v3441, %v3441
        %v4018 = vmul.f32 %v3442, %v3442
        %v4019 = vsub.f32 %v3995, %v4011
        %v4020 = vsub.f32 %v3996, %v4012
        %v4021 = vsub.f32 %v3997, %v4013
        %v4022 = vsub.f32 %v3998, %v4014
        %v4023 = vsub.f32 %v3999, %v4015
        %v4024 = vsub.f32 %v4000, %v4016
        %v4025 = vsub.f32 %v4001, %v4017
        %v4026 = vsub.f32 %v4002, %v4018
        %v4027 = vadd.f32 %v4019, 1e-05
        %v4028 = vadd.f32 %v4020, 1e-05
        %v4029 = vadd.f32 %v4021, 1e-05
        %v4030 = vadd.f32 %v4022, 1e-05
        %v4031 = vadd.f32 %v4023, 1e-05
        %v4032 = vadd.f32 %v4024, 1e-05
        %v4033 = vadd.f32 %v4025, 1e-05
        %v4034 = vadd.f32 %v4026, 1e-05
        %v4035 = vrsqrt.pop %v4027
        %v4036 = vmul.f32 %v4035, %v4027
        %v4037 = vmul.f32 %v4036, %v4035
        %v4038 = vmul.f32 0.5, %v4037
        %v4039 = vsub.f32 1.5, %v4038
        %v4040 = vmul.f32 %v4035, %v4039
        %vm4041 = vweird.f32 %v4027
        %vm4042 = vweird.f32 %v4035
        %vm4043 = vmor %vm4041, %vm4042
        %v4044 = vsel %vm4043, %v4035, %v4040
        %v4045 = vrsqrt.pop %v4028
        %v4046 = vmul.f32 %v4045, %v4028
        %v4047 = vmul.f32 %v4046, %v4045
        %v4048 = vmul.f32 0.5, %v4047
        %v4049 = vsub.f32 1.5, %v4048
        %v4050 = vmul.f32 %v4045, %v4049
        %vm4051 = vweird.f32 %v4028
        %vm4052 = vweird.f32 %v4045
        %vm4053 = vmor %vm4051, %vm4052
        %v4054 = vsel %vm4053, %v4045, %v4050
        %v4055 = vrsqrt.pop %v4029
        %v4056 = vmul.f32 %v4055, %v4029
        %v4057 = vmul.f32 %v4056, %v4055
        %v4058 = vmul.f32 0.5, %v4057
        %v4059 = vsub.f32 1.5, %v4058
        %v4060 = vmul.f32 %v4055, %v4059
        %vm4061 = vweird.f32 %v4029
        %vm4062 = vweird.f32 %v4055
        %vm4063 = vmor %vm4061, %vm4062
        %v4064 = vsel %vm4063, %v4055, %v4060
        %v4065 = vrsqrt.pop %v4030
        %v4066 = vmul.f32 %v4065, %v4030
        %v4067 = vmul.f32 %v4066, %v4065
        %v4068 = vmul.f32 0.5, %v4067
        %v4069 = vsub.f32 1.5, %v4068
        %v4070 = vmul.f32 %v4065, %v4069
        %vm4071 = vweird.f32 %v4030
        %vm4072 = vweird.f32 %v4065
        %vm4073 = vmor %vm4071, %vm4072
        %v4074 = vsel %vm4073, %v4065, %v4070
        %v4075 = vrsqrt.pop %v4031
        %v4076 = vmul.f32 %v4075, %v4031
        %v4077 = vmul.f32 %v4076, %v4075
        %v4078 = vmul.f32 0.5, %v4077
        %v4079 = vsub.f32 1.5, %v4078
        %v4080 = vmul.f32 %v4075, %v4079
        %vm4081 = vweird.f32 %v4031
        %vm4082 = vweird.f32 %v4075
        %vm4083 = vmor %vm4081, %vm4082
        %v4084 = vsel %vm4083, %v4075, %v4080
        %v4085 = vrsqrt.pop %v4032
        %v4086 = vmul.f32 %v4085, %v4032
        %v4087 = vmul.f32 %v4086, %v4085
        %v4088 = vmul.f32 0.5, %v4087
        %v4089 = vsub.f32 1.5, %v4088
        %v4090 = vmul.f32 %v4085, %v4089
        %vm4091 = vweird.f32 %v4032
        %vm4092 = vweird.f32 %v4085
        %vm4093 = vmor %vm4091, %vm4092
        %v4094 = vsel %vm4093, %v4085, %v4090
        %v4095 = vrsqrt.pop %v4033
        %v4096 = vmul.f32 %v4095, %v4033
        %v4097 = vmul.f32 %v4096, %v4095
        %v4098 = vmul.f32 0.5, %v4097
        %v4099 = vsub.f32 1.5, %v4098
        %v4100 = vmul.f32 %v4095, %v4099
        %vm4101 = vweird.f32 %v4033
        %vm4102 = vweird.f32 %v4095
        %vm4103 = vmor %vm4101, %vm4102
        %v4104 = vsel %vm4103, %v4095, %v4100
        %v4105 = vrsqrt.pop %v4034
        %v4106 = vmul.f32 %v4105, %v4034
        %v4107 = vmul.f32 %v4106, %v4105
        %v4108 = vmul.f32 0.5, %v4107
        %v4109 = vsub.f32 1.5, %v4108
        %v4110 = vmul.f32 %v4105, %v4109
        %vm4111 = vweird.f32 %v4034
        %vm4112 = vweird.f32 %v4105
        %vm4113 = vmor %vm4111, %vm4112
        %v4114 = vsel %vm4113, %v4105, %v4110
        %v4115 = vmul.f32 %v4003, %v4044
        %v4116 = vmul.f32 %v4004, %v4054
        %v4117 = vmul.f32 %v4005, %v4064
        %v4118 = vmul.f32 %v4006, %v4074
        %v4119 = vmul.f32 %v4007, %v4084
        %v4120 = vmul.f32 %v4008, %v4094
        %v4121 = vmul.f32 %v4009, %v4104
        %v4122 = vmul.f32 %v4010, %v4114
        %v4123 = vmax.f32 %v4115, 0.0
        %v4124 = vmax.f32 %v4116, 0.0
        %v4125 = vmax.f32 %v4117, 0.0
        %v4126 = vmax.f32 %v4118, 0.0
        %v4127 = vmax.f32 %v4119, 0.0
        %v4128 = vmax.f32 %v4120, 0.0
        %v4129 = vmax.f32 %v4121, 0.0
        %v4130 = vmax.f32 %v4122, 0.0
        %v4131 = vpack.c.bf16 %v4123, %v4123
        %v4132 = vpack.c.bf16 %v4124, %v4124
        %v4133 = vpack.c.bf16 %v4125, %v4125
        %v4134 = vpack.c.bf16 %v4126, %v4126
        %v4135 = vpack.c.bf16 %v4127, %v4127
        %v4136 = vpack.c.bf16 %v4128, %v4128
        %v4137 = vpack.c.bf16 %v4129, %v4129
        %v4138 = vpack.c.bf16 %v4130, %v4130
        %v4139 = vld [vmem:[#allocation2] sm:$0xff]
        %v4140 = vld [vmem:[#allocation2 + $0x8] sm:$0xff]
        %v4141 = vld [vmem:[#allocation2 + $0x10] sm:$0xff]
        %v4142 = vld [vmem:[#allocation2 + $0x18] sm:$0xff]
        %v4143 = vld [vmem:[#allocation2 + $0x20] sm:$0xff]
        %v4144 = vld [vmem:[#allocation2 + $0x28] sm:$0xff]
        %v4145 = vld [vmem:[#allocation2 + $0x30] sm:$0xff]
        %v4146 = vld [vmem:[#allocation2 + $0x38] sm:$0xff]
        %v4147 = vld [vmem:[#allocation2 + $0x40] sm:$0xff]
        %v4148 = vld [vmem:[#allocation2 + $0x48] sm:$0xff]
        %v4149 = vld [vmem:[#allocation2 + $0x50] sm:$0xff]
        %v4150 = vld [vmem:[#allocation2 + $0x58] sm:$0xff]
        %v4151 = vld [vmem:[#allocation2 + $0x60] sm:$0xff]
        %v4152 = vld [vmem:[#allocation2 + $0x68] sm:$0xff]
        %v4153 = vld [vmem:[#allocation2 + $0x70] sm:$0xff]
        %v4154 = vld [vmem:[#allocation2 + $0x78] sm:$0xff]
        %v4155 = vld [vmem:[#allocation2 + $0x80] sm:$0xff]
        %v4156 = vld [vmem:[#allocation2 + $0x88] sm:$0xff]
        %v4157 = vld [vmem:[#allocation2 + $0x90] sm:$0xff]
        %v4158 = vld [vmem:[#allocation2 + $0x98] sm:$0xff]
        %v4159 = vld [vmem:[#allocation2 + $0xa0] sm:$0xff]
        %v4160 = vld [vmem:[#allocation2 + $0xa8] sm:$0xff]
        %v4161 = vld [vmem:[#allocation2 + $0xb0] sm:$0xff]
        %v4162 = vld [vmem:[#allocation2 + $0xb8] sm:$0xff]
        %v4163 = vld [vmem:[#allocation2 + $0xc0] sm:$0xff]
        %v4164 = vld [vmem:[#allocation2 + $0xc8] sm:$0xff]
        %v4165 = vld [vmem:[#allocation2 + $0xd0] sm:$0xff]
        %v4166 = vld [vmem:[#allocation2 + $0xd8] sm:$0xff]
        %v4167 = vld [vmem:[#allocation2 + $0xe0] sm:$0xff]
        %v4168 = vld [vmem:[#allocation2 + $0xe8] sm:$0xff]
        %v4169 = vld [vmem:[#allocation2 + $0xf0] sm:$0xff]
        %v4170 = vld [vmem:[#allocation2 + $0xf8] sm:$0xff]
        %v4171 = vld [vmem:[#allocation2 + $0x100] sm:$0xff]
        %v4172 = vld [vmem:[#allocation2 + $0x108] sm:$0xff]
        %v4173 = vld [vmem:[#allocation2 + $0x110] sm:$0xff]
        %v4174 = vld [vmem:[#allocation2 + $0x118] sm:$0xff]
        %v4175 = vld [vmem:[#allocation2 + $0x120] sm:$0xff]
        %v4176 = vld [vmem:[#allocation2 + $0x128] sm:$0xff]
        %v4177 = vld [vmem:[#allocation2 + $0x130] sm:$0xff]
        %v4178 = vld [vmem:[#allocation2 + $0x138] sm:$0xff]
        %v4179 = vld [vmem:[#allocation2 + $0x140] sm:$0xff]
        %v4180 = vld [vmem:[#allocation2 + $0x148] sm:$0xff]
        %v4181 = vld [vmem:[#allocation2 + $0x150] sm:$0xff]
        %v4182 = vld [vmem:[#allocation2 + $0x158] sm:$0xff]
        %v4183 = vld [vmem:[#allocation2 + $0x160] sm:$0xff]
        %v4184 = vld [vmem:[#allocation2 + $0x168] sm:$0xff]
        %v4185 = vld [vmem:[#allocation2 + $0x170] sm:$0xff]
        %v4186 = vld [vmem:[#allocation2 + $0x178] sm:$0xff]
        %v4187 = vld [vmem:[#allocation2 + $0x180] sm:$0xff]
        %v4188 = vld [vmem:[#allocation2 + $0x188] sm:$0xff]
        %v4189 = vld [vmem:[#allocation2 + $0x190] sm:$0xff]
        %v4190 = vld [vmem:[#allocation2 + $0x198] sm:$0xff]
        %v4191 = vld [vmem:[#allocation2 + $0x1a0] sm:$0xff]
        %v4192 = vld [vmem:[#allocation2 + $0x1a8] sm:$0xff]
        %v4193 = vld [vmem:[#allocation2 + $0x1b0] sm:$0xff]
        %v4194 = vld [vmem:[#allocation2 + $0x1b8] sm:$0xff]
        %v4195 = vld [vmem:[#allocation2 + $0x1c0] sm:$0xff]
        %v4196 = vld [vmem:[#allocation2 + $0x1c8] sm:$0xff]
        %v4197 = vld [vmem:[#allocation2 + $0x1d0] sm:$0xff]
        %v4198 = vld [vmem:[#allocation2 + $0x1d8] sm:$0xff]
        %v4199 = vld [vmem:[#allocation2 + $0x1e0] sm:$0xff]
        %v4200 = vld [vmem:[#allocation2 + $0x1e8] sm:$0xff]
        %v4201 = vld [vmem:[#allocation2 + $0x1f0] sm:$0xff]
        %v4202 = vld [vmem:[#allocation2 + $0x1f8] sm:$0xff]
        %v4203 = vld [vmem:[#allocation2 + $0x200] sm:$0xff]
        %v4204 = vld [vmem:[#allocation2 + $0x208] sm:$0xff]
        %v4205 = vld [vmem:[#allocation2 + $0x210] sm:$0xff]
        %v4206 = vld [vmem:[#allocation2 + $0x218] sm:$0xff]
        %v4207 = vld [vmem:[#allocation2 + $0x220] sm:$0xff]
        %v4208 = vld [vmem:[#allocation2 + $0x228] sm:$0xff]
        %v4209 = vld [vmem:[#allocation2 + $0x230] sm:$0xff]
        %v4210 = vld [vmem:[#allocation2 + $0x238] sm:$0xff]
        %v4211 = vld [vmem:[#allocation2 + $0x240] sm:$0xff]
        %v4212 = vld [vmem:[#allocation2 + $0x248] sm:$0xff]
        %v4213 = vld [vmem:[#allocation2 + $0x250] sm:$0xff]
        %v4214 = vld [vmem:[#allocation2 + $0x258] sm:$0xff]
        %v4215 = vld [vmem:[#allocation2 + $0x260] sm:$0xff]
        %v4216 = vld [vmem:[#allocation2 + $0x268] sm:$0xff]
        %v4217 = vld [vmem:[#allocation2 + $0x270] sm:$0xff]
        %v4218 = vld [vmem:[#allocation2 + $0x278] sm:$0xff]
        %v4219 = vld [vmem:[#allocation2 + $0x280] sm:$0xff]
        %v4220 = vld [vmem:[#allocation2 + $0x288] sm:$0xff]
        %v4221 = vld [vmem:[#allocation2 + $0x290] sm:$0xff]
        %v4222 = vld [vmem:[#allocation2 + $0x298] sm:$0xff]
        %v4223 = vld [vmem:[#allocation2 + $0x2a0] sm:$0xff]
        %v4224 = vld [vmem:[#allocation2 + $0x2a8] sm:$0xff]
        %v4225 = vld [vmem:[#allocation2 + $0x2b0] sm:$0xff]
        %v4226 = vld [vmem:[#allocation2 + $0x2b8] sm:$0xff]
        %v4227 = vld [vmem:[#allocation2 + $0x2c0] sm:$0xff]
        %v4228 = vld [vmem:[#allocation2 + $0x2c8] sm:$0xff]
        %v4229 = vld [vmem:[#allocation2 + $0x2d0] sm:$0xff]
        %v4230 = vld [vmem:[#allocation2 + $0x2d8] sm:$0xff]
        %v4231 = vld [vmem:[#allocation2 + $0x2e0] sm:$0xff]
        %v4232 = vld [vmem:[#allocation2 + $0x2e8] sm:$0xff]
        %v4233 = vld [vmem:[#allocation2 + $0x2f0] sm:$0xff]
        %v4234 = vld [vmem:[#allocation2 + $0x2f8] sm:$0xff]
        %v4235 = vld [vmem:[#allocation2 + $0x300] sm:$0xff]
        %v4236 = vld [vmem:[#allocation2 + $0x308] sm:$0xff]
        %v4237 = vld [vmem:[#allocation2 + $0x310] sm:$0xff]
        %v4238 = vld [vmem:[#allocation2 + $0x318] sm:$0xff]
        %v4239 = vld [vmem:[#allocation2 + $0x320] sm:$0xff]
        %v4240 = vld [vmem:[#allocation2 + $0x328] sm:$0xff]
        %v4241 = vld [vmem:[#allocation2 + $0x330] sm:$0xff]
        %v4242 = vld [vmem:[#allocation2 + $0x338] sm:$0xff]
        %v4243 = vld [vmem:[#allocation2 + $0x340] sm:$0xff]
        %v4244 = vld [vmem:[#allocation2 + $0x348] sm:$0xff]
        %v4245 = vld [vmem:[#allocation2 + $0x350] sm:$0xff]
        %v4246 = vld [vmem:[#allocation2 + $0x358] sm:$0xff]
        %v4247 = vld [vmem:[#allocation2 + $0x360] sm:$0xff]
        %v4248 = vld [vmem:[#allocation2 + $0x368] sm:$0xff]
        %v4249 = vld [vmem:[#allocation2 + $0x370] sm:$0xff]
        %v4250 = vld [vmem:[#allocation2 + $0x378] sm:$0xff]
        %v4251 = vld [vmem:[#allocation2 + $0x380] sm:$0xff]
        %v4252 = vld [vmem:[#allocation2 + $0x388] sm:$0xff]
        %v4253 = vld [vmem:[#allocation2 + $0x390] sm:$0xff]
        %v4254 = vld [vmem:[#allocation2 + $0x398] sm:$0xff]
        %v4255 = vld [vmem:[#allocation2 + $0x3a0] sm:$0xff]
        %v4256 = vld [vmem:[#allocation2 + $0x3a8] sm:$0xff]
        %v4257 = vld [vmem:[#allocation2 + $0x3b0] sm:$0xff]
        %v4258 = vld [vmem:[#allocation2 + $0x3b8] sm:$0xff]
        %v4259 = vld [vmem:[#allocation2 + $0x3c0] sm:$0xff]
        %v4260 = vld [vmem:[#allocation2 + $0x3c8] sm:$0xff]
        %v4261 = vld [vmem:[#allocation2 + $0x3d0] sm:$0xff]
        %v4262 = vld [vmem:[#allocation2 + $0x3d8] sm:$0xff]
        %v4263 = vld [vmem:[#allocation2 + $0x3e0] sm:$0xff]
        %v4264 = vld [vmem:[#allocation2 + $0x3e8] sm:$0xff]
        %v4265 = vld [vmem:[#allocation2 + $0x3f0] sm:$0xff]
        %v4266 = vld [vmem:[#allocation2 + $0x3f8] sm:$0xff]
        %v4267 = vld [vmem:[#allocation2 + $0x400] sm:$0xff]
        %v4268 = vld [vmem:[#allocation2 + $0x408] sm:$0xff]
        %v4269 = vld [vmem:[#allocation2 + $0x410] sm:$0xff]
        %v4270 = vld [vmem:[#allocation2 + $0x418] sm:$0xff]
        %v4271 = vld [vmem:[#allocation2 + $0x420] sm:$0xff]
        %v4272 = vld [vmem:[#allocation2 + $0x428] sm:$0xff]
        %v4273 = vld [vmem:[#allocation2 + $0x430] sm:$0xff]
        %v4274 = vld [vmem:[#allocation2 + $0x438] sm:$0xff]
        %v4275 = vld [vmem:[#allocation2 + $0x440] sm:$0xff]
        %v4276 = vld [vmem:[#allocation2 + $0x448] sm:$0xff]
        %v4277 = vld [vmem:[#allocation2 + $0x450] sm:$0xff]
        %v4278 = vld [vmem:[#allocation2 + $0x458] sm:$0xff]
        %v4279 = vld [vmem:[#allocation2 + $0x460] sm:$0xff]
        %v4280 = vld [vmem:[#allocation2 + $0x468] sm:$0xff]
        %v4281 = vld [vmem:[#allocation2 + $0x470] sm:$0xff]
        %v4282 = vld [vmem:[#allocation2 + $0x478] sm:$0xff]
        %v4283 = vld [vmem:[#allocation2 + $0x480] sm:$0xff]
        %v4284 = vld [vmem:[#allocation2 + $0x488] sm:$0xff]
        %v4285 = vld [vmem:[#allocation2 + $0x490] sm:$0xff]
        %v4286 = vld [vmem:[#allocation2 + $0x498] sm:$0xff]
        %v4287 = vld [vmem:[#allocation2 + $0x4a0] sm:$0xff]
        %v4288 = vld [vmem:[#allocation2 + $0x4a8] sm:$0xff]
        %v4289 = vld [vmem:[#allocation2 + $0x4b0] sm:$0xff]
        %v4290 = vld [vmem:[#allocation2 + $0x4b8] sm:$0xff]
        %v4291 = vld [vmem:[#allocation2 + $0x4c0] sm:$0xff]
        %v4292 = vld [vmem:[#allocation2 + $0x4c8] sm:$0xff]
        %v4293 = vld [vmem:[#allocation2 + $0x4d0] sm:$0xff]
        %v4294 = vld [vmem:[#allocation2 + $0x4d8] sm:$0xff]
        %v4295 = vld [vmem:[#allocation2 + $0x4e0] sm:$0xff]
        %v4296 = vld [vmem:[#allocation2 + $0x4e8] sm:$0xff]
        %v4297 = vld [vmem:[#allocation2 + $0x4f0] sm:$0xff]
        %v4298 = vld [vmem:[#allocation2 + $0x4f8] sm:$0xff]
        %v4299 = vld [vmem:[#allocation2 + $0x500] sm:$0xff]
        %v4300 = vld [vmem:[#allocation2 + $0x508] sm:$0xff]
        %v4301 = vld [vmem:[#allocation2 + $0x510] sm:$0xff]
        %v4302 = vld [vmem:[#allocation2 + $0x518] sm:$0xff]
        %v4303 = vld [vmem:[#allocation2 + $0x520] sm:$0xff]
        %v4304 = vld [vmem:[#allocation2 + $0x528] sm:$0xff]
        %v4305 = vld [vmem:[#allocation2 + $0x530] sm:$0xff]
        %v4306 = vld [vmem:[#allocation2 + $0x538] sm:$0xff]
        %v4307 = vld [vmem:[#allocation2 + $0x540] sm:$0xff]
        %v4308 = vld [vmem:[#allocation2 + $0x548] sm:$0xff]
        %v4309 = vld [vmem:[#allocation2 + $0x550] sm:$0xff]
        %v4310 = vld [vmem:[#allocation2 + $0x558] sm:$0xff]
        %v4311 = vld [vmem:[#allocation2 + $0x560] sm:$0xff]
        %v4312 = vld [vmem:[#allocation2 + $0x568] sm:$0xff]
        %v4313 = vld [vmem:[#allocation2 + $0x570] sm:$0xff]
        %v4314 = vld [vmem:[#allocation2 + $0x578] sm:$0xff]
        %v4315 = vld [vmem:[#allocation2 + $0x580] sm:$0xff]
        %v4316 = vld [vmem:[#allocation2 + $0x588] sm:$0xff]
        %v4317 = vld [vmem:[#allocation2 + $0x590] sm:$0xff]
        %v4318 = vld [vmem:[#allocation2 + $0x598] sm:$0xff]
        %v4319 = vld [vmem:[#allocation2 + $0x5a0] sm:$0xff]
        %v4320 = vld [vmem:[#allocation2 + $0x5a8] sm:$0xff]
        %v4321 = vld [vmem:[#allocation2 + $0x5b0] sm:$0xff]
        %v4322 = vld [vmem:[#allocation2 + $0x5b8] sm:$0xff]
        %v4323 = vld [vmem:[#allocation2 + $0x5c0] sm:$0xff]
        %v4324 = vld [vmem:[#allocation2 + $0x5c8] sm:$0xff]
        %v4325 = vld [vmem:[#allocation2 + $0x5d0] sm:$0xff]
        %v4326 = vld [vmem:[#allocation2 + $0x5d8] sm:$0xff]
        %v4327 = vld [vmem:[#allocation2 + $0x5e0] sm:$0xff]
        %v4328 = vld [vmem:[#allocation2 + $0x5e8] sm:$0xff]
        %v4329 = vld [vmem:[#allocation2 + $0x5f0] sm:$0xff]
        %v4330 = vld [vmem:[#allocation2 + $0x5f8] sm:$0xff]
        %v4331 = vld [vmem:[#allocation2 + $0x600] sm:$0xff]
        %v4332 = vld [vmem:[#allocation2 + $0x608] sm:$0xff]
        %v4333 = vld [vmem:[#allocation2 + $0x610] sm:$0xff]
        %v4334 = vld [vmem:[#allocation2 + $0x618] sm:$0xff]
        %v4335 = vld [vmem:[#allocation2 + $0x620] sm:$0xff]
        %v4336 = vld [vmem:[#allocation2 + $0x628] sm:$0xff]
        %v4337 = vld [vmem:[#allocation2 + $0x630] sm:$0xff]
        %v4338 = vld [vmem:[#allocation2 + $0x638] sm:$0xff]
        %v4339 = vld [vmem:[#allocation2 + $0x640] sm:$0xff]
        %v4340 = vld [vmem:[#allocation2 + $0x648] sm:$0xff]
        %v4341 = vld [vmem:[#allocation2 + $0x650] sm:$0xff]
        %v4342 = vld [vmem:[#allocation2 + $0x658] sm:$0xff]
        %v4343 = vld [vmem:[#allocation2 + $0x660] sm:$0xff]
        %v4344 = vld [vmem:[#allocation2 + $0x668] sm:$0xff]
        %v4345 = vld [vmem:[#allocation2 + $0x670] sm:$0xff]
        %v4346 = vld [vmem:[#allocation2 + $0x678] sm:$0xff]
        %v4347 = vld [vmem:[#allocation2 + $0x680] sm:$0xff]
        %v4348 = vld [vmem:[#allocation2 + $0x688] sm:$0xff]
        %v4349 = vld [vmem:[#allocation2 + $0x690] sm:$0xff]
        %v4350 = vld [vmem:[#allocation2 + $0x698] sm:$0xff]
        %v4351 = vld [vmem:[#allocation2 + $0x6a0] sm:$0xff]
        %v4352 = vld [vmem:[#allocation2 + $0x6a8] sm:$0xff]
        %v4353 = vld [vmem:[#allocation2 + $0x6b0] sm:$0xff]
        %v4354 = vld [vmem:[#allocation2 + $0x6b8] sm:$0xff]
        %v4355 = vld [vmem:[#allocation2 + $0x6c0] sm:$0xff]
        %v4356 = vld [vmem:[#allocation2 + $0x6c8] sm:$0xff]
        %v4357 = vld [vmem:[#allocation2 + $0x6d0] sm:$0xff]
        %v4358 = vld [vmem:[#allocation2 + $0x6d8] sm:$0xff]
        %v4359 = vld [vmem:[#allocation2 + $0x6e0] sm:$0xff]
        %v4360 = vld [vmem:[#allocation2 + $0x6e8] sm:$0xff]
        %v4361 = vld [vmem:[#allocation2 + $0x6f0] sm:$0xff]
        %v4362 = vld [vmem:[#allocation2 + $0x6f8] sm:$0xff]
        %v4363 = vld [vmem:[#allocation2 + $0x700] sm:$0xff]
        %v4364 = vld [vmem:[#allocation2 + $0x708] sm:$0xff]
        %v4365 = vld [vmem:[#allocation2 + $0x710] sm:$0xff]
        %v4366 = vld [vmem:[#allocation2 + $0x718] sm:$0xff]
        %v4367 = vld [vmem:[#allocation2 + $0x720] sm:$0xff]
        %v4368 = vld [vmem:[#allocation2 + $0x728] sm:$0xff]
        %v4369 = vld [vmem:[#allocation2 + $0x730] sm:$0xff]
        %v4370 = vld [vmem:[#allocation2 + $0x738] sm:$0xff]
        %v4371 = vld [vmem:[#allocation2 + $0x740] sm:$0xff]
        %v4372 = vld [vmem:[#allocation2 + $0x748] sm:$0xff]
        %v4373 = vld [vmem:[#allocation2 + $0x750] sm:$0xff]
        %v4374 = vld [vmem:[#allocation2 + $0x758] sm:$0xff]
        %v4375 = vld [vmem:[#allocation2 + $0x760] sm:$0xff]
        %v4376 = vld [vmem:[#allocation2 + $0x768] sm:$0xff]
        %v4377 = vld [vmem:[#allocation2 + $0x770] sm:$0xff]
        %v4378 = vld [vmem:[#allocation2 + $0x778] sm:$0xff]
        %v4379 = vld [vmem:[#allocation2 + $0x780] sm:$0xff]
        %v4380 = vld [vmem:[#allocation2 + $0x788] sm:$0xff]
        %v4381 = vld [vmem:[#allocation2 + $0x790] sm:$0xff]
        %v4382 = vld [vmem:[#allocation2 + $0x798] sm:$0xff]
        %v4383 = vld [vmem:[#allocation2 + $0x7a0] sm:$0xff]
        %v4384 = vld [vmem:[#allocation2 + $0x7a8] sm:$0xff]
        %v4385 = vld [vmem:[#allocation2 + $0x7b0] sm:$0xff]
        %v4386 = vld [vmem:[#allocation2 + $0x7b8] sm:$0xff]
        %v4387 = vld [vmem:[#allocation2 + $0x7c0] sm:$0xff]
        %v4388 = vld [vmem:[#allocation2 + $0x7c8] sm:$0xff]
        %v4389 = vld [vmem:[#allocation2 + $0x7d0] sm:$0xff]
        %v4390 = vld [vmem:[#allocation2 + $0x7d8] sm:$0xff]
        %v4391 = vld [vmem:[#allocation2 + $0x7e0] sm:$0xff]
        %v4392 = vld [vmem:[#allocation2 + $0x7e8] sm:$0xff]
        %v4393 = vld [vmem:[#allocation2 + $0x7f0] sm:$0xff]
        %v4394 = vld [vmem:[#allocation2 + $0x7f8] sm:$0xff]
        %v4395 = vld [vmem:[%s8] sm:$0xf]
        %v4652 = vunpack.c.l.b16 %v4139
        %v4653 = vunpack.c.h.b16 %v4139
        %v4654 = vunpack.c.l.b16 %v4140
        %v4655 = vunpack.c.h.b16 %v4140
        %v4656 = vunpack.c.l.b16 %v4141
        %v4657 = vunpack.c.h.b16 %v4141
        %v4658 = vunpack.c.l.b16 %v4142
        %v4659 = vunpack.c.h.b16 %v4142
        %v4660 = vunpack.c.l.b16 %v4143
        %v4661 = vunpack.c.h.b16 %v4143
        %v4662 = vunpack.c.l.b16 %v4144
        %v4663 = vunpack.c.h.b16 %v4144
        %v4664 = vunpack.c.l.b16 %v4145
        %v4665 = vunpack.c.h.b16 %v4145
        %v4666 = vunpack.c.l.b16 %v4146
        %v4667 = vunpack.c.h.b16 %v4146
        %v4668 = vunpack.c.l.b16 %v4147
        %v4669 = vunpack.c.h.b16 %v4147
        %v4670 = vunpack.c.l.b16 %v4148
        %v4671 = vunpack.c.h.b16 %v4148
        %v4672 = vunpack.c.l.b16 %v4149
        %v4673 = vunpack.c.h.b16 %v4149
        %v4674 = vunpack.c.l.b16 %v4150
        %v4675 = vunpack.c.h.b16 %v4150
        %v4676 = vunpack.c.l.b16 %v4151
        %v4677 = vunpack.c.h.b16 %v4151
        %v4678 = vunpack.c.l.b16 %v4152
        %v4679 = vunpack.c.h.b16 %v4152
        %v4680 = vunpack.c.l.b16 %v4153
        %v4681 = vunpack.c.h.b16 %v4153
        %v4682 = vunpack.c.l.b16 %v4154
        %v4683 = vunpack.c.h.b16 %v4154
        %v4684 = vunpack.c.l.b16 %v4155
        %v4685 = vunpack.c.h.b16 %v4155
        %v4686 = vunpack.c.l.b16 %v4156
        %v4687 = vunpack.c.h.b16 %v4156
        %v4688 = vunpack.c.l.b16 %v4157
        %v4689 = vunpack.c.h.b16 %v4157
        %v4690 = vunpack.c.l.b16 %v4158
        %v4691 = vunpack.c.h.b16 %v4158
        %v4692 = vunpack.c.l.b16 %v4159
        %v4693 = vunpack.c.h.b16 %v4159
        %v4694 = vunpack.c.l.b16 %v4160
        %v4695 = vunpack.c.h.b16 %v4160
        %v4696 = vunpack.c.l.b16 %v4161
        %v4697 = vunpack.c.h.b16 %v4161
        %v4698 = vunpack.c.l.b16 %v4162
        %v4699 = vunpack.c.h.b16 %v4162
        %v4700 = vunpack.c.l.b16 %v4163
        %v4701 = vunpack.c.h.b16 %v4163
        %v4702 = vunpack.c.l.b16 %v4164
        %v4703 = vunpack.c.h.b16 %v4164
        %v4704 = vunpack.c.l.b16 %v4165
        %v4705 = vunpack.c.h.b16 %v4165
        %v4706 = vunpack.c.l.b16 %v4166
        %v4707 = vunpack.c.h.b16 %v4166
        %v4708 = vunpack.c.l.b16 %v4167
        %v4709 = vunpack.c.h.b16 %v4167
        %v4710 = vunpack.c.l.b16 %v4168
        %v4711 = vunpack.c.h.b16 %v4168
        %v4712 = vunpack.c.l.b16 %v4169
        %v4713 = vunpack.c.h.b16 %v4169
        %v4714 = vunpack.c.l.b16 %v4170
        %v4715 = vunpack.c.h.b16 %v4170
        %v4716 = vunpack.c.l.b16 %v4171
        %v4717 = vunpack.c.h.b16 %v4171
        %v4718 = vunpack.c.l.b16 %v4172
        %v4719 = vunpack.c.h.b16 %v4172
        %v4720 = vunpack.c.l.b16 %v4173
        %v4721 = vunpack.c.h.b16 %v4173
        %v4722 = vunpack.c.l.b16 %v4174
        %v4723 = vunpack.c.h.b16 %v4174
        %v4724 = vunpack.c.l.b16 %v4175
        %v4725 = vunpack.c.h.b16 %v4175
        %v4726 = vunpack.c.l.b16 %v4176
        %v4727 = vunpack.c.h.b16 %v4176
        %v4728 = vunpack.c.l.b16 %v4177
        %v4729 = vunpack.c.h.b16 %v4177
        %v4730 = vunpack.c.l.b16 %v4178
        %v4731 = vunpack.c.h.b16 %v4178
        %v4732 = vunpack.c.l.b16 %v4179
        %v4733 = vunpack.c.h.b16 %v4179
        %v4734 = vunpack.c.l.b16 %v4180
        %v4735 = vunpack.c.h.b16 %v4180
        %v4736 = vunpack.c.l.b16 %v4181
        %v4737 = vunpack.c.h.b16 %v4181
        %v4738 = vunpack.c.l.b16 %v4182
        %v4739 = vunpack.c.h.b16 %v4182
        %v4740 = vunpack.c.l.b16 %v4183
        %v4741 = vunpack.c.h.b16 %v4183
        %v4742 = vunpack.c.l.b16 %v4184
        %v4743 = vunpack.c.h.b16 %v4184
        %v4744 = vunpack.c.l.b16 %v4185
        %v4745 = vunpack.c.h.b16 %v4185
        %v4746 = vunpack.c.l.b16 %v4186
        %v4747 = vunpack.c.h.b16 %v4186
        %v4748 = vunpack.c.l.b16 %v4187
        %v4749 = vunpack.c.h.b16 %v4187
        %v4750 = vunpack.c.l.b16 %v4188
        %v4751 = vunpack.c.h.b16 %v4188
        %v4752 = vunpack.c.l.b16 %v4189
        %v4753 = vunpack.c.h.b16 %v4189
        %v4754 = vunpack.c.l.b16 %v4190
        %v4755 = vunpack.c.h.b16 %v4190
        %v4756 = vunpack.c.l.b16 %v4191
        %v4757 = vunpack.c.h.b16 %v4191
        %v4758 = vunpack.c.l.b16 %v4192
        %v4759 = vunpack.c.h.b16 %v4192
        %v4760 = vunpack.c.l.b16 %v4193
        %v4761 = vunpack.c.h.b16 %v4193
        %v4762 = vunpack.c.l.b16 %v4194
        %v4763 = vunpack.c.h.b16 %v4194
        %v4764 = vunpack.c.l.b16 %v4195
        %v4765 = vunpack.c.h.b16 %v4195
        %v4766 = vunpack.c.l.b16 %v4196
        %v4767 = vunpack.c.h.b16 %v4196
        %v4768 = vunpack.c.l.b16 %v4197
        %v4769 = vunpack.c.h.b16 %v4197
        %v4770 = vunpack.c.l.b16 %v4198
        %v4771 = vunpack.c.h.b16 %v4198
        %v4772 = vunpack.c.l.b16 %v4199
        %v4773 = vunpack.c.h.b16 %v4199
        %v4774 = vunpack.c.l.b16 %v4200
        %v4775 = vunpack.c.h.b16 %v4200
        %v4776 = vunpack.c.l.b16 %v4201
        %v4777 = vunpack.c.h.b16 %v4201
        %v4778 = vunpack.c.l.b16 %v4202
        %v4779 = vunpack.c.h.b16 %v4202
        %v4780 = vunpack.c.l.b16 %v4203
        %v4781 = vunpack.c.h.b16 %v4203
        %v4782 = vunpack.c.l.b16 %v4204
        %v4783 = vunpack.c.h.b16 %v4204
        %v4784 = vunpack.c.l.b16 %v4205
        %v4785 = vunpack.c.h.b16 %v4205
        %v4786 = vunpack.c.l.b16 %v4206
        %v4787 = vunpack.c.h.b16 %v4206
        %v4788 = vunpack.c.l.b16 %v4207
        %v4789 = vunpack.c.h.b16 %v4207
        %v4790 = vunpack.c.l.b16 %v4208
        %v4791 = vunpack.c.h.b16 %v4208
        %v4792 = vunpack.c.l.b16 %v4209
        %v4793 = vunpack.c.h.b16 %v4209
        %v4794 = vunpack.c.l.b16 %v4210
        %v4795 = vunpack.c.h.b16 %v4210
        %v4796 = vunpack.c.l.b16 %v4211
        %v4797 = vunpack.c.h.b16 %v4211
        %v4798 = vunpack.c.l.b16 %v4212
        %v4799 = vunpack.c.h.b16 %v4212
        %v4800 = vunpack.c.l.b16 %v4213
        %v4801 = vunpack.c.h.b16 %v4213
        %v4802 = vunpack.c.l.b16 %v4214
        %v4803 = vunpack.c.h.b16 %v4214
        %v4804 = vunpack.c.l.b16 %v4215
        %v4805 = vunpack.c.h.b16 %v4215
        %v4806 = vunpack.c.l.b16 %v4216
        %v4807 = vunpack.c.h.b16 %v4216
        %v4808 = vunpack.c.l.b16 %v4217
        %v4809 = vunpack.c.h.b16 %v4217
        %v4810 = vunpack.c.l.b16 %v4218
        %v4811 = vunpack.c.h.b16 %v4218
        %v4812 = vunpack.c.l.b16 %v4219
        %v4813 = vunpack.c.h.b16 %v4219
        %v4814 = vunpack.c.l.b16 %v4220
        %v4815 = vunpack.c.h.b16 %v4220
        %v4816 = vunpack.c.l.b16 %v4221
        %v4817 = vunpack.c.h.b16 %v4221
        %v4818 = vunpack.c.l.b16 %v4222
        %v4819 = vunpack.c.h.b16 %v4222
        %v4820 = vunpack.c.l.b16 %v4223
        %v4821 = vunpack.c.h.b16 %v4223
        %v4822 = vunpack.c.l.b16 %v4224
        %v4823 = vunpack.c.h.b16 %v4224
        %v4824 = vunpack.c.l.b16 %v4225
        %v4825 = vunpack.c.h.b16 %v4225
        %v4826 = vunpack.c.l.b16 %v4226
        %v4827 = vunpack.c.h.b16 %v4226
        %v4828 = vunpack.c.l.b16 %v4227
        %v4829 = vunpack.c.h.b16 %v4227
        %v4830 = vunpack.c.l.b16 %v4228
        %v4831 = vunpack.c.h.b16 %v4228
        %v4832 = vunpack.c.l.b16 %v4229
        %v4833 = vunpack.c.h.b16 %v4229
        %v4834 = vunpack.c.l.b16 %v4230
        %v4835 = vunpack.c.h.b16 %v4230
        %v4836 = vunpack.c.l.b16 %v4231
        %v4837 = vunpack.c.h.b16 %v4231
        %v4838 = vunpack.c.l.b16 %v4232
        %v4839 = vunpack.c.h.b16 %v4232
        %v4840 = vunpack.c.l.b16 %v4233
        %v4841 = vunpack.c.h.b16 %v4233
        %v4842 = vunpack.c.l.b16 %v4234
        %v4843 = vunpack.c.h.b16 %v4234
        %v4844 = vunpack.c.l.b16 %v4235
        %v4845 = vunpack.c.h.b16 %v4235
        %v4846 = vunpack.c.l.b16 %v4236
        %v4847 = vunpack.c.h.b16 %v4236
        %v4848 = vunpack.c.l.b16 %v4237
        %v4849 = vunpack.c.h.b16 %v4237
        %v4850 = vunpack.c.l.b16 %v4238
        %v4851 = vunpack.c.h.b16 %v4238
        %v4852 = vunpack.c.l.b16 %v4239
        %v4853 = vunpack.c.h.b16 %v4239
        %v4854 = vunpack.c.l.b16 %v4240
        %v4855 = vunpack.c.h.b16 %v4240
        %v4856 = vunpack.c.l.b16 %v4241
        %v4857 = vunpack.c.h.b16 %v4241
        %v4858 = vunpack.c.l.b16 %v4242
        %v4859 = vunpack.c.h.b16 %v4242
        %v4860 = vunpack.c.l.b16 %v4243
        %v4861 = vunpack.c.h.b16 %v4243
        %v4862 = vunpack.c.l.b16 %v4244
        %v4863 = vunpack.c.h.b16 %v4244
        %v4864 = vunpack.c.l.b16 %v4245
        %v4865 = vunpack.c.h.b16 %v4245
        %v4866 = vunpack.c.l.b16 %v4246
        %v4867 = vunpack.c.h.b16 %v4246
        %v4868 = vunpack.c.l.b16 %v4247
        %v4869 = vunpack.c.h.b16 %v4247
        %v4870 = vunpack.c.l.b16 %v4248
        %v4871 = vunpack.c.h.b16 %v4248
        %v4872 = vunpack.c.l.b16 %v4249
        %v4873 = vunpack.c.h.b16 %v4249
        %v4874 = vunpack.c.l.b16 %v4250
        %v4875 = vunpack.c.h.b16 %v4250
        %v4876 = vunpack.c.l.b16 %v4251
        %v4877 = vunpack.c.h.b16 %v4251
        %v4878 = vunpack.c.l.b16 %v4252
        %v4879 = vunpack.c.h.b16 %v4252
        %v4880 = vunpack.c.l.b16 %v4253
        %v4881 = vunpack.c.h.b16 %v4253
        %v4882 = vunpack.c.l.b16 %v4254
        %v4883 = vunpack.c.h.b16 %v4254
        %v4884 = vunpack.c.l.b16 %v4255
        %v4885 = vunpack.c.h.b16 %v4255
        %v4886 = vunpack.c.l.b16 %v4256
        %v4887 = vunpack.c.h.b16 %v4256
        %v4888 = vunpack.c.l.b16 %v4257
        %v4889 = vunpack.c.h.b16 %v4257
        %v4890 = vunpack.c.l.b16 %v4258
        %v4891 = vunpack.c.h.b16 %v4258
        %v4892 = vunpack.c.l.b16 %v4259
        %v4893 = vunpack.c.h.b16 %v4259
        %v4894 = vunpack.c.l.b16 %v4260
        %v4895 = vunpack.c.h.b16 %v4260
        %v4896 = vunpack.c.l.b16 %v4261
        %v4897 = vunpack.c.h.b16 %v4261
        %v4898 = vunpack.c.l.b16 %v4262
        %v4899 = vunpack.c.h.b16 %v4262
        %v4900 = vunpack.c.l.b16 %v4263
        %v4901 = vunpack.c.h.b16 %v4263
        %v4902 = vunpack.c.l.b16 %v4264
        %v4903 = vunpack.c.h.b16 %v4264
        %v4904 = vunpack.c.l.b16 %v4265
        %v4905 = vunpack.c.h.b16 %v4265
        %v4906 = vunpack.c.l.b16 %v4266
        %v4907 = vunpack.c.h.b16 %v4266
        %v4908 = vunpack.c.l.b16 %v4267
        %v4909 = vunpack.c.h.b16 %v4267
        %v4910 = vunpack.c.l.b16 %v4268
        %v4911 = vunpack.c.h.b16 %v4268
        %v4912 = vunpack.c.l.b16 %v4269
        %v4913 = vunpack.c.h.b16 %v4269
        %v4914 = vunpack.c.l.b16 %v4270
        %v4915 = vunpack.c.h.b16 %v4270
        %v4916 = vunpack.c.l.b16 %v4271
        %v4917 = vunpack.c.h.b16 %v4271
        %v4918 = vunpack.c.l.b16 %v4272
        %v4919 = vunpack.c.h.b16 %v4272
        %v4920 = vunpack.c.l.b16 %v4273
        %v4921 = vunpack.c.h.b16 %v4273
        %v4922 = vunpack.c.l.b16 %v4274
        %v4923 = vunpack.c.h.b16 %v4274
        %v4924 = vunpack.c.l.b16 %v4275
        %v4925 = vunpack.c.h.b16 %v4275
        %v4926 = vunpack.c.l.b16 %v4276
        %v4927 = vunpack.c.h.b16 %v4276
        %v4928 = vunpack.c.l.b16 %v4277
        %v4929 = vunpack.c.h.b16 %v4277
        %v4930 = vunpack.c.l.b16 %v4278
        %v4931 = vunpack.c.h.b16 %v4278
        %v4932 = vunpack.c.l.b16 %v4279
        %v4933 = vunpack.c.h.b16 %v4279
        %v4934 = vunpack.c.l.b16 %v4280
        %v4935 = vunpack.c.h.b16 %v4280
        %v4936 = vunpack.c.l.b16 %v4281
        %v4937 = vunpack.c.h.b16 %v4281
        %v4938 = vunpack.c.l.b16 %v4282
        %v4939 = vunpack.c.h.b16 %v4282
        %v4940 = vunpack.c.l.b16 %v4283
        %v4941 = vunpack.c.h.b16 %v4283
        %v4942 = vunpack.c.l.b16 %v4284
        %v4943 = vunpack.c.h.b16 %v4284
        %v4944 = vunpack.c.l.b16 %v4285
        %v4945 = vunpack.c.h.b16 %v4285
        %v4946 = vunpack.c.l.b16 %v4286
        %v4947 = vunpack.c.h.b16 %v4286
        %v4948 = vunpack.c.l.b16 %v4287
        %v4949 = vunpack.c.h.b16 %v4287
        %v4950 = vunpack.c.l.b16 %v4288
        %v4951 = vunpack.c.h.b16 %v4288
        %v4952 = vunpack.c.l.b16 %v4289
        %v4953 = vunpack.c.h.b16 %v4289
        %v4954 = vunpack.c.l.b16 %v4290
        %v4955 = vunpack.c.h.b16 %v4290
        %v4956 = vunpack.c.l.b16 %v4291
        %v4957 = vunpack.c.h.b16 %v4291
        %v4958 = vunpack.c.l.b16 %v4292
        %v4959 = vunpack.c.h.b16 %v4292
        %v4960 = vunpack.c.l.b16 %v4293
        %v4961 = vunpack.c.h.b16 %v4293
        %v4962 = vunpack.c.l.b16 %v4294
        %v4963 = vunpack.c.h.b16 %v4294
        %v4964 = vunpack.c.l.b16 %v4295
        %v4965 = vunpack.c.h.b16 %v4295
        %v4966 = vunpack.c.l.b16 %v4296
        %v4967 = vunpack.c.h.b16 %v4296
        %v4968 = vunpack.c.l.b16 %v4297
        %v4969 = vunpack.c.h.b16 %v4297
        %v4970 = vunpack.c.l.b16 %v4298
        %v4971 = vunpack.c.h.b16 %v4298
        %v4972 = vunpack.c.l.b16 %v4299
        %v4973 = vunpack.c.h.b16 %v4299
        %v4974 = vunpack.c.l.b16 %v4300
        %v4975 = vunpack.c.h.b16 %v4300
        %v4976 = vunpack.c.l.b16 %v4301
        %v4977 = vunpack.c.h.b16 %v4301
        %v4978 = vunpack.c.l.b16 %v4302
        %v4979 = vunpack.c.h.b16 %v4302
        %v4980 = vunpack.c.l.b16 %v4303
        %v4981 = vunpack.c.h.b16 %v4303
        %v4982 = vunpack.c.l.b16 %v4304
        %v4983 = vunpack.c.h.b16 %v4304
        %v4984 = vunpack.c.l.b16 %v4305
        %v4985 = vunpack.c.h.b16 %v4305
        %v4986 = vunpack.c.l.b16 %v4306
        %v4987 = vunpack.c.h.b16 %v4306
        %v4988 = vunpack.c.l.b16 %v4307
        %v4989 = vunpack.c.h.b16 %v4307
        %v4990 = vunpack.c.l.b16 %v4308
        %v4991 = vunpack.c.h.b16 %v4308
        %v4992 = vunpack.c.l.b16 %v4309
        %v4993 = vunpack.c.h.b16 %v4309
        %v4994 = vunpack.c.l.b16 %v4310
        %v4995 = vunpack.c.h.b16 %v4310
        %v4996 = vunpack.c.l.b16 %v4311
        %v4997 = vunpack.c.h.b16 %v4311
        %v4998 = vunpack.c.l.b16 %v4312
        %v4999 = vunpack.c.h.b16 %v4312
        %v5000 = vunpack.c.l.b16 %v4313
        %v5001 = vunpack.c.h.b16 %v4313
        %v5002 = vunpack.c.l.b16 %v4314
        %v5003 = vunpack.c.h.b16 %v4314
        %v5004 = vunpack.c.l.b16 %v4315
        %v5005 = vunpack.c.h.b16 %v4315
        %v5006 = vunpack.c.l.b16 %v4316
        %v5007 = vunpack.c.h.b16 %v4316
        %v5008 = vunpack.c.l.b16 %v4317
        %v5009 = vunpack.c.h.b16 %v4317
        %v5010 = vunpack.c.l.b16 %v4318
        %v5011 = vunpack.c.h.b16 %v4318
        %v5012 = vunpack.c.l.b16 %v4319
        %v5013 = vunpack.c.h.b16 %v4319
        %v5014 = vunpack.c.l.b16 %v4320
        %v5015 = vunpack.c.h.b16 %v4320
        %v5016 = vunpack.c.l.b16 %v4321
        %v5017 = vunpack.c.h.b16 %v4321
        %v5018 = vunpack.c.l.b16 %v4322
        %v5019 = vunpack.c.h.b16 %v4322
        %v5020 = vunpack.c.l.b16 %v4323
        %v5021 = vunpack.c.h.b16 %v4323
        %v5022 = vunpack.c.l.b16 %v4324
        %v5023 = vunpack.c.h.b16 %v4324
        %v5024 = vunpack.c.l.b16 %v4325
        %v5025 = vunpack.c.h.b16 %v4325
        %v5026 = vunpack.c.l.b16 %v4326
        %v5027 = vunpack.c.h.b16 %v4326
        %v5028 = vunpack.c.l.b16 %v4327
        %v5029 = vunpack.c.h.b16 %v4327
        %v5030 = vunpack.c.l.b16 %v4328
        %v5031 = vunpack.c.h.b16 %v4328
        %v5032 = vunpack.c.l.b16 %v4329
        %v5033 = vunpack.c.h.b16 %v4329
        %v5034 = vunpack.c.l.b16 %v4330
        %v5035 = vunpack.c.h.b16 %v4330
        %v5036 = vunpack.c.l.b16 %v4331
        %v5037 = vunpack.c.h.b16 %v4331
        %v5038 = vunpack.c.l.b16 %v4332
        %v5039 = vunpack.c.h.b16 %v4332
        %v5040 = vunpack.c.l.b16 %v4333
        %v5041 = vunpack.c.h.b16 %v4333
        %v5042 = vunpack.c.l.b16 %v4334
        %v5043 = vunpack.c.h.b16 %v4334
        %v5044 = vunpack.c.l.b16 %v4335
        %v5045 = vunpack.c.h.b16 %v4335
        %v5046 = vunpack.c.l.b16 %v4336
        %v5047 = vunpack.c.h.b16 %v4336
        %v5048 = vunpack.c.l.b16 %v4337
        %v5049 = vunpack.c.h.b16 %v4337
        %v5050 = vunpack.c.l.b16 %v4338
        %v5051 = vunpack.c.h.b16 %v4338
        %v5052 = vunpack.c.l.b16 %v4339
        %v5053 = vunpack.c.h.b16 %v4339
        %v5054 = vunpack.c.l.b16 %v4340
        %v5055 = vunpack.c.h.b16 %v4340
        %v5056 = vunpack.c.l.b16 %v4341
        %v5057 = vunpack.c.h.b16 %v4341
        %v5058 = vunpack.c.l.b16 %v4342
        %v5059 = vunpack.c.h.b16 %v4342
        %v5060 = vunpack.c.l.b16 %v4343
        %v5061 = vunpack.c.h.b16 %v4343
        %v5062 = vunpack.c.l.b16 %v4344
        %v5063 = vunpack.c.h.b16 %v4344
        %v5064 = vunpack.c.l.b16 %v4345
        %v5065 = vunpack.c.h.b16 %v4345
        %v5066 = vunpack.c.l.b16 %v4346
        %v5067 = vunpack.c.h.b16 %v4346
        %v5068 = vunpack.c.l.b16 %v4347
        %v5069 = vunpack.c.h.b16 %v4347
        %v5070 = vunpack.c.l.b16 %v4348
        %v5071 = vunpack.c.h.b16 %v4348
        %v5072 = vunpack.c.l.b16 %v4349
        %v5073 = vunpack.c.h.b16 %v4349
        %v5074 = vunpack.c.l.b16 %v4350
        %v5075 = vunpack.c.h.b16 %v4350
        %v5076 = vunpack.c.l.b16 %v4351
        %v5077 = vunpack.c.h.b16 %v4351
        %v5078 = vunpack.c.l.b16 %v4352
        %v5079 = vunpack.c.h.b16 %v4352
        %v5080 = vunpack.c.l.b16 %v4353
        %v5081 = vunpack.c.h.b16 %v4353
        %v5082 = vunpack.c.l.b16 %v4354
        %v5083 = vunpack.c.h.b16 %v4354
        %v5084 = vunpack.c.l.b16 %v4355
        %v5085 = vunpack.c.h.b16 %v4355
        %v5086 = vunpack.c.l.b16 %v4356
        %v5087 = vunpack.c.h.b16 %v4356
        %v5088 = vunpack.c.l.b16 %v4357
        %v5089 = vunpack.c.h.b16 %v4357
        %v5090 = vunpack.c.l.b16 %v4358
        %v5091 = vunpack.c.h.b16 %v4358
        %v5092 = vunpack.c.l.b16 %v4359
        %v5093 = vunpack.c.h.b16 %v4359
        %v5094 = vunpack.c.l.b16 %v4360
        %v5095 = vunpack.c.h.b16 %v4360
        %v5096 = vunpack.c.l.b16 %v4361
        %v5097 = vunpack.c.h.b16 %v4361
        %v5098 = vunpack.c.l.b16 %v4362
        %v5099 = vunpack.c.h.b16 %v4362
        %v5100 = vunpack.c.l.b16 %v4363
        %v5101 = vunpack.c.h.b16 %v4363
        %v5102 = vunpack.c.l.b16 %v4364
        %v5103 = vunpack.c.h.b16 %v4364
        %v5104 = vunpack.c.l.b16 %v4365
        %v5105 = vunpack.c.h.b16 %v4365
        %v5106 = vunpack.c.l.b16 %v4366
        %v5107 = vunpack.c.h.b16 %v4366
        %v5108 = vunpack.c.l.b16 %v4367
        %v5109 = vunpack.c.h.b16 %v4367
        %v5110 = vunpack.c.l.b16 %v4368
        %v5111 = vunpack.c.h.b16 %v4368
        %v5112 = vunpack.c.l.b16 %v4369
        %v5113 = vunpack.c.h.b16 %v4369
        %v5114 = vunpack.c.l.b16 %v4370
        %v5115 = vunpack.c.h.b16 %v4370
        %v5116 = vunpack.c.l.b16 %v4371
        %v5117 = vunpack.c.h.b16 %v4371
        %v5118 = vunpack.c.l.b16 %v4372
        %v5119 = vunpack.c.h.b16 %v4372
        %v5120 = vunpack.c.l.b16 %v4373
        %v5121 = vunpack.c.h.b16 %v4373
        %v5122 = vunpack.c.l.b16 %v4374
        %v5123 = vunpack.c.h.b16 %v4374
        %v5124 = vunpack.c.l.b16 %v4375
        %v5125 = vunpack.c.h.b16 %v4375
        %v5126 = vunpack.c.l.b16 %v4376
        %v5127 = vunpack.c.h.b16 %v4376
        %v5128 = vunpack.c.l.b16 %v4377
        %v5129 = vunpack.c.h.b16 %v4377
        %v5130 = vunpack.c.l.b16 %v4378
        %v5131 = vunpack.c.h.b16 %v4378
        %v5132 = vunpack.c.l.b16 %v4379
        %v5133 = vunpack.c.h.b16 %v4379
        %v5134 = vunpack.c.l.b16 %v4380
        %v5135 = vunpack.c.h.b16 %v4380
        %v5136 = vunpack.c.l.b16 %v4381
        %v5137 = vunpack.c.h.b16 %v4381
        %v5138 = vunpack.c.l.b16 %v4382
        %v5139 = vunpack.c.h.b16 %v4382
        %v5140 = vunpack.c.l.b16 %v4383
        %v5141 = vunpack.c.h.b16 %v4383
        %v5142 = vunpack.c.l.b16 %v4384
        %v5143 = vunpack.c.h.b16 %v4384
        %v5144 = vunpack.c.l.b16 %v4385
        %v5145 = vunpack.c.h.b16 %v4385
        %v5146 = vunpack.c.l.b16 %v4386
        %v5147 = vunpack.c.h.b16 %v4386
        %v5148 = vunpack.c.l.b16 %v4387
        %v5149 = vunpack.c.h.b16 %v4387
        %v5150 = vunpack.c.l.b16 %v4388
        %v5151 = vunpack.c.h.b16 %v4388
        %v5152 = vunpack.c.l.b16 %v4389
        %v5153 = vunpack.c.h.b16 %v4389
        %v5154 = vunpack.c.l.b16 %v4390
        %v5155 = vunpack.c.h.b16 %v4390
        %v5156 = vunpack.c.l.b16 %v4391
        %v5157 = vunpack.c.h.b16 %v4391
        %v5158 = vunpack.c.l.b16 %v4392
        %v5159 = vunpack.c.h.b16 %v4392
        %v5160 = vunpack.c.l.b16 %v4393
        %v5161 = vunpack.c.h.b16 %v4393
        %v5162 = vunpack.c.l.b16 %v4394
        %v5163 = vunpack.c.h.b16 %v4394
        %v5164 = vpack.c.b16 %v4656, %v4652
        %v5165 = vpack.c.b16 %v4657, %v4653
        %v5166 = vpack.c.b16 %v4658, %v4654
        %v5167 = vpack.c.b16 %v4659, %v4655
        %v5168 = vpack.c.b16 %v4664, %v4660
        %v5169 = vpack.c.b16 %v4665, %v4661
        %v5170 = vpack.c.b16 %v4666, %v4662
        %v5171 = vpack.c.b16 %v4667, %v4663
        %v5172 = vpack.c.b16 %v4672, %v4668
        %v5173 = vpack.c.b16 %v4673, %v4669
        %v5174 = vpack.c.b16 %v4674, %v4670
        %v5175 = vpack.c.b16 %v4675, %v4671
        %v5176 = vpack.c.b16 %v4680, %v4676
        %v5177 = vpack.c.b16 %v4681, %v4677
        %v5178 = vpack.c.b16 %v4682, %v4678
        %v5179 = vpack.c.b16 %v4683, %v4679
        %v5180 = vpack.c.b16 %v4688, %v4684
        %v5181 = vpack.c.b16 %v4689, %v4685
        %v5182 = vpack.c.b16 %v4690, %v4686
        %v5183 = vpack.c.b16 %v4691, %v4687
        %v5184 = vpack.c.b16 %v4696, %v4692
        %v5185 = vpack.c.b16 %v4697, %v4693
        %v5186 = vpack.c.b16 %v4698, %v4694
        %v5187 = vpack.c.b16 %v4699, %v4695
        %v5188 = vpack.c.b16 %v4704, %v4700
        %v5189 = vpack.c.b16 %v4705, %v4701
        %v5190 = vpack.c.b16 %v4706, %v4702
        %v5191 = vpack.c.b16 %v4707, %v4703
        %v5192 = vpack.c.b16 %v4712, %v4708
        %v5193 = vpack.c.b16 %v4713, %v4709
        %v5194 = vpack.c.b16 %v4714, %v4710
        %v5195 = vpack.c.b16 %v4715, %v4711
        %v5196 = vpack.c.b16 %v4720, %v4716
        %v5197 = vpack.c.b16 %v4721, %v4717
        %v5198 = vpack.c.b16 %v4722, %v4718
        %v5199 = vpack.c.b16 %v4723, %v4719
        %v5200 = vpack.c.b16 %v4728, %v4724
        %v5201 = vpack.c.b16 %v4729, %v4725
        %v5202 = vpack.c.b16 %v4730, %v4726
        %v5203 = vpack.c.b16 %v4731, %v4727
        %v5204 = vpack.c.b16 %v4736, %v4732
        %v5205 = vpack.c.b16 %v4737, %v4733
        %v5206 = vpack.c.b16 %v4738, %v4734
        %v5207 = vpack.c.b16 %v4739, %v4735
        %v5208 = vpack.c.b16 %v4744, %v4740
        %v5209 = vpack.c.b16 %v4745, %v4741
        %v5210 = vpack.c.b16 %v4746, %v4742
        %v5211 = vpack.c.b16 %v4747, %v4743
        %v5212 = vpack.c.b16 %v4752, %v4748
        %v5213 = vpack.c.b16 %v4753, %v4749
        %v5214 = vpack.c.b16 %v4754, %v4750
        %v5215 = vpack.c.b16 %v4755, %v4751
        %v5216 = vpack.c.b16 %v4760, %v4756
        %v5217 = vpack.c.b16 %v4761, %v4757
        %v5218 = vpack.c.b16 %v4762, %v4758
        %v5219 = vpack.c.b16 %v4763, %v4759
        %v5220 = vpack.c.b16 %v4768, %v4764
        %v5221 = vpack.c.b16 %v4769, %v4765
        %v5222 = vpack.c.b16 %v4770, %v4766
        %v5223 = vpack.c.b16 %v4771, %v4767
        %v5224 = vpack.c.b16 %v4776, %v4772
        %v5225 = vpack.c.b16 %v4777, %v4773
        %v5226 = vpack.c.b16 %v4778, %v4774
        %v5227 = vpack.c.b16 %v4779, %v4775
        %v5228 = vpack.c.b16 %v4784, %v4780
        %v5229 = vpack.c.b16 %v4785, %v4781
        %v5230 = vpack.c.b16 %v4786, %v4782
        %v5231 = vpack.c.b16 %v4787, %v4783
        %v5232 = vpack.c.b16 %v4792, %v4788
        %v5233 = vpack.c.b16 %v4793, %v4789
        %v5234 = vpack.c.b16 %v4794, %v4790
        %v5235 = vpack.c.b16 %v4795, %v4791
        %v5236 = vpack.c.b16 %v4800, %v4796
        %v5237 = vpack.c.b16 %v4801, %v4797
        %v5238 = vpack.c.b16 %v4802, %v4798
        %v5239 = vpack.c.b16 %v4803, %v4799
        %v5240 = vpack.c.b16 %v4808, %v4804
        %v5241 = vpack.c.b16 %v4809, %v4805
        %v5242 = vpack.c.b16 %v4810, %v4806
        %v5243 = vpack.c.b16 %v4811, %v4807
        %v5244 = vpack.c.b16 %v4816, %v4812
        %v5245 = vpack.c.b16 %v4817, %v4813
        %v5246 = vpack.c.b16 %v4818, %v4814
        %v5247 = vpack.c.b16 %v4819, %v4815
        %v5248 = vpack.c.b16 %v4824, %v4820
        %v5249 = vpack.c.b16 %v4825, %v4821
        %v5250 = vpack.c.b16 %v4826, %v4822
        %v5251 = vpack.c.b16 %v4827, %v4823
        %v5252 = vpack.c.b16 %v4832, %v4828
        %v5253 = vpack.c.b16 %v4833, %v4829
        %v5254 = vpack.c.b16 %v4834, %v4830
        %v5255 = vpack.c.b16 %v4835, %v4831
        %v5256 = vpack.c.b16 %v4840, %v4836
        %v5257 = vpack.c.b16 %v4841, %v4837
        %v5258 = vpack.c.b16 %v4842, %v4838
        %v5259 = vpack.c.b16 %v4843, %v4839
        %v5260 = vpack.c.b16 %v4848, %v4844
        %v5261 = vpack.c.b16 %v4849, %v4845
        %v5262 = vpack.c.b16 %v4850, %v4846
        %v5263 = vpack.c.b16 %v4851, %v4847
        %v5264 = vpack.c.b16 %v4856, %v4852
        %v5265 = vpack.c.b16 %v4857, %v4853
        %v5266 = vpack.c.b16 %v4858, %v4854
        %v5267 = vpack.c.b16 %v4859, %v4855
        %v5268 = vpack.c.b16 %v4864, %v4860
        %v5269 = vpack.c.b16 %v4865, %v4861
        %v5270 = vpack.c.b16 %v4866, %v4862
        %v5271 = vpack.c.b16 %v4867, %v4863
        %v5272 = vpack.c.b16 %v4872, %v4868
        %v5273 = vpack.c.b16 %v4873, %v4869
        %v5274 = vpack.c.b16 %v4874, %v4870
        %v5275 = vpack.c.b16 %v4875, %v4871
        %v5276 = vpack.c.b16 %v4880, %v4876
        %v5277 = vpack.c.b16 %v4881, %v4877
        %v5278 = vpack.c.b16 %v4882, %v4878
        %v5279 = vpack.c.b16 %v4883, %v4879
        %v5280 = vpack.c.b16 %v4888, %v4884
        %v5281 = vpack.c.b16 %v4889, %v4885
        %v5282 = vpack.c.b16 %v4890, %v4886
        %v5283 = vpack.c.b16 %v4891, %v4887
        %v5284 = vpack.c.b16 %v4896, %v4892
        %v5285 = vpack.c.b16 %v4897, %v4893
        %v5286 = vpack.c.b16 %v4898, %v4894
        %v5287 = vpack.c.b16 %v4899, %v4895
        %v5288 = vpack.c.b16 %v4904, %v4900
        %v5289 = vpack.c.b16 %v4905, %v4901
        %v5290 = vpack.c.b16 %v4906, %v4902
        %v5291 = vpack.c.b16 %v4907, %v4903
        %v5292 = vpack.c.b16 %v4912, %v4908
        %v5293 = vpack.c.b16 %v4913, %v4909
        %v5294 = vpack.c.b16 %v4914, %v4910
        %v5295 = vpack.c.b16 %v4915, %v4911
        %v5296 = vpack.c.b16 %v4920, %v4916
        %v5297 = vpack.c.b16 %v4921, %v4917
        %v5298 = vpack.c.b16 %v4922, %v4918
        %v5299 = vpack.c.b16 %v4923, %v4919
        %v5300 = vpack.c.b16 %v4928, %v4924
        %v5301 = vpack.c.b16 %v4929, %v4925
        %v5302 = vpack.c.b16 %v4930, %v4926
        %v5303 = vpack.c.b16 %v4931, %v4927
        %v5304 = vpack.c.b16 %v4936, %v4932
        %v5305 = vpack.c.b16 %v4937, %v4933
        %v5306 = vpack.c.b16 %v4938, %v4934
        %v5307 = vpack.c.b16 %v4939, %v4935
        %v5308 = vpack.c.b16 %v4944, %v4940
        %v5309 = vpack.c.b16 %v4945, %v4941
        %v5310 = vpack.c.b16 %v4946, %v4942
        %v5311 = vpack.c.b16 %v4947, %v4943
        %v5312 = vpack.c.b16 %v4952, %v4948
        %v5313 = vpack.c.b16 %v4953, %v4949
        %v5314 = vpack.c.b16 %v4954, %v4950
        %v5315 = vpack.c.b16 %v4955, %v4951
        %v5316 = vpack.c.b16 %v4960, %v4956
        %v5317 = vpack.c.b16 %v4961, %v4957
        %v5318 = vpack.c.b16 %v4962, %v4958
        %v5319 = vpack.c.b16 %v4963, %v4959
        %v5320 = vpack.c.b16 %v4968, %v4964
        %v5321 = vpack.c.b16 %v4969, %v4965
        %v5322 = vpack.c.b16 %v4970, %v4966
        %v5323 = vpack.c.b16 %v4971, %v4967
        %v5324 = vpack.c.b16 %v4976, %v4972
        %v5325 = vpack.c.b16 %v4977, %v4973
        %v5326 = vpack.c.b16 %v4978, %v4974
        %v5327 = vpack.c.b16 %v4979, %v4975
        %v5328 = vpack.c.b16 %v4984, %v4980
        %v5329 = vpack.c.b16 %v4985, %v4981
        %v5330 = vpack.c.b16 %v4986, %v4982
        %v5331 = vpack.c.b16 %v4987, %v4983
        %v5332 = vpack.c.b16 %v4992, %v4988
        %v5333 = vpack.c.b16 %v4993, %v4989
        %v5334 = vpack.c.b16 %v4994, %v4990
        %v5335 = vpack.c.b16 %v4995, %v4991
        %v5336 = vpack.c.b16 %v5000, %v4996
        %v5337 = vpack.c.b16 %v5001, %v4997
        %v5338 = vpack.c.b16 %v5002, %v4998
        %v5339 = vpack.c.b16 %v5003, %v4999
        %v5340 = vpack.c.b16 %v5008, %v5004
        %v5341 = vpack.c.b16 %v5009, %v5005
        %v5342 = vpack.c.b16 %v5010, %v5006
        %v5343 = vpack.c.b16 %v5011, %v5007
        %v5344 = vpack.c.b16 %v5016, %v5012
        %v5345 = vpack.c.b16 %v5017, %v5013
        %v5346 = vpack.c.b16 %v5018, %v5014
        %v5347 = vpack.c.b16 %v5019, %v5015
        %v5348 = vpack.c.b16 %v5024, %v5020
        %v5349 = vpack.c.b16 %v5025, %v5021
        %v5350 = vpack.c.b16 %v5026, %v5022
        %v5351 = vpack.c.b16 %v5027, %v5023
        %v5352 = vpack.c.b16 %v5032, %v5028
        %v5353 = vpack.c.b16 %v5033, %v5029
        %v5354 = vpack.c.b16 %v5034, %v5030
        %v5355 = vpack.c.b16 %v5035, %v5031
        %v5356 = vpack.c.b16 %v5040, %v5036
        %v5357 = vpack.c.b16 %v5041, %v5037
        %v5358 = vpack.c.b16 %v5042, %v5038
        %v5359 = vpack.c.b16 %v5043, %v5039
        %v5360 = vpack.c.b16 %v5048, %v5044
        %v5361 = vpack.c.b16 %v5049, %v5045
        %v5362 = vpack.c.b16 %v5050, %v5046
        %v5363 = vpack.c.b16 %v5051, %v5047
        %v5364 = vpack.c.b16 %v5056, %v5052
        %v5365 = vpack.c.b16 %v5057, %v5053
        %v5366 = vpack.c.b16 %v5058, %v5054
        %v5367 = vpack.c.b16 %v5059, %v5055
        %v5368 = vpack.c.b16 %v5064, %v5060
        %v5369 = vpack.c.b16 %v5065, %v5061
        %v5370 = vpack.c.b16 %v5066, %v5062
        %v5371 = vpack.c.b16 %v5067, %v5063
        %v5372 = vpack.c.b16 %v5072, %v5068
        %v5373 = vpack.c.b16 %v5073, %v5069
        %v5374 = vpack.c.b16 %v5074, %v5070
        %v5375 = vpack.c.b16 %v5075, %v5071
        %v5376 = vpack.c.b16 %v5080, %v5076
        %v5377 = vpack.c.b16 %v5081, %v5077
        %v5378 = vpack.c.b16 %v5082, %v5078
        %v5379 = vpack.c.b16 %v5083, %v5079
        %v5380 = vpack.c.b16 %v5088, %v5084
        %v5381 = vpack.c.b16 %v5089, %v5085
        %v5382 = vpack.c.b16 %v5090, %v5086
        %v5383 = vpack.c.b16 %v5091, %v5087
        %v5384 = vpack.c.b16 %v5096, %v5092
        %v5385 = vpack.c.b16 %v5097, %v5093
        %v5386 = vpack.c.b16 %v5098, %v5094
        %v5387 = vpack.c.b16 %v5099, %v5095
        %v5388 = vpack.c.b16 %v5104, %v5100
        %v5389 = vpack.c.b16 %v5105, %v5101
        %v5390 = vpack.c.b16 %v5106, %v5102
        %v5391 = vpack.c.b16 %v5107, %v5103
        %v5392 = vpack.c.b16 %v5112, %v5108
        %v5393 = vpack.c.b16 %v5113, %v5109
        %v5394 = vpack.c.b16 %v5114, %v5110
        %v5395 = vpack.c.b16 %v5115, %v5111
        %v5396 = vpack.c.b16 %v5120, %v5116
        %v5397 = vpack.c.b16 %v5121, %v5117
        %v5398 = vpack.c.b16 %v5122, %v5118
        %v5399 = vpack.c.b16 %v5123, %v5119
        %v5400 = vpack.c.b16 %v5128, %v5124
        %v5401 = vpack.c.b16 %v5129, %v5125
        %v5402 = vpack.c.b16 %v5130, %v5126
        %v5403 = vpack.c.b16 %v5131, %v5127
        %v5404 = vpack.c.b16 %v5136, %v5132
        %v5405 = vpack.c.b16 %v5137, %v5133
        %v5406 = vpack.c.b16 %v5138, %v5134
        %v5407 = vpack.c.b16 %v5139, %v5135
        %v5408 = vpack.c.b16 %v5144, %v5140
        %v5409 = vpack.c.b16 %v5145, %v5141
        %v5410 = vpack.c.b16 %v5146, %v5142
        %v5411 = vpack.c.b16 %v5147, %v5143
        %v5412 = vpack.c.b16 %v5152, %v5148
        %v5413 = vpack.c.b16 %v5153, %v5149
        %v5414 = vpack.c.b16 %v5154, %v5150
        %v5415 = vpack.c.b16 %v5155, %v5151
        %v5416 = vpack.c.b16 %v5160, %v5156
        %v5417 = vpack.c.b16 %v5161, %v5157
        %v5418 = vpack.c.b16 %v5162, %v5158
        %v5419 = vpack.c.b16 %v5163, %v5159
        %v5677 = vperm.slane %v4395, 0
        %v5678 = vperm.slane %v4395, 1
        %v5679 = vperm.slane %v4395, 2
        %v5680 = vperm.slane %v4395, 3
        %5685 = vmatpush.bf16.msra.mxu0 %v5192
        %5686 = vmatpush.bf16.msra.mxu0 %v5188
        %5687 = vmatpush.bf16.msra.mxu0 %v5184
        %5688 = vmatpush.bf16.msra.mxu0 %v5180
        %5689 = vmatpush.bf16.msra.mxu0 %v5176
        %5690 = vmatpush.bf16.msra.mxu0 %v5172
        %5691 = vmatpush.bf16.msra.mxu0 %v5168
        %5692 = vmatpush.bf16.msra.mxu0 %v5164
        %5693 = vmatmul.bf16.gmra.mxu0 %v4131
        %v5694 = vpop.f32.mrf.mxu0
        %v5695 = vadd.f32 %v5677, %v5694
        %v5696 = vpop.f32.mrf.mxu0
        %5697 = vdwg.mxu0
        %5698 = vmatpush.bf16.msra.mxu0 %v5224
        %5699 = vmatpush.bf16.msra.mxu0 %v5220
        %5700 = vmatpush.bf16.msra.mxu0 %v5216
        %5701 = vmatpush.bf16.msra.mxu0 %v5212
        %5702 = vmatpush.bf16.msra.mxu0 %v5208
        %5703 = vmatpush.bf16.msra.mxu0 %v5204
        %5704 = vmatpush.bf16.msra.mxu0 %v5200
        %5705 = vmatpush.bf16.msra.mxu0 %v5196
        %5706 = vmatmul.bf16.gmra.mxu0 %v4132
        %v5707 = vpop.f32.mrf.mxu0
        %v5708 = vadd.f32 %v5695, %v5707
        %v5709 = vpop.f32.mrf.mxu0
        %5710 = vdwg.mxu0
        %5711 = vmatpush.bf16.msra.mxu0 %v5256
        %5712 = vmatpush.bf16.msra.mxu0 %v5252
        %5713 = vmatpush.bf16.msra.mxu0 %v5248
        %5714 = vmatpush.bf16.msra.mxu0 %v5244
        %5715 = vmatpush.bf16.msra.mxu0 %v5240
        %5716 = vmatpush.bf16.msra.mxu0 %v5236
        %5717 = vmatpush.bf16.msra.mxu0 %v5232
        %5718 = vmatpush.bf16.msra.mxu0 %v5228
        %5719 = vmatmul.bf16.gmra.mxu0 %v4133
        %v5720 = vpop.f32.mrf.mxu0
        %v5721 = vadd.f32 %v5708, %v5720
        %v5722 = vpop.f32.mrf.mxu0
        %5723 = vdwg.mxu0
        %5724 = vmatpush.bf16.msra.mxu0 %v5288
        %5725 = vmatpush.bf16.msra.mxu0 %v5284
        %5726 = vmatpush.bf16.msra.mxu0 %v5280
        %5727 = vmatpush.bf16.msra.mxu0 %v5276
        %5728 = vmatpush.bf16.msra.mxu0 %v5272
        %5729 = vmatpush.bf16.msra.mxu0 %v5268
        %5730 = vmatpush.bf16.msra.mxu0 %v5264
        %5731 = vmatpush.bf16.msra.mxu0 %v5260
        %5732 = vmatmul.bf16.gmra.mxu0 %v4134
        %v5733 = vpop.f32.mrf.mxu0
        %v5734 = vadd.f32 %v5721, %v5733
        %v5735 = vpop.f32.mrf.mxu0
        %5736 = vdwg.mxu0
        %5737 = vmatpush.bf16.msra.mxu0 %v5320
        %5738 = vmatpush.bf16.msra.mxu0 %v5316
        %5739 = vmatpush.bf16.msra.mxu0 %v5312
        %5740 = vmatpush.bf16.msra.mxu0 %v5308
        %5741 = vmatpush.bf16.msra.mxu0 %v5304
        %5742 = vmatpush.bf16.msra.mxu0 %v5300
        %5743 = vmatpush.bf16.msra.mxu0 %v5296
        %5744 = vmatpush.bf16.msra.mxu0 %v5292
        %5745 = vmatmul.bf16.gmra.mxu0 %v4135
        %v5746 = vpop.f32.mrf.mxu0
        %v5747 = vadd.f32 %v5734, %v5746
        %v5748 = vpop.f32.mrf.mxu0
        %5749 = vdwg.mxu0
        %5750 = vmatpush.bf16.msra.mxu0 %v5352
        %5751 = vmatpush.bf16.msra.mxu0 %v5348
        %5752 = vmatpush.bf16.msra.mxu0 %v5344
        %5753 = vmatpush.bf16.msra.mxu0 %v5340
        %5754 = vmatpush.bf16.msra.mxu0 %v5336
        %5755 = vmatpush.bf16.msra.mxu0 %v5332
        %5756 = vmatpush.bf16.msra.mxu0 %v5328
        %5757 = vmatpush.bf16.msra.mxu0 %v5324
        %5758 = vmatmul.bf16.gmra.mxu0 %v4136
        %v5759 = vpop.f32.mrf.mxu0
        %v5760 = vadd.f32 %v5747, %v5759
        %v5761 = vpop.f32.mrf.mxu0
        %5762 = vdwg.mxu0
        %5763 = vmatpush.bf16.msra.mxu0 %v5384
        %5764 = vmatpush.bf16.msra.mxu0 %v5380
        %5765 = vmatpush.bf16.msra.mxu0 %v5376
        %5766 = vmatpush.bf16.msra.mxu0 %v5372
        %5767 = vmatpush.bf16.msra.mxu0 %v5368
        %5768 = vmatpush.bf16.msra.mxu0 %v5364
        %5769 = vmatpush.bf16.msra.mxu0 %v5360
        %5770 = vmatpush.bf16.msra.mxu0 %v5356
        %5771 = vmatmul.bf16.gmra.mxu0 %v4137
        %v5772 = vpop.f32.mrf.mxu0
        %v5773 = vadd.f32 %v5760, %v5772
        %v5774 = vpop.f32.mrf.mxu0
        %5775 = vdwg.mxu0
        %5776 = vmatpush.bf16.msra.mxu0 %v5416
        %5777 = vmatpush.bf16.msra.mxu0 %v5412
        %5778 = vmatpush.bf16.msra.mxu0 %v5408
        %5779 = vmatpush.bf16.msra.mxu0 %v5404
        %5780 = vmatpush.bf16.msra.mxu0 %v5400
        %5781 = vmatpush.bf16.msra.mxu0 %v5396
        %5782 = vmatpush.bf16.msra.mxu0 %v5392
        %5783 = vmatpush.bf16.msra.mxu0 %v5388
        %5784 = vmatmul.bf16.gmra.mxu0 %v4138
        %v5785 = vpop.f32.mrf.mxu0
        %v5786 = vadd.f32 %v5773, %v5785
        %v5787 = vpop.f32.mrf.mxu0
        %5788 = vdwg.mxu0
        %5789 = vmatpush.bf16.msra.mxu0 %v5193
        %5790 = vmatpush.bf16.msra.mxu0 %v5189
        %5791 = vmatpush.bf16.msra.mxu0 %v5185
        %5792 = vmatpush.bf16.msra.mxu0 %v5181
        %5793 = vmatpush.bf16.msra.mxu0 %v5177
        %5794 = vmatpush.bf16.msra.mxu0 %v5173
        %5795 = vmatpush.bf16.msra.mxu0 %v5169
        %5796 = vmatpush.bf16.msra.mxu0 %v5165
        %5797 = vmatmul.bf16.gmra.mxu0 %v4131
        %v5798 = vpop.f32.mrf.mxu0
        %v5799 = vadd.f32 %v5678, %v5798
        %v5800 = vpop.f32.mrf.mxu0
        %5801 = vdwg.mxu0
        %5802 = vmatpush.bf16.msra.mxu0 %v5225
        %5803 = vmatpush.bf16.msra.mxu0 %v5221
        %5804 = vmatpush.bf16.msra.mxu0 %v5217
        %5805 = vmatpush.bf16.msra.mxu0 %v5213
        %5806 = vmatpush.bf16.msra.mxu0 %v5209
        %5807 = vmatpush.bf16.msra.mxu0 %v5205
        %5808 = vmatpush.bf16.msra.mxu0 %v5201
        %5809 = vmatpush.bf16.msra.mxu0 %v5197
        %5810 = vmatmul.bf16.gmra.mxu0 %v4132
        %v5811 = vpop.f32.mrf.mxu0
        %v5812 = vadd.f32 %v5799, %v5811
        %v5813 = vpop.f32.mrf.mxu0
        %5814 = vdwg.mxu0
        %5815 = vmatpush.bf16.msra.mxu0 %v5257
        %5816 = vmatpush.bf16.msra.mxu0 %v5253
        %5817 = vmatpush.bf16.msra.mxu0 %v5249
        %5818 = vmatpush.bf16.msra.mxu0 %v5245
        %5819 = vmatpush.bf16.msra.mxu0 %v5241
        %5820 = vmatpush.bf16.msra.mxu0 %v5237
        %5821 = vmatpush.bf16.msra.mxu0 %v5233
        %5822 = vmatpush.bf16.msra.mxu0 %v5229
        %5823 = vmatmul.bf16.gmra.mxu0 %v4133
        %v5824 = vpop.f32.mrf.mxu0
        %v5825 = vadd.f32 %v5812, %v5824
        %v5826 = vpop.f32.mrf.mxu0
        %5827 = vdwg.mxu0
        %5828 = vmatpush.bf16.msra.mxu0 %v5289
        %5829 = vmatpush.bf16.msra.mxu0 %v5285
        %5830 = vmatpush.bf16.msra.mxu0 %v5281
        %5831 = vmatpush.bf16.msra.mxu0 %v5277
        %5832 = vmatpush.bf16.msra.mxu0 %v5273
        %5833 = vmatpush.bf16.msra.mxu0 %v5269
        %5834 = vmatpush.bf16.msra.mxu0 %v5265
        %5835 = vmatpush.bf16.msra.mxu0 %v5261
        %5836 = vmatmul.bf16.gmra.mxu0 %v4134
        %v5837 = vpop.f32.mrf.mxu0
        %v5838 = vadd.f32 %v5825, %v5837
        %v5839 = vpop.f32.mrf.mxu0
        %5840 = vdwg.mxu0
        %5841 = vmatpush.bf16.msra.mxu0 %v5321
        %5842 = vmatpush.bf16.msra.mxu0 %v5317
        %5843 = vmatpush.bf16.msra.mxu0 %v5313
        %5844 = vmatpush.bf16.msra.mxu0 %v5309
        %5845 = vmatpush.bf16.msra.mxu0 %v5305
        %5846 = vmatpush.bf16.msra.mxu0 %v5301
        %5847 = vmatpush.bf16.msra.mxu0 %v5297
        %5848 = vmatpush.bf16.msra.mxu0 %v5293
        %5849 = vmatmul.bf16.gmra.mxu0 %v4135
        %v5850 = vpop.f32.mrf.mxu0
        %v5851 = vadd.f32 %v5838, %v5850
        %v5852 = vpop.f32.mrf.mxu0
        %5853 = vdwg.mxu0
        %5854 = vmatpush.bf16.msra.mxu0 %v5353
        %5855 = vmatpush.bf16.msra.mxu0 %v5349
        %5856 = vmatpush.bf16.msra.mxu0 %v5345
        %5857 = vmatpush.bf16.msra.mxu0 %v5341
        %5858 = vmatpush.bf16.msra.mxu0 %v5337
        %5859 = vmatpush.bf16.msra.mxu0 %v5333
        %5860 = vmatpush.bf16.msra.mxu0 %v5329
        %5861 = vmatpush.bf16.msra.mxu0 %v5325
        %5862 = vmatmul.bf16.gmra.mxu0 %v4136
        %v5863 = vpop.f32.mrf.mxu0
        %v5864 = vadd.f32 %v5851, %v5863
        %v5865 = vpop.f32.mrf.mxu0
        %5866 = vdwg.mxu0
        %5867 = vmatpush.bf16.msra.mxu0 %v5385
        %5868 = vmatpush.bf16.msra.mxu0 %v5381
        %5869 = vmatpush.bf16.msra.mxu0 %v5377
        %5870 = vmatpush.bf16.msra.mxu0 %v5373
        %5871 = vmatpush.bf16.msra.mxu0 %v5369
        %5872 = vmatpush.bf16.msra.mxu0 %v5365
        %5873 = vmatpush.bf16.msra.mxu0 %v5361
        %5874 = vmatpush.bf16.msra.mxu0 %v5357
        %5875 = vmatmul.bf16.gmra.mxu0 %v4137
        %v5876 = vpop.f32.mrf.mxu0
        %v5877 = vadd.f32 %v5864, %v5876
        %v5878 = vpop.f32.mrf.mxu0
        %5879 = vdwg.mxu0
        %5880 = vmatpush.bf16.msra.mxu0 %v5417
        %5881 = vmatpush.bf16.msra.mxu0 %v5413
        %5882 = vmatpush.bf16.msra.mxu0 %v5409
        %5883 = vmatpush.bf16.msra.mxu0 %v5405
        %5884 = vmatpush.bf16.msra.mxu0 %v5401
        %5885 = vmatpush.bf16.msra.mxu0 %v5397
        %5886 = vmatpush.bf16.msra.mxu0 %v5393
        %5887 = vmatpush.bf16.msra.mxu0 %v5389
        %5888 = vmatmul.bf16.gmra.mxu0 %v4138
        %v5889 = vpop.f32.mrf.mxu0
        %v5890 = vadd.f32 %v5877, %v5889
        %v5891 = vpop.f32.mrf.mxu0
        %5892 = vdwg.mxu0
        %5893 = vmatpush.bf16.msra.mxu0 %v5194
        %5894 = vmatpush.bf16.msra.mxu0 %v5190
        %5895 = vmatpush.bf16.msra.mxu0 %v5186
        %5896 = vmatpush.bf16.msra.mxu0 %v5182
        %5897 = vmatpush.bf16.msra.mxu0 %v5178
        %5898 = vmatpush.bf16.msra.mxu0 %v5174
        %5899 = vmatpush.bf16.msra.mxu0 %v5170
        %5900 = vmatpush.bf16.msra.mxu0 %v5166
        %5901 = vmatmul.bf16.gmra.mxu0 %v4131
        %v5902 = vpop.f32.mrf.mxu0
        %v5903 = vadd.f32 %v5679, %v5902
        %v5904 = vpop.f32.mrf.mxu0
        %5905 = vdwg.mxu0
        %5906 = vmatpush.bf16.msra.mxu0 %v5226
        %5907 = vmatpush.bf16.msra.mxu0 %v5222
        %5908 = vmatpush.bf16.msra.mxu0 %v5218
        %5909 = vmatpush.bf16.msra.mxu0 %v5214
        %5910 = vmatpush.bf16.msra.mxu0 %v5210
        %5911 = vmatpush.bf16.msra.mxu0 %v5206
        %5912 = vmatpush.bf16.msra.mxu0 %v5202
        %5913 = vmatpush.bf16.msra.mxu0 %v5198
        %5914 = vmatmul.bf16.gmra.mxu0 %v4132
        %v5915 = vpop.f32.mrf.mxu0
        %v5916 = vadd.f32 %v5903, %v5915
        %v5917 = vpop.f32.mrf.mxu0
        %5918 = vdwg.mxu0
        %5919 = vmatpush.bf16.msra.mxu0 %v5258
        %5920 = vmatpush.bf16.msra.mxu0 %v5254
        %5921 = vmatpush.bf16.msra.mxu0 %v5250
        %5922 = vmatpush.bf16.msra.mxu0 %v5246
        %5923 = vmatpush.bf16.msra.mxu0 %v5242
        %5924 = vmatpush.bf16.msra.mxu0 %v5238
        %5925 = vmatpush.bf16.msra.mxu0 %v5234
        %5926 = vmatpush.bf16.msra.mxu0 %v5230
        %5927 = vmatmul.bf16.gmra.mxu0 %v4133
        %v5928 = vpop.f32.mrf.mxu0
        %v5929 = vadd.f32 %v5916, %v5928
        %v5930 = vpop.f32.mrf.mxu0
        %5931 = vdwg.mxu0
        %5932 = vmatpush.bf16.msra.mxu0 %v5290
        %5933 = vmatpush.bf16.msra.mxu0 %v5286
        %5934 = vmatpush.bf16.msra.mxu0 %v5282
        %5935 = vmatpush.bf16.msra.mxu0 %v5278
        %5936 = vmatpush.bf16.msra.mxu0 %v5274
        %5937 = vmatpush.bf16.msra.mxu0 %v5270
        %5938 = vmatpush.bf16.msra.mxu0 %v5266
        %5939 = vmatpush.bf16.msra.mxu0 %v5262
        %5940 = vmatmul.bf16.gmra.mxu0 %v4134
        %v5941 = vpop.f32.mrf.mxu0
        %v5942 = vadd.f32 %v5929, %v5941
        %v5943 = vpop.f32.mrf.mxu0
        %5944 = vdwg.mxu0
        %5945 = vmatpush.bf16.msra.mxu0 %v5322
        %5946 = vmatpush.bf16.msra.mxu0 %v5318
        %5947 = vmatpush.bf16.msra.mxu0 %v5314
        %5948 = vmatpush.bf16.msra.mxu0 %v5310
        %5949 = vmatpush.bf16.msra.mxu0 %v5306
        %5950 = vmatpush.bf16.msra.mxu0 %v5302
        %5951 = vmatpush.bf16.msra.mxu0 %v5298
        %5952 = vmatpush.bf16.msra.mxu0 %v5294
        %5953 = vmatmul.bf16.gmra.mxu0 %v4135
        %v5954 = vpop.f32.mrf.mxu0
        %v5955 = vadd.f32 %v5942, %v5954
        %v5956 = vpop.f32.mrf.mxu0
        %5957 = vdwg.mxu0
        %5958 = vmatpush.bf16.msra.mxu0 %v5354
        %5959 = vmatpush.bf16.msra.mxu0 %v5350
        %5960 = vmatpush.bf16.msra.mxu0 %v5346
        %5961 = vmatpush.bf16.msra.mxu0 %v5342
        %5962 = vmatpush.bf16.msra.mxu0 %v5338
        %5963 = vmatpush.bf16.msra.mxu0 %v5334
        %5964 = vmatpush.bf16.msra.mxu0 %v5330
        %5965 = vmatpush.bf16.msra.mxu0 %v5326
        %5966 = vmatmul.bf16.gmra.mxu0 %v4136
        %v5967 = vpop.f32.mrf.mxu0
        %v5968 = vadd.f32 %v5955, %v5967
        %v5969 = vpop.f32.mrf.mxu0
        %5970 = vdwg.mxu0
        %5971 = vmatpush.bf16.msra.mxu0 %v5386
        %5972 = vmatpush.bf16.msra.mxu0 %v5382
        %5973 = vmatpush.bf16.msra.mxu0 %v5378
        %5974 = vmatpush.bf16.msra.mxu0 %v5374
        %5975 = vmatpush.bf16.msra.mxu0 %v5370
        %5976 = vmatpush.bf16.msra.mxu0 %v5366
        %5977 = vmatpush.bf16.msra.mxu0 %v5362
        %5978 = vmatpush.bf16.msra.mxu0 %v5358
        %5979 = vmatmul.bf16.gmra.mxu0 %v4137
        %v5980 = vpop.f32.mrf.mxu0
        %v5981 = vadd.f32 %v5968, %v5980
        %v5982 = vpop.f32.mrf.mxu0
        %5983 = vdwg.mxu0
        %5984 = vmatpush.bf16.msra.mxu0 %v5418
        %5985 = vmatpush.bf16.msra.mxu0 %v5414
        %5986 = vmatpush.bf16.msra.mxu0 %v5410
        %5987 = vmatpush.bf16.msra.mxu0 %v5406
        %5988 = vmatpush.bf16.msra.mxu0 %v5402
        %5989 = vmatpush.bf16.msra.mxu0 %v5398
        %5990 = vmatpush.bf16.msra.mxu0 %v5394
        %5991 = vmatpush.bf16.msra.mxu0 %v5390
        %5992 = vmatmul.bf16.gmra.mxu0 %v4138
        %v5993 = vpop.f32.mrf.mxu0
        %v5994 = vadd.f32 %v5981, %v5993
        %v5995 = vpop.f32.mrf.mxu0
        %5996 = vdwg.mxu0
        %5997 = vmatpush.bf16.msra.mxu0 %v5195
        %5998 = vmatpush.bf16.msra.mxu0 %v5191
        %5999 = vmatpush.bf16.msra.mxu0 %v5187
        %6000 = vmatpush.bf16.msra.mxu0 %v5183
        %6001 = vmatpush.bf16.msra.mxu0 %v5179
        %6002 = vmatpush.bf16.msra.mxu0 %v5175
        %6003 = vmatpush.bf16.msra.mxu0 %v5171
        %6004 = vmatpush.bf16.msra.mxu0 %v5167
        %6005 = vmatmul.bf16.gmra.mxu0 %v4131
        %v6006 = vpop.f32.mrf.mxu0
        %v6007 = vadd.f32 %v5680, %v6006
        %v6008 = vpop.f32.mrf.mxu0
        %6009 = vdwg.mxu0
        %6010 = vmatpush.bf16.msra.mxu0 %v5227
        %6011 = vmatpush.bf16.msra.mxu0 %v5223
        %6012 = vmatpush.bf16.msra.mxu0 %v5219
        %6013 = vmatpush.bf16.msra.mxu0 %v5215
        %6014 = vmatpush.bf16.msra.mxu0 %v5211
        %6015 = vmatpush.bf16.msra.mxu0 %v5207
        %6016 = vmatpush.bf16.msra.mxu0 %v5203
        %6017 = vmatpush.bf16.msra.mxu0 %v5199
        %6018 = vmatmul.bf16.gmra.mxu0 %v4132
        %v6019 = vpop.f32.mrf.mxu0
        %v6020 = vadd.f32 %v6007, %v6019
        %v6021 = vpop.f32.mrf.mxu0
        %6022 = vdwg.mxu0
        %6023 = vmatpush.bf16.msra.mxu0 %v5259
        %6024 = vmatpush.bf16.msra.mxu0 %v5255
        %6025 = vmatpush.bf16.msra.mxu0 %v5251
        %6026 = vmatpush.bf16.msra.mxu0 %v5247
        %6027 = vmatpush.bf16.msra.mxu0 %v5243
        %6028 = vmatpush.bf16.msra.mxu0 %v5239
        %6029 = vmatpush.bf16.msra.mxu0 %v5235
        %6030 = vmatpush.bf16.msra.mxu0 %v5231
        %6031 = vmatmul.bf16.gmra.mxu0 %v4133
        %v6032 = vpop.f32.mrf.mxu0
        %v6033 = vadd.f32 %v6020, %v6032
        %v6034 = vpop.f32.mrf.mxu0
        %6035 = vdwg.mxu0
        %6036 = vmatpush.bf16.msra.mxu0 %v5291
        %6037 = vmatpush.bf16.msra.mxu0 %v5287
        %6038 = vmatpush.bf16.msra.mxu0 %v5283
        %6039 = vmatpush.bf16.msra.mxu0 %v5279
        %6040 = vmatpush.bf16.msra.mxu0 %v5275
        %6041 = vmatpush.bf16.msra.mxu0 %v5271
        %6042 = vmatpush.bf16.msra.mxu0 %v5267
        %6043 = vmatpush.bf16.msra.mxu0 %v5263
        %6044 = vmatmul.bf16.gmra.mxu0 %v4134
        %v6045 = vpop.f32.mrf.mxu0
        %v6046 = vadd.f32 %v6033, %v6045
        %v6047 = vpop.f32.mrf.mxu0
        %6048 = vdwg.mxu0
        %6049 = vmatpush.bf16.msra.mxu0 %v5323
        %6050 = vmatpush.bf16.msra.mxu0 %v5319
        %6051 = vmatpush.bf16.msra.mxu0 %v5315
        %6052 = vmatpush.bf16.msra.mxu0 %v5311
        %6053 = vmatpush.bf16.msra.mxu0 %v5307
        %6054 = vmatpush.bf16.msra.mxu0 %v5303
        %6055 = vmatpush.bf16.msra.mxu0 %v5299
        %6056 = vmatpush.bf16.msra.mxu0 %v5295
        %6057 = vmatmul.bf16.gmra.mxu0 %v4135
        %v6058 = vpop.f32.mrf.mxu0
        %v6059 = vadd.f32 %v6046, %v6058
        %v6060 = vpop.f32.mrf.mxu0
        %6061 = vdwg.mxu0
        %6062 = vmatpush.bf16.msra.mxu0 %v5355
        %6063 = vmatpush.bf16.msra.mxu0 %v5351
        %6064 = vmatpush.bf16.msra.mxu0 %v5347
        %6065 = vmatpush.bf16.msra.mxu0 %v5343
        %6066 = vmatpush.bf16.msra.mxu0 %v5339
        %6067 = vmatpush.bf16.msra.mxu0 %v5335
        %6068 = vmatpush.bf16.msra.mxu0 %v5331
        %6069 = vmatpush.bf16.msra.mxu0 %v5327
        %6070 = vmatmul.bf16.gmra.mxu0 %v4136
        %v6071 = vpop.f32.mrf.mxu0
        %v6072 = vadd.f32 %v6059, %v6071
        %v6073 = vpop.f32.mrf.mxu0
        %6074 = vdwg.mxu0
        %6075 = vmatpush.bf16.msra.mxu0 %v5387
        %6076 = vmatpush.bf16.msra.mxu0 %v5383
        %6077 = vmatpush.bf16.msra.mxu0 %v5379
        %6078 = vmatpush.bf16.msra.mxu0 %v5375
        %6079 = vmatpush.bf16.msra.mxu0 %v5371
        %6080 = vmatpush.bf16.msra.mxu0 %v5367
        %6081 = vmatpush.bf16.msra.mxu0 %v5363
        %6082 = vmatpush.bf16.msra.mxu0 %v5359
        %6083 = vmatmul.bf16.gmra.mxu0 %v4137
        %v6084 = vpop.f32.mrf.mxu0
        %v6085 = vadd.f32 %v6072, %v6084
        %v6086 = vpop.f32.mrf.mxu0
        %6087 = vdwg.mxu0
        %6088 = vmatpush.bf16.msra.mxu0 %v5419
        %6089 = vmatpush.bf16.msra.mxu0 %v5415
        %6090 = vmatpush.bf16.msra.mxu0 %v5411
        %6091 = vmatpush.bf16.msra.mxu0 %v5407
        %6092 = vmatpush.bf16.msra.mxu0 %v5403
        %6093 = vmatpush.bf16.msra.mxu0 %v5399
        %6094 = vmatpush.bf16.msra.mxu0 %v5395
        %6095 = vmatpush.bf16.msra.mxu0 %v5391
        %6096 = vmatmul.bf16.gmra.mxu0 %v4138
        %v6097 = vpop.f32.mrf.mxu0
        %v6098 = vadd.f32 %v6085, %v6097
        %v6099 = vpop.f32.mrf.mxu0
        %6100 = vdwg.mxu0
        %v6101 = vsel %vm801, %v5786, 0.0
        %v6102 = vsel %vm801, %v5890, 0.0
        %v6103 = vadd.f32 %v6101, %v6102
        %v6104 = vsel %vm801, %v5994, 0.0
        %v6105 = vadd.f32 %v6103, %v6104
        %v6106 = vsel %vm801, %v6098, 0.0
        %v6107 = vadd.f32 %v6105, %v6106
        %6108 = vadd.xlane.f32.xlu0 %v6107
        %v6109 = vpop.xlane.xlu0 %6108
        %v6110 = vrcp.pop 512.0
        %v6111 = vmul.f32 512.0, %v6110
        %v6112 = vsub.f32 1.0, %v6111
        %v6113 = vmul.f32 %v6110, %v6112
        %v6114 = vadd.f32 %v6110, %v6113
        %vm6115 = vweird.f32 %v6110
        %v6116 = vsel %vm6115, %v6110, %v6114
        %v6117 = vmul.f32 %v6109, %v6116
        %v6118 = vmul.f32 %v5786, %v5786
        %v6119 = vmul.f32 %v5890, %v5890
        %v6120 = vmul.f32 %v5994, %v5994
        %v6121 = vmul.f32 %v6098, %v6098
        %v6122 = vsel %vm801, %v6118, 0.0
        %v6123 = vsel %vm801, %v6119, 0.0
        %v6124 = vadd.f32 %v6122, %v6123
        %v6125 = vsel %vm801, %v6120, 0.0
        %v6126 = vadd.f32 %v6124, %v6125
        %v6127 = vsel %vm801, %v6121, 0.0
        %v6128 = vadd.f32 %v6126, %v6127
        %6129 = vadd.xlane.f32.xlu0 %v6128
        %v6130 = vpop.xlane.xlu0 %6129
        %v6131 = vmul.f32 %v6130, %v6116
        %v6132 = vsub.f32 %v5786, %v6117
        %v6133 = vsub.f32 %v5890, %v6117
        %v6134 = vsub.f32 %v5994, %v6117
        %v6135 = vsub.f32 %v6098, %v6117
        %v6136 = vmul.f32 %v6117, %v6117
        %v6137 = vsub.f32 %v6131, %v6136
        %v6138 = vadd.f32 %v6137, 1e-05
        %v6139 = vrsqrt.pop %v6138
        %v6140 = vmul.f32 %v6139, %v6138
        %v6141 = vmul.f32 %v6140, %v6139
        %v6142 = vmul.f32 0.5, %v6141
        %v6143 = vsub.f32 1.5, %v6142
        %v6144 = vmul.f32 %v6139, %v6143
        %vm6145 = vweird.f32 %v6138
        %vm6146 = vweird.f32 %v6139
        %vm6147 = vmor %vm6145, %vm6146
        %v6148 = vsel %vm6147, %v6139, %v6144
        %v6149 = vmul.f32 %v6132, %v6148
        %v6150 = vmul.f32 %v6133, %v6148
        %v6151 = vmul.f32 %v6134, %v6148
        %v6152 = vmul.f32 %v6135, %v6148
        %v6153 = vpack.c.bf16 %v6150, %v6149
        %v6154 = vpack.c.bf16 %v6152, %v6151
        %v6155 = vunpack.c.l.bf16 %v6153
        %v6156 = vunpack.c.h.bf16 %v6153
        %v6157 = vunpack.c.l.bf16 %v6154
        %v6158 = vunpack.c.h.bf16 %v6154
        %v6159 = vmax.f32 %v6155, 0.0
        %v6160 = vmax.f32 %v6156, 0.0
        %v6161 = vmax.f32 %v6157, 0.0
        %v6162 = vmax.f32 %v6158, 0.0
        %v6163 = vpack.c.bf16 %v6159, %v6159
        %v6164 = vpack.c.bf16 %v6160, %v6160
        %v6165 = vpack.c.bf16 %v6161, %v6161
        %v6166 = vpack.c.bf16 %v6162, %v6162
        %v6167 = vld [vmem:[%s9] sm:$0xff]
        %v6168 = vld [vmem:[%s9 + $0x8] sm:$0xff]
        %v6169 = vld [vmem:[%s9 + $0x10] sm:$0xff]
        %v6170 = vld [vmem:[%s9 + $0x18] sm:$0xff]
        %v6171 = vld [vmem:[%s9 + $0x20] sm:$0xff]
        %v6172 = vld [vmem:[%s9 + $0x28] sm:$0xff]
        %v6173 = vld [vmem:[%s9 + $0x30] sm:$0xff]
        %v6174 = vld [vmem:[%s9 + $0x38] sm:$0xff]
        %v6175 = vld [vmem:[%s9 + $0x40] sm:$0xff]
        %v6176 = vld [vmem:[%s9 + $0x48] sm:$0xff]
        %v6177 = vld [vmem:[%s9 + $0x50] sm:$0xff]
        %v6178 = vld [vmem:[%s9 + $0x58] sm:$0xff]
        %v6179 = vld [vmem:[%s9 + $0x60] sm:$0xff]
        %v6180 = vld [vmem:[%s9 + $0x68] sm:$0xff]
        %v6181 = vld [vmem:[%s9 + $0x70] sm:$0xff]
        %v6182 = vld [vmem:[%s9 + $0x78] sm:$0xff]
        %v6183 = vld [vmem:[%s9 + $0x80] sm:$0xff]
        %v6184 = vld [vmem:[%s9 + $0x88] sm:$0xff]
        %v6185 = vld [vmem:[%s9 + $0x90] sm:$0xff]
        %v6186 = vld [vmem:[%s9 + $0x98] sm:$0xff]
        %v6187 = vld [vmem:[%s9 + $0xa0] sm:$0xff]
        %v6188 = vld [vmem:[%s9 + $0xa8] sm:$0xff]
        %v6189 = vld [vmem:[%s9 + $0xb0] sm:$0xff]
        %v6190 = vld [vmem:[%s9 + $0xb8] sm:$0xff]
        %v6191 = vld [vmem:[%s9 + $0xc0] sm:$0xff]
        %v6192 = vld [vmem:[%s9 + $0xc8] sm:$0xff]
        %v6193 = vld [vmem:[%s9 + $0xd0] sm:$0xff]
        %v6194 = vld [vmem:[%s9 + $0xd8] sm:$0xff]
        %v6195 = vld [vmem:[%s9 + $0xe0] sm:$0xff]
        %v6196 = vld [vmem:[%s9 + $0xe8] sm:$0xff]
        %v6197 = vld [vmem:[%s9 + $0xf0] sm:$0xff]
        %v6198 = vld [vmem:[%s9 + $0xf8] sm:$0xff]
        %v6199 = vld [vmem:[%s9 + $0x100] sm:$0xff]
        %v6200 = vld [vmem:[%s9 + $0x108] sm:$0xff]
        %v6201 = vld [vmem:[%s9 + $0x110] sm:$0xff]
        %v6202 = vld [vmem:[%s9 + $0x118] sm:$0xff]
        %v6203 = vld [vmem:[%s9 + $0x120] sm:$0xff]
        %v6204 = vld [vmem:[%s9 + $0x128] sm:$0xff]
        %v6205 = vld [vmem:[%s9 + $0x130] sm:$0xff]
        %v6206 = vld [vmem:[%s9 + $0x138] sm:$0xff]
        %v6207 = vld [vmem:[%s9 + $0x140] sm:$0xff]
        %v6208 = vld [vmem:[%s9 + $0x148] sm:$0xff]
        %v6209 = vld [vmem:[%s9 + $0x150] sm:$0xff]
        %v6210 = vld [vmem:[%s9 + $0x158] sm:$0xff]
        %v6211 = vld [vmem:[%s9 + $0x160] sm:$0xff]
        %v6212 = vld [vmem:[%s9 + $0x168] sm:$0xff]
        %v6213 = vld [vmem:[%s9 + $0x170] sm:$0xff]
        %v6214 = vld [vmem:[%s9 + $0x178] sm:$0xff]
        %v6215 = vld [vmem:[%s9 + $0x180] sm:$0xff]
        %v6216 = vld [vmem:[%s9 + $0x188] sm:$0xff]
        %v6217 = vld [vmem:[%s9 + $0x190] sm:$0xff]
        %v6218 = vld [vmem:[%s9 + $0x198] sm:$0xff]
        %v6219 = vld [vmem:[%s9 + $0x1a0] sm:$0xff]
        %v6220 = vld [vmem:[%s9 + $0x1a8] sm:$0xff]
        %v6221 = vld [vmem:[%s9 + $0x1b0] sm:$0xff]
        %v6222 = vld [vmem:[%s9 + $0x1b8] sm:$0xff]
        %v6223 = vld [vmem:[%s9 + $0x1c0] sm:$0xff]
        %v6224 = vld [vmem:[%s9 + $0x1c8] sm:$0xff]
        %v6225 = vld [vmem:[%s9 + $0x1d0] sm:$0xff]
        %v6226 = vld [vmem:[%s9 + $0x1d8] sm:$0xff]
        %v6227 = vld [vmem:[%s9 + $0x1e0] sm:$0xff]
        %v6228 = vld [vmem:[%s9 + $0x1e8] sm:$0xff]
        %v6229 = vld [vmem:[%s9 + $0x1f0] sm:$0xff]
        %v6230 = vld [vmem:[%s9 + $0x1f8] sm:$0xff]
        %v6231 = vld [vmem:[%s10] sm:$0x3]
        %v6296 = vunpack.c.l.b16 %v6167
        %v6297 = vunpack.c.h.b16 %v6167
        %v6298 = vunpack.c.l.b16 %v6168
        %v6299 = vunpack.c.h.b16 %v6168
        %v6300 = vunpack.c.l.b16 %v6169
        %v6301 = vunpack.c.h.b16 %v6169
        %v6302 = vunpack.c.l.b16 %v6170
        %v6303 = vunpack.c.h.b16 %v6170
        %v6304 = vunpack.c.l.b16 %v6171
        %v6305 = vunpack.c.h.b16 %v6171
        %v6306 = vunpack.c.l.b16 %v6172
        %v6307 = vunpack.c.h.b16 %v6172
        %v6308 = vunpack.c.l.b16 %v6173
        %v6309 = vunpack.c.h.b16 %v6173
        %v6310 = vunpack.c.l.b16 %v6174
        %v6311 = vunpack.c.h.b16 %v6174
        %v6312 = vunpack.c.l.b16 %v6175
        %v6313 = vunpack.c.h.b16 %v6175
        %v6314 = vunpack.c.l.b16 %v6176
        %v6315 = vunpack.c.h.b16 %v6176
        %v6316 = vunpack.c.l.b16 %v6177
        %v6317 = vunpack.c.h.b16 %v6177
        %v6318 = vunpack.c.l.b16 %v6178
        %v6319 = vunpack.c.h.b16 %v6178
        %v6320 = vunpack.c.l.b16 %v6179
        %v6321 = vunpack.c.h.b16 %v6179
        %v6322 = vunpack.c.l.b16 %v6180
        %v6323 = vunpack.c.h.b16 %v6180
        %v6324 = vunpack.c.l.b16 %v6181
        %v6325 = vunpack.c.h.b16 %v6181
        %v6326 = vunpack.c.l.b16 %v6182
        %v6327 = vunpack.c.h.b16 %v6182
        %v6328 = vunpack.c.l.b16 %v6183
        %v6329 = vunpack.c.h.b16 %v6183
        %v6330 = vunpack.c.l.b16 %v6184
        %v6331 = vunpack.c.h.b16 %v6184
        %v6332 = vunpack.c.l.b16 %v6185
        %v6333 = vunpack.c.h.b16 %v6185
        %v6334 = vunpack.c.l.b16 %v6186
        %v6335 = vunpack.c.h.b16 %v6186
        %v6336 = vunpack.c.l.b16 %v6187
        %v6337 = vunpack.c.h.b16 %v6187
        %v6338 = vunpack.c.l.b16 %v6188
        %v6339 = vunpack.c.h.b16 %v6188
        %v6340 = vunpack.c.l.b16 %v6189
        %v6341 = vunpack.c.h.b16 %v6189
        %v6342 = vunpack.c.l.b16 %v6190
        %v6343 = vunpack.c.h.b16 %v6190
        %v6344 = vunpack.c.l.b16 %v6191
        %v6345 = vunpack.c.h.b16 %v6191
        %v6346 = vunpack.c.l.b16 %v6192
        %v6347 = vunpack.c.h.b16 %v6192
        %v6348 = vunpack.c.l.b16 %v6193
        %v6349 = vunpack.c.h.b16 %v6193
        %v6350 = vunpack.c.l.b16 %v6194
        %v6351 = vunpack.c.h.b16 %v6194
        %v6352 = vunpack.c.l.b16 %v6195
        %v6353 = vunpack.c.h.b16 %v6195
        %v6354 = vunpack.c.l.b16 %v6196
        %v6355 = vunpack.c.h.b16 %v6196
        %v6356 = vunpack.c.l.b16 %v6197
        %v6357 = vunpack.c.h.b16 %v6197
        %v6358 = vunpack.c.l.b16 %v6198
        %v6359 = vunpack.c.h.b16 %v6198
        %v6360 = vunpack.c.l.b16 %v6199
        %v6361 = vunpack.c.h.b16 %v6199
        %v6362 = vunpack.c.l.b16 %v6200
        %v6363 = vunpack.c.h.b16 %v6200
        %v6364 = vunpack.c.l.b16 %v6201
        %v6365 = vunpack.c.h.b16 %v6201
        %v6366 = vunpack.c.l.b16 %v6202
        %v6367 = vunpack.c.h.b16 %v6202
        %v6368 = vunpack.c.l.b16 %v6203
        %v6369 = vunpack.c.h.b16 %v6203
        %v6370 = vunpack.c.l.b16 %v6204
        %v6371 = vunpack.c.h.b16 %v6204
        %v6372 = vunpack.c.l.b16 %v6205
        %v6373 = vunpack.c.h.b16 %v6205
        %v6374 = vunpack.c.l.b16 %v6206
        %v6375 = vunpack.c.h.b16 %v6206
        %v6376 = vunpack.c.l.b16 %v6207
        %v6377 = vunpack.c.h.b16 %v6207
        %v6378 = vunpack.c.l.b16 %v6208
        %v6379 = vunpack.c.h.b16 %v6208
        %v6380 = vunpack.c.l.b16 %v6209
        %v6381 = vunpack.c.h.b16 %v6209
        %v6382 = vunpack.c.l.b16 %v6210
        %v6383 = vunpack.c.h.b16 %v6210
        %v6384 = vunpack.c.l.b16 %v6211
        %v6385 = vunpack.c.h.b16 %v6211
        %v6386 = vunpack.c.l.b16 %v6212
        %v6387 = vunpack.c.h.b16 %v6212
        %v6388 = vunpack.c.l.b16 %v6213
        %v6389 = vunpack.c.h.b16 %v6213
        %v6390 = vunpack.c.l.b16 %v6214
        %v6391 = vunpack.c.h.b16 %v6214
        %v6392 = vunpack.c.l.b16 %v6215
        %v6393 = vunpack.c.h.b16 %v6215
        %v6394 = vunpack.c.l.b16 %v6216
        %v6395 = vunpack.c.h.b16 %v6216
        %v6396 = vunpack.c.l.b16 %v6217
        %v6397 = vunpack.c.h.b16 %v6217
        %v6398 = vunpack.c.l.b16 %v6218
        %v6399 = vunpack.c.h.b16 %v6218
        %v6400 = vunpack.c.l.b16 %v6219
        %v6401 = vunpack.c.h.b16 %v6219
        %v6402 = vunpack.c.l.b16 %v6220
        %v6403 = vunpack.c.h.b16 %v6220
        %v6404 = vunpack.c.l.b16 %v6221
        %v6405 = vunpack.c.h.b16 %v6221
        %v6406 = vunpack.c.l.b16 %v6222
        %v6407 = vunpack.c.h.b16 %v6222
        %v6408 = vunpack.c.l.b16 %v6223
        %v6409 = vunpack.c.h.b16 %v6223
        %v6410 = vunpack.c.l.b16 %v6224
        %v6411 = vunpack.c.h.b16 %v6224
        %v6412 = vunpack.c.l.b16 %v6225
        %v6413 = vunpack.c.h.b16 %v6225
        %v6414 = vunpack.c.l.b16 %v6226
        %v6415 = vunpack.c.h.b16 %v6226
        %v6416 = vunpack.c.l.b16 %v6227
        %v6417 = vunpack.c.h.b16 %v6227
        %v6418 = vunpack.c.l.b16 %v6228
        %v6419 = vunpack.c.h.b16 %v6228
        %v6420 = vunpack.c.l.b16 %v6229
        %v6421 = vunpack.c.h.b16 %v6229
        %v6422 = vunpack.c.l.b16 %v6230
        %v6423 = vunpack.c.h.b16 %v6230
        %v6424 = vpack.c.b16 %v6298, %v6296
        %v6425 = vpack.c.b16 %v6299, %v6297
        %v6426 = vpack.c.b16 %v6302, %v6300
        %v6427 = vpack.c.b16 %v6303, %v6301
        %v6428 = vpack.c.b16 %v6306, %v6304
        %v6429 = vpack.c.b16 %v6307, %v6305
        %v6430 = vpack.c.b16 %v6310, %v6308
        %v6431 = vpack.c.b16 %v6311, %v6309
        %v6432 = vpack.c.b16 %v6314, %v6312
        %v6433 = vpack.c.b16 %v6315, %v6313
        %v6434 = vpack.c.b16 %v6318, %v6316
        %v6435 = vpack.c.b16 %v6319, %v6317
        %v6436 = vpack.c.b16 %v6322, %v6320
        %v6437 = vpack.c.b16 %v6323, %v6321
        %v6438 = vpack.c.b16 %v6326, %v6324
        %v6439 = vpack.c.b16 %v6327, %v6325
        %v6440 = vpack.c.b16 %v6330, %v6328
        %v6441 = vpack.c.b16 %v6331, %v6329
        %v6442 = vpack.c.b16 %v6334, %v6332
        %v6443 = vpack.c.b16 %v6335, %v6333
        %v6444 = vpack.c.b16 %v6338, %v6336
        %v6445 = vpack.c.b16 %v6339, %v6337
        %v6446 = vpack.c.b16 %v6342, %v6340
        %v6447 = vpack.c.b16 %v6343, %v6341
        %v6448 = vpack.c.b16 %v6346, %v6344
        %v6449 = vpack.c.b16 %v6347, %v6345
        %v6450 = vpack.c.b16 %v6350, %v6348
        %v6451 = vpack.c.b16 %v6351, %v6349
        %v6452 = vpack.c.b16 %v6354, %v6352
        %v6453 = vpack.c.b16 %v6355, %v6353
        %v6454 = vpack.c.b16 %v6358, %v6356
        %v6455 = vpack.c.b16 %v6359, %v6357
        %v6456 = vpack.c.b16 %v6362, %v6360
        %v6457 = vpack.c.b16 %v6363, %v6361
        %v6458 = vpack.c.b16 %v6366, %v6364
        %v6459 = vpack.c.b16 %v6367, %v6365
        %v6460 = vpack.c.b16 %v6370, %v6368
        %v6461 = vpack.c.b16 %v6371, %v6369
        %v6462 = vpack.c.b16 %v6374, %v6372
        %v6463 = vpack.c.b16 %v6375, %v6373
        %v6464 = vpack.c.b16 %v6378, %v6376
        %v6465 = vpack.c.b16 %v6379, %v6377
        %v6466 = vpack.c.b16 %v6382, %v6380
        %v6467 = vpack.c.b16 %v6383, %v6381
        %v6468 = vpack.c.b16 %v6386, %v6384
        %v6469 = vpack.c.b16 %v6387, %v6385
        %v6470 = vpack.c.b16 %v6390, %v6388
        %v6471 = vpack.c.b16 %v6391, %v6389
        %v6472 = vpack.c.b16 %v6394, %v6392
        %v6473 = vpack.c.b16 %v6395, %v6393
        %v6474 = vpack.c.b16 %v6398, %v6396
        %v6475 = vpack.c.b16 %v6399, %v6397
        %v6476 = vpack.c.b16 %v6402, %v6400
        %v6477 = vpack.c.b16 %v6403, %v6401
        %v6478 = vpack.c.b16 %v6406, %v6404
        %v6479 = vpack.c.b16 %v6407, %v6405
        %v6480 = vpack.c.b16 %v6410, %v6408
        %v6481 = vpack.c.b16 %v6411, %v6409
        %v6482 = vpack.c.b16 %v6414, %v6412
        %v6483 = vpack.c.b16 %v6415, %v6413
        %v6484 = vpack.c.b16 %v6418, %v6416
        %v6485 = vpack.c.b16 %v6419, %v6417
        %v6486 = vpack.c.b16 %v6422, %v6420
        %v6487 = vpack.c.b16 %v6423, %v6421
        %v6553 = vperm.slane %v6231, 0
        %v6554 = vperm.slane %v6231, 1
        %6557 = vmatpush.bf16.msra.mxu0 %v6438
        %6558 = vmatpush.bf16.msra.mxu0 %v6436
        %6559 = vmatpush.bf16.msra.mxu0 %v6434
        %6560 = vmatpush.bf16.msra.mxu0 %v6432
        %6561 = vmatpush.bf16.msra.mxu0 %v6430
        %6562 = vmatpush.bf16.msra.mxu0 %v6428
        %6563 = vmatpush.bf16.msra.mxu0 %v6426
        %6564 = vmatpush.bf16.msra.mxu0 %v6424
        %6565 = vmatmul.bf16.gmra.mxu0 %v6163
        %v6566 = vpop.f32.mrf.mxu0
        %v6567 = vadd.f32 %v6553, %v6566
        %v6568 = vpop.f32.mrf.mxu0
        %6569 = vdwg.mxu0
        %6570 = vmatpush.bf16.msra.mxu0 %v6454
        %6571 = vmatpush.bf16.msra.mxu0 %v6452
        %6572 = vmatpush.bf16.msra.mxu0 %v6450
        %6573 = vmatpush.bf16.msra.mxu0 %v6448
        %6574 = vmatpush.bf16.msra.mxu0 %v6446
        %6575 = vmatpush.bf16.msra.mxu0 %v6444
        %6576 = vmatpush.bf16.msra.mxu0 %v6442
        %6577 = vmatpush.bf16.msra.mxu0 %v6440
        %6578 = vmatmul.bf16.gmra.mxu0 %v6164
        %v6579 = vpop.f32.mrf.mxu0
        %v6580 = vadd.f32 %v6567, %v6579
        %v6581 = vpop.f32.mrf.mxu0
        %6582 = vdwg.mxu0
        %6583 = vmatpush.bf16.msra.mxu0 %v6470
        %6584 = vmatpush.bf16.msra.mxu0 %v6468
        %6585 = vmatpush.bf16.msra.mxu0 %v6466
        %6586 = vmatpush.bf16.msra.mxu0 %v6464
        %6587 = vmatpush.bf16.msra.mxu0 %v6462
        %6588 = vmatpush.bf16.msra.mxu0 %v6460
        %6589 = vmatpush.bf16.msra.mxu0 %v6458
        %6590 = vmatpush.bf16.msra.mxu0 %v6456
        %6591 = vmatmul.bf16.gmra.mxu0 %v6165
        %v6592 = vpop.f32.mrf.mxu0
        %v6593 = vadd.f32 %v6580, %v6592
        %v6594 = vpop.f32.mrf.mxu0
        %6595 = vdwg.mxu0
        %6596 = vmatpush.bf16.msra.mxu0 %v6486
        %6597 = vmatpush.bf16.msra.mxu0 %v6484
        %6598 = vmatpush.bf16.msra.mxu0 %v6482
        %6599 = vmatpush.bf16.msra.mxu0 %v6480
        %6600 = vmatpush.bf16.msra.mxu0 %v6478
        %6601 = vmatpush.bf16.msra.mxu0 %v6476
        %6602 = vmatpush.bf16.msra.mxu0 %v6474
        %6603 = vmatpush.bf16.msra.mxu0 %v6472
        %6604 = vmatmul.bf16.gmra.mxu0 %v6166
        %v6605 = vpop.f32.mrf.mxu0
        %v6606 = vadd.f32 %v6593, %v6605
        %v6607 = vpop.f32.mrf.mxu0
        %6608 = vdwg.mxu0
        %6609 = vmatpush.bf16.msra.mxu0 %v6439
        %6610 = vmatpush.bf16.msra.mxu0 %v6437
        %6611 = vmatpush.bf16.msra.mxu0 %v6435
        %6612 = vmatpush.bf16.msra.mxu0 %v6433
        %6613 = vmatpush.bf16.msra.mxu0 %v6431
        %6614 = vmatpush.bf16.msra.mxu0 %v6429
        %6615 = vmatpush.bf16.msra.mxu0 %v6427
        %6616 = vmatpush.bf16.msra.mxu0 %v6425
        %6617 = vmatmul.bf16.gmra.mxu0 %v6163
        %v6618 = vpop.f32.mrf.mxu0
        %v6619 = vadd.f32 %v6554, %v6618
        %v6620 = vpop.f32.mrf.mxu0
        %6621 = vdwg.mxu0
        %6622 = vmatpush.bf16.msra.mxu0 %v6455
        %6623 = vmatpush.bf16.msra.mxu0 %v6453
        %6624 = vmatpush.bf16.msra.mxu0 %v6451
        %6625 = vmatpush.bf16.msra.mxu0 %v6449
        %6626 = vmatpush.bf16.msra.mxu0 %v6447
        %6627 = vmatpush.bf16.msra.mxu0 %v6445
        %6628 = vmatpush.bf16.msra.mxu0 %v6443
        %6629 = vmatpush.bf16.msra.mxu0 %v6441
        %6630 = vmatmul.bf16.gmra.mxu0 %v6164
        %v6631 = vpop.f32.mrf.mxu0
        %v6632 = vadd.f32 %v6619, %v6631
        %v6633 = vpop.f32.mrf.mxu0
        %6634 = vdwg.mxu0
        %6635 = vmatpush.bf16.msra.mxu0 %v6471
        %6636 = vmatpush.bf16.msra.mxu0 %v6469
        %6637 = vmatpush.bf16.msra.mxu0 %v6467
        %6638 = vmatpush.bf16.msra.mxu0 %v6465
        %6639 = vmatpush.bf16.msra.mxu0 %v6463
        %6640 = vmatpush.bf16.msra.mxu0 %v6461
        %6641 = vmatpush.bf16.msra.mxu0 %v6459
        %6642 = vmatpush.bf16.msra.mxu0 %v6457
        %6643 = vmatmul.bf16.gmra.mxu0 %v6165
        %v6644 = vpop.f32.mrf.mxu0
        %v6645 = vadd.f32 %v6632, %v6644
        %v6646 = vpop.f32.mrf.mxu0
        %6647 = vdwg.mxu0
        %6648 = vmatpush.bf16.msra.mxu0 %v6487
        %6649 = vmatpush.bf16.msra.mxu0 %v6485
        %6650 = vmatpush.bf16.msra.mxu0 %v6483
        %6651 = vmatpush.bf16.msra.mxu0 %v6481
        %6652 = vmatpush.bf16.msra.mxu0 %v6479
        %6653 = vmatpush.bf16.msra.mxu0 %v6477
        %6654 = vmatpush.bf16.msra.mxu0 %v6475
        %6655 = vmatpush.bf16.msra.mxu0 %v6473
        %6656 = vmatmul.bf16.gmra.mxu0 %v6166
        %v6657 = vpop.f32.mrf.mxu0
        %v6658 = vadd.f32 %v6645, %v6657
        %v6659 = vpop.f32.mrf.mxu0
        %6660 = vdwg.mxu0
        %v6661 = vsel %vm801, %v6606, 0.0
        %v6662 = vsel %vm801, %v6658, 0.0
        %v6663 = vadd.f32 %v6661, %v6662
        %6664 = vadd.xlane.f32.xlu0 %v6663
        %v6665 = vpop.xlane.xlu0 %6664
        %v6666 = vrcp.pop 256.0
        %v6667 = vmul.f32 256.0, %v6666
        %v6668 = vsub.f32 1.0, %v6667
        %v6669 = vmul.f32 %v6666, %v6668
        %v6670 = vadd.f32 %v6666, %v6669
        %vm6671 = vweird.f32 %v6666
        %v6672 = vsel %vm6671, %v6666, %v6670
        %v6673 = vmul.f32 %v6665, %v6672
        %v6674 = vmul.f32 %v6606, %v6606
        %v6675 = vmul.f32 %v6658, %v6658
        %v6676 = vsel %vm801, %v6674, 0.0
        %v6677 = vsel %vm801, %v6675, 0.0
        %v6678 = vadd.f32 %v6676, %v6677
        %6679 = vadd.xlane.f32.xlu0 %v6678
        %v6680 = vpop.xlane.xlu0 %6679
        %v6681 = vmul.f32 %v6680, %v6672
        %v6682 = vsub.f32 %v6606, %v6673
        %v6683 = vsub.f32 %v6658, %v6673
        %v6684 = vmul.f32 %v6673, %v6673
        %v6685 = vsub.f32 %v6681, %v6684
        %v6686 = vadd.f32 %v6685, 1e-05
        %v6687 = vrsqrt.pop %v6686
        %v6688 = vmul.f32 %v6687, %v6686
        %v6689 = vmul.f32 %v6688, %v6687
        %v6690 = vmul.f32 0.5, %v6689
        %v6691 = vsub.f32 1.5, %v6690
        %v6692 = vmul.f32 %v6687, %v6691
        %vm6693 = vweird.f32 %v6686
        %vm6694 = vweird.f32 %v6687
        %vm6695 = vmor %vm6693, %vm6694
        %v6696 = vsel %vm6695, %v6687, %v6692
        %v6697 = vmul.f32 %v6682, %v6696
        %v6698 = vmul.f32 %v6683, %v6696
        %v6699 = vpack.c.bf16 %v6698, %v6697
        %v6700 = vunpack.c.l.bf16 %v6699
        %v6701 = vunpack.c.h.bf16 %v6699
        %v6702 = vmax.f32 %v6700, 0.0
        %v6703 = vmax.f32 %v6701, 0.0
        %v6704 = vpack.c.bf16 %v6702, %v6702
        %v6705 = vpack.c.bf16 %v6703, %v6703
        %v6706 = vld [vmem:[%s11] sm:$0xf]
        %v6707 = vld [vmem:[%s11 + $0x4] sm:$0xf]
        %v6708 = vld [vmem:[%s11 + $0x8] sm:$0xf]
        %v6709 = vld [vmem:[%s11 + $0xc] sm:$0xf]
        %v6710 = vld [vmem:[%s11 + $0x10] sm:$0xf]
        %v6711 = vld [vmem:[%s11 + $0x14] sm:$0xf]
        %v6712 = vld [vmem:[%s11 + $0x18] sm:$0xf]
        %v6713 = vld [vmem:[%s11 + $0x1c] sm:$0xf]
        %v6714 = vld [vmem:[%s11 + $0x20] sm:$0xf]
        %v6715 = vld [vmem:[%s11 + $0x24] sm:$0xf]
        %v6716 = vld [vmem:[%s11 + $0x28] sm:$0xf]
        %v6717 = vld [vmem:[%s11 + $0x2c] sm:$0xf]
        %v6718 = vld [vmem:[%s11 + $0x30] sm:$0xf]
        %v6719 = vld [vmem:[%s11 + $0x34] sm:$0xf]
        %v6720 = vld [vmem:[%s11 + $0x38] sm:$0xf]
        %v6721 = vld [vmem:[%s11 + $0x3c] sm:$0xf]
        %v6722 = vld [vmem:[%s11 + $0x40] sm:$0xf]
        %v6723 = vld [vmem:[%s11 + $0x44] sm:$0xf]
        %v6724 = vld [vmem:[%s11 + $0x48] sm:$0xf]
        %v6725 = vld [vmem:[%s11 + $0x4c] sm:$0xf]
        %v6726 = vld [vmem:[%s11 + $0x50] sm:$0xf]
        %v6727 = vld [vmem:[%s11 + $0x54] sm:$0xf]
        %v6728 = vld [vmem:[%s11 + $0x58] sm:$0xf]
        %v6729 = vld [vmem:[%s11 + $0x5c] sm:$0xf]
        %v6730 = vld [vmem:[%s11 + $0x60] sm:$0xf]
        %v6731 = vld [vmem:[%s11 + $0x64] sm:$0xf]
        %v6732 = vld [vmem:[%s11 + $0x68] sm:$0xf]
        %v6733 = vld [vmem:[%s11 + $0x6c] sm:$0xf]
        %v6734 = vld [vmem:[%s11 + $0x70] sm:$0xf]
        %v6735 = vld [vmem:[%s11 + $0x74] sm:$0xf]
        %v6736 = vld [vmem:[%s11 + $0x78] sm:$0xf]
        %v6737 = vld [vmem:[%s11 + $0x7c] sm:$0xf]
        %v6738 = vld [vmem:[%s12] sm:$0x1]
        %v6771 = vunpack.c.l.b16 %v6706
        %v6772 = vunpack.c.l.b16 %v6707
        %v6773 = vunpack.c.l.b16 %v6708
        %v6774 = vunpack.c.l.b16 %v6709
        %v6775 = vunpack.c.l.b16 %v6710
        %v6776 = vunpack.c.l.b16 %v6711
        %v6777 = vunpack.c.l.b16 %v6712
        %v6778 = vunpack.c.l.b16 %v6713
        %v6779 = vunpack.c.l.b16 %v6714
        %v6780 = vunpack.c.l.b16 %v6715
        %v6781 = vunpack.c.l.b16 %v6716
        %v6782 = vunpack.c.l.b16 %v6717
        %v6783 = vunpack.c.l.b16 %v6718
        %v6784 = vunpack.c.l.b16 %v6719
        %v6785 = vunpack.c.l.b16 %v6720
        %v6786 = vunpack.c.l.b16 %v6721
        %v6787 = vunpack.c.l.b16 %v6722
        %v6788 = vunpack.c.l.b16 %v6723
        %v6789 = vunpack.c.l.b16 %v6724
        %v6790 = vunpack.c.l.b16 %v6725
        %v6791 = vunpack.c.l.b16 %v6726
        %v6792 = vunpack.c.l.b16 %v6727
        %v6793 = vunpack.c.l.b16 %v6728
        %v6794 = vunpack.c.l.b16 %v6729
        %v6795 = vunpack.c.l.b16 %v6730
        %v6796 = vunpack.c.l.b16 %v6731
        %v6797 = vunpack.c.l.b16 %v6732
        %v6798 = vunpack.c.l.b16 %v6733
        %v6799 = vunpack.c.l.b16 %v6734
        %v6800 = vunpack.c.l.b16 %v6735
        %v6801 = vunpack.c.l.b16 %v6736
        %v6802 = vunpack.c.l.b16 %v6737
        %v6803 = vpack.c.b16 %v6772, %v6771
        %v6804 = vpack.c.b16 %v6774, %v6773
        %v6805 = vpack.c.b16 %v6776, %v6775
        %v6806 = vpack.c.b16 %v6778, %v6777
        %v6807 = vpack.c.b16 %v6780, %v6779
        %v6808 = vpack.c.b16 %v6782, %v6781
        %v6809 = vpack.c.b16 %v6784, %v6783
        %v6810 = vpack.c.b16 %v6786, %v6785
        %v6811 = vpack.c.b16 %v6788, %v6787
        %v6812 = vpack.c.b16 %v6790, %v6789
        %v6813 = vpack.c.b16 %v6792, %v6791
        %v6814 = vpack.c.b16 %v6794, %v6793
        %v6815 = vpack.c.b16 %v6796, %v6795
        %v6816 = vpack.c.b16 %v6798, %v6797
        %v6817 = vpack.c.b16 %v6800, %v6799
        %v6818 = vpack.c.b16 %v6802, %v6801
        %6835 = vmatpush.bf16.msra.mxu0 %v6810
        %6836 = vmatpush.bf16.msra.mxu0 %v6809
        %6837 = vmatpush.bf16.msra.mxu0 %v6808
        %6838 = vmatpush.bf16.msra.mxu0 %v6807
        %6839 = vmatpush.bf16.msra.mxu0 %v6806
        %6840 = vmatpush.bf16.msra.mxu0 %v6805
        %6841 = vmatpush.bf16.msra.mxu0 %v6804
        %6842 = vmatpush.bf16.msra.mxu0 %v6803
        %6843 = vmatmul.bf16.gmra.mxu0 %v6704
        %v6844 = vpop.f32.mrf.mxu0
        %v6845 = vadd.f32 %v6738, %v6844
        %v6846 = vpop.f32.mrf.mxu0
        %6847 = vdwg.mxu0
        %6848 = vmatpush.bf16.msra.mxu0 %v6818
        %6849 = vmatpush.bf16.msra.mxu0 %v6817
        %6850 = vmatpush.bf16.msra.mxu0 %v6816
        %6851 = vmatpush.bf16.msra.mxu0 %v6815
        %6852 = vmatpush.bf16.msra.mxu0 %v6814
        %6853 = vmatpush.bf16.msra.mxu0 %v6813
        %6854 = vmatpush.bf16.msra.mxu0 %v6812
        %6855 = vmatpush.bf16.msra.mxu0 %v6811
        %6856 = vmatmul.bf16.gmra.mxu0 %v6705
        %v6857 = vpop.f32.mrf.mxu0
        %v6858 = vadd.f32 %v6845, %v6857
        %v6859 = vpop.f32.mrf.mxu0
        %6860 = vdwg.mxu0
        %6861 = vst [vmem:[%s697] sm:$0x1] %v6858
        %v6862 = vld [vmem:[%s13] sm:$0x3]
        %v6864 = vand.u32 %v6862, %v804
        %6866 = vmatpush.bf16.msra.mxu0 0
        %6867 = vmatpush.bf16.msra.mxu0 0
        %6868 = vmatpush.bf16.msra.mxu0 0
        %6869 = vmatpush.bf16.msra.mxu0 0
        %6870 = vmatpush.bf16.msra.mxu0 0
        %6871 = vmatpush.bf16.msra.mxu0 0
        %6872 = vmatpush.bf16.msra.mxu0 0
        %6873 = vmatpush.bf16.msra.mxu0 %v6864
        %6874 = vmatmul.bf16.gmra.mxu0 %v754
        %v6875 = vpop.f32.mrf.mxu0
        %v6876 = vadd.f32 0.0, %v6875
        %v6877 = vpop.f32.mrf.mxu0
        %v6878 = vadd.f32 0.0, %v6877
        %6879 = vmatmul.bf16.gmra.mxu0 %v757
        %v6880 = vpop.f32.mrf.mxu0
        %v6881 = vadd.f32 0.0, %v6880
        %v6882 = vpop.f32.mrf.mxu0
        %v6883 = vadd.f32 0.0, %v6882
        %6884 = vmatmul.bf16.gmra.mxu0 %v760
        %v6885 = vpop.f32.mrf.mxu0
        %v6886 = vadd.f32 0.0, %v6885
        %v6887 = vpop.f32.mrf.mxu0
        %v6888 = vadd.f32 0.0, %v6887
        %6889 = vmatmul.bf16.gmra.mxu0 %v763
        %v6890 = vpop.f32.mrf.mxu0
        %v6891 = vadd.f32 0.0, %v6890
        %v6892 = vpop.f32.mrf.mxu0
        %v6893 = vadd.f32 0.0, %v6892
        %6894 = vmatmul.bf16.gmra.mxu0 %v766
        %v6895 = vpop.f32.mrf.mxu0
        %v6896 = vadd.f32 0.0, %v6895
        %v6897 = vpop.f32.mrf.mxu0
        %v6898 = vadd.f32 0.0, %v6897
        %6899 = vmatmul.bf16.gmra.mxu0 %v769
        %v6900 = vpop.f32.mrf.mxu0
        %v6901 = vadd.f32 0.0, %v6900
        %v6902 = vpop.f32.mrf.mxu0
        %v6903 = vadd.f32 0.0, %v6902
        %6904 = vmatmul.bf16.gmra.mxu0 %v772
        %v6905 = vpop.f32.mrf.mxu0
        %v6906 = vadd.f32 0.0, %v6905
        %v6907 = vpop.f32.mrf.mxu0
        %v6908 = vadd.f32 0.0, %v6907
        %6909 = vmatmul.bf16.gmra.mxu0 %v775
        %v6910 = vpop.f32.mrf.mxu0
        %v6911 = vadd.f32 0.0, %v6910
        %v6912 = vpop.f32.mrf.mxu0
        %v6913 = vadd.f32 0.0, %v6912
        %6914 = vmatmul.bf16.gmra.mxu0 %v778
        %v6915 = vpop.f32.mrf.mxu0
        %v6916 = vadd.f32 0.0, %v6915
        %v6917 = vpop.f32.mrf.mxu0
        %v6918 = vadd.f32 0.0, %v6917
        %6919 = vmatmul.bf16.gmra.mxu0 %v781
        %v6920 = vpop.f32.mrf.mxu0
        %v6921 = vadd.f32 0.0, %v6920
        %v6922 = vpop.f32.mrf.mxu0
        %v6923 = vadd.f32 0.0, %v6922
        %6924 = vmatmul.bf16.gmra.mxu0 %v784
        %v6925 = vpop.f32.mrf.mxu0
        %v6926 = vadd.f32 0.0, %v6925
        %v6927 = vpop.f32.mrf.mxu0
        %v6928 = vadd.f32 0.0, %v6927
        %6929 = vmatmul.bf16.gmra.mxu0 %v787
        %v6930 = vpop.f32.mrf.mxu0
        %v6931 = vadd.f32 0.0, %v6930
        %v6932 = vpop.f32.mrf.mxu0
        %v6933 = vadd.f32 0.0, %v6932
        %6934 = vmatmul.bf16.gmra.mxu0 %v790
        %v6935 = vpop.f32.mrf.mxu0
        %v6936 = vadd.f32 0.0, %v6935
        %v6937 = vpop.f32.mrf.mxu0
        %v6938 = vadd.f32 0.0, %v6937
        %6939 = vmatmul.bf16.gmra.mxu0 %v793
        %v6940 = vpop.f32.mrf.mxu0
        %v6941 = vadd.f32 0.0, %v6940
        %v6942 = vpop.f32.mrf.mxu0
        %v6943 = vadd.f32 0.0, %v6942
        %6944 = vmatmul.bf16.gmra.mxu0 %v796
        %v6945 = vpop.f32.mrf.mxu0
        %v6946 = vadd.f32 0.0, %v6945
        %v6947 = vpop.f32.mrf.mxu0
        %v6948 = vadd.f32 0.0, %v6947
        %6949 = vmatmul.bf16.gmra.mxu0 %v799
        %v6950 = vpop.f32.mrf.mxu0
        %v6951 = vadd.f32 0.0, %v6950
        %v6952 = vpop.f32.mrf.mxu0
        %v6953 = vadd.f32 0.0, %v6952
        %6954 = vdwg.mxu0
        %v6955 = vperm.slane %v6858, 0
        %v6956 = vmul.f32 %v6876, %v6955
        %v6957 = vmul.f32 %v6878, %v6955
        %v6958 = vmul.f32 %v6881, %v6955
        %v6959 = vmul.f32 %v6883, %v6955
        %v6960 = vmul.f32 %v6886, %v6955
        %v6961 = vmul.f32 %v6888, %v6955
        %v6962 = vmul.f32 %v6891, %v6955
        %v6963 = vmul.f32 %v6893, %v6955
        %v6964 = vmul.f32 %v6896, %v6955
        %v6965 = vmul.f32 %v6898, %v6955
        %v6966 = vmul.f32 %v6901, %v6955
        %v6967 = vmul.f32 %v6903, %v6955
        %v6968 = vmul.f32 %v6906, %v6955
        %v6969 = vmul.f32 %v6908, %v6955
        %v6970 = vmul.f32 %v6911, %v6955
        %v6971 = vmul.f32 %v6913, %v6955
        %v6972 = vmul.f32 %v6916, %v6955
        %v6973 = vmul.f32 %v6918, %v6955
        %v6974 = vmul.f32 %v6921, %v6955
        %v6975 = vmul.f32 %v6923, %v6955
        %v6976 = vmul.f32 %v6926, %v6955
        %v6977 = vmul.f32 %v6928, %v6955
        %v6978 = vmul.f32 %v6931, %v6955
        %v6979 = vmul.f32 %v6933, %v6955
        %v6980 = vmul.f32 %v6936, %v6955
        %v6981 = vmul.f32 %v6938, %v6955
        %v6982 = vmul.f32 %v6941, %v6955
        %v6983 = vmul.f32 %v6943, %v6955
        %v6984 = vmul.f32 %v6946, %v6955
        %v6985 = vmul.f32 %v6948, %v6955
        %v6986 = vmul.f32 %v6951, %v6955
        %v6987 = vmul.f32 %v6953, %v6955
        %v6988 = vpack.c.bf16 %v6957, %v6956
        %v6989 = vpack.c.bf16 %v6959, %v6958
        %v6990 = vpack.c.bf16 %v6961, %v6960
        %v6991 = vpack.c.bf16 %v6963, %v6962
        %v6992 = vpack.c.bf16 %v6965, %v6964
        %v6993 = vpack.c.bf16 %v6967, %v6966
        %v6994 = vpack.c.bf16 %v6969, %v6968
        %v6995 = vpack.c.bf16 %v6971, %v6970
        %v6996 = vpack.c.bf16 %v6973, %v6972
        %v6997 = vpack.c.bf16 %v6975, %v6974
        %v6998 = vpack.c.bf16 %v6977, %v6976
        %v6999 = vpack.c.bf16 %v6979, %v6978
        %v7000 = vpack.c.bf16 %v6981, %v6980
        %v7001 = vpack.c.bf16 %v6983, %v6982
        %v7002 = vpack.c.bf16 %v6985, %v6984
        %v7003 = vpack.c.bf16 %v6987, %v6986
        %v7004 = vld [vmem:[%s14] sm:$0xf]
        %v7005 = vld [vmem:[%s14 + $0x4] sm:$0xf]
        %v7006 = vld [vmem:[%s14 + $0x8] sm:$0xf]
        %v7007 = vld [vmem:[%s14 + $0xc] sm:$0xf]
        %v7008 = vld [vmem:[%s14 + $0x10] sm:$0xf]
        %v7009 = vld [vmem:[%s14 + $0x14] sm:$0xf]
        %v7010 = vld [vmem:[%s14 + $0x18] sm:$0xf]
        %v7011 = vld [vmem:[%s14 + $0x1c] sm:$0xf]
        %v7012 = vld [vmem:[%s14 + $0x20] sm:$0xf]
        %v7013 = vld [vmem:[%s14 + $0x24] sm:$0xf]
        %v7014 = vld [vmem:[%s14 + $0x28] sm:$0xf]
        %v7015 = vld [vmem:[%s14 + $0x2c] sm:$0xf]
        %v7016 = vld [vmem:[%s14 + $0x30] sm:$0xf]
        %v7017 = vld [vmem:[%s14 + $0x34] sm:$0xf]
        %v7018 = vld [vmem:[%s14 + $0x38] sm:$0xf]
        %v7019 = vld [vmem:[%s14 + $0x3c] sm:$0xf]
        %v7020 = vld [vmem:[%s15] sm:$0x1]
        %v7022 = vperm.slane %v7020, 0
        %v7040 = vunpack.c.l.b16 %v7004
        %v7041 = vunpack.c.l.b16 %v7005
        %v7042 = vunpack.c.l.b16 %v7006
        %v7043 = vunpack.c.l.b16 %v7007
        %v7044 = vunpack.c.l.b16 %v7008
        %v7045 = vunpack.c.l.b16 %v7009
        %v7046 = vunpack.c.l.b16 %v7010
        %v7047 = vunpack.c.l.b16 %v7011
        %v7048 = vunpack.c.l.b16 %v7012
        %v7049 = vunpack.c.l.b16 %v7013
        %v7050 = vunpack.c.l.b16 %v7014
        %v7051 = vunpack.c.l.b16 %v7015
        %v7052 = vunpack.c.l.b16 %v7016
        %v7053 = vunpack.c.l.b16 %v7017
        %v7054 = vunpack.c.l.b16 %v7018
        %v7055 = vunpack.c.l.b16 %v7019
        %v7056 = vpack.c.b16 %v7041, %v7040
        %v7057 = vpack.c.b16 %v7043, %v7042
        %v7058 = vpack.c.b16 %v7045, %v7044
        %v7059 = vpack.c.b16 %v7047, %v7046
        %v7060 = vpack.c.b16 %v7049, %v7048
        %v7061 = vpack.c.b16 %v7051, %v7050
        %v7062 = vpack.c.b16 %v7053, %v7052
        %v7063 = vpack.c.b16 %v7055, %v7054
        %7072 = vmatpush.bf16.msra.mxu0 %v7063
        %7073 = vmatpush.bf16.msra.mxu0 %v7062
        %7074 = vmatpush.bf16.msra.mxu0 %v7061
        %7075 = vmatpush.bf16.msra.mxu0 %v7060
        %7076 = vmatpush.bf16.msra.mxu0 %v7059
        %7077 = vmatpush.bf16.msra.mxu0 %v7058
        %7078 = vmatpush.bf16.msra.mxu0 %v7057
        %7079 = vmatpush.bf16.msra.mxu0 %v7056
        %7080 = vmatmul.bf16.gmra.mxu0 %v6988
        %v7081 = vpop.f32.mrf.mxu0
        %v7082 = vadd.f32 %v7022, %v7081
        %v7083 = vpop.f32.mrf.mxu0
        %v7084 = vadd.f32 %v7022, %v7083
        %7085 = vmatmul.bf16.gmra.mxu0 %v6989
        %v7086 = vpop.f32.mrf.mxu0
        %v7087 = vadd.f32 %v7022, %v7086
        %v7088 = vpop.f32.mrf.mxu0
        %v7089 = vadd.f32 %v7022, %v7088
        %7090 = vmatmul.bf16.gmra.mxu0 %v6990
        %v7091 = vpop.f32.mrf.mxu0
        %v7092 = vadd.f32 %v7022, %v7091
        %v7093 = vpop.f32.mrf.mxu0
        %v7094 = vadd.f32 %v7022, %v7093
        %7095 = vmatmul.bf16.gmra.mxu0 %v6991
        %v7096 = vpop.f32.mrf.mxu0
        %v7097 = vadd.f32 %v7022, %v7096
        %v7098 = vpop.f32.mrf.mxu0
        %v7099 = vadd.f32 %v7022, %v7098
        %7100 = vmatmul.bf16.gmra.mxu0 %v6992
        %v7101 = vpop.f32.mrf.mxu0
        %v7102 = vadd.f32 %v7022, %v7101
        %v7103 = vpop.f32.mrf.mxu0
        %v7104 = vadd.f32 %v7022, %v7103
        %7105 = vmatmul.bf16.gmra.mxu0 %v6993
        %v7106 = vpop.f32.mrf.mxu0
        %v7107 = vadd.f32 %v7022, %v7106
        %v7108 = vpop.f32.mrf.mxu0
        %v7109 = vadd.f32 %v7022, %v7108
        %7110 = vmatmul.bf16.gmra.mxu0 %v6994
        %v7111 = vpop.f32.mrf.mxu0
        %v7112 = vadd.f32 %v7022, %v7111
        %v7113 = vpop.f32.mrf.mxu0
        %v7114 = vadd.f32 %v7022, %v7113
        %7115 = vmatmul.bf16.gmra.mxu0 %v6995
        %v7116 = vpop.f32.mrf.mxu0
        %v7117 = vadd.f32 %v7022, %v7116
        %v7118 = vpop.f32.mrf.mxu0
        %v7119 = vadd.f32 %v7022, %v7118
        %7120 = vmatmul.bf16.gmra.mxu0 %v6996
        %v7121 = vpop.f32.mrf.mxu0
        %v7122 = vadd.f32 %v7022, %v7121
        %v7123 = vpop.f32.mrf.mxu0
        %v7124 = vadd.f32 %v7022, %v7123
        %7125 = vmatmul.bf16.gmra.mxu0 %v6997
        %v7126 = vpop.f32.mrf.mxu0
        %v7127 = vadd.f32 %v7022, %v7126
        %v7128 = vpop.f32.mrf.mxu0
        %v7129 = vadd.f32 %v7022, %v7128
        %7130 = vmatmul.bf16.gmra.mxu0 %v6998
        %v7131 = vpop.f32.mrf.mxu0
        %v7132 = vadd.f32 %v7022, %v7131
        %v7133 = vpop.f32.mrf.mxu0
        %v7134 = vadd.f32 %v7022, %v7133
        %7135 = vmatmul.bf16.gmra.mxu0 %v6999
        %v7136 = vpop.f32.mrf.mxu0
        %v7137 = vadd.f32 %v7022, %v7136
        %v7138 = vpop.f32.mrf.mxu0
        %v7139 = vadd.f32 %v7022, %v7138
        %7140 = vmatmul.bf16.gmra.mxu0 %v7000
        %v7141 = vpop.f32.mrf.mxu0
        %v7142 = vadd.f32 %v7022, %v7141
        %v7143 = vpop.f32.mrf.mxu0
        %v7144 = vadd.f32 %v7022, %v7143
        %7145 = vmatmul.bf16.gmra.mxu0 %v7001
        %v7146 = vpop.f32.mrf.mxu0
        %v7147 = vadd.f32 %v7022, %v7146
        %v7148 = vpop.f32.mrf.mxu0
        %v7149 = vadd.f32 %v7022, %v7148
        %7150 = vmatmul.bf16.gmra.mxu0 %v7002
        %v7151 = vpop.f32.mrf.mxu0
        %v7152 = vadd.f32 %v7022, %v7151
        %v7153 = vpop.f32.mrf.mxu0
        %v7154 = vadd.f32 %v7022, %v7153
        %7155 = vmatmul.bf16.gmra.mxu0 %v7003
        %v7156 = vpop.f32.mrf.mxu0
        %v7157 = vadd.f32 %v7022, %v7156
        %v7158 = vpop.f32.mrf.mxu0
        %v7159 = vadd.f32 %v7022, %v7158
        %7160 = vdwg.mxu0
        %v7161 = vsel %vm897, %v7082, 0.0
        %v7162 = vsel %vm897, %v7084, 0.0
        %v7163 = vadd.f32 %v7161, %v7162
        %v7164 = vsel %vm897, %v7087, 0.0
        %v7165 = vadd.f32 %v7163, %v7164
        %v7166 = vsel %vm897, %v7089, 0.0
        %v7167 = vadd.f32 %v7165, %v7166
        %v7168 = vsel %vm897, %v7092, 0.0
        %v7169 = vadd.f32 %v7167, %v7168
        %v7170 = vsel %vm897, %v7094, 0.0
        %v7171 = vadd.f32 %v7169, %v7170
        %v7172 = vsel %vm897, %v7097, 0.0
        %v7173 = vadd.f32 %v7171, %v7172
        %v7174 = vsel %vm897, %v7099, 0.0
        %v7175 = vadd.f32 %v7173, %v7174
        %v7176 = vsel %vm897, %v7102, 0.0
        %v7177 = vadd.f32 %v7175, %v7176
        %v7178 = vsel %vm897, %v7104, 0.0
        %v7179 = vadd.f32 %v7177, %v7178
        %v7180 = vsel %vm897, %v7107, 0.0
        %v7181 = vadd.f32 %v7179, %v7180
        %v7182 = vsel %vm897, %v7109, 0.0
        %v7183 = vadd.f32 %v7181, %v7182
        %v7184 = vsel %vm897, %v7112, 0.0
        %v7185 = vadd.f32 %v7183, %v7184
        %v7186 = vsel %vm897, %v7114, 0.0
        %v7187 = vadd.f32 %v7185, %v7186
        %v7188 = vsel %vm897, %v7117, 0.0
        %v7189 = vadd.f32 %v7187, %v7188
        %v7190 = vsel %vm897, %v7119, 0.0
        %v7191 = vadd.f32 %v7189, %v7190
        %v7192 = vsel %vm897, %v7122, 0.0
        %v7193 = vadd.f32 %v7191, %v7192
        %v7194 = vsel %vm897, %v7124, 0.0
        %v7195 = vadd.f32 %v7193, %v7194
        %v7196 = vsel %vm897, %v7127, 0.0
        %v7197 = vadd.f32 %v7195, %v7196
        %v7198 = vsel %vm897, %v7129, 0.0
        %v7199 = vadd.f32 %v7197, %v7198
        %v7200 = vsel %vm897, %v7132, 0.0
        %v7201 = vadd.f32 %v7199, %v7200
        %v7202 = vsel %vm897, %v7134, 0.0
        %v7203 = vadd.f32 %v7201, %v7202
        %v7204 = vsel %vm897, %v7137, 0.0
        %v7205 = vadd.f32 %v7203, %v7204
        %v7206 = vsel %vm897, %v7139, 0.0
        %v7207 = vadd.f32 %v7205, %v7206
        %v7208 = vsel %vm897, %v7142, 0.0
        %v7209 = vadd.f32 %v7207, %v7208
        %v7210 = vsel %vm897, %v7144, 0.0
        %v7211 = vadd.f32 %v7209, %v7210
        %v7212 = vsel %vm897, %v7147, 0.0
        %v7213 = vadd.f32 %v7211, %v7212
        %v7214 = vsel %vm897, %v7149, 0.0
        %v7215 = vadd.f32 %v7213, %v7214
        %v7216 = vsel %vm897, %v7152, 0.0
        %v7217 = vadd.f32 %v7215, %v7216
        %v7218 = vsel %vm897, %v7154, 0.0
        %v7219 = vadd.f32 %v7217, %v7218
        %v7220 = vsel %vm897, %v7157, 0.0
        %v7221 = vadd.f32 %v7219, %v7220
        %v7222 = vsel %vm897, %v7159, 0.0
        %v7223 = vadd.f32 %v7221, %v7222
        %v7224 = vrot.slane %v7223, 4
        %v7225 = vadd.f32 %v7223, %v7224
        %v7226 = vrot.slane %v7225, 2
        %v7227 = vadd.f32 %v7225, %v7226
        %v7228 = vrot.slane %v7227, 1
        %v7229 = vadd.f32 %v7227, %v7228
        %v7230 = vmul.f32 %v7229, 0.00390625
        %v7231 = vmul.f32 %v7082, %v7082
        %v7232 = vmul.f32 %v7084, %v7084
        %v7233 = vmul.f32 %v7087, %v7087
        %v7234 = vmul.f32 %v7089, %v7089
        %v7235 = vmul.f32 %v7092, %v7092
        %v7236 = vmul.f32 %v7094, %v7094
        %v7237 = vmul.f32 %v7097, %v7097
        %v7238 = vmul.f32 %v7099, %v7099
        %v7239 = vmul.f32 %v7102, %v7102
        %v7240 = vmul.f32 %v7104, %v7104
        %v7241 = vmul.f32 %v7107, %v7107
        %v7242 = vmul.f32 %v7109, %v7109
        %v7243 = vmul.f32 %v7112, %v7112
        %v7244 = vmul.f32 %v7114, %v7114
        %v7245 = vmul.f32 %v7117, %v7117
        %v7246 = vmul.f32 %v7119, %v7119
        %v7247 = vmul.f32 %v7122, %v7122
        %v7248 = vmul.f32 %v7124, %v7124
        %v7249 = vmul.f32 %v7127, %v7127
        %v7250 = vmul.f32 %v7129, %v7129
        %v7251 = vmul.f32 %v7132, %v7132
        %v7252 = vmul.f32 %v7134, %v7134
        %v7253 = vmul.f32 %v7137, %v7137
        %v7254 = vmul.f32 %v7139, %v7139
        %v7255 = vmul.f32 %v7142, %v7142
        %v7256 = vmul.f32 %v7144, %v7144
        %v7257 = vmul.f32 %v7147, %v7147
        %v7258 = vmul.f32 %v7149, %v7149
        %v7259 = vmul.f32 %v7152, %v7152
        %v7260 = vmul.f32 %v7154, %v7154
        %v7261 = vmul.f32 %v7157, %v7157
        %v7262 = vmul.f32 %v7159, %v7159
        %v7263 = vsel %vm897, %v7231, 0.0
        %v7264 = vsel %vm897, %v7232, 0.0
        %v7265 = vadd.f32 %v7263, %v7264
        %v7266 = vsel %vm897, %v7233, 0.0
        %v7267 = vadd.f32 %v7265, %v7266
        %v7268 = vsel %vm897, %v7234, 0.0
        %v7269 = vadd.f32 %v7267, %v7268
        %v7270 = vsel %vm897, %v7235, 0.0
        %v7271 = vadd.f32 %v7269, %v7270
        %v7272 = vsel %vm897, %v7236, 0.0
        %v7273 = vadd.f32 %v7271, %v7272
        %v7274 = vsel %vm897, %v7237, 0.0
        %v7275 = vadd.f32 %v7273, %v7274
        %v7276 = vsel %vm897, %v7238, 0.0
        %v7277 = vadd.f32 %v7275, %v7276
        %v7278 = vsel %vm897, %v7239, 0.0
        %v7279 = vadd.f32 %v7277, %v7278
        %v7280 = vsel %vm897, %v7240, 0.0
        %v7281 = vadd.f32 %v7279, %v7280
        %v7282 = vsel %vm897, %v7241, 0.0
        %v7283 = vadd.f32 %v7281, %v7282
        %v7284 = vsel %vm897, %v7242, 0.0
        %v7285 = vadd.f32 %v7283, %v7284
        %v7286 = vsel %vm897, %v7243, 0.0
        %v7287 = vadd.f32 %v7285, %v7286
        %v7288 = vsel %vm897, %v7244, 0.0
        %v7289 = vadd.f32 %v7287, %v7288
        %v7290 = vsel %vm897, %v7245, 0.0
        %v7291 = vadd.f32 %v7289, %v7290
        %v7292 = vsel %vm897, %v7246, 0.0
        %v7293 = vadd.f32 %v7291, %v7292
        %v7294 = vsel %vm897, %v7247, 0.0
        %v7295 = vadd.f32 %v7293, %v7294
        %v7296 = vsel %vm897, %v7248, 0.0
        %v7297 = vadd.f32 %v7295, %v7296
        %v7298 = vsel %vm897, %v7249, 0.0
        %v7299 = vadd.f32 %v7297, %v7298
        %v7300 = vsel %vm897, %v7250, 0.0
        %v7301 = vadd.f32 %v7299, %v7300
        %v7302 = vsel %vm897, %v7251, 0.0
        %v7303 = vadd.f32 %v7301, %v7302
        %v7304 = vsel %vm897, %v7252, 0.0
        %v7305 = vadd.f32 %v7303, %v7304
        %v7306 = vsel %vm897, %v7253, 0.0
        %v7307 = vadd.f32 %v7305, %v7306
        %v7308 = vsel %vm897, %v7254, 0.0
        %v7309 = vadd.f32 %v7307, %v7308
        %v7310 = vsel %vm897, %v7255, 0.0
        %v7311 = vadd.f32 %v7309, %v7310
        %v7312 = vsel %vm897, %v7256, 0.0
        %v7313 = vadd.f32 %v7311, %v7312
        %v7314 = vsel %vm897, %v7257, 0.0
        %v7315 = vadd.f32 %v7313, %v7314
        %v7316 = vsel %vm897, %v7258, 0.0
        %v7317 = vadd.f32 %v7315, %v7316
        %v7318 = vsel %vm897, %v7259, 0.0
        %v7319 = vadd.f32 %v7317, %v7318
        %v7320 = vsel %vm897, %v7260, 0.0
        %v7321 = vadd.f32 %v7319, %v7320
        %v7322 = vsel %vm897, %v7261, 0.0
        %v7323 = vadd.f32 %v7321, %v7322
        %v7324 = vsel %vm897, %v7262, 0.0
        %v7325 = vadd.f32 %v7323, %v7324
        %v7326 = vrot.slane %v7325, 4
        %v7327 = vadd.f32 %v7325, %v7326
        %v7328 = vrot.slane %v7327, 2
        %v7329 = vadd.f32 %v7327, %v7328
        %v7330 = vrot.slane %v7329, 1
        %v7331 = vadd.f32 %v7329, %v7330
        %v7332 = vmul.f32 %v7331, 0.00390625
        %v7333 = vsub.f32 %v7082, %v7230
        %v7334 = vsub.f32 %v7084, %v7230
        %v7335 = vsub.f32 %v7087, %v7230
        %v7336 = vsub.f32 %v7089, %v7230
        %v7337 = vsub.f32 %v7092, %v7230
        %v7338 = vsub.f32 %v7094, %v7230
        %v7339 = vsub.f32 %v7097, %v7230
        %v7340 = vsub.f32 %v7099, %v7230
        %v7341 = vsub.f32 %v7102, %v7230
        %v7342 = vsub.f32 %v7104, %v7230
        %v7343 = vsub.f32 %v7107, %v7230
        %v7344 = vsub.f32 %v7109, %v7230
        %v7345 = vsub.f32 %v7112, %v7230
        %v7346 = vsub.f32 %v7114, %v7230
        %v7347 = vsub.f32 %v7117, %v7230
        %v7348 = vsub.f32 %v7119, %v7230
        %v7349 = vsub.f32 %v7122, %v7230
        %v7350 = vsub.f32 %v7124, %v7230
        %v7351 = vsub.f32 %v7127, %v7230
        %v7352 = vsub.f32 %v7129, %v7230
        %v7353 = vsub.f32 %v7132, %v7230
        %v7354 = vsub.f32 %v7134, %v7230
        %v7355 = vsub.f32 %v7137, %v7230
        %v7356 = vsub.f32 %v7139, %v7230
        %v7357 = vsub.f32 %v7142, %v7230
        %v7358 = vsub.f32 %v7144, %v7230
        %v7359 = vsub.f32 %v7147, %v7230
        %v7360 = vsub.f32 %v7149, %v7230
        %v7361 = vsub.f32 %v7152, %v7230
        %v7362 = vsub.f32 %v7154, %v7230
        %v7363 = vsub.f32 %v7157, %v7230
        %v7364 = vsub.f32 %v7159, %v7230
        %v7365 = vmul.f32 %v7230, %v7230
        %v7366 = vsub.f32 %v7332, %v7365
        %v7367 = vadd.f32 %v7366, 1e-05
        %v7368 = vrsqrt.pop %v7367
        %v7369 = vmul.f32 %v7368, %v7367
        %v7370 = vmul.f32 %v7369, %v7368
        %v7371 = vmul.f32 0.5, %v7370
        %v7372 = vsub.f32 1.5, %v7371
        %v7373 = vmul.f32 %v7368, %v7372
        %vm7374 = vweird.f32 %v7367
        %vm7375 = vweird.f32 %v7368
        %vm7376 = vmor %vm7374, %vm7375
        %v7377 = vsel %vm7376, %v7368, %v7373
        %v7378 = vmul.f32 %v7333, %v7377
        %v7379 = vmul.f32 %v7334, %v7377
        %v7380 = vmul.f32 %v7335, %v7377
        %v7381 = vmul.f32 %v7336, %v7377
        %v7382 = vmul.f32 %v7337, %v7377
        %v7383 = vmul.f32 %v7338, %v7377
        %v7384 = vmul.f32 %v7339, %v7377
        %v7385 = vmul.f32 %v7340, %v7377
        %v7386 = vmul.f32 %v7341, %v7377
        %v7387 = vmul.f32 %v7342, %v7377
        %v7388 = vmul.f32 %v7343, %v7377
        %v7389 = vmul.f32 %v7344, %v7377
        %v7390 = vmul.f32 %v7345, %v7377
        %v7391 = vmul.f32 %v7346, %v7377
        %v7392 = vmul.f32 %v7347, %v7377
        %v7393 = vmul.f32 %v7348, %v7377
        %v7394 = vmul.f32 %v7349, %v7377
        %v7395 = vmul.f32 %v7350, %v7377
        %v7396 = vmul.f32 %v7351, %v7377
        %v7397 = vmul.f32 %v7352, %v7377
        %v7398 = vmul.f32 %v7353, %v7377
        %v7399 = vmul.f32 %v7354, %v7377
        %v7400 = vmul.f32 %v7355, %v7377
        %v7401 = vmul.f32 %v7356, %v7377
        %v7402 = vmul.f32 %v7357, %v7377
        %v7403 = vmul.f32 %v7358, %v7377
        %v7404 = vmul.f32 %v7359, %v7377
        %v7405 = vmul.f32 %v7360, %v7377
        %v7406 = vmul.f32 %v7361, %v7377
        %v7407 = vmul.f32 %v7362, %v7377
        %v7408 = vmul.f32 %v7363, %v7377
        %v7409 = vmul.f32 %v7364, %v7377
        %v7410 = vpack.c.bf16 %v7378, %v7378
        %v7411 = vpack.c.bf16 %v7379, %v7379
        %v7412 = vpack.c.bf16 %v7380, %v7380
        %v7413 = vpack.c.bf16 %v7381, %v7381
        %v7414 = vpack.c.bf16 %v7382, %v7382
        %v7415 = vpack.c.bf16 %v7383, %v7383
        %v7416 = vpack.c.bf16 %v7384, %v7384
        %v7417 = vpack.c.bf16 %v7385, %v7385
        %v7418 = vpack.c.bf16 %v7386, %v7386
        %v7419 = vpack.c.bf16 %v7387, %v7387
        %v7420 = vpack.c.bf16 %v7388, %v7388
        %v7421 = vpack.c.bf16 %v7389, %v7389
        %v7422 = vpack.c.bf16 %v7390, %v7390
        %v7423 = vpack.c.bf16 %v7391, %v7391
        %v7424 = vpack.c.bf16 %v7392, %v7392
        %v7425 = vpack.c.bf16 %v7393, %v7393
        %v7426 = vpack.c.bf16 %v7394, %v7394
        %v7427 = vpack.c.bf16 %v7395, %v7395
        %v7428 = vpack.c.bf16 %v7396, %v7396
        %v7429 = vpack.c.bf16 %v7397, %v7397
        %v7430 = vpack.c.bf16 %v7398, %v7398
        %v7431 = vpack.c.bf16 %v7399, %v7399
        %v7432 = vpack.c.bf16 %v7400, %v7400
        %v7433 = vpack.c.bf16 %v7401, %v7401
        %v7434 = vpack.c.bf16 %v7402, %v7402
        %v7435 = vpack.c.bf16 %v7403, %v7403
        %v7436 = vpack.c.bf16 %v7404, %v7404
        %v7437 = vpack.c.bf16 %v7405, %v7405
        %v7438 = vpack.c.bf16 %v7406, %v7406
        %v7439 = vpack.c.bf16 %v7407, %v7407
        %v7440 = vpack.c.bf16 %v7408, %v7408
        %v7441 = vpack.c.bf16 %v7409, %v7409
        %v7442 = vunpack.c.l.bf16 %v7410
        %v7443 = vunpack.c.l.bf16 %v7411
        %v7444 = vunpack.c.l.bf16 %v7412
        %v7445 = vunpack.c.l.bf16 %v7413
        %v7446 = vunpack.c.l.bf16 %v7414
        %v7447 = vunpack.c.l.bf16 %v7415
        %v7448 = vunpack.c.l.bf16 %v7416
        %v7449 = vunpack.c.l.bf16 %v7417
        %v7450 = vunpack.c.l.bf16 %v7418
        %v7451 = vunpack.c.l.bf16 %v7419
        %v7452 = vunpack.c.l.bf16 %v7420
        %v7453 = vunpack.c.l.bf16 %v7421
        %v7454 = vunpack.c.l.bf16 %v7422
        %v7455 = vunpack.c.l.bf16 %v7423
        %v7456 = vunpack.c.l.bf16 %v7424
        %v7457 = vunpack.c.l.bf16 %v7425
        %v7458 = vunpack.c.l.bf16 %v7426
        %v7459 = vunpack.c.l.bf16 %v7427
        %v7460 = vunpack.c.l.bf16 %v7428
        %v7461 = vunpack.c.l.bf16 %v7429
        %v7462 = vunpack.c.l.bf16 %v7430
        %v7463 = vunpack.c.l.bf16 %v7431
        %v7464 = vunpack.c.l.bf16 %v7432
        %v7465 = vunpack.c.l.bf16 %v7433
        %v7466 = vunpack.c.l.bf16 %v7434
        %v7467 = vunpack.c.l.bf16 %v7435
        %v7468 = vunpack.c.l.bf16 %v7436
        %v7469 = vunpack.c.l.bf16 %v7437
        %v7470 = vunpack.c.l.bf16 %v7438
        %v7471 = vunpack.c.l.bf16 %v7439
        %v7472 = vunpack.c.l.bf16 %v7440
        %v7473 = vunpack.c.l.bf16 %v7441
        %v7474 = vmax.f32 %v7442, 0.0
        %v7475 = vmax.f32 %v7443, 0.0
        %v7476 = vmax.f32 %v7444, 0.0
        %v7477 = vmax.f32 %v7445, 0.0
        %v7478 = vmax.f32 %v7446, 0.0
        %v7479 = vmax.f32 %v7447, 0.0
        %v7480 = vmax.f32 %v7448, 0.0
        %v7481 = vmax.f32 %v7449, 0.0
        %v7482 = vmax.f32 %v7450, 0.0
        %v7483 = vmax.f32 %v7451, 0.0
        %v7484 = vmax.f32 %v7452, 0.0
        %v7485 = vmax.f32 %v7453, 0.0
        %v7486 = vmax.f32 %v7454, 0.0
        %v7487 = vmax.f32 %v7455, 0.0
        %v7488 = vmax.f32 %v7456, 0.0
        %v7489 = vmax.f32 %v7457, 0.0
        %v7490 = vmax.f32 %v7458, 0.0
        %v7491 = vmax.f32 %v7459, 0.0
        %v7492 = vmax.f32 %v7460, 0.0
        %v7493 = vmax.f32 %v7461, 0.0
        %v7494 = vmax.f32 %v7462, 0.0
        %v7495 = vmax.f32 %v7463, 0.0
        %v7496 = vmax.f32 %v7464, 0.0
        %v7497 = vmax.f32 %v7465, 0.0
        %v7498 = vmax.f32 %v7466, 0.0
        %v7499 = vmax.f32 %v7467, 0.0
        %v7500 = vmax.f32 %v7468, 0.0
        %v7501 = vmax.f32 %v7469, 0.0
        %v7502 = vmax.f32 %v7470, 0.0
        %v7503 = vmax.f32 %v7471, 0.0
        %v7504 = vmax.f32 %v7472, 0.0
        %v7505 = vmax.f32 %v7473, 0.0
        %v7506 = vpack.c.bf16 %v7475, %v7474
        %v7507 = vpack.c.bf16 %v7477, %v7476
        %v7508 = vpack.c.bf16 %v7479, %v7478
        %v7509 = vpack.c.bf16 %v7481, %v7480
        %v7510 = vpack.c.bf16 %v7483, %v7482
        %v7511 = vpack.c.bf16 %v7485, %v7484
        %v7512 = vpack.c.bf16 %v7487, %v7486
        %v7513 = vpack.c.bf16 %v7489, %v7488
        %v7514 = vpack.c.bf16 %v7491, %v7490
        %v7515 = vpack.c.bf16 %v7493, %v7492
        %v7516 = vpack.c.bf16 %v7495, %v7494
        %v7517 = vpack.c.bf16 %v7497, %v7496
        %v7518 = vpack.c.bf16 %v7499, %v7498
        %v7519 = vpack.c.bf16 %v7501, %v7500
        %v7520 = vpack.c.bf16 %v7503, %v7502
        %v7521 = vpack.c.bf16 %v7505, %v7504
        %v7522 = vld [vmem:[%s16] sm:$0xf]
        %v7523 = vld [vmem:[%s16 + $0x4] sm:$0xf]
        %v7524 = vld [vmem:[%s16 + $0x8] sm:$0xf]
        %v7525 = vld [vmem:[%s16 + $0xc] sm:$0xf]
        %v7526 = vld [vmem:[%s16 + $0x10] sm:$0xf]
        %v7527 = vld [vmem:[%s16 + $0x14] sm:$0xf]
        %v7528 = vld [vmem:[%s16 + $0x18] sm:$0xf]
        %v7529 = vld [vmem:[%s16 + $0x1c] sm:$0xf]
        %v7530 = vld [vmem:[%s17] sm:$0x1]
        %v7532 = vperm.slane %v7530, 0
        %v7542 = vunpack.c.l.b16 %v7522
        %v7543 = vunpack.c.l.b16 %v7523
        %v7544 = vunpack.c.l.b16 %v7524
        %v7545 = vunpack.c.l.b16 %v7525
        %v7546 = vunpack.c.l.b16 %v7526
        %v7547 = vunpack.c.l.b16 %v7527
        %v7548 = vunpack.c.l.b16 %v7528
        %v7549 = vunpack.c.l.b16 %v7529
        %v7550 = vpack.c.b16 %v7543, %v7542
        %v7551 = vpack.c.b16 %v7545, %v7544
        %v7552 = vpack.c.b16 %v7547, %v7546
        %v7553 = vpack.c.b16 %v7549, %v7548
        %v7559 = vsel %vm897, %v7506, 0
        %v7562 = vsel %vm897, %v7507, 0
        %v7565 = vsel %vm897, %v7508, 0
        %v7568 = vsel %vm897, %v7509, 0
        %v7571 = vsel %vm897, %v7510, 0
        %v7574 = vsel %vm897, %v7511, 0
        %v7577 = vsel %vm897, %v7512, 0
        %v7580 = vsel %vm897, %v7513, 0
        %v7583 = vsel %vm897, %v7514, 0
        %v7586 = vsel %vm897, %v7515, 0
        %v7589 = vsel %vm897, %v7516, 0
        %v7592 = vsel %vm897, %v7517, 0
        %v7595 = vsel %vm897, %v7518, 0
        %v7598 = vsel %vm897, %v7519, 0
        %v7601 = vsel %vm897, %v7520, 0
        %v7604 = vsel %vm897, %v7521, 0
        %7606 = vmatpush.bf16.msra.mxu0 0
        %7607 = vmatpush.bf16.msra.mxu0 0
        %7608 = vmatpush.bf16.msra.mxu0 0
        %7609 = vmatpush.bf16.msra.mxu0 0
        %7610 = vmatpush.bf16.msra.mxu0 %v7553
        %7611 = vmatpush.bf16.msra.mxu0 %v7552
        %7612 = vmatpush.bf16.msra.mxu0 %v7551
        %7613 = vmatpush.bf16.msra.mxu0 %v7550
        %7614 = vmatmul.bf16.gmra.mxu0 %v7559
        %v7615 = vpop.f32.mrf.mxu0
        %v7616 = vadd.f32 %v7532, %v7615
        %v7617 = vpop.f32.mrf.mxu0
        %v7618 = vadd.f32 %v7532, %v7617
        %7619 = vmatmul.bf16.gmra.mxu0 %v7562
        %v7620 = vpop.f32.mrf.mxu0
        %v7621 = vadd.f32 %v7532, %v7620
        %v7622 = vpop.f32.mrf.mxu0
        %v7623 = vadd.f32 %v7532, %v7622
        %7624 = vmatmul.bf16.gmra.mxu0 %v7565
        %v7625 = vpop.f32.mrf.mxu0
        %v7626 = vadd.f32 %v7532, %v7625
        %v7627 = vpop.f32.mrf.mxu0
        %v7628 = vadd.f32 %v7532, %v7627
        %7629 = vmatmul.bf16.gmra.mxu0 %v7568
        %v7630 = vpop.f32.mrf.mxu0
        %v7631 = vadd.f32 %v7532, %v7630
        %v7632 = vpop.f32.mrf.mxu0
        %v7633 = vadd.f32 %v7532, %v7632
        %7634 = vmatmul.bf16.gmra.mxu0 %v7571
        %v7635 = vpop.f32.mrf.mxu0
        %v7636 = vadd.f32 %v7532, %v7635
        %v7637 = vpop.f32.mrf.mxu0
        %v7638 = vadd.f32 %v7532, %v7637
        %7639 = vmatmul.bf16.gmra.mxu0 %v7574
        %v7640 = vpop.f32.mrf.mxu0
        %v7641 = vadd.f32 %v7532, %v7640
        %v7642 = vpop.f32.mrf.mxu0
        %v7643 = vadd.f32 %v7532, %v7642
        %7644 = vmatmul.bf16.gmra.mxu0 %v7577
        %v7645 = vpop.f32.mrf.mxu0
        %v7646 = vadd.f32 %v7532, %v7645
        %v7647 = vpop.f32.mrf.mxu0
        %v7648 = vadd.f32 %v7532, %v7647
        %7649 = vmatmul.bf16.gmra.mxu0 %v7580
        %v7650 = vpop.f32.mrf.mxu0
        %v7651 = vadd.f32 %v7532, %v7650
        %v7652 = vpop.f32.mrf.mxu0
        %v7653 = vadd.f32 %v7532, %v7652
        %7654 = vmatmul.bf16.gmra.mxu0 %v7583
        %v7655 = vpop.f32.mrf.mxu0
        %v7656 = vadd.f32 %v7532, %v7655
        %v7657 = vpop.f32.mrf.mxu0
        %v7658 = vadd.f32 %v7532, %v7657
        %7659 = vmatmul.bf16.gmra.mxu0 %v7586
        %v7660 = vpop.f32.mrf.mxu0
        %v7661 = vadd.f32 %v7532, %v7660
        %v7662 = vpop.f32.mrf.mxu0
        %v7663 = vadd.f32 %v7532, %v7662
        %7664 = vmatmul.bf16.gmra.mxu0 %v7589
        %v7665 = vpop.f32.mrf.mxu0
        %v7666 = vadd.f32 %v7532, %v7665
        %v7667 = vpop.f32.mrf.mxu0
        %v7668 = vadd.f32 %v7532, %v7667
        %7669 = vmatmul.bf16.gmra.mxu0 %v7592
        %v7670 = vpop.f32.mrf.mxu0
        %v7671 = vadd.f32 %v7532, %v7670
        %v7672 = vpop.f32.mrf.mxu0
        %v7673 = vadd.f32 %v7532, %v7672
        %7674 = vmatmul.bf16.gmra.mxu0 %v7595
        %v7675 = vpop.f32.mrf.mxu0
        %v7676 = vadd.f32 %v7532, %v7675
        %v7677 = vpop.f32.mrf.mxu0
        %v7678 = vadd.f32 %v7532, %v7677
        %7679 = vmatmul.bf16.gmra.mxu0 %v7598
        %v7680 = vpop.f32.mrf.mxu0
        %v7681 = vadd.f32 %v7532, %v7680
        %v7682 = vpop.f32.mrf.mxu0
        %v7683 = vadd.f32 %v7532, %v7682
        %7684 = vmatmul.bf16.gmra.mxu0 %v7601
        %v7685 = vpop.f32.mrf.mxu0
        %v7686 = vadd.f32 %v7532, %v7685
        %v7687 = vpop.f32.mrf.mxu0
        %v7688 = vadd.f32 %v7532, %v7687
        %7689 = vmatmul.bf16.gmra.mxu0 %v7604
        %v7690 = vpop.f32.mrf.mxu0
        %v7691 = vadd.f32 %v7532, %v7690
        %v7692 = vpop.f32.mrf.mxu0
        %v7693 = vadd.f32 %v7532, %v7692
        %7694 = vdwg.mxu0
        %v7695 = vadd.f32 %v7616, %v7618
        %v7696 = vadd.f32 %v7695, %v7621
        %v7697 = vadd.f32 %v7696, %v7623
        %v7698 = vadd.f32 %v7697, %v7626
        %v7699 = vadd.f32 %v7698, %v7628
        %v7700 = vadd.f32 %v7699, %v7631
        %v7701 = vadd.f32 %v7700, %v7633
        %v7702 = vadd.f32 %v7701, %v7636
        %v7703 = vadd.f32 %v7702, %v7638
        %v7704 = vadd.f32 %v7703, %v7641
        %v7705 = vadd.f32 %v7704, %v7643
        %v7706 = vadd.f32 %v7705, %v7646
        %v7707 = vadd.f32 %v7706, %v7648
        %v7708 = vadd.f32 %v7707, %v7651
        %v7709 = vadd.f32 %v7708, %v7653
        %v7710 = vadd.f32 %v7709, %v7656
        %v7711 = vadd.f32 %v7710, %v7658
        %v7712 = vadd.f32 %v7711, %v7661
        %v7713 = vadd.f32 %v7712, %v7663
        %v7714 = vadd.f32 %v7713, %v7666
        %v7715 = vadd.f32 %v7714, %v7668
        %v7716 = vadd.f32 %v7715, %v7671
        %v7717 = vadd.f32 %v7716, %v7673
        %v7718 = vadd.f32 %v7717, %v7676
        %v7719 = vadd.f32 %v7718, %v7678
        %v7720 = vadd.f32 %v7719, %v7681
        %v7721 = vadd.f32 %v7720, %v7683
        %v7722 = vadd.f32 %v7721, %v7686
        %v7723 = vadd.f32 %v7722, %v7688
        %v7724 = vadd.f32 %v7723, %v7691
        %v7725 = vadd.f32 %v7724, %v7693
        %v7726 = vrot.slane %v7725, 4
        %v7727 = vadd.f32 %v7725, %v7726
        %v7728 = vrot.slane %v7727, 2
        %v7729 = vadd.f32 %v7727, %v7728
        %v7730 = vrot.slane %v7729, 1
        %v7731 = vadd.f32 %v7729, %v7730
        %v7732 = vmul.f32 %v7731, 0.00390625
        %v7733 = vmul.f32 %v7616, %v7616
        %v7734 = vmul.f32 %v7618, %v7618
        %v7735 = vmul.f32 %v7621, %v7621
        %v7736 = vmul.f32 %v7623, %v7623
        %v7737 = vmul.f32 %v7626, %v7626
        %v7738 = vmul.f32 %v7628, %v7628
        %v7739 = vmul.f32 %v7631, %v7631
        %v7740 = vmul.f32 %v7633, %v7633
        %v7741 = vmul.f32 %v7636, %v7636
        %v7742 = vmul.f32 %v7638, %v7638
        %v7743 = vmul.f32 %v7641, %v7641
        %v7744 = vmul.f32 %v7643, %v7643
        %v7745 = vmul.f32 %v7646, %v7646
        %v7746 = vmul.f32 %v7648, %v7648
        %v7747 = vmul.f32 %v7651, %v7651
        %v7748 = vmul.f32 %v7653, %v7653
        %v7749 = vmul.f32 %v7656, %v7656
        %v7750 = vmul.f32 %v7658, %v7658
        %v7751 = vmul.f32 %v7661, %v7661
        %v7752 = vmul.f32 %v7663, %v7663
        %v7753 = vmul.f32 %v7666, %v7666
        %v7754 = vmul.f32 %v7668, %v7668
        %v7755 = vmul.f32 %v7671, %v7671
        %v7756 = vmul.f32 %v7673, %v7673
        %v7757 = vmul.f32 %v7676, %v7676
        %v7758 = vmul.f32 %v7678, %v7678
        %v7759 = vmul.f32 %v7681, %v7681
        %v7760 = vmul.f32 %v7683, %v7683
        %v7761 = vmul.f32 %v7686, %v7686
        %v7762 = vmul.f32 %v7688, %v7688
        %v7763 = vmul.f32 %v7691, %v7691
        %v7764 = vmul.f32 %v7693, %v7693
        %v7765 = vadd.f32 %v7733, %v7734
        %v7766 = vadd.f32 %v7765, %v7735
        %v7767 = vadd.f32 %v7766, %v7736
        %v7768 = vadd.f32 %v7767, %v7737
        %v7769 = vadd.f32 %v7768, %v7738
        %v7770 = vadd.f32 %v7769, %v7739
        %v7771 = vadd.f32 %v7770, %v7740
        %v7772 = vadd.f32 %v7771, %v7741
        %v7773 = vadd.f32 %v7772, %v7742
        %v7774 = vadd.f32 %v7773, %v7743
        %v7775 = vadd.f32 %v7774, %v7744
        %v7776 = vadd.f32 %v7775, %v7745
        %v7777 = vadd.f32 %v7776, %v7746
        %v7778 = vadd.f32 %v7777, %v7747
        %v7779 = vadd.f32 %v7778, %v7748
        %v7780 = vadd.f32 %v7779, %v7749
        %v7781 = vadd.f32 %v7780, %v7750
        %v7782 = vadd.f32 %v7781, %v7751
        %v7783 = vadd.f32 %v7782, %v7752
        %v7784 = vadd.f32 %v7783, %v7753
        %v7785 = vadd.f32 %v7784, %v7754
        %v7786 = vadd.f32 %v7785, %v7755
        %v7787 = vadd.f32 %v7786, %v7756
        %v7788 = vadd.f32 %v7787, %v7757
        %v7789 = vadd.f32 %v7788, %v7758
        %v7790 = vadd.f32 %v7789, %v7759
        %v7791 = vadd.f32 %v7790, %v7760
        %v7792 = vadd.f32 %v7791, %v7761
        %v7793 = vadd.f32 %v7792, %v7762
        %v7794 = vadd.f32 %v7793, %v7763
        %v7795 = vadd.f32 %v7794, %v7764
        %v7796 = vrot.slane %v7795, 4
        %v7797 = vadd.f32 %v7795, %v7796
        %v7798 = vrot.slane %v7797, 2
        %v7799 = vadd.f32 %v7797, %v7798
        %v7800 = vrot.slane %v7799, 1
        %v7801 = vadd.f32 %v7799, %v7800
        %v7802 = vmul.f32 %v7801, 0.00390625
        %v7803 = vsub.f32 %v7616, %v7732
        %v7804 = vsub.f32 %v7618, %v7732
        %v7805 = vsub.f32 %v7621, %v7732
        %v7806 = vsub.f32 %v7623, %v7732
        %v7807 = vsub.f32 %v7626, %v7732
        %v7808 = vsub.f32 %v7628, %v7732
        %v7809 = vsub.f32 %v7631, %v7732
        %v7810 = vsub.f32 %v7633, %v7732
        %v7811 = vsub.f32 %v7636, %v7732
        %v7812 = vsub.f32 %v7638, %v7732
        %v7813 = vsub.f32 %v7641, %v7732
        %v7814 = vsub.f32 %v7643, %v7732
        %v7815 = vsub.f32 %v7646, %v7732
        %v7816 = vsub.f32 %v7648, %v7732
        %v7817 = vsub.f32 %v7651, %v7732
        %v7818 = vsub.f32 %v7653, %v7732
        %v7819 = vsub.f32 %v7656, %v7732
        %v7820 = vsub.f32 %v7658, %v7732
        %v7821 = vsub.f32 %v7661, %v7732
        %v7822 = vsub.f32 %v7663, %v7732
        %v7823 = vsub.f32 %v7666, %v7732
        %v7824 = vsub.f32 %v7668, %v7732
        %v7825 = vsub.f32 %v7671, %v7732
        %v7826 = vsub.f32 %v7673, %v7732
        %v7827 = vsub.f32 %v7676, %v7732
        %v7828 = vsub.f32 %v7678, %v7732
        %v7829 = vsub.f32 %v7681, %v7732
        %v7830 = vsub.f32 %v7683, %v7732
        %v7831 = vsub.f32 %v7686, %v7732
        %v7832 = vsub.f32 %v7688, %v7732
        %v7833 = vsub.f32 %v7691, %v7732
        %v7834 = vsub.f32 %v7693, %v7732
        %v7835 = vmul.f32 %v7732, %v7732
        %v7836 = vsub.f32 %v7802, %v7835
        %v7837 = vadd.f32 %v7836, 1e-05
        %v7838 = vrsqrt.pop %v7837
        %v7839 = vmul.f32 %v7838, %v7837
        %v7840 = vmul.f32 %v7839, %v7838
        %v7841 = vmul.f32 0.5, %v7840
        %v7842 = vsub.f32 1.5, %v7841
        %v7843 = vmul.f32 %v7838, %v7842
        %vm7844 = vweird.f32 %v7837
        %vm7845 = vweird.f32 %v7838
        %vm7846 = vmor %vm7844, %vm7845
        %v7847 = vsel %vm7846, %v7838, %v7843
        %v7848 = vmul.f32 %v7803, %v7847
        %v7849 = vmul.f32 %v7804, %v7847
        %v7850 = vmul.f32 %v7805, %v7847
        %v7851 = vmul.f32 %v7806, %v7847
        %v7852 = vmul.f32 %v7807, %v7847
        %v7853 = vmul.f32 %v7808, %v7847
        %v7854 = vmul.f32 %v7809, %v7847
        %v7855 = vmul.f32 %v7810, %v7847
        %v7856 = vmul.f32 %v7811, %v7847
        %v7857 = vmul.f32 %v7812, %v7847
        %v7858 = vmul.f32 %v7813, %v7847
        %v7859 = vmul.f32 %v7814, %v7847
        %v7860 = vmul.f32 %v7815, %v7847
        %v7861 = vmul.f32 %v7816, %v7847
        %v7862 = vmul.f32 %v7817, %v7847
        %v7863 = vmul.f32 %v7818, %v7847
        %v7864 = vmul.f32 %v7819, %v7847
        %v7865 = vmul.f32 %v7820, %v7847
        %v7866 = vmul.f32 %v7821, %v7847
        %v7867 = vmul.f32 %v7822, %v7847
        %v7868 = vmul.f32 %v7823, %v7847
        %v7869 = vmul.f32 %v7824, %v7847
        %v7870 = vmul.f32 %v7825, %v7847
        %v7871 = vmul.f32 %v7826, %v7847
        %v7872 = vmul.f32 %v7827, %v7847
        %v7873 = vmul.f32 %v7828, %v7847
        %v7874 = vmul.f32 %v7829, %v7847
        %v7875 = vmul.f32 %v7830, %v7847
        %v7876 = vmul.f32 %v7831, %v7847
        %v7877 = vmul.f32 %v7832, %v7847
        %v7878 = vmul.f32 %v7833, %v7847
        %v7879 = vmul.f32 %v7834, %v7847
        %v7880 = vpack.c.bf16 %v7848, %v7848
        %v7881 = vpack.c.bf16 %v7849, %v7849
        %v7882 = vpack.c.bf16 %v7850, %v7850
        %v7883 = vpack.c.bf16 %v7851, %v7851
        %v7884 = vpack.c.bf16 %v7852, %v7852
        %v7885 = vpack.c.bf16 %v7853, %v7853
        %v7886 = vpack.c.bf16 %v7854, %v7854
        %v7887 = vpack.c.bf16 %v7855, %v7855
        %v7888 = vpack.c.bf16 %v7856, %v7856
        %v7889 = vpack.c.bf16 %v7857, %v7857
        %v7890 = vpack.c.bf16 %v7858, %v7858
        %v7891 = vpack.c.bf16 %v7859, %v7859
        %v7892 = vpack.c.bf16 %v7860, %v7860
        %v7893 = vpack.c.bf16 %v7861, %v7861
        %v7894 = vpack.c.bf16 %v7862, %v7862
        %v7895 = vpack.c.bf16 %v7863, %v7863
        %v7896 = vpack.c.bf16 %v7864, %v7864
        %v7897 = vpack.c.bf16 %v7865, %v7865
        %v7898 = vpack.c.bf16 %v7866, %v7866
        %v7899 = vpack.c.bf16 %v7867, %v7867
        %v7900 = vpack.c.bf16 %v7868, %v7868
        %v7901 = vpack.c.bf16 %v7869, %v7869
        %v7902 = vpack.c.bf16 %v7870, %v7870
        %v7903 = vpack.c.bf16 %v7871, %v7871
        %v7904 = vpack.c.bf16 %v7872, %v7872
        %v7905 = vpack.c.bf16 %v7873, %v7873
        %v7906 = vpack.c.bf16 %v7874, %v7874
        %v7907 = vpack.c.bf16 %v7875, %v7875
        %v7908 = vpack.c.bf16 %v7876, %v7876
        %v7909 = vpack.c.bf16 %v7877, %v7877
        %v7910 = vpack.c.bf16 %v7878, %v7878
        %v7911 = vpack.c.bf16 %v7879, %v7879
        %v7912 = vunpack.c.l.bf16 %v7880
        %v7913 = vunpack.c.l.bf16 %v7881
        %v7914 = vunpack.c.l.bf16 %v7882
        %v7915 = vunpack.c.l.bf16 %v7883
        %v7916 = vunpack.c.l.bf16 %v7884
        %v7917 = vunpack.c.l.bf16 %v7885
        %v7918 = vunpack.c.l.bf16 %v7886
        %v7919 = vunpack.c.l.bf16 %v7887
        %v7920 = vunpack.c.l.bf16 %v7888
        %v7921 = vunpack.c.l.bf16 %v7889
        %v7922 = vunpack.c.l.bf16 %v7890
        %v7923 = vunpack.c.l.bf16 %v7891
        %v7924 = vunpack.c.l.bf16 %v7892
        %v7925 = vunpack.c.l.bf16 %v7893
        %v7926 = vunpack.c.l.bf16 %v7894
        %v7927 = vunpack.c.l.bf16 %v7895
        %v7928 = vunpack.c.l.bf16 %v7896
        %v7929 = vunpack.c.l.bf16 %v7897
        %v7930 = vunpack.c.l.bf16 %v7898
        %v7931 = vunpack.c.l.bf16 %v7899
        %v7932 = vunpack.c.l.bf16 %v7900
        %v7933 = vunpack.c.l.bf16 %v7901
        %v7934 = vunpack.c.l.bf16 %v7902
        %v7935 = vunpack.c.l.bf16 %v7903
        %v7936 = vunpack.c.l.bf16 %v7904
        %v7937 = vunpack.c.l.bf16 %v7905
        %v7938 = vunpack.c.l.bf16 %v7906
        %v7939 = vunpack.c.l.bf16 %v7907
        %v7940 = vunpack.c.l.bf16 %v7908
        %v7941 = vunpack.c.l.bf16 %v7909
        %v7942 = vunpack.c.l.bf16 %v7910
        %v7943 = vunpack.c.l.bf16 %v7911
        %v7944 = vmax.f32 %v7912, 0.0
        %v7945 = vmax.f32 %v7913, 0.0
        %v7946 = vmax.f32 %v7914, 0.0
        %v7947 = vmax.f32 %v7915, 0.0
        %v7948 = vmax.f32 %v7916, 0.0
        %v7949 = vmax.f32 %v7917, 0.0
        %v7950 = vmax.f32 %v7918, 0.0
        %v7951 = vmax.f32 %v7919, 0.0
        %v7952 = vmax.f32 %v7920, 0.0
        %v7953 = vmax.f32 %v7921, 0.0
        %v7954 = vmax.f32 %v7922, 0.0
        %v7955 = vmax.f32 %v7923, 0.0
        %v7956 = vmax.f32 %v7924, 0.0
        %v7957 = vmax.f32 %v7925, 0.0
        %v7958 = vmax.f32 %v7926, 0.0
        %v7959 = vmax.f32 %v7927, 0.0
        %v7960 = vmax.f32 %v7928, 0.0
        %v7961 = vmax.f32 %v7929, 0.0
        %v7962 = vmax.f32 %v7930, 0.0
        %v7963 = vmax.f32 %v7931, 0.0
        %v7964 = vmax.f32 %v7932, 0.0
        %v7965 = vmax.f32 %v7933, 0.0
        %v7966 = vmax.f32 %v7934, 0.0
        %v7967 = vmax.f32 %v7935, 0.0
        %v7968 = vmax.f32 %v7936, 0.0
        %v7969 = vmax.f32 %v7937, 0.0
        %v7970 = vmax.f32 %v7938, 0.0
        %v7971 = vmax.f32 %v7939, 0.0
        %v7972 = vmax.f32 %v7940, 0.0
        %v7973 = vmax.f32 %v7941, 0.0
        %v7974 = vmax.f32 %v7942, 0.0
        %v7975 = vmax.f32 %v7943, 0.0
        %v7976 = vpack.c.bf16 %v7945, %v7944
        %v7977 = vpack.c.bf16 %v7947, %v7946
        %v7978 = vpack.c.bf16 %v7949, %v7948
        %v7979 = vpack.c.bf16 %v7951, %v7950
        %v7980 = vpack.c.bf16 %v7953, %v7952
        %v7981 = vpack.c.bf16 %v7955, %v7954
        %v7982 = vpack.c.bf16 %v7957, %v7956
        %v7983 = vpack.c.bf16 %v7959, %v7958
        %v7984 = vpack.c.bf16 %v7961, %v7960
        %v7985 = vpack.c.bf16 %v7963, %v7962
        %v7986 = vpack.c.bf16 %v7965, %v7964
        %v7987 = vpack.c.bf16 %v7967, %v7966
        %v7988 = vpack.c.bf16 %v7969, %v7968
        %v7989 = vpack.c.bf16 %v7971, %v7970
        %v7990 = vpack.c.bf16 %v7973, %v7972
        %v7991 = vpack.c.bf16 %v7975, %v7974
        %v7992 = vld [vmem:[#allocation4] sm:$0xff]
        %v7993 = vld [vmem:[#allocation4 + $0x8] sm:$0xff]
        %v7994 = vld [vmem:[#allocation4 + $0x10] sm:$0xff]
        %v7995 = vld [vmem:[#allocation4 + $0x18] sm:$0xff]
        %v7996 = vld [vmem:[#allocation4 + $0x20] sm:$0xff]
        %v7997 = vld [vmem:[#allocation4 + $0x28] sm:$0xff]
        %v7998 = vld [vmem:[#allocation4 + $0x30] sm:$0xff]
        %v7999 = vld [vmem:[#allocation4 + $0x38] sm:$0xff]
        %v8000 = vld [vmem:[#allocation4 + $0x40] sm:$0xff]
        %v8001 = vld [vmem:[#allocation4 + $0x48] sm:$0xff]
        %v8002 = vld [vmem:[#allocation4 + $0x50] sm:$0xff]
        %v8003 = vld [vmem:[#allocation4 + $0x58] sm:$0xff]
        %v8004 = vld [vmem:[#allocation4 + $0x60] sm:$0xff]
        %v8005 = vld [vmem:[#allocation4 + $0x68] sm:$0xff]
        %v8006 = vld [vmem:[#allocation4 + $0x70] sm:$0xff]
        %v8007 = vld [vmem:[#allocation4 + $0x78] sm:$0xff]
        %v8008 = vld [vmem:[#allocation4 + $0x80] sm:$0xff]
        %v8009 = vld [vmem:[#allocation4 + $0x88] sm:$0xff]
        %v8010 = vld [vmem:[#allocation4 + $0x90] sm:$0xff]
        %v8011 = vld [vmem:[#allocation4 + $0x98] sm:$0xff]
        %v8012 = vld [vmem:[#allocation4 + $0xa0] sm:$0xff]
        %v8013 = vld [vmem:[#allocation4 + $0xa8] sm:$0xff]
        %v8014 = vld [vmem:[#allocation4 + $0xb0] sm:$0xff]
        %v8015 = vld [vmem:[#allocation4 + $0xb8] sm:$0xff]
        %v8016 = vld [vmem:[#allocation4 + $0xc0] sm:$0xff]
        %v8017 = vld [vmem:[#allocation4 + $0xc8] sm:$0xff]
        %v8018 = vld [vmem:[#allocation4 + $0xd0] sm:$0xff]
        %v8019 = vld [vmem:[#allocation4 + $0xd8] sm:$0xff]
        %v8020 = vld [vmem:[#allocation4 + $0xe0] sm:$0xff]
        %v8021 = vld [vmem:[#allocation4 + $0xe8] sm:$0xff]
        %v8022 = vld [vmem:[#allocation4 + $0xf0] sm:$0xff]
        %v8023 = vld [vmem:[#allocation4 + $0xf8] sm:$0xff]
        %v8024 = vld [vmem:[#allocation4 + $0x100] sm:$0xff]
        %v8025 = vld [vmem:[#allocation4 + $0x108] sm:$0xff]
        %v8026 = vld [vmem:[#allocation4 + $0x110] sm:$0xff]
        %v8027 = vld [vmem:[#allocation4 + $0x118] sm:$0xff]
        %v8028 = vld [vmem:[#allocation4 + $0x120] sm:$0xff]
        %v8029 = vld [vmem:[#allocation4 + $0x128] sm:$0xff]
        %v8030 = vld [vmem:[#allocation4 + $0x130] sm:$0xff]
        %v8031 = vld [vmem:[#allocation4 + $0x138] sm:$0xff]
        %v8032 = vld [vmem:[#allocation4 + $0x140] sm:$0xff]
        %v8033 = vld [vmem:[#allocation4 + $0x148] sm:$0xff]
        %v8034 = vld [vmem:[#allocation4 + $0x150] sm:$0xff]
        %v8035 = vld [vmem:[#allocation4 + $0x158] sm:$0xff]
        %v8036 = vld [vmem:[#allocation4 + $0x160] sm:$0xff]
        %v8037 = vld [vmem:[#allocation4 + $0x168] sm:$0xff]
        %v8038 = vld [vmem:[#allocation4 + $0x170] sm:$0xff]
        %v8039 = vld [vmem:[#allocation4 + $0x178] sm:$0xff]
        %v8040 = vld [vmem:[#allocation4 + $0x180] sm:$0xff]
        %v8041 = vld [vmem:[#allocation4 + $0x188] sm:$0xff]
        %v8042 = vld [vmem:[#allocation4 + $0x190] sm:$0xff]
        %v8043 = vld [vmem:[#allocation4 + $0x198] sm:$0xff]
        %v8044 = vld [vmem:[#allocation4 + $0x1a0] sm:$0xff]
        %v8045 = vld [vmem:[#allocation4 + $0x1a8] sm:$0xff]
        %v8046 = vld [vmem:[#allocation4 + $0x1b0] sm:$0xff]
        %v8047 = vld [vmem:[#allocation4 + $0x1b8] sm:$0xff]
        %v8048 = vld [vmem:[#allocation4 + $0x1c0] sm:$0xff]
        %v8049 = vld [vmem:[#allocation4 + $0x1c8] sm:$0xff]
        %v8050 = vld [vmem:[#allocation4 + $0x1d0] sm:$0xff]
        %v8051 = vld [vmem:[#allocation4 + $0x1d8] sm:$0xff]
        %v8052 = vld [vmem:[#allocation4 + $0x1e0] sm:$0xff]
        %v8053 = vld [vmem:[#allocation4 + $0x1e8] sm:$0xff]
        %v8054 = vld [vmem:[#allocation4 + $0x1f0] sm:$0xff]
        %v8055 = vld [vmem:[#allocation4 + $0x1f8] sm:$0xff]
        %v8056 = vld [vmem:[%s19] sm:$0xff]
        %v8058 = vperm.slane %v8056, 0
        %v8059 = vperm.slane %v8056, 1
        %v8060 = vperm.slane %v8056, 2
        %v8061 = vperm.slane %v8056, 3
        %v8062 = vperm.slane %v8056, 4
        %v8063 = vperm.slane %v8056, 5
        %v8064 = vperm.slane %v8056, 6
        %v8065 = vperm.slane %v8056, 7
        %v8138 = vunpack.c.l.b16 %v7992
        %v8139 = vunpack.c.h.b16 %v7992
        %v8140 = vunpack.c.l.b16 %v7993
        %v8141 = vunpack.c.h.b16 %v7993
        %v8142 = vunpack.c.l.b16 %v7994
        %v8143 = vunpack.c.h.b16 %v7994
        %v8144 = vunpack.c.l.b16 %v7995
        %v8145 = vunpack.c.h.b16 %v7995
        %v8146 = vunpack.c.l.b16 %v7996
        %v8147 = vunpack.c.h.b16 %v7996
        %v8148 = vunpack.c.l.b16 %v7997
        %v8149 = vunpack.c.h.b16 %v7997
        %v8150 = vunpack.c.l.b16 %v7998
        %v8151 = vunpack.c.h.b16 %v7998
        %v8152 = vunpack.c.l.b16 %v7999
        %v8153 = vunpack.c.h.b16 %v7999
        %v8154 = vunpack.c.l.b16 %v8000
        %v8155 = vunpack.c.h.b16 %v8000
        %v8156 = vunpack.c.l.b16 %v8001
        %v8157 = vunpack.c.h.b16 %v8001
        %v8158 = vunpack.c.l.b16 %v8002
        %v8159 = vunpack.c.h.b16 %v8002
        %v8160 = vunpack.c.l.b16 %v8003
        %v8161 = vunpack.c.h.b16 %v8003
        %v8162 = vunpack.c.l.b16 %v8004
        %v8163 = vunpack.c.h.b16 %v8004
        %v8164 = vunpack.c.l.b16 %v8005
        %v8165 = vunpack.c.h.b16 %v8005
        %v8166 = vunpack.c.l.b16 %v8006
        %v8167 = vunpack.c.h.b16 %v8006
        %v8168 = vunpack.c.l.b16 %v8007
        %v8169 = vunpack.c.h.b16 %v8007
        %v8170 = vunpack.c.l.b16 %v8008
        %v8171 = vunpack.c.h.b16 %v8008
        %v8172 = vunpack.c.l.b16 %v8009
        %v8173 = vunpack.c.h.b16 %v8009
        %v8174 = vunpack.c.l.b16 %v8010
        %v8175 = vunpack.c.h.b16 %v8010
        %v8176 = vunpack.c.l.b16 %v8011
        %v8177 = vunpack.c.h.b16 %v8011
        %v8178 = vunpack.c.l.b16 %v8012
        %v8179 = vunpack.c.h.b16 %v8012
        %v8180 = vunpack.c.l.b16 %v8013
        %v8181 = vunpack.c.h.b16 %v8013
        %v8182 = vunpack.c.l.b16 %v8014
        %v8183 = vunpack.c.h.b16 %v8014
        %v8184 = vunpack.c.l.b16 %v8015
        %v8185 = vunpack.c.h.b16 %v8015
        %v8186 = vunpack.c.l.b16 %v8016
        %v8187 = vunpack.c.h.b16 %v8016
        %v8188 = vunpack.c.l.b16 %v8017
        %v8189 = vunpack.c.h.b16 %v8017
        %v8190 = vunpack.c.l.b16 %v8018
        %v8191 = vunpack.c.h.b16 %v8018
        %v8192 = vunpack.c.l.b16 %v8019
        %v8193 = vunpack.c.h.b16 %v8019
        %v8194 = vunpack.c.l.b16 %v8020
        %v8195 = vunpack.c.h.b16 %v8020
        %v8196 = vunpack.c.l.b16 %v8021
        %v8197 = vunpack.c.h.b16 %v8021
        %v8198 = vunpack.c.l.b16 %v8022
        %v8199 = vunpack.c.h.b16 %v8022
        %v8200 = vunpack.c.l.b16 %v8023
        %v8201 = vunpack.c.h.b16 %v8023
        %v8202 = vunpack.c.l.b16 %v8024
        %v8203 = vunpack.c.h.b16 %v8024
        %v8204 = vunpack.c.l.b16 %v8025
        %v8205 = vunpack.c.h.b16 %v8025
        %v8206 = vunpack.c.l.b16 %v8026
        %v8207 = vunpack.c.h.b16 %v8026
        %v8208 = vunpack.c.l.b16 %v8027
        %v8209 = vunpack.c.h.b16 %v8027
        %v8210 = vunpack.c.l.b16 %v8028
        %v8211 = vunpack.c.h.b16 %v8028
        %v8212 = vunpack.c.l.b16 %v8029
        %v8213 = vunpack.c.h.b16 %v8029
        %v8214 = vunpack.c.l.b16 %v8030
        %v8215 = vunpack.c.h.b16 %v8030
        %v8216 = vunpack.c.l.b16 %v8031
        %v8217 = vunpack.c.h.b16 %v8031
        %v8218 = vunpack.c.l.b16 %v8032
        %v8219 = vunpack.c.h.b16 %v8032
        %v8220 = vunpack.c.l.b16 %v8033
        %v8221 = vunpack.c.h.b16 %v8033
        %v8222 = vunpack.c.l.b16 %v8034
        %v8223 = vunpack.c.h.b16 %v8034
        %v8224 = vunpack.c.l.b16 %v8035
        %v8225 = vunpack.c.h.b16 %v8035
        %v8226 = vunpack.c.l.b16 %v8036
        %v8227 = vunpack.c.h.b16 %v8036
        %v8228 = vunpack.c.l.b16 %v8037
        %v8229 = vunpack.c.h.b16 %v8037
        %v8230 = vunpack.c.l.b16 %v8038
        %v8231 = vunpack.c.h.b16 %v8038
        %v8232 = vunpack.c.l.b16 %v8039
        %v8233 = vunpack.c.h.b16 %v8039
        %v8234 = vunpack.c.l.b16 %v8040
        %v8235 = vunpack.c.h.b16 %v8040
        %v8236 = vunpack.c.l.b16 %v8041
        %v8237 = vunpack.c.h.b16 %v8041
        %v8238 = vunpack.c.l.b16 %v8042
        %v8239 = vunpack.c.h.b16 %v8042
        %v8240 = vunpack.c.l.b16 %v8043
        %v8241 = vunpack.c.h.b16 %v8043
        %v8242 = vunpack.c.l.b16 %v8044
        %v8243 = vunpack.c.h.b16 %v8044
        %v8244 = vunpack.c.l.b16 %v8045
        %v8245 = vunpack.c.h.b16 %v8045
        %v8246 = vunpack.c.l.b16 %v8046
        %v8247 = vunpack.c.h.b16 %v8046
        %v8248 = vunpack.c.l.b16 %v8047
        %v8249 = vunpack.c.h.b16 %v8047
        %v8250 = vunpack.c.l.b16 %v8048
        %v8251 = vunpack.c.h.b16 %v8048
        %v8252 = vunpack.c.l.b16 %v8049
        %v8253 = vunpack.c.h.b16 %v8049
        %v8254 = vunpack.c.l.b16 %v8050
        %v8255 = vunpack.c.h.b16 %v8050
        %v8256 = vunpack.c.l.b16 %v8051
        %v8257 = vunpack.c.h.b16 %v8051
        %v8258 = vunpack.c.l.b16 %v8052
        %v8259 = vunpack.c.h.b16 %v8052
        %v8260 = vunpack.c.l.b16 %v8053
        %v8261 = vunpack.c.h.b16 %v8053
        %v8262 = vunpack.c.l.b16 %v8054
        %v8263 = vunpack.c.h.b16 %v8054
        %v8264 = vunpack.c.l.b16 %v8055
        %v8265 = vunpack.c.h.b16 %v8055
        %v8266 = vpack.c.b16 %v8146, %v8138
        %v8267 = vpack.c.b16 %v8147, %v8139
        %v8268 = vpack.c.b16 %v8148, %v8140
        %v8269 = vpack.c.b16 %v8149, %v8141
        %v8270 = vpack.c.b16 %v8150, %v8142
        %v8271 = vpack.c.b16 %v8151, %v8143
        %v8272 = vpack.c.b16 %v8152, %v8144
        %v8273 = vpack.c.b16 %v8153, %v8145
        %v8274 = vpack.c.b16 %v8162, %v8154
        %v8275 = vpack.c.b16 %v8163, %v8155
        %v8276 = vpack.c.b16 %v8164, %v8156
        %v8277 = vpack.c.b16 %v8165, %v8157
        %v8278 = vpack.c.b16 %v8166, %v8158
        %v8279 = vpack.c.b16 %v8167, %v8159
        %v8280 = vpack.c.b16 %v8168, %v8160
        %v8281 = vpack.c.b16 %v8169, %v8161
        %v8282 = vpack.c.b16 %v8178, %v8170
        %v8283 = vpack.c.b16 %v8179, %v8171
        %v8284 = vpack.c.b16 %v8180, %v8172
        %v8285 = vpack.c.b16 %v8181, %v8173
        %v8286 = vpack.c.b16 %v8182, %v8174
        %v8287 = vpack.c.b16 %v8183, %v8175
        %v8288 = vpack.c.b16 %v8184, %v8176
        %v8289 = vpack.c.b16 %v8185, %v8177
        %v8290 = vpack.c.b16 %v8194, %v8186
        %v8291 = vpack.c.b16 %v8195, %v8187
        %v8292 = vpack.c.b16 %v8196, %v8188
        %v8293 = vpack.c.b16 %v8197, %v8189
        %v8294 = vpack.c.b16 %v8198, %v8190
        %v8295 = vpack.c.b16 %v8199, %v8191
        %v8296 = vpack.c.b16 %v8200, %v8192
        %v8297 = vpack.c.b16 %v8201, %v8193
        %v8298 = vpack.c.b16 %v8210, %v8202
        %v8299 = vpack.c.b16 %v8211, %v8203
        %v8300 = vpack.c.b16 %v8212, %v8204
        %v8301 = vpack.c.b16 %v8213, %v8205
        %v8302 = vpack.c.b16 %v8214, %v8206
        %v8303 = vpack.c.b16 %v8215, %v8207
        %v8304 = vpack.c.b16 %v8216, %v8208
        %v8305 = vpack.c.b16 %v8217, %v8209
        %v8306 = vpack.c.b16 %v8226, %v8218
        %v8307 = vpack.c.b16 %v8227, %v8219
        %v8308 = vpack.c.b16 %v8228, %v8220
        %v8309 = vpack.c.b16 %v8229, %v8221
        %v8310 = vpack.c.b16 %v8230, %v8222
        %v8311 = vpack.c.b16 %v8231, %v8223
        %v8312 = vpack.c.b16 %v8232, %v8224
        %v8313 = vpack.c.b16 %v8233, %v8225
        %v8314 = vpack.c.b16 %v8242, %v8234
        %v8315 = vpack.c.b16 %v8243, %v8235
        %v8316 = vpack.c.b16 %v8244, %v8236
        %v8317 = vpack.c.b16 %v8245, %v8237
        %v8318 = vpack.c.b16 %v8246, %v8238
        %v8319 = vpack.c.b16 %v8247, %v8239
        %v8320 = vpack.c.b16 %v8248, %v8240
        %v8321 = vpack.c.b16 %v8249, %v8241
        %v8322 = vpack.c.b16 %v8258, %v8250
        %v8323 = vpack.c.b16 %v8259, %v8251
        %v8324 = vpack.c.b16 %v8260, %v8252
        %v8325 = vpack.c.b16 %v8261, %v8253
        %v8326 = vpack.c.b16 %v8262, %v8254
        %v8327 = vpack.c.b16 %v8263, %v8255
        %v8328 = vpack.c.b16 %v8264, %v8256
        %v8329 = vpack.c.b16 %v8265, %v8257
        %8394 = vmatpush.bf16.msra.mxu0 %v8322
        %8395 = vmatpush.bf16.msra.mxu0 %v8314
        %8396 = vmatpush.bf16.msra.mxu0 %v8306
        %8397 = vmatpush.bf16.msra.mxu0 %v8298
        %8398 = vmatpush.bf16.msra.mxu0 %v8290
        %8399 = vmatpush.bf16.msra.mxu0 %v8282
        %8400 = vmatpush.bf16.msra.mxu0 %v8274
        %8401 = vmatpush.bf16.msra.mxu0 %v8266
        %8402 = vmatmul.bf16.gmra.mxu0 %v7976
        %v8403 = vpop.f32.mrf.mxu0
        %v8404 = vadd.f32 %v8058, %v8403
        %v8405 = vpop.f32.mrf.mxu0
        %v8406 = vadd.f32 %v8058, %v8405
        %8407 = vmatmul.bf16.gmra.mxu0 %v7977
        %v8408 = vpop.f32.mrf.mxu0
        %v8409 = vadd.f32 %v8058, %v8408
        %v8410 = vpop.f32.mrf.mxu0
        %v8411 = vadd.f32 %v8058, %v8410
        %8412 = vmatmul.bf16.gmra.mxu0 %v7978
        %v8413 = vpop.f32.mrf.mxu0
        %v8414 = vadd.f32 %v8058, %v8413
        %v8415 = vpop.f32.mrf.mxu0
        %v8416 = vadd.f32 %v8058, %v8415
        %8417 = vmatmul.bf16.gmra.mxu0 %v7979
        %v8418 = vpop.f32.mrf.mxu0
        %v8419 = vadd.f32 %v8058, %v8418
        %v8420 = vpop.f32.mrf.mxu0
        %v8421 = vadd.f32 %v8058, %v8420
        %8422 = vmatmul.bf16.gmra.mxu0 %v7980
        %v8423 = vpop.f32.mrf.mxu0
        %v8424 = vadd.f32 %v8058, %v8423
        %v8425 = vpop.f32.mrf.mxu0
        %v8426 = vadd.f32 %v8058, %v8425
        %8427 = vmatmul.bf16.gmra.mxu0 %v7981
        %v8428 = vpop.f32.mrf.mxu0
        %v8429 = vadd.f32 %v8058, %v8428
        %v8430 = vpop.f32.mrf.mxu0
        %v8431 = vadd.f32 %v8058, %v8430
        %8432 = vmatmul.bf16.gmra.mxu0 %v7982
        %v8433 = vpop.f32.mrf.mxu0
        %v8434 = vadd.f32 %v8058, %v8433
        %v8435 = vpop.f32.mrf.mxu0
        %v8436 = vadd.f32 %v8058, %v8435
        %8437 = vmatmul.bf16.gmra.mxu0 %v7983
        %v8438 = vpop.f32.mrf.mxu0
        %v8439 = vadd.f32 %v8058, %v8438
        %v8440 = vpop.f32.mrf.mxu0
        %v8441 = vadd.f32 %v8058, %v8440
        %8442 = vmatmul.bf16.gmra.mxu0 %v7984
        %v8443 = vpop.f32.mrf.mxu0
        %v8444 = vadd.f32 %v8058, %v8443
        %v8445 = vpop.f32.mrf.mxu0
        %v8446 = vadd.f32 %v8058, %v8445
        %8447 = vmatmul.bf16.gmra.mxu0 %v7985
        %v8448 = vpop.f32.mrf.mxu0
        %v8449 = vadd.f32 %v8058, %v8448
        %v8450 = vpop.f32.mrf.mxu0
        %v8451 = vadd.f32 %v8058, %v8450
        %8452 = vmatmul.bf16.gmra.mxu0 %v7986
        %v8453 = vpop.f32.mrf.mxu0
        %v8454 = vadd.f32 %v8058, %v8453
        %v8455 = vpop.f32.mrf.mxu0
        %v8456 = vadd.f32 %v8058, %v8455
        %8457 = vmatmul.bf16.gmra.mxu0 %v7987
        %v8458 = vpop.f32.mrf.mxu0
        %v8459 = vadd.f32 %v8058, %v8458
        %v8460 = vpop.f32.mrf.mxu0
        %v8461 = vadd.f32 %v8058, %v8460
        %8462 = vmatmul.bf16.gmra.mxu0 %v7988
        %v8463 = vpop.f32.mrf.mxu0
        %v8464 = vadd.f32 %v8058, %v8463
        %v8465 = vpop.f32.mrf.mxu0
        %v8466 = vadd.f32 %v8058, %v8465
        %8467 = vmatmul.bf16.gmra.mxu0 %v7989
        %v8468 = vpop.f32.mrf.mxu0
        %v8469 = vadd.f32 %v8058, %v8468
        %v8470 = vpop.f32.mrf.mxu0
        %v8471 = vadd.f32 %v8058, %v8470
        %8472 = vmatmul.bf16.gmra.mxu0 %v7990
        %v8473 = vpop.f32.mrf.mxu0
        %v8474 = vadd.f32 %v8058, %v8473
        %v8475 = vpop.f32.mrf.mxu0
        %v8476 = vadd.f32 %v8058, %v8475
        %8477 = vmatmul.bf16.gmra.mxu0 %v7991
        %v8478 = vpop.f32.mrf.mxu0
        %v8479 = vadd.f32 %v8058, %v8478
        %v8480 = vpop.f32.mrf.mxu0
        %v8481 = vadd.f32 %v8058, %v8480
        %8482 = vdwg.mxu0
        %8483 = vmatpush.bf16.msra.mxu0 %v8323
        %8484 = vmatpush.bf16.msra.mxu0 %v8315
        %8485 = vmatpush.bf16.msra.mxu0 %v8307
        %8486 = vmatpush.bf16.msra.mxu0 %v8299
        %8487 = vmatpush.bf16.msra.mxu0 %v8291
        %8488 = vmatpush.bf16.msra.mxu0 %v8283
        %8489 = vmatpush.bf16.msra.mxu0 %v8275
        %8490 = vmatpush.bf16.msra.mxu0 %v8267
        %8491 = vmatmul.bf16.gmra.mxu0 %v7976
        %v8492 = vpop.f32.mrf.mxu0
        %v8493 = vadd.f32 %v8059, %v8492
        %v8494 = vpop.f32.mrf.mxu0
        %v8495 = vadd.f32 %v8059, %v8494
        %8496 = vmatmul.bf16.gmra.mxu0 %v7977
        %v8497 = vpop.f32.mrf.mxu0
        %v8498 = vadd.f32 %v8059, %v8497
        %v8499 = vpop.f32.mrf.mxu0
        %v8500 = vadd.f32 %v8059, %v8499
        %8501 = vmatmul.bf16.gmra.mxu0 %v7978
        %v8502 = vpop.f32.mrf.mxu0
        %v8503 = vadd.f32 %v8059, %v8502
        %v8504 = vpop.f32.mrf.mxu0
        %v8505 = vadd.f32 %v8059, %v8504
        %8506 = vmatmul.bf16.gmra.mxu0 %v7979
        %v8507 = vpop.f32.mrf.mxu0
        %v8508 = vadd.f32 %v8059, %v8507
        %v8509 = vpop.f32.mrf.mxu0
        %v8510 = vadd.f32 %v8059, %v8509
        %8511 = vmatmul.bf16.gmra.mxu0 %v7980
        %v8512 = vpop.f32.mrf.mxu0
        %v8513 = vadd.f32 %v8059, %v8512
        %v8514 = vpop.f32.mrf.mxu0
        %v8515 = vadd.f32 %v8059, %v8514
        %8516 = vmatmul.bf16.gmra.mxu0 %v7981
        %v8517 = vpop.f32.mrf.mxu0
        %v8518 = vadd.f32 %v8059, %v8517
        %v8519 = vpop.f32.mrf.mxu0
        %v8520 = vadd.f32 %v8059, %v8519
        %8521 = vmatmul.bf16.gmra.mxu0 %v7982
        %v8522 = vpop.f32.mrf.mxu0
        %v8523 = vadd.f32 %v8059, %v8522
        %v8524 = vpop.f32.mrf.mxu0
        %v8525 = vadd.f32 %v8059, %v8524
        %8526 = vmatmul.bf16.gmra.mxu0 %v7983
        %v8527 = vpop.f32.mrf.mxu0
        %v8528 = vadd.f32 %v8059, %v8527
        %v8529 = vpop.f32.mrf.mxu0
        %v8530 = vadd.f32 %v8059, %v8529
        %8531 = vmatmul.bf16.gmra.mxu0 %v7984
        %v8532 = vpop.f32.mrf.mxu0
        %v8533 = vadd.f32 %v8059, %v8532
        %v8534 = vpop.f32.mrf.mxu0
        %v8535 = vadd.f32 %v8059, %v8534
        %8536 = vmatmul.bf16.gmra.mxu0 %v7985
        %v8537 = vpop.f32.mrf.mxu0
        %v8538 = vadd.f32 %v8059, %v8537
        %v8539 = vpop.f32.mrf.mxu0
        %v8540 = vadd.f32 %v8059, %v8539
        %8541 = vmatmul.bf16.gmra.mxu0 %v7986
        %v8542 = vpop.f32.mrf.mxu0
        %v8543 = vadd.f32 %v8059, %v8542
        %v8544 = vpop.f32.mrf.mxu0
        %v8545 = vadd.f32 %v8059, %v8544
        %8546 = vmatmul.bf16.gmra.mxu0 %v7987
        %v8547 = vpop.f32.mrf.mxu0
        %v8548 = vadd.f32 %v8059, %v8547
        %v8549 = vpop.f32.mrf.mxu0
        %v8550 = vadd.f32 %v8059, %v8549
        %8551 = vmatmul.bf16.gmra.mxu0 %v7988
        %v8552 = vpop.f32.mrf.mxu0
        %v8553 = vadd.f32 %v8059, %v8552
        %v8554 = vpop.f32.mrf.mxu0
        %v8555 = vadd.f32 %v8059, %v8554
        %8556 = vmatmul.bf16.gmra.mxu0 %v7989
        %v8557 = vpop.f32.mrf.mxu0
        %v8558 = vadd.f32 %v8059, %v8557
        %v8559 = vpop.f32.mrf.mxu0
        %v8560 = vadd.f32 %v8059, %v8559
        %8561 = vmatmul.bf16.gmra.mxu0 %v7990
        %v8562 = vpop.f32.mrf.mxu0
        %v8563 = vadd.f32 %v8059, %v8562
        %v8564 = vpop.f32.mrf.mxu0
        %v8565 = vadd.f32 %v8059, %v8564
        %8566 = vmatmul.bf16.gmra.mxu0 %v7991
        %v8567 = vpop.f32.mrf.mxu0
        %v8568 = vadd.f32 %v8059, %v8567
        %v8569 = vpop.f32.mrf.mxu0
        %v8570 = vadd.f32 %v8059, %v8569
        %8571 = vdwg.mxu0
        %8572 = vmatpush.bf16.msra.mxu0 %v8324
        %8573 = vmatpush.bf16.msra.mxu0 %v8316
        %8574 = vmatpush.bf16.msra.mxu0 %v8308
        %8575 = vmatpush.bf16.msra.mxu0 %v8300
        %8576 = vmatpush.bf16.msra.mxu0 %v8292
        %8577 = vmatpush.bf16.msra.mxu0 %v8284
        %8578 = vmatpush.bf16.msra.mxu0 %v8276
        %8579 = vmatpush.bf16.msra.mxu0 %v8268
        %8580 = vmatmul.bf16.gmra.mxu0 %v7976
        %v8581 = vpop.f32.mrf.mxu0
        %v8582 = vadd.f32 %v8060, %v8581
        %v8583 = vpop.f32.mrf.mxu0
        %v8584 = vadd.f32 %v8060, %v8583
        %8585 = vmatmul.bf16.gmra.mxu0 %v7977
        %v8586 = vpop.f32.mrf.mxu0
        %v8587 = vadd.f32 %v8060, %v8586
        %v8588 = vpop.f32.mrf.mxu0
        %v8589 = vadd.f32 %v8060, %v8588
        %8590 = vmatmul.bf16.gmra.mxu0 %v7978
        %v8591 = vpop.f32.mrf.mxu0
        %v8592 = vadd.f32 %v8060, %v8591
        %v8593 = vpop.f32.mrf.mxu0
        %v8594 = vadd.f32 %v8060, %v8593
        %8595 = vmatmul.bf16.gmra.mxu0 %v7979
        %v8596 = vpop.f32.mrf.mxu0
        %v8597 = vadd.f32 %v8060, %v8596
        %v8598 = vpop.f32.mrf.mxu0
        %v8599 = vadd.f32 %v8060, %v8598
        %8600 = vmatmul.bf16.gmra.mxu0 %v7980
        %v8601 = vpop.f32.mrf.mxu0
        %v8602 = vadd.f32 %v8060, %v8601
        %v8603 = vpop.f32.mrf.mxu0
        %v8604 = vadd.f32 %v8060, %v8603
        %8605 = vmatmul.bf16.gmra.mxu0 %v7981
        %v8606 = vpop.f32.mrf.mxu0
        %v8607 = vadd.f32 %v8060, %v8606
        %v8608 = vpop.f32.mrf.mxu0
        %v8609 = vadd.f32 %v8060, %v8608
        %8610 = vmatmul.bf16.gmra.mxu0 %v7982
        %v8611 = vpop.f32.mrf.mxu0
        %v8612 = vadd.f32 %v8060, %v8611
        %v8613 = vpop.f32.mrf.mxu0
        %v8614 = vadd.f32 %v8060, %v8613
        %8615 = vmatmul.bf16.gmra.mxu0 %v7983
        %v8616 = vpop.f32.mrf.mxu0
        %v8617 = vadd.f32 %v8060, %v8616
        %v8618 = vpop.f32.mrf.mxu0
        %v8619 = vadd.f32 %v8060, %v8618
        %8620 = vmatmul.bf16.gmra.mxu0 %v7984
        %v8621 = vpop.f32.mrf.mxu0
        %v8622 = vadd.f32 %v8060, %v8621
        %v8623 = vpop.f32.mrf.mxu0
        %v8624 = vadd.f32 %v8060, %v8623
        %8625 = vmatmul.bf16.gmra.mxu0 %v7985
        %v8626 = vpop.f32.mrf.mxu0
        %v8627 = vadd.f32 %v8060, %v8626
        %v8628 = vpop.f32.mrf.mxu0
        %v8629 = vadd.f32 %v8060, %v8628
        %8630 = vmatmul.bf16.gmra.mxu0 %v7986
        %v8631 = vpop.f32.mrf.mxu0
        %v8632 = vadd.f32 %v8060, %v8631
        %v8633 = vpop.f32.mrf.mxu0
        %v8634 = vadd.f32 %v8060, %v8633
        %8635 = vmatmul.bf16.gmra.mxu0 %v7987
        %v8636 = vpop.f32.mrf.mxu0
        %v8637 = vadd.f32 %v8060, %v8636
        %v8638 = vpop.f32.mrf.mxu0
        %v8639 = vadd.f32 %v8060, %v8638
        %8640 = vmatmul.bf16.gmra.mxu0 %v7988
        %v8641 = vpop.f32.mrf.mxu0
        %v8642 = vadd.f32 %v8060, %v8641
        %v8643 = vpop.f32.mrf.mxu0
        %v8644 = vadd.f32 %v8060, %v8643
        %8645 = vmatmul.bf16.gmra.mxu0 %v7989
        %v8646 = vpop.f32.mrf.mxu0
        %v8647 = vadd.f32 %v8060, %v8646
        %v8648 = vpop.f32.mrf.mxu0
        %v8649 = vadd.f32 %v8060, %v8648
        %8650 = vmatmul.bf16.gmra.mxu0 %v7990
        %v8651 = vpop.f32.mrf.mxu0
        %v8652 = vadd.f32 %v8060, %v8651
        %v8653 = vpop.f32.mrf.mxu0
        %v8654 = vadd.f32 %v8060, %v8653
        %8655 = vmatmul.bf16.gmra.mxu0 %v7991
        %v8656 = vpop.f32.mrf.mxu0
        %v8657 = vadd.f32 %v8060, %v8656
        %v8658 = vpop.f32.mrf.mxu0
        %v8659 = vadd.f32 %v8060, %v8658
        %8660 = vdwg.mxu0
        %8661 = vmatpush.bf16.msra.mxu0 %v8325
        %8662 = vmatpush.bf16.msra.mxu0 %v8317
        %8663 = vmatpush.bf16.msra.mxu0 %v8309
        %8664 = vmatpush.bf16.msra.mxu0 %v8301
        %8665 = vmatpush.bf16.msra.mxu0 %v8293
        %8666 = vmatpush.bf16.msra.mxu0 %v8285
        %8667 = vmatpush.bf16.msra.mxu0 %v8277
        %8668 = vmatpush.bf16.msra.mxu0 %v8269
        %8669 = vmatmul.bf16.gmra.mxu0 %v7976
        %v8670 = vpop.f32.mrf.mxu0
        %v8671 = vadd.f32 %v8061, %v8670
        %v8672 = vpop.f32.mrf.mxu0
        %v8673 = vadd.f32 %v8061, %v8672
        %8674 = vmatmul.bf16.gmra.mxu0 %v7977
        %v8675 = vpop.f32.mrf.mxu0
        %v8676 = vadd.f32 %v8061, %v8675
        %v8677 = vpop.f32.mrf.mxu0
        %v8678 = vadd.f32 %v8061, %v8677
        %8679 = vmatmul.bf16.gmra.mxu0 %v7978
        %v8680 = vpop.f32.mrf.mxu0
        %v8681 = vadd.f32 %v8061, %v8680
        %v8682 = vpop.f32.mrf.mxu0
        %v8683 = vadd.f32 %v8061, %v8682
        %8684 = vmatmul.bf16.gmra.mxu0 %v7979
        %v8685 = vpop.f32.mrf.mxu0
        %v8686 = vadd.f32 %v8061, %v8685
        %v8687 = vpop.f32.mrf.mxu0
        %v8688 = vadd.f32 %v8061, %v8687
        %8689 = vmatmul.bf16.gmra.mxu0 %v7980
        %v8690 = vpop.f32.mrf.mxu0
        %v8691 = vadd.f32 %v8061, %v8690
        %v8692 = vpop.f32.mrf.mxu0
        %v8693 = vadd.f32 %v8061, %v8692
        %8694 = vmatmul.bf16.gmra.mxu0 %v7981
        %v8695 = vpop.f32.mrf.mxu0
        %v8696 = vadd.f32 %v8061, %v8695
        %v8697 = vpop.f32.mrf.mxu0
        %v8698 = vadd.f32 %v8061, %v8697
        %8699 = vmatmul.bf16.gmra.mxu0 %v7982
        %v8700 = vpop.f32.mrf.mxu0
        %v8701 = vadd.f32 %v8061, %v8700
        %v8702 = vpop.f32.mrf.mxu0
        %v8703 = vadd.f32 %v8061, %v8702
        %8704 = vmatmul.bf16.gmra.mxu0 %v7983
        %v8705 = vpop.f32.mrf.mxu0
        %v8706 = vadd.f32 %v8061, %v8705
        %v8707 = vpop.f32.mrf.mxu0
        %v8708 = vadd.f32 %v8061, %v8707
        %8709 = vmatmul.bf16.gmra.mxu0 %v7984
        %v8710 = vpop.f32.mrf.mxu0
        %v8711 = vadd.f32 %v8061, %v8710
        %v8712 = vpop.f32.mrf.mxu0
        %v8713 = vadd.f32 %v8061, %v8712
        %8714 = vmatmul.bf16.gmra.mxu0 %v7985
        %v8715 = vpop.f32.mrf.mxu0
        %v8716 = vadd.f32 %v8061, %v8715
        %v8717 = vpop.f32.mrf.mxu0
        %v8718 = vadd.f32 %v8061, %v8717
        %8719 = vmatmul.bf16.gmra.mxu0 %v7986
        %v8720 = vpop.f32.mrf.mxu0
        %v8721 = vadd.f32 %v8061, %v8720
        %v8722 = vpop.f32.mrf.mxu0
        %v8723 = vadd.f32 %v8061, %v8722
        %8724 = vmatmul.bf16.gmra.mxu0 %v7987
        %v8725 = vpop.f32.mrf.mxu0
        %v8726 = vadd.f32 %v8061, %v8725
        %v8727 = vpop.f32.mrf.mxu0
        %v8728 = vadd.f32 %v8061, %v8727
        %8729 = vmatmul.bf16.gmra.mxu0 %v7988
        %v8730 = vpop.f32.mrf.mxu0
        %v8731 = vadd.f32 %v8061, %v8730
        %v8732 = vpop.f32.mrf.mxu0
        %v8733 = vadd.f32 %v8061, %v8732
        %8734 = vmatmul.bf16.gmra.mxu0 %v7989
        %v8735 = vpop.f32.mrf.mxu0
        %v8736 = vadd.f32 %v8061, %v8735
        %v8737 = vpop.f32.mrf.mxu0
        %v8738 = vadd.f32 %v8061, %v8737
        %8739 = vmatmul.bf16.gmra.mxu0 %v7990
        %v8740 = vpop.f32.mrf.mxu0
        %v8741 = vadd.f32 %v8061, %v8740
        %v8742 = vpop.f32.mrf.mxu0
        %v8743 = vadd.f32 %v8061, %v8742
        %8744 = vmatmul.bf16.gmra.mxu0 %v7991
        %v8745 = vpop.f32.mrf.mxu0
        %v8746 = vadd.f32 %v8061, %v8745
        %v8747 = vpop.f32.mrf.mxu0
        %v8748 = vadd.f32 %v8061, %v8747
        %8749 = vdwg.mxu0
        %8750 = vmatpush.bf16.msra.mxu0 %v8326
        %8751 = vmatpush.bf16.msra.mxu0 %v8318
        %8752 = vmatpush.bf16.msra.mxu0 %v8310
        %8753 = vmatpush.bf16.msra.mxu0 %v8302
        %8754 = vmatpush.bf16.msra.mxu0 %v8294
        %8755 = vmatpush.bf16.msra.mxu0 %v8286
        %8756 = vmatpush.bf16.msra.mxu0 %v8278
        %8757 = vmatpush.bf16.msra.mxu0 %v8270
        %8758 = vmatmul.bf16.gmra.mxu0 %v7976
        %v8759 = vpop.f32.mrf.mxu0
        %v8760 = vadd.f32 %v8062, %v8759
        %v8761 = vpop.f32.mrf.mxu0
        %v8762 = vadd.f32 %v8062, %v8761
        %8763 = vmatmul.bf16.gmra.mxu0 %v7977
        %v8764 = vpop.f32.mrf.mxu0
        %v8765 = vadd.f32 %v8062, %v8764
        %v8766 = vpop.f32.mrf.mxu0
        %v8767 = vadd.f32 %v8062, %v8766
        %8768 = vmatmul.bf16.gmra.mxu0 %v7978
        %v8769 = vpop.f32.mrf.mxu0
        %v8770 = vadd.f32 %v8062, %v8769
        %v8771 = vpop.f32.mrf.mxu0
        %v8772 = vadd.f32 %v8062, %v8771
        %8773 = vmatmul.bf16.gmra.mxu0 %v7979
        %v8774 = vpop.f32.mrf.mxu0
        %v8775 = vadd.f32 %v8062, %v8774
        %v8776 = vpop.f32.mrf.mxu0
        %v8777 = vadd.f32 %v8062, %v8776
        %8778 = vmatmul.bf16.gmra.mxu0 %v7980
        %v8779 = vpop.f32.mrf.mxu0
        %v8780 = vadd.f32 %v8062, %v8779
        %v8781 = vpop.f32.mrf.mxu0
        %v8782 = vadd.f32 %v8062, %v8781
        %8783 = vmatmul.bf16.gmra.mxu0 %v7981
        %v8784 = vpop.f32.mrf.mxu0
        %v8785 = vadd.f32 %v8062, %v8784
        %v8786 = vpop.f32.mrf.mxu0
        %v8787 = vadd.f32 %v8062, %v8786
        %8788 = vmatmul.bf16.gmra.mxu0 %v7982
        %v8789 = vpop.f32.mrf.mxu0
        %v8790 = vadd.f32 %v8062, %v8789
        %v8791 = vpop.f32.mrf.mxu0
        %v8792 = vadd.f32 %v8062, %v8791
        %8793 = vmatmul.bf16.gmra.mxu0 %v7983
        %v8794 = vpop.f32.mrf.mxu0
        %v8795 = vadd.f32 %v8062, %v8794
        %v8796 = vpop.f32.mrf.mxu0
        %v8797 = vadd.f32 %v8062, %v8796
        %8798 = vmatmul.bf16.gmra.mxu0 %v7984
        %v8799 = vpop.f32.mrf.mxu0
        %v8800 = vadd.f32 %v8062, %v8799
        %v8801 = vpop.f32.mrf.mxu0
        %v8802 = vadd.f32 %v8062, %v8801
        %8803 = vmatmul.bf16.gmra.mxu0 %v7985
        %v8804 = vpop.f32.mrf.mxu0
        %v8805 = vadd.f32 %v8062, %v8804
        %v8806 = vpop.f32.mrf.mxu0
        %v8807 = vadd.f32 %v8062, %v8806
        %8808 = vmatmul.bf16.gmra.mxu0 %v7986
        %v8809 = vpop.f32.mrf.mxu0
        %v8810 = vadd.f32 %v8062, %v8809
        %v8811 = vpop.f32.mrf.mxu0
        %v8812 = vadd.f32 %v8062, %v8811
        %8813 = vmatmul.bf16.gmra.mxu0 %v7987
        %v8814 = vpop.f32.mrf.mxu0
        %v8815 = vadd.f32 %v8062, %v8814
        %v8816 = vpop.f32.mrf.mxu0
        %v8817 = vadd.f32 %v8062, %v8816
        %8818 = vmatmul.bf16.gmra.mxu0 %v7988
        %v8819 = vpop.f32.mrf.mxu0
        %v8820 = vadd.f32 %v8062, %v8819
        %v8821 = vpop.f32.mrf.mxu0
        %v8822 = vadd.f32 %v8062, %v8821
        %8823 = vmatmul.bf16.gmra.mxu0 %v7989
        %v8824 = vpop.f32.mrf.mxu0
        %v8825 = vadd.f32 %v8062, %v8824
        %v8826 = vpop.f32.mrf.mxu0
        %v8827 = vadd.f32 %v8062, %v8826
        %8828 = vmatmul.bf16.gmra.mxu0 %v7990
        %v8829 = vpop.f32.mrf.mxu0
        %v8830 = vadd.f32 %v8062, %v8829
        %v8831 = vpop.f32.mrf.mxu0
        %v8832 = vadd.f32 %v8062, %v8831
        %8833 = vmatmul.bf16.gmra.mxu0 %v7991
        %v8834 = vpop.f32.mrf.mxu0
        %v8835 = vadd.f32 %v8062, %v8834
        %v8836 = vpop.f32.mrf.mxu0
        %v8837 = vadd.f32 %v8062, %v8836
        %8838 = vdwg.mxu0
        %8839 = vmatpush.bf16.msra.mxu0 %v8327
        %8840 = vmatpush.bf16.msra.mxu0 %v8319
        %8841 = vmatpush.bf16.msra.mxu0 %v8311
        %8842 = vmatpush.bf16.msra.mxu0 %v8303
        %8843 = vmatpush.bf16.msra.mxu0 %v8295
        %8844 = vmatpush.bf16.msra.mxu0 %v8287
        %8845 = vmatpush.bf16.msra.mxu0 %v8279
        %8846 = vmatpush.bf16.msra.mxu0 %v8271
        %8847 = vmatmul.bf16.gmra.mxu0 %v7976
        %v8848 = vpop.f32.mrf.mxu0
        %v8849 = vadd.f32 %v8063, %v8848
        %v8850 = vpop.f32.mrf.mxu0
        %v8851 = vadd.f32 %v8063, %v8850
        %8852 = vmatmul.bf16.gmra.mxu0 %v7977
        %v8853 = vpop.f32.mrf.mxu0
        %v8854 = vadd.f32 %v8063, %v8853
        %v8855 = vpop.f32.mrf.mxu0
        %v8856 = vadd.f32 %v8063, %v8855
        %8857 = vmatmul.bf16.gmra.mxu0 %v7978
        %v8858 = vpop.f32.mrf.mxu0
        %v8859 = vadd.f32 %v8063, %v8858
        %v8860 = vpop.f32.mrf.mxu0
        %v8861 = vadd.f32 %v8063, %v8860
        %8862 = vmatmul.bf16.gmra.mxu0 %v7979
        %v8863 = vpop.f32.mrf.mxu0
        %v8864 = vadd.f32 %v8063, %v8863
        %v8865 = vpop.f32.mrf.mxu0
        %v8866 = vadd.f32 %v8063, %v8865
        %8867 = vmatmul.bf16.gmra.mxu0 %v7980
        %v8868 = vpop.f32.mrf.mxu0
        %v8869 = vadd.f32 %v8063, %v8868
        %v8870 = vpop.f32.mrf.mxu0
        %v8871 = vadd.f32 %v8063, %v8870
        %8872 = vmatmul.bf16.gmra.mxu0 %v7981
        %v8873 = vpop.f32.mrf.mxu0
        %v8874 = vadd.f32 %v8063, %v8873
        %v8875 = vpop.f32.mrf.mxu0
        %v8876 = vadd.f32 %v8063, %v8875
        %8877 = vmatmul.bf16.gmra.mxu0 %v7982
        %v8878 = vpop.f32.mrf.mxu0
        %v8879 = vadd.f32 %v8063, %v8878
        %v8880 = vpop.f32.mrf.mxu0
        %v8881 = vadd.f32 %v8063, %v8880
        %8882 = vmatmul.bf16.gmra.mxu0 %v7983
        %v8883 = vpop.f32.mrf.mxu0
        %v8884 = vadd.f32 %v8063, %v8883
        %v8885 = vpop.f32.mrf.mxu0
        %v8886 = vadd.f32 %v8063, %v8885
        %8887 = vmatmul.bf16.gmra.mxu0 %v7984
        %v8888 = vpop.f32.mrf.mxu0
        %v8889 = vadd.f32 %v8063, %v8888
        %v8890 = vpop.f32.mrf.mxu0
        %v8891 = vadd.f32 %v8063, %v8890
        %8892 = vmatmul.bf16.gmra.mxu0 %v7985
        %v8893 = vpop.f32.mrf.mxu0
        %v8894 = vadd.f32 %v8063, %v8893
        %v8895 = vpop.f32.mrf.mxu0
        %v8896 = vadd.f32 %v8063, %v8895
        %8897 = vmatmul.bf16.gmra.mxu0 %v7986
        %v8898 = vpop.f32.mrf.mxu0
        %v8899 = vadd.f32 %v8063, %v8898
        %v8900 = vpop.f32.mrf.mxu0
        %v8901 = vadd.f32 %v8063, %v8900
        %8902 = vmatmul.bf16.gmra.mxu0 %v7987
        %v8903 = vpop.f32.mrf.mxu0
        %v8904 = vadd.f32 %v8063, %v8903
        %v8905 = vpop.f32.mrf.mxu0
        %v8906 = vadd.f32 %v8063, %v8905
        %8907 = vmatmul.bf16.gmra.mxu0 %v7988
        %v8908 = vpop.f32.mrf.mxu0
        %v8909 = vadd.f32 %v8063, %v8908
        %v8910 = vpop.f32.mrf.mxu0
        %v8911 = vadd.f32 %v8063, %v8910
        %8912 = vmatmul.bf16.gmra.mxu0 %v7989
        %v8913 = vpop.f32.mrf.mxu0
        %v8914 = vadd.f32 %v8063, %v8913
        %v8915 = vpop.f32.mrf.mxu0
        %v8916 = vadd.f32 %v8063, %v8915
        %8917 = vmatmul.bf16.gmra.mxu0 %v7990
        %v8918 = vpop.f32.mrf.mxu0
        %v8919 = vadd.f32 %v8063, %v8918
        %v8920 = vpop.f32.mrf.mxu0
        %v8921 = vadd.f32 %v8063, %v8920
        %8922 = vmatmul.bf16.gmra.mxu0 %v7991
        %v8923 = vpop.f32.mrf.mxu0
        %v8924 = vadd.f32 %v8063, %v8923
        %v8925 = vpop.f32.mrf.mxu0
        %v8926 = vadd.f32 %v8063, %v8925
        %8927 = vdwg.mxu0
        %8928 = vmatpush.bf16.msra.mxu0 %v8328
        %8929 = vmatpush.bf16.msra.mxu0 %v8320
        %8930 = vmatpush.bf16.msra.mxu0 %v8312
        %8931 = vmatpush.bf16.msra.mxu0 %v8304
        %8932 = vmatpush.bf16.msra.mxu0 %v8296
        %8933 = vmatpush.bf16.msra.mxu0 %v8288
        %8934 = vmatpush.bf16.msra.mxu0 %v8280
        %8935 = vmatpush.bf16.msra.mxu0 %v8272
        %8936 = vmatmul.bf16.gmra.mxu0 %v7976
        %v8937 = vpop.f32.mrf.mxu0
        %v8938 = vadd.f32 %v8064, %v8937
        %v8939 = vpop.f32.mrf.mxu0
        %v8940 = vadd.f32 %v8064, %v8939
        %8941 = vmatmul.bf16.gmra.mxu0 %v7977
        %v8942 = vpop.f32.mrf.mxu0
        %v8943 = vadd.f32 %v8064, %v8942
        %v8944 = vpop.f32.mrf.mxu0
        %v8945 = vadd.f32 %v8064, %v8944
        %8946 = vmatmul.bf16.gmra.mxu0 %v7978
        %v8947 = vpop.f32.mrf.mxu0
        %v8948 = vadd.f32 %v8064, %v8947
        %v8949 = vpop.f32.mrf.mxu0
        %v8950 = vadd.f32 %v8064, %v8949
        %8951 = vmatmul.bf16.gmra.mxu0 %v7979
        %v8952 = vpop.f32.mrf.mxu0
        %v8953 = vadd.f32 %v8064, %v8952
        %v8954 = vpop.f32.mrf.mxu0
        %v8955 = vadd.f32 %v8064, %v8954
        %8956 = vmatmul.bf16.gmra.mxu0 %v7980
        %v8957 = vpop.f32.mrf.mxu0
        %v8958 = vadd.f32 %v8064, %v8957
        %v8959 = vpop.f32.mrf.mxu0
        %v8960 = vadd.f32 %v8064, %v8959
        %8961 = vmatmul.bf16.gmra.mxu0 %v7981
        %v8962 = vpop.f32.mrf.mxu0
        %v8963 = vadd.f32 %v8064, %v8962
        %v8964 = vpop.f32.mrf.mxu0
        %v8965 = vadd.f32 %v8064, %v8964
        %8966 = vmatmul.bf16.gmra.mxu0 %v7982
        %v8967 = vpop.f32.mrf.mxu0
        %v8968 = vadd.f32 %v8064, %v8967
        %v8969 = vpop.f32.mrf.mxu0
        %v8970 = vadd.f32 %v8064, %v8969
        %8971 = vmatmul.bf16.gmra.mxu0 %v7983
        %v8972 = vpop.f32.mrf.mxu0
        %v8973 = vadd.f32 %v8064, %v8972
        %v8974 = vpop.f32.mrf.mxu0
        %v8975 = vadd.f32 %v8064, %v8974
        %8976 = vmatmul.bf16.gmra.mxu0 %v7984
        %v8977 = vpop.f32.mrf.mxu0
        %v8978 = vadd.f32 %v8064, %v8977
        %v8979 = vpop.f32.mrf.mxu0
        %v8980 = vadd.f32 %v8064, %v8979
        %8981 = vmatmul.bf16.gmra.mxu0 %v7985
        %v8982 = vpop.f32.mrf.mxu0
        %v8983 = vadd.f32 %v8064, %v8982
        %v8984 = vpop.f32.mrf.mxu0
        %v8985 = vadd.f32 %v8064, %v8984
        %8986 = vmatmul.bf16.gmra.mxu0 %v7986
        %v8987 = vpop.f32.mrf.mxu0
        %v8988 = vadd.f32 %v8064, %v8987
        %v8989 = vpop.f32.mrf.mxu0
        %v8990 = vadd.f32 %v8064, %v8989
        %8991 = vmatmul.bf16.gmra.mxu0 %v7987
        %v8992 = vpop.f32.mrf.mxu0
        %v8993 = vadd.f32 %v8064, %v8992
        %v8994 = vpop.f32.mrf.mxu0
        %v8995 = vadd.f32 %v8064, %v8994
        %8996 = vmatmul.bf16.gmra.mxu0 %v7988
        %v8997 = vpop.f32.mrf.mxu0
        %v8998 = vadd.f32 %v8064, %v8997
        %v8999 = vpop.f32.mrf.mxu0
        %v9000 = vadd.f32 %v8064, %v8999
        %9001 = vmatmul.bf16.gmra.mxu0 %v7989
        %v9002 = vpop.f32.mrf.mxu0
        %v9003 = vadd.f32 %v8064, %v9002
        %v9004 = vpop.f32.mrf.mxu0
        %v9005 = vadd.f32 %v8064, %v9004
        %9006 = vmatmul.bf16.gmra.mxu0 %v7990
        %v9007 = vpop.f32.mrf.mxu0
        %v9008 = vadd.f32 %v8064, %v9007
        %v9009 = vpop.f32.mrf.mxu0
        %v9010 = vadd.f32 %v8064, %v9009
        %9011 = vmatmul.bf16.gmra.mxu0 %v7991
        %v9012 = vpop.f32.mrf.mxu0
        %v9013 = vadd.f32 %v8064, %v9012
        %v9014 = vpop.f32.mrf.mxu0
        %v9015 = vadd.f32 %v8064, %v9014
        %9016 = vdwg.mxu0
        %9017 = vmatpush.bf16.msra.mxu0 %v8329
        %9018 = vmatpush.bf16.msra.mxu0 %v8321
        %9019 = vmatpush.bf16.msra.mxu0 %v8313
        %9020 = vmatpush.bf16.msra.mxu0 %v8305
        %9021 = vmatpush.bf16.msra.mxu0 %v8297
        %9022 = vmatpush.bf16.msra.mxu0 %v8289
        %9023 = vmatpush.bf16.msra.mxu0 %v8281
        %9024 = vmatpush.bf16.msra.mxu0 %v8273
        %9025 = vmatmul.bf16.gmra.mxu0 %v7976
        %v9026 = vpop.f32.mrf.mxu0
        %v9027 = vadd.f32 %v8065, %v9026
        %v9028 = vpop.f32.mrf.mxu0
        %v9029 = vadd.f32 %v8065, %v9028
        %9030 = vmatmul.bf16.gmra.mxu0 %v7977
        %v9031 = vpop.f32.mrf.mxu0
        %v9032 = vadd.f32 %v8065, %v9031
        %v9033 = vpop.f32.mrf.mxu0
        %v9034 = vadd.f32 %v8065, %v9033
        %9035 = vmatmul.bf16.gmra.mxu0 %v7978
        %v9036 = vpop.f32.mrf.mxu0
        %v9037 = vadd.f32 %v8065, %v9036
        %v9038 = vpop.f32.mrf.mxu0
        %v9039 = vadd.f32 %v8065, %v9038
        %9040 = vmatmul.bf16.gmra.mxu0 %v7979
        %v9041 = vpop.f32.mrf.mxu0
        %v9042 = vadd.f32 %v8065, %v9041
        %v9043 = vpop.f32.mrf.mxu0
        %v9044 = vadd.f32 %v8065, %v9043
        %9045 = vmatmul.bf16.gmra.mxu0 %v7980
        %v9046 = vpop.f32.mrf.mxu0
        %v9047 = vadd.f32 %v8065, %v9046
        %v9048 = vpop.f32.mrf.mxu0
        %v9049 = vadd.f32 %v8065, %v9048
        %9050 = vmatmul.bf16.gmra.mxu0 %v7981
        %v9051 = vpop.f32.mrf.mxu0
        %v9052 = vadd.f32 %v8065, %v9051
        %v9053 = vpop.f32.mrf.mxu0
        %v9054 = vadd.f32 %v8065, %v9053
        %9055 = vmatmul.bf16.gmra.mxu0 %v7982
        %v9056 = vpop.f32.mrf.mxu0
        %v9057 = vadd.f32 %v8065, %v9056
        %v9058 = vpop.f32.mrf.mxu0
        %v9059 = vadd.f32 %v8065, %v9058
        %9060 = vmatmul.bf16.gmra.mxu0 %v7983
        %v9061 = vpop.f32.mrf.mxu0
        %v9062 = vadd.f32 %v8065, %v9061
        %v9063 = vpop.f32.mrf.mxu0
        %v9064 = vadd.f32 %v8065, %v9063
        %9065 = vmatmul.bf16.gmra.mxu0 %v7984
        %v9066 = vpop.f32.mrf.mxu0
        %v9067 = vadd.f32 %v8065, %v9066
        %v9068 = vpop.f32.mrf.mxu0
        %v9069 = vadd.f32 %v8065, %v9068
        %9070 = vmatmul.bf16.gmra.mxu0 %v7985
        %v9071 = vpop.f32.mrf.mxu0
        %v9072 = vadd.f32 %v8065, %v9071
        %v9073 = vpop.f32.mrf.mxu0
        %v9074 = vadd.f32 %v8065, %v9073
        %9075 = vmatmul.bf16.gmra.mxu0 %v7986
        %v9076 = vpop.f32.mrf.mxu0
        %v9077 = vadd.f32 %v8065, %v9076
        %v9078 = vpop.f32.mrf.mxu0
        %v9079 = vadd.f32 %v8065, %v9078
        %9080 = vmatmul.bf16.gmra.mxu0 %v7987
        %v9081 = vpop.f32.mrf.mxu0
        %v9082 = vadd.f32 %v8065, %v9081
        %v9083 = vpop.f32.mrf.mxu0
        %v9084 = vadd.f32 %v8065, %v9083
        %9085 = vmatmul.bf16.gmra.mxu0 %v7988
        %v9086 = vpop.f32.mrf.mxu0
        %v9087 = vadd.f32 %v8065, %v9086
        %v9088 = vpop.f32.mrf.mxu0
        %v9089 = vadd.f32 %v8065, %v9088
        %9090 = vmatmul.bf16.gmra.mxu0 %v7989
        %v9091 = vpop.f32.mrf.mxu0
        %v9092 = vadd.f32 %v8065, %v9091
        %v9093 = vpop.f32.mrf.mxu0
        %v9094 = vadd.f32 %v8065, %v9093
        %9095 = vmatmul.bf16.gmra.mxu0 %v7990
        %v9096 = vpop.f32.mrf.mxu0
        %v9097 = vadd.f32 %v8065, %v9096
        %v9098 = vpop.f32.mrf.mxu0
        %v9099 = vadd.f32 %v8065, %v9098
        %9100 = vmatmul.bf16.gmra.mxu0 %v7991
        %v9101 = vpop.f32.mrf.mxu0
        %v9102 = vadd.f32 %v8065, %v9101
        %v9103 = vpop.f32.mrf.mxu0
        %v9104 = vadd.f32 %v8065, %v9103
        %9105 = vdwg.mxu0
        %v9106 = vmax.f32 %v8404, %v8406
        %v9107 = vmax.f32 %v9106, %v8409
        %v9108 = vmax.f32 %v9107, %v8411
        %v9109 = vmax.f32 %v9108, %v8414
        %v9110 = vmax.f32 %v9109, %v8416
        %v9111 = vmax.f32 %v9110, %v8419
        %v9112 = vmax.f32 %v9111, %v8421
        %v9113 = vmax.f32 %v9112, %v8424
        %v9114 = vmax.f32 %v9113, %v8426
        %v9115 = vmax.f32 %v9114, %v8429
        %v9116 = vmax.f32 %v9115, %v8431
        %v9117 = vmax.f32 %v9116, %v8434
        %v9118 = vmax.f32 %v9117, %v8436
        %v9119 = vmax.f32 %v9118, %v8439
        %v9120 = vmax.f32 %v9119, %v8441
        %v9121 = vmax.f32 %v9120, %v8444
        %v9122 = vmax.f32 %v9121, %v8446
        %v9123 = vmax.f32 %v9122, %v8449
        %v9124 = vmax.f32 %v9123, %v8451
        %v9125 = vmax.f32 %v9124, %v8454
        %v9126 = vmax.f32 %v9125, %v8456
        %v9127 = vmax.f32 %v9126, %v8459
        %v9128 = vmax.f32 %v9127, %v8461
        %v9129 = vmax.f32 %v9128, %v8464
        %v9130 = vmax.f32 %v9129, %v8466
        %v9131 = vmax.f32 %v9130, %v8469
        %v9132 = vmax.f32 %v9131, %v8471
        %v9133 = vmax.f32 %v9132, %v8474
        %v9134 = vmax.f32 %v9133, %v8476
        %v9135 = vmax.f32 %v9134, %v8479
        %v9136 = vmax.f32 %v9135, %v8481
        %v9137 = vrot.slane %v9136, 4
        %v9138 = vmax.f32 %v9136, %v9137
        %v9139 = vrot.slane %v9138, 2
        %v9140 = vmax.f32 %v9138, %v9139
        %v9141 = vrot.slane %v9140, 1
        %v9142 = vmax.f32 %v9140, %v9141
        %v9143 = vmax.f32 %v8493, %v8495
        %v9144 = vmax.f32 %v9143, %v8498
        %v9145 = vmax.f32 %v9144, %v8500
        %v9146 = vmax.f32 %v9145, %v8503
        %v9147 = vmax.f32 %v9146, %v8505
        %v9148 = vmax.f32 %v9147, %v8508
        %v9149 = vmax.f32 %v9148, %v8510
        %v9150 = vmax.f32 %v9149, %v8513
        %v9151 = vmax.f32 %v9150, %v8515
        %v9152 = vmax.f32 %v9151, %v8518
        %v9153 = vmax.f32 %v9152, %v8520
        %v9154 = vmax.f32 %v9153, %v8523
        %v9155 = vmax.f32 %v9154, %v8525
        %v9156 = vmax.f32 %v9155, %v8528
        %v9157 = vmax.f32 %v9156, %v8530
        %v9158 = vmax.f32 %v9157, %v8533
        %v9159 = vmax.f32 %v9158, %v8535
        %v9160 = vmax.f32 %v9159, %v8538
        %v9161 = vmax.f32 %v9160, %v8540
        %v9162 = vmax.f32 %v9161, %v8543
        %v9163 = vmax.f32 %v9162, %v8545
        %v9164 = vmax.f32 %v9163, %v8548
        %v9165 = vmax.f32 %v9164, %v8550
        %v9166 = vmax.f32 %v9165, %v8553
        %v9167 = vmax.f32 %v9166, %v8555
        %v9168 = vmax.f32 %v9167, %v8558
        %v9169 = vmax.f32 %v9168, %v8560
        %v9170 = vmax.f32 %v9169, %v8563
        %v9171 = vmax.f32 %v9170, %v8565
        %v9172 = vmax.f32 %v9171, %v8568
        %v9173 = vmax.f32 %v9172, %v8570
        %v9174 = vrot.slane %v9173, 4
        %v9175 = vmax.f32 %v9173, %v9174
        %v9176 = vrot.slane %v9175, 2
        %v9177 = vmax.f32 %v9175, %v9176
        %v9178 = vrot.slane %v9177, 1
        %v9179 = vmax.f32 %v9177, %v9178
        %v9180 = vmax.f32 %v8582, %v8584
        %v9181 = vmax.f32 %v9180, %v8587
        %v9182 = vmax.f32 %v9181, %v8589
        %v9183 = vmax.f32 %v9182, %v8592
        %v9184 = vmax.f32 %v9183, %v8594
        %v9185 = vmax.f32 %v9184, %v8597
        %v9186 = vmax.f32 %v9185, %v8599
        %v9187 = vmax.f32 %v9186, %v8602
        %v9188 = vmax.f32 %v9187, %v8604
        %v9189 = vmax.f32 %v9188, %v8607
        %v9190 = vmax.f32 %v9189, %v8609
        %v9191 = vmax.f32 %v9190, %v8612
        %v9192 = vmax.f32 %v9191, %v8614
        %v9193 = vmax.f32 %v9192, %v8617
        %v9194 = vmax.f32 %v9193, %v8619
        %v9195 = vmax.f32 %v9194, %v8622
        %v9196 = vmax.f32 %v9195, %v8624
        %v9197 = vmax.f32 %v9196, %v8627
        %v9198 = vmax.f32 %v9197, %v8629
        %v9199 = vmax.f32 %v9198, %v8632
        %v9200 = vmax.f32 %v9199, %v8634
        %v9201 = vmax.f32 %v9200, %v8637
        %v9202 = vmax.f32 %v9201, %v8639
        %v9203 = vmax.f32 %v9202, %v8642
        %v9204 = vmax.f32 %v9203, %v8644
        %v9205 = vmax.f32 %v9204, %v8647
        %v9206 = vmax.f32 %v9205, %v8649
        %v9207 = vmax.f32 %v9206, %v8652
        %v9208 = vmax.f32 %v9207, %v8654
        %v9209 = vmax.f32 %v9208, %v8657
        %v9210 = vmax.f32 %v9209, %v8659
        %v9211 = vrot.slane %v9210, 4
        %v9212 = vmax.f32 %v9210, %v9211
        %v9213 = vrot.slane %v9212, 2
        %v9214 = vmax.f32 %v9212, %v9213
        %v9215 = vrot.slane %v9214, 1
        %v9216 = vmax.f32 %v9214, %v9215
        %v9217 = vmax.f32 %v8671, %v8673
        %v9218 = vmax.f32 %v9217, %v8676
        %v9219 = vmax.f32 %v9218, %v8678
        %v9220 = vmax.f32 %v9219, %v8681
        %v9221 = vmax.f32 %v9220, %v8683
        %v9222 = vmax.f32 %v9221, %v8686
        %v9223 = vmax.f32 %v9222, %v8688
        %v9224 = vmax.f32 %v9223, %v8691
        %v9225 = vmax.f32 %v9224, %v8693
        %v9226 = vmax.f32 %v9225, %v8696
        %v9227 = vmax.f32 %v9226, %v8698
        %v9228 = vmax.f32 %v9227, %v8701
        %v9229 = vmax.f32 %v9228, %v8703
        %v9230 = vmax.f32 %v9229, %v8706
        %v9231 = vmax.f32 %v9230, %v8708
        %v9232 = vmax.f32 %v9231, %v8711
        %v9233 = vmax.f32 %v9232, %v8713
        %v9234 = vmax.f32 %v9233, %v8716
        %v9235 = vmax.f32 %v9234, %v8718
        %v9236 = vmax.f32 %v9235, %v8721
        %v9237 = vmax.f32 %v9236, %v8723
        %v9238 = vmax.f32 %v9237, %v8726
        %v9239 = vmax.f32 %v9238, %v8728
        %v9240 = vmax.f32 %v9239, %v8731
        %v9241 = vmax.f32 %v9240, %v8733
        %v9242 = vmax.f32 %v9241, %v8736
        %v9243 = vmax.f32 %v9242, %v8738
        %v9244 = vmax.f32 %v9243, %v8741
        %v9245 = vmax.f32 %v9244, %v8743
        %v9246 = vmax.f32 %v9245, %v8746
        %v9247 = vmax.f32 %v9246, %v8748
        %v9248 = vrot.slane %v9247, 4
        %v9249 = vmax.f32 %v9247, %v9248
        %v9250 = vrot.slane %v9249, 2
        %v9251 = vmax.f32 %v9249, %v9250
        %v9252 = vrot.slane %v9251, 1
        %v9253 = vmax.f32 %v9251, %v9252
        %v9254 = vmax.f32 %v8760, %v8762
        %v9255 = vmax.f32 %v9254, %v8765
        %v9256 = vmax.f32 %v9255, %v8767
        %v9257 = vmax.f32 %v9256, %v8770
        %v9258 = vmax.f32 %v9257, %v8772
        %v9259 = vmax.f32 %v9258, %v8775
        %v9260 = vmax.f32 %v9259, %v8777
        %v9261 = vmax.f32 %v9260, %v8780
        %v9262 = vmax.f32 %v9261, %v8782
        %v9263 = vmax.f32 %v9262, %v8785
        %v9264 = vmax.f32 %v9263, %v8787
        %v9265 = vmax.f32 %v9264, %v8790
        %v9266 = vmax.f32 %v9265, %v8792
        %v9267 = vmax.f32 %v9266, %v8795
        %v9268 = vmax.f32 %v9267, %v8797
        %v9269 = vmax.f32 %v9268, %v8800
        %v9270 = vmax.f32 %v9269, %v8802
        %v9271 = vmax.f32 %v9270, %v8805
        %v9272 = vmax.f32 %v9271, %v8807
        %v9273 = vmax.f32 %v9272, %v8810
        %v9274 = vmax.f32 %v9273, %v8812
        %v9275 = vmax.f32 %v9274, %v8815
        %v9276 = vmax.f32 %v9275, %v8817
        %v9277 = vmax.f32 %v9276, %v8820
        %v9278 = vmax.f32 %v9277, %v8822
        %v9279 = vmax.f32 %v9278, %v8825
        %v9280 = vmax.f32 %v9279, %v8827
        %v9281 = vmax.f32 %v9280, %v8830
        %v9282 = vmax.f32 %v9281, %v8832
        %v9283 = vmax.f32 %v9282, %v8835
        %v9284 = vmax.f32 %v9283, %v8837
        %v9285 = vrot.slane %v9284, 4
        %v9286 = vmax.f32 %v9284, %v9285
        %v9287 = vrot.slane %v9286, 2
        %v9288 = vmax.f32 %v9286, %v9287
        %v9289 = vrot.slane %v9288, 1
        %v9290 = vmax.f32 %v9288, %v9289
        %v9291 = vmax.f32 %v8849, %v8851
        %v9292 = vmax.f32 %v9291, %v8854
        %v9293 = vmax.f32 %v9292, %v8856
        %v9294 = vmax.f32 %v9293, %v8859
        %v9295 = vmax.f32 %v9294, %v8861
        %v9296 = vmax.f32 %v9295, %v8864
        %v9297 = vmax.f32 %v9296, %v8866
        %v9298 = vmax.f32 %v9297, %v8869
        %v9299 = vmax.f32 %v9298, %v8871
        %v9300 = vmax.f32 %v9299, %v8874
        %v9301 = vmax.f32 %v9300, %v8876
        %v9302 = vmax.f32 %v9301, %v8879
        %v9303 = vmax.f32 %v9302, %v8881
        %v9304 = vmax.f32 %v9303, %v8884
        %v9305 = vmax.f32 %v9304, %v8886
        %v9306 = vmax.f32 %v9305, %v8889
        %v9307 = vmax.f32 %v9306, %v8891
        %v9308 = vmax.f32 %v9307, %v8894
        %v9309 = vmax.f32 %v9308, %v8896
        %v9310 = vmax.f32 %v9309, %v8899
        %v9311 = vmax.f32 %v9310, %v8901
        %v9312 = vmax.f32 %v9311, %v8904
        %v9313 = vmax.f32 %v9312, %v8906
        %v9314 = vmax.f32 %v9313, %v8909
        %v9315 = vmax.f32 %v9314, %v8911
        %v9316 = vmax.f32 %v9315, %v8914
        %v9317 = vmax.f32 %v9316, %v8916
        %v9318 = vmax.f32 %v9317, %v8919
        %v9319 = vmax.f32 %v9318, %v8921
        %v9320 = vmax.f32 %v9319, %v8924
        %v9321 = vmax.f32 %v9320, %v8926
        %v9322 = vrot.slane %v9321, 4
        %v9323 = vmax.f32 %v9321, %v9322
        %v9324 = vrot.slane %v9323, 2
        %v9325 = vmax.f32 %v9323, %v9324
        %v9326 = vrot.slane %v9325, 1
        %v9327 = vmax.f32 %v9325, %v9326
        %v9328 = vmax.f32 %v8938, %v8940
        %v9329 = vmax.f32 %v9328, %v8943
        %v9330 = vmax.f32 %v9329, %v8945
        %v9331 = vmax.f32 %v9330, %v8948
        %v9332 = vmax.f32 %v9331, %v8950
        %v9333 = vmax.f32 %v9332, %v8953
        %v9334 = vmax.f32 %v9333, %v8955
        %v9335 = vmax.f32 %v9334, %v8958
        %v9336 = vmax.f32 %v9335, %v8960
        %v9337 = vmax.f32 %v9336, %v8963
        %v9338 = vmax.f32 %v9337, %v8965
        %v9339 = vmax.f32 %v9338, %v8968
        %v9340 = vmax.f32 %v9339, %v8970
        %v9341 = vmax.f32 %v9340, %v8973
        %v9342 = vmax.f32 %v9341, %v8975
        %v9343 = vmax.f32 %v9342, %v8978
        %v9344 = vmax.f32 %v9343, %v8980
        %v9345 = vmax.f32 %v9344, %v8983
        %v9346 = vmax.f32 %v9345, %v8985
        %v9347 = vmax.f32 %v9346, %v8988
        %v9348 = vmax.f32 %v9347, %v8990
        %v9349 = vmax.f32 %v9348, %v8993
        %v9350 = vmax.f32 %v9349, %v8995
        %v9351 = vmax.f32 %v9350, %v8998
        %v9352 = vmax.f32 %v9351, %v9000
        %v9353 = vmax.f32 %v9352, %v9003
        %v9354 = vmax.f32 %v9353, %v9005
        %v9355 = vmax.f32 %v9354, %v9008
        %v9356 = vmax.f32 %v9355, %v9010
        %v9357 = vmax.f32 %v9356, %v9013
        %v9358 = vmax.f32 %v9357, %v9015
        %v9359 = vrot.slane %v9358, 4
        %v9360 = vmax.f32 %v9358, %v9359
        %v9361 = vrot.slane %v9360, 2
        %v9362 = vmax.f32 %v9360, %v9361
        %v9363 = vrot.slane %v9362, 1
        %v9364 = vmax.f32 %v9362, %v9363
        %v9365 = vmax.f32 %v9027, %v9029
        %v9366 = vmax.f32 %v9365, %v9032
        %v9367 = vmax.f32 %v9366, %v9034
        %v9368 = vmax.f32 %v9367, %v9037
        %v9369 = vmax.f32 %v9368, %v9039
        %v9370 = vmax.f32 %v9369, %v9042
        %v9371 = vmax.f32 %v9370, %v9044
        %v9372 = vmax.f32 %v9371, %v9047
        %v9373 = vmax.f32 %v9372, %v9049
        %v9374 = vmax.f32 %v9373, %v9052
        %v9375 = vmax.f32 %v9374, %v9054
        %v9376 = vmax.f32 %v9375, %v9057
        %v9377 = vmax.f32 %v9376, %v9059
        %v9378 = vmax.f32 %v9377, %v9062
        %v9379 = vmax.f32 %v9378, %v9064
        %v9380 = vmax.f32 %v9379, %v9067
        %v9381 = vmax.f32 %v9380, %v9069
        %v9382 = vmax.f32 %v9381, %v9072
        %v9383 = vmax.f32 %v9382, %v9074
        %v9384 = vmax.f32 %v9383, %v9077
        %v9385 = vmax.f32 %v9384, %v9079
        %v9386 = vmax.f32 %v9385, %v9082
        %v9387 = vmax.f32 %v9386, %v9084
        %v9388 = vmax.f32 %v9387, %v9087
        %v9389 = vmax.f32 %v9388, %v9089
        %v9390 = vmax.f32 %v9389, %v9092
        %v9391 = vmax.f32 %v9390, %v9094
        %v9392 = vmax.f32 %v9391, %v9097
        %v9393 = vmax.f32 %v9392, %v9099
        %v9394 = vmax.f32 %v9393, %v9102
        %v9395 = vmax.f32 %v9394, %v9104
        %v9396 = vrot.slane %v9395, 4
        %v9397 = vmax.f32 %v9395, %v9396
        %v9398 = vrot.slane %v9397, 2
        %v9399 = vmax.f32 %v9397, %v9398
        %v9400 = vrot.slane %v9399, 1
        %v9401 = vmax.f32 %v9399, %v9400
        %v9402 = vadd.f32 %v8404, %v8406
        %v9403 = vadd.f32 %v9402, %v8409
        %v9404 = vadd.f32 %v9403, %v8411
        %v9405 = vadd.f32 %v9404, %v8414
        %v9406 = vadd.f32 %v9405, %v8416
        %v9407 = vadd.f32 %v9406, %v8419
        %v9408 = vadd.f32 %v9407, %v8421
        %v9409 = vadd.f32 %v9408, %v8424
        %v9410 = vadd.f32 %v9409, %v8426
        %v9411 = vadd.f32 %v9410, %v8429
        %v9412 = vadd.f32 %v9411, %v8431
        %v9413 = vadd.f32 %v9412, %v8434
        %v9414 = vadd.f32 %v9413, %v8436
        %v9415 = vadd.f32 %v9414, %v8439
        %v9416 = vadd.f32 %v9415, %v8441
        %v9417 = vadd.f32 %v9416, %v8444
        %v9418 = vadd.f32 %v9417, %v8446
        %v9419 = vadd.f32 %v9418, %v8449
        %v9420 = vadd.f32 %v9419, %v8451
        %v9421 = vadd.f32 %v9420, %v8454
        %v9422 = vadd.f32 %v9421, %v8456
        %v9423 = vadd.f32 %v9422, %v8459
        %v9424 = vadd.f32 %v9423, %v8461
        %v9425 = vadd.f32 %v9424, %v8464
        %v9426 = vadd.f32 %v9425, %v8466
        %v9427 = vadd.f32 %v9426, %v8469
        %v9428 = vadd.f32 %v9427, %v8471
        %v9429 = vadd.f32 %v9428, %v8474
        %v9430 = vadd.f32 %v9429, %v8476
        %v9431 = vadd.f32 %v9430, %v8479
        %v9432 = vadd.f32 %v9431, %v8481
        %v9433 = vrot.slane %v9432, 4
        %v9434 = vadd.f32 %v9432, %v9433
        %v9435 = vrot.slane %v9434, 2
        %v9436 = vadd.f32 %v9434, %v9435
        %v9437 = vrot.slane %v9436, 1
        %v9438 = vadd.f32 %v9436, %v9437
        %v9439 = vadd.f32 %v8493, %v8495
        %v9440 = vadd.f32 %v9439, %v8498
        %v9441 = vadd.f32 %v9440, %v8500
        %v9442 = vadd.f32 %v9441, %v8503
        %v9443 = vadd.f32 %v9442, %v8505
        %v9444 = vadd.f32 %v9443, %v8508
        %v9445 = vadd.f32 %v9444, %v8510
        %v9446 = vadd.f32 %v9445, %v8513
        %v9447 = vadd.f32 %v9446, %v8515
        %v9448 = vadd.f32 %v9447, %v8518
        %v9449 = vadd.f32 %v9448, %v8520
        %v9450 = vadd.f32 %v9449, %v8523
        %v9451 = vadd.f32 %v9450, %v8525
        %v9452 = vadd.f32 %v9451, %v8528
        %v9453 = vadd.f32 %v9452, %v8530
        %v9454 = vadd.f32 %v9453, %v8533
        %v9455 = vadd.f32 %v9454, %v8535
        %v9456 = vadd.f32 %v9455, %v8538
        %v9457 = vadd.f32 %v9456, %v8540
        %v9458 = vadd.f32 %v9457, %v8543
        %v9459 = vadd.f32 %v9458, %v8545
        %v9460 = vadd.f32 %v9459, %v8548
        %v9461 = vadd.f32 %v9460, %v8550
        %v9462 = vadd.f32 %v9461, %v8553
        %v9463 = vadd.f32 %v9462, %v8555
        %v9464 = vadd.f32 %v9463, %v8558
        %v9465 = vadd.f32 %v9464, %v8560
        %v9466 = vadd.f32 %v9465, %v8563
        %v9467 = vadd.f32 %v9466, %v8565
        %v9468 = vadd.f32 %v9467, %v8568
        %v9469 = vadd.f32 %v9468, %v8570
        %v9470 = vrot.slane %v9469, 4
        %v9471 = vadd.f32 %v9469, %v9470
        %v9472 = vrot.slane %v9471, 2
        %v9473 = vadd.f32 %v9471, %v9472
        %v9474 = vrot.slane %v9473, 1
        %v9475 = vadd.f32 %v9473, %v9474
        %v9476 = vadd.f32 %v8582, %v8584
        %v9477 = vadd.f32 %v9476, %v8587
        %v9478 = vadd.f32 %v9477, %v8589
        %v9479 = vadd.f32 %v9478, %v8592
        %v9480 = vadd.f32 %v9479, %v8594
        %v9481 = vadd.f32 %v9480, %v8597
        %v9482 = vadd.f32 %v9481, %v8599
        %v9483 = vadd.f32 %v9482, %v8602
        %v9484 = vadd.f32 %v9483, %v8604
        %v9485 = vadd.f32 %v9484, %v8607
        %v9486 = vadd.f32 %v9485, %v8609
        %v9487 = vadd.f32 %v9486, %v8612
        %v9488 = vadd.f32 %v9487, %v8614
        %v9489 = vadd.f32 %v9488, %v8617
        %v9490 = vadd.f32 %v9489, %v8619
        %v9491 = vadd.f32 %v9490, %v8622
        %v9492 = vadd.f32 %v9491, %v8624
        %v9493 = vadd.f32 %v9492, %v8627
        %v9494 = vadd.f32 %v9493, %v8629
        %v9495 = vadd.f32 %v9494, %v8632
        %v9496 = vadd.f32 %v9495, %v8634
        %v9497 = vadd.f32 %v9496, %v8637
        %v9498 = vadd.f32 %v9497, %v8639
        %v9499 = vadd.f32 %v9498, %v8642
        %v9500 = vadd.f32 %v9499, %v8644
        %v9501 = vadd.f32 %v9500, %v8647
        %v9502 = vadd.f32 %v9501, %v8649
        %v9503 = vadd.f32 %v9502, %v8652
        %v9504 = vadd.f32 %v9503, %v8654
        %v9505 = vadd.f32 %v9504, %v8657
        %v9506 = vadd.f32 %v9505, %v8659
        %v9507 = vrot.slane %v9506, 4
        %v9508 = vadd.f32 %v9506, %v9507
        %v9509 = vrot.slane %v9508, 2
        %v9510 = vadd.f32 %v9508, %v9509
        %v9511 = vrot.slane %v9510, 1
        %v9512 = vadd.f32 %v9510, %v9511
        %v9513 = vadd.f32 %v8671, %v8673
        %v9514 = vadd.f32 %v9513, %v8676
        %v9515 = vadd.f32 %v9514, %v8678
        %v9516 = vadd.f32 %v9515, %v8681
        %v9517 = vadd.f32 %v9516, %v8683
        %v9518 = vadd.f32 %v9517, %v8686
        %v9519 = vadd.f32 %v9518, %v8688
        %v9520 = vadd.f32 %v9519, %v8691
        %v9521 = vadd.f32 %v9520, %v8693
        %v9522 = vadd.f32 %v9521, %v8696
        %v9523 = vadd.f32 %v9522, %v8698
        %v9524 = vadd.f32 %v9523, %v8701
        %v9525 = vadd.f32 %v9524, %v8703
        %v9526 = vadd.f32 %v9525, %v8706
        %v9527 = vadd.f32 %v9526, %v8708
        %v9528 = vadd.f32 %v9527, %v8711
        %v9529 = vadd.f32 %v9528, %v8713
        %v9530 = vadd.f32 %v9529, %v8716
        %v9531 = vadd.f32 %v9530, %v8718
        %v9532 = vadd.f32 %v9531, %v8721
        %v9533 = vadd.f32 %v9532, %v8723
        %v9534 = vadd.f32 %v9533, %v8726
        %v9535 = vadd.f32 %v9534, %v8728
        %v9536 = vadd.f32 %v9535, %v8731
        %v9537 = vadd.f32 %v9536, %v8733
        %v9538 = vadd.f32 %v9537, %v8736
        %v9539 = vadd.f32 %v9538, %v8738
        %v9540 = vadd.f32 %v9539, %v8741
        %v9541 = vadd.f32 %v9540, %v8743
        %v9542 = vadd.f32 %v9541, %v8746
        %v9543 = vadd.f32 %v9542, %v8748
        %v9544 = vrot.slane %v9543, 4
        %v9545 = vadd.f32 %v9543, %v9544
        %v9546 = vrot.slane %v9545, 2
        %v9547 = vadd.f32 %v9545, %v9546
        %v9548 = vrot.slane %v9547, 1
        %v9549 = vadd.f32 %v9547, %v9548
        %v9550 = vadd.f32 %v8760, %v8762
        %v9551 = vadd.f32 %v9550, %v8765
        %v9552 = vadd.f32 %v9551, %v8767
        %v9553 = vadd.f32 %v9552, %v8770
        %v9554 = vadd.f32 %v9553, %v8772
        %v9555 = vadd.f32 %v9554, %v8775
        %v9556 = vadd.f32 %v9555, %v8777
        %v9557 = vadd.f32 %v9556, %v8780
        %v9558 = vadd.f32 %v9557, %v8782
        %v9559 = vadd.f32 %v9558, %v8785
        %v9560 = vadd.f32 %v9559, %v8787
        %v9561 = vadd.f32 %v9560, %v8790
        %v9562 = vadd.f32 %v9561, %v8792
        %v9563 = vadd.f32 %v9562, %v8795
        %v9564 = vadd.f32 %v9563, %v8797
        %v9565 = vadd.f32 %v9564, %v8800
        %v9566 = vadd.f32 %v9565, %v8802
        %v9567 = vadd.f32 %v9566, %v8805
        %v9568 = vadd.f32 %v9567, %v8807
        %v9569 = vadd.f32 %v9568, %v8810
        %v9570 = vadd.f32 %v9569, %v8812
        %v9571 = vadd.f32 %v9570, %v8815
        %v9572 = vadd.f32 %v9571, %v8817
        %v9573 = vadd.f32 %v9572, %v8820
        %v9574 = vadd.f32 %v9573, %v8822
        %v9575 = vadd.f32 %v9574, %v8825
        %v9576 = vadd.f32 %v9575, %v8827
        %v9577 = vadd.f32 %v9576, %v8830
        %v9578 = vadd.f32 %v9577, %v8832
        %v9579 = vadd.f32 %v9578, %v8835
        %v9580 = vadd.f32 %v9579, %v8837
        %v9581 = vrot.slane %v9580, 4
        %v9582 = vadd.f32 %v9580, %v9581
        %v9583 = vrot.slane %v9582, 2
        %v9584 = vadd.f32 %v9582, %v9583
        %v9585 = vrot.slane %v9584, 1
        %v9586 = vadd.f32 %v9584, %v9585
        %v9587 = vadd.f32 %v8849, %v8851
        %v9588 = vadd.f32 %v9587, %v8854
        %v9589 = vadd.f32 %v9588, %v8856
        %v9590 = vadd.f32 %v9589, %v8859
        %v9591 = vadd.f32 %v9590, %v8861
        %v9592 = vadd.f32 %v9591, %v8864
        %v9593 = vadd.f32 %v9592, %v8866
        %v9594 = vadd.f32 %v9593, %v8869
        %v9595 = vadd.f32 %v9594, %v8871
        %v9596 = vadd.f32 %v9595, %v8874
        %v9597 = vadd.f32 %v9596, %v8876
        %v9598 = vadd.f32 %v9597, %v8879
        %v9599 = vadd.f32 %v9598, %v8881
        %v9600 = vadd.f32 %v9599, %v8884
        %v9601 = vadd.f32 %v9600, %v8886
        %v9602 = vadd.f32 %v9601, %v8889
        %v9603 = vadd.f32 %v9602, %v8891
        %v9604 = vadd.f32 %v9603, %v8894
        %v9605 = vadd.f32 %v9604, %v8896
        %v9606 = vadd.f32 %v9605, %v8899
        %v9607 = vadd.f32 %v9606, %v8901
        %v9608 = vadd.f32 %v9607, %v8904
        %v9609 = vadd.f32 %v9608, %v8906
        %v9610 = vadd.f32 %v9609, %v8909
        %v9611 = vadd.f32 %v9610, %v8911
        %v9612 = vadd.f32 %v9611, %v8914
        %v9613 = vadd.f32 %v9612, %v8916
        %v9614 = vadd.f32 %v9613, %v8919
        %v9615 = vadd.f32 %v9614, %v8921
        %v9616 = vadd.f32 %v9615, %v8924
        %v9617 = vadd.f32 %v9616, %v8926
        %v9618 = vrot.slane %v9617, 4
        %v9619 = vadd.f32 %v9617, %v9618
        %v9620 = vrot.slane %v9619, 2
        %v9621 = vadd.f32 %v9619, %v9620
        %v9622 = vrot.slane %v9621, 1
        %v9623 = vadd.f32 %v9621, %v9622
        %v9624 = vadd.f32 %v8938, %v8940
        %v9625 = vadd.f32 %v9624, %v8943
        %v9626 = vadd.f32 %v9625, %v8945
        %v9627 = vadd.f32 %v9626, %v8948
        %v9628 = vadd.f32 %v9627, %v8950
        %v9629 = vadd.f32 %v9628, %v8953
        %v9630 = vadd.f32 %v9629, %v8955
        %v9631 = vadd.f32 %v9630, %v8958
        %v9632 = vadd.f32 %v9631, %v8960
        %v9633 = vadd.f32 %v9632, %v8963
        %v9634 = vadd.f32 %v9633, %v8965
        %v9635 = vadd.f32 %v9634, %v8968
        %v9636 = vadd.f32 %v9635, %v8970
        %v9637 = vadd.f32 %v9636, %v8973
        %v9638 = vadd.f32 %v9637, %v8975
        %v9639 = vadd.f32 %v9638, %v8978
        %v9640 = vadd.f32 %v9639, %v8980
        %v9641 = vadd.f32 %v9640, %v8983
        %v9642 = vadd.f32 %v9641, %v8985
        %v9643 = vadd.f32 %v9642, %v8988
        %v9644 = vadd.f32 %v9643, %v8990
        %v9645 = vadd.f32 %v9644, %v8993
        %v9646 = vadd.f32 %v9645, %v8995
        %v9647 = vadd.f32 %v9646, %v8998
        %v9648 = vadd.f32 %v9647, %v9000
        %v9649 = vadd.f32 %v9648, %v9003
        %v9650 = vadd.f32 %v9649, %v9005
        %v9651 = vadd.f32 %v9650, %v9008
        %v9652 = vadd.f32 %v9651, %v9010
        %v9653 = vadd.f32 %v9652, %v9013
        %v9654 = vadd.f32 %v9653, %v9015
        %v9655 = vrot.slane %v9654, 4
        %v9656 = vadd.f32 %v9654, %v9655
        %v9657 = vrot.slane %v9656, 2
        %v9658 = vadd.f32 %v9656, %v9657
        %v9659 = vrot.slane %v9658, 1
        %v9660 = vadd.f32 %v9658, %v9659
        %v9661 = vadd.f32 %v9027, %v9029
        %v9662 = vadd.f32 %v9661, %v9032
        %v9663 = vadd.f32 %v9662, %v9034
        %v9664 = vadd.f32 %v9663, %v9037
        %v9665 = vadd.f32 %v9664, %v9039
        %v9666 = vadd.f32 %v9665, %v9042
        %v9667 = vadd.f32 %v9666, %v9044
        %v9668 = vadd.f32 %v9667, %v9047
        %v9669 = vadd.f32 %v9668, %v9049
        %v9670 = vadd.f32 %v9669, %v9052
        %v9671 = vadd.f32 %v9670, %v9054
        %v9672 = vadd.f32 %v9671, %v9057
        %v9673 = vadd.f32 %v9672, %v9059
        %v9674 = vadd.f32 %v9673, %v9062
        %v9675 = vadd.f32 %v9674, %v9064
        %v9676 = vadd.f32 %v9675, %v9067
        %v9677 = vadd.f32 %v9676, %v9069
        %v9678 = vadd.f32 %v9677, %v9072
        %v9679 = vadd.f32 %v9678, %v9074
        %v9680 = vadd.f32 %v9679, %v9077
        %v9681 = vadd.f32 %v9680, %v9079
        %v9682 = vadd.f32 %v9681, %v9082
        %v9683 = vadd.f32 %v9682, %v9084
        %v9684 = vadd.f32 %v9683, %v9087
        %v9685 = vadd.f32 %v9684, %v9089
        %v9686 = vadd.f32 %v9685, %v9092
        %v9687 = vadd.f32 %v9686, %v9094
        %v9688 = vadd.f32 %v9687, %v9097
        %v9689 = vadd.f32 %v9688, %v9099
        %v9690 = vadd.f32 %v9689, %v9102
        %v9691 = vadd.f32 %v9690, %v9104
        %v9692 = vrot.slane %v9691, 4
        %v9693 = vadd.f32 %v9691, %v9692
        %v9694 = vrot.slane %v9693, 2
        %v9695 = vadd.f32 %v9693, %v9694
        %v9696 = vrot.slane %v9695, 1
        %v9697 = vadd.f32 %v9695, %v9696
        %v9698 = vmul.f32 %v9438, 0.00390625
        %v9699 = vmul.f32 %v9475, 0.00390625
        %v9700 = vmul.f32 %v9512, 0.00390625
        %v9701 = vmul.f32 %v9549, 0.00390625
        %v9702 = vmul.f32 %v9586, 0.00390625
        %v9703 = vmul.f32 %v9623, 0.00390625
        %v9704 = vmul.f32 %v9660, 0.00390625
        %v9705 = vmul.f32 %v9697, 0.00390625
        %v9706 = vmul.f32 %v8404, %v8404
        %v9707 = vmul.f32 %v8493, %v8493
        %v9708 = vmul.f32 %v8582, %v8582
        %v9709 = vmul.f32 %v8671, %v8671
        %v9710 = vmul.f32 %v8760, %v8760
        %v9711 = vmul.f32 %v8849, %v8849
        %v9712 = vmul.f32 %v8938, %v8938
        %v9713 = vmul.f32 %v9027, %v9027
        %v9714 = vmul.f32 %v8406, %v8406
        %v9715 = vmul.f32 %v8495, %v8495
        %v9716 = vmul.f32 %v8584, %v8584
        %v9717 = vmul.f32 %v8673, %v8673
        %v9718 = vmul.f32 %v8762, %v8762
        %v9719 = vmul.f32 %v8851, %v8851
        %v9720 = vmul.f32 %v8940, %v8940
        %v9721 = vmul.f32 %v9029, %v9029
        %v9722 = vmul.f32 %v8409, %v8409
        %v9723 = vmul.f32 %v8498, %v8498
        %v9724 = vmul.f32 %v8587, %v8587
        %v9725 = vmul.f32 %v8676, %v8676
        %v9726 = vmul.f32 %v8765, %v8765
        %v9727 = vmul.f32 %v8854, %v8854
        %v9728 = vmul.f32 %v8943, %v8943
        %v9729 = vmul.f32 %v9032, %v9032
        %v9730 = vmul.f32 %v8411, %v8411
        %v9731 = vmul.f32 %v8500, %v8500
        %v9732 = vmul.f32 %v8589, %v8589
        %v9733 = vmul.f32 %v8678, %v8678
        %v9734 = vmul.f32 %v8767, %v8767
        %v9735 = vmul.f32 %v8856, %v8856
        %v9736 = vmul.f32 %v8945, %v8945
        %v9737 = vmul.f32 %v9034, %v9034
        %v9738 = vmul.f32 %v8414, %v8414
        %v9739 = vmul.f32 %v8503, %v8503
        %v9740 = vmul.f32 %v8592, %v8592
        %v9741 = vmul.f32 %v8681, %v8681
        %v9742 = vmul.f32 %v8770, %v8770
        %v9743 = vmul.f32 %v8859, %v8859
        %v9744 = vmul.f32 %v8948, %v8948
        %v9745 = vmul.f32 %v9037, %v9037
        %v9746 = vmul.f32 %v8416, %v8416
        %v9747 = vmul.f32 %v8505, %v8505
        %v9748 = vmul.f32 %v8594, %v8594
        %v9749 = vmul.f32 %v8683, %v8683
        %v9750 = vmul.f32 %v8772, %v8772
        %v9751 = vmul.f32 %v8861, %v8861
        %v9752 = vmul.f32 %v8950, %v8950
        %v9753 = vmul.f32 %v9039, %v9039
        %v9754 = vmul.f32 %v8419, %v8419
        %v9755 = vmul.f32 %v8508, %v8508
        %v9756 = vmul.f32 %v8597, %v8597
        %v9757 = vmul.f32 %v8686, %v8686
        %v9758 = vmul.f32 %v8775, %v8775
        %v9759 = vmul.f32 %v8864, %v8864
        %v9760 = vmul.f32 %v8953, %v8953
        %v9761 = vmul.f32 %v9042, %v9042
        %v9762 = vmul.f32 %v8421, %v8421
        %v9763 = vmul.f32 %v8510, %v8510
        %v9764 = vmul.f32 %v8599, %v8599
        %v9765 = vmul.f32 %v8688, %v8688
        %v9766 = vmul.f32 %v8777, %v8777
        %v9767 = vmul.f32 %v8866, %v8866
        %v9768 = vmul.f32 %v8955, %v8955
        %v9769 = vmul.f32 %v9044, %v9044
        %v9770 = vmul.f32 %v8424, %v8424
        %v9771 = vmul.f32 %v8513, %v8513
        %v9772 = vmul.f32 %v8602, %v8602
        %v9773 = vmul.f32 %v8691, %v8691
        %v9774 = vmul.f32 %v8780, %v8780
        %v9775 = vmul.f32 %v8869, %v8869
        %v9776 = vmul.f32 %v8958, %v8958
        %v9777 = vmul.f32 %v9047, %v9047
        %v9778 = vmul.f32 %v8426, %v8426
        %v9779 = vmul.f32 %v8515, %v8515
        %v9780 = vmul.f32 %v8604, %v8604
        %v9781 = vmul.f32 %v8693, %v8693
        %v9782 = vmul.f32 %v8782, %v8782
        %v9783 = vmul.f32 %v8871, %v8871
        %v9784 = vmul.f32 %v8960, %v8960
        %v9785 = vmul.f32 %v9049, %v9049
        %v9786 = vmul.f32 %v8429, %v8429
        %v9787 = vmul.f32 %v8518, %v8518
        %v9788 = vmul.f32 %v8607, %v8607
        %v9789 = vmul.f32 %v8696, %v8696
        %v9790 = vmul.f32 %v8785, %v8785
        %v9791 = vmul.f32 %v8874, %v8874
        %v9792 = vmul.f32 %v8963, %v8963
        %v9793 = vmul.f32 %v9052, %v9052
        %v9794 = vmul.f32 %v8431, %v8431
        %v9795 = vmul.f32 %v8520, %v8520
        %v9796 = vmul.f32 %v8609, %v8609
        %v9797 = vmul.f32 %v8698, %v8698
        %v9798 = vmul.f32 %v8787, %v8787
        %v9799 = vmul.f32 %v8876, %v8876
        %v9800 = vmul.f32 %v8965, %v8965
        %v9801 = vmul.f32 %v9054, %v9054
        %v9802 = vmul.f32 %v8434, %v8434
        %v9803 = vmul.f32 %v8523, %v8523
        %v9804 = vmul.f32 %v8612, %v8612
        %v9805 = vmul.f32 %v8701, %v8701
        %v9806 = vmul.f32 %v8790, %v8790
        %v9807 = vmul.f32 %v8879, %v8879
        %v9808 = vmul.f32 %v8968, %v8968
        %v9809 = vmul.f32 %v9057, %v9057
        %v9810 = vmul.f32 %v8436, %v8436
        %v9811 = vmul.f32 %v8525, %v8525
        %v9812 = vmul.f32 %v8614, %v8614
        %v9813 = vmul.f32 %v8703, %v8703
        %v9814 = vmul.f32 %v8792, %v8792
        %v9815 = vmul.f32 %v8881, %v8881
        %v9816 = vmul.f32 %v8970, %v8970
        %v9817 = vmul.f32 %v9059, %v9059
        %v9818 = vmul.f32 %v8439, %v8439
        %v9819 = vmul.f32 %v8528, %v8528
        %v9820 = vmul.f32 %v8617, %v8617
        %v9821 = vmul.f32 %v8706, %v8706
        %v9822 = vmul.f32 %v8795, %v8795
        %v9823 = vmul.f32 %v8884, %v8884
        %v9824 = vmul.f32 %v8973, %v8973
        %v9825 = vmul.f32 %v9062, %v9062
        %v9826 = vmul.f32 %v8441, %v8441
        %v9827 = vmul.f32 %v8530, %v8530
        %v9828 = vmul.f32 %v8619, %v8619
        %v9829 = vmul.f32 %v8708, %v8708
        %v9830 = vmul.f32 %v8797, %v8797
        %v9831 = vmul.f32 %v8886, %v8886
        %v9832 = vmul.f32 %v8975, %v8975
        %v9833 = vmul.f32 %v9064, %v9064
        %v9834 = vmul.f32 %v8444, %v8444
        %v9835 = vmul.f32 %v8533, %v8533
        %v9836 = vmul.f32 %v8622, %v8622
        %v9837 = vmul.f32 %v8711, %v8711
        %v9838 = vmul.f32 %v8800, %v8800
        %v9839 = vmul.f32 %v8889, %v8889
        %v9840 = vmul.f32 %v8978, %v8978
        %v9841 = vmul.f32 %v9067, %v9067
        %v9842 = vmul.f32 %v8446, %v8446
        %v9843 = vmul.f32 %v8535, %v8535
        %v9844 = vmul.f32 %v8624, %v8624
        %v9845 = vmul.f32 %v8713, %v8713
        %v9846 = vmul.f32 %v8802, %v8802
        %v9847 = vmul.f32 %v8891, %v8891
        %v9848 = vmul.f32 %v8980, %v8980
        %v9849 = vmul.f32 %v9069, %v9069
        %v9850 = vmul.f32 %v8449, %v8449
        %v9851 = vmul.f32 %v8538, %v8538
        %v9852 = vmul.f32 %v8627, %v8627
        %v9853 = vmul.f32 %v8716, %v8716
        %v9854 = vmul.f32 %v8805, %v8805
        %v9855 = vmul.f32 %v8894, %v8894
        %v9856 = vmul.f32 %v8983, %v8983
        %v9857 = vmul.f32 %v9072, %v9072
        %v9858 = vmul.f32 %v8451, %v8451
        %v9859 = vmul.f32 %v8540, %v8540
        %v9860 = vmul.f32 %v8629, %v8629
        %v9861 = vmul.f32 %v8718, %v8718
        %v9862 = vmul.f32 %v8807, %v8807
        %v9863 = vmul.f32 %v8896, %v8896
        %v9864 = vmul.f32 %v8985, %v8985
        %v9865 = vmul.f32 %v9074, %v9074
        %v9866 = vmul.f32 %v8454, %v8454
        %v9867 = vmul.f32 %v8543, %v8543
        %v9868 = vmul.f32 %v8632, %v8632
        %v9869 = vmul.f32 %v8721, %v8721
        %v9870 = vmul.f32 %v8810, %v8810
        %v9871 = vmul.f32 %v8899, %v8899
        %v9872 = vmul.f32 %v8988, %v8988
        %v9873 = vmul.f32 %v9077, %v9077
        %v9874 = vmul.f32 %v8456, %v8456
        %v9875 = vmul.f32 %v8545, %v8545
        %v9876 = vmul.f32 %v8634, %v8634
        %v9877 = vmul.f32 %v8723, %v8723
        %v9878 = vmul.f32 %v8812, %v8812
        %v9879 = vmul.f32 %v8901, %v8901
        %v9880 = vmul.f32 %v8990, %v8990
        %v9881 = vmul.f32 %v9079, %v9079
        %v9882 = vmul.f32 %v8459, %v8459
        %v9883 = vmul.f32 %v8548, %v8548
        %v9884 = vmul.f32 %v8637, %v8637
        %v9885 = vmul.f32 %v8726, %v8726
        %v9886 = vmul.f32 %v8815, %v8815
        %v9887 = vmul.f32 %v8904, %v8904
        %v9888 = vmul.f32 %v8993, %v8993
        %v9889 = vmul.f32 %v9082, %v9082
        %v9890 = vmul.f32 %v8461, %v8461
        %v9891 = vmul.f32 %v8550, %v8550
        %v9892 = vmul.f32 %v8639, %v8639
        %v9893 = vmul.f32 %v8728, %v8728
        %v9894 = vmul.f32 %v8817, %v8817
        %v9895 = vmul.f32 %v8906, %v8906
        %v9896 = vmul.f32 %v8995, %v8995
        %v9897 = vmul.f32 %v9084, %v9084
        %v9898 = vmul.f32 %v8464, %v8464
        %v9899 = vmul.f32 %v8553, %v8553
        %v9900 = vmul.f32 %v8642, %v8642
        %v9901 = vmul.f32 %v8731, %v8731
        %v9902 = vmul.f32 %v8820, %v8820
        %v9903 = vmul.f32 %v8909, %v8909
        %v9904 = vmul.f32 %v8998, %v8998
        %v9905 = vmul.f32 %v9087, %v9087
        %v9906 = vmul.f32 %v8466, %v8466
        %v9907 = vmul.f32 %v8555, %v8555
        %v9908 = vmul.f32 %v8644, %v8644
        %v9909 = vmul.f32 %v8733, %v8733
        %v9910 = vmul.f32 %v8822, %v8822
        %v9911 = vmul.f32 %v8911, %v8911
        %v9912 = vmul.f32 %v9000, %v9000
        %v9913 = vmul.f32 %v9089, %v9089
        %v9914 = vmul.f32 %v8469, %v8469
        %v9915 = vmul.f32 %v8558, %v8558
        %v9916 = vmul.f32 %v8647, %v8647
        %v9917 = vmul.f32 %v8736, %v8736
        %v9918 = vmul.f32 %v8825, %v8825
        %v9919 = vmul.f32 %v8914, %v8914
        %v9920 = vmul.f32 %v9003, %v9003
        %v9921 = vmul.f32 %v9092, %v9092
        %v9922 = vmul.f32 %v8471, %v8471
        %v9923 = vmul.f32 %v8560, %v8560
        %v9924 = vmul.f32 %v8649, %v8649
        %v9925 = vmul.f32 %v8738, %v8738
        %v9926 = vmul.f32 %v8827, %v8827
        %v9927 = vmul.f32 %v8916, %v8916
        %v9928 = vmul.f32 %v9005, %v9005
        %v9929 = vmul.f32 %v9094, %v9094
        %v9930 = vmul.f32 %v8474, %v8474
        %v9931 = vmul.f32 %v8563, %v8563
        %v9932 = vmul.f32 %v8652, %v8652
        %v9933 = vmul.f32 %v8741, %v8741
        %v9934 = vmul.f32 %v8830, %v8830
        %v9935 = vmul.f32 %v8919, %v8919
        %v9936 = vmul.f32 %v9008, %v9008
        %v9937 = vmul.f32 %v9097, %v9097
        %v9938 = vmul.f32 %v8476, %v8476
        %v9939 = vmul.f32 %v8565, %v8565
        %v9940 = vmul.f32 %v8654, %v8654
        %v9941 = vmul.f32 %v8743, %v8743
        %v9942 = vmul.f32 %v8832, %v8832
        %v9943 = vmul.f32 %v8921, %v8921
        %v9944 = vmul.f32 %v9010, %v9010
        %v9945 = vmul.f32 %v9099, %v9099
        %v9946 = vmul.f32 %v8479, %v8479
        %v9947 = vmul.f32 %v8568, %v8568
        %v9948 = vmul.f32 %v8657, %v8657
        %v9949 = vmul.f32 %v8746, %v8746
        %v9950 = vmul.f32 %v8835, %v8835
        %v9951 = vmul.f32 %v8924, %v8924
        %v9952 = vmul.f32 %v9013, %v9013
        %v9953 = vmul.f32 %v9102, %v9102
        %v9954 = vmul.f32 %v8481, %v8481
        %v9955 = vmul.f32 %v8570, %v8570
        %v9956 = vmul.f32 %v8659, %v8659
        %v9957 = vmul.f32 %v8748, %v8748
        %v9958 = vmul.f32 %v8837, %v8837
        %v9959 = vmul.f32 %v8926, %v8926
        %v9960 = vmul.f32 %v9015, %v9015
        %v9961 = vmul.f32 %v9104, %v9104
        %v9962 = vadd.f32 %v9706, %v9714
        %v9963 = vadd.f32 %v9962, %v9722
        %v9964 = vadd.f32 %v9963, %v9730
        %v9965 = vadd.f32 %v9964, %v9738
        %v9966 = vadd.f32 %v9965, %v9746
        %v9967 = vadd.f32 %v9966, %v9754
        %v9968 = vadd.f32 %v9967, %v9762
        %v9969 = vadd.f32 %v9968, %v9770
        %v9970 = vadd.f32 %v9969, %v9778
        %v9971 = vadd.f32 %v9970, %v9786
        %v9972 = vadd.f32 %v9971, %v9794
        %v9973 = vadd.f32 %v9972, %v9802
        %v9974 = vadd.f32 %v9973, %v9810
        %v9975 = vadd.f32 %v9974, %v9818
        %v9976 = vadd.f32 %v9975, %v9826
        %v9977 = vadd.f32 %v9976, %v9834
        %v9978 = vadd.f32 %v9977, %v9842
        %v9979 = vadd.f32 %v9978, %v9850
        %v9980 = vadd.f32 %v9979, %v9858
        %v9981 = vadd.f32 %v9980, %v9866
        %v9982 = vadd.f32 %v9981, %v9874
        %v9983 = vadd.f32 %v9982, %v9882
        %v9984 = vadd.f32 %v9983, %v9890
        %v9985 = vadd.f32 %v9984, %v9898
        %v9986 = vadd.f32 %v9985, %v9906
        %v9987 = vadd.f32 %v9986, %v9914
        %v9988 = vadd.f32 %v9987, %v9922
        %v9989 = vadd.f32 %v9988, %v9930
        %v9990 = vadd.f32 %v9989, %v9938
        %v9991 = vadd.f32 %v9990, %v9946
        %v9992 = vadd.f32 %v9991, %v9954
        %v9993 = vrot.slane %v9992, 4
        %v9994 = vadd.f32 %v9992, %v9993
        %v9995 = vrot.slane %v9994, 2
        %v9996 = vadd.f32 %v9994, %v9995
        %v9997 = vrot.slane %v9996, 1
        %v9998 = vadd.f32 %v9996, %v9997
        %v9999 = vadd.f32 %v9707, %v9715
        %v10000 = vadd.f32 %v9999, %v9723
        %v10001 = vadd.f32 %v10000, %v9731
        %v10002 = vadd.f32 %v10001, %v9739
        %v10003 = vadd.f32 %v10002, %v9747
        %v10004 = vadd.f32 %v10003, %v9755
        %v10005 = vadd.f32 %v10004, %v9763
        %v10006 = vadd.f32 %v10005, %v9771
        %v10007 = vadd.f32 %v10006, %v9779
        %v10008 = vadd.f32 %v10007, %v9787
        %v10009 = vadd.f32 %v10008, %v9795
        %v10010 = vadd.f32 %v10009, %v9803
        %v10011 = vadd.f32 %v10010, %v9811
        %v10012 = vadd.f32 %v10011, %v9819
        %v10013 = vadd.f32 %v10012, %v9827
        %v10014 = vadd.f32 %v10013, %v9835
        %v10015 = vadd.f32 %v10014, %v9843
        %v10016 = vadd.f32 %v10015, %v9851
        %v10017 = vadd.f32 %v10016, %v9859
        %v10018 = vadd.f32 %v10017, %v9867
        %v10019 = vadd.f32 %v10018, %v9875
        %v10020 = vadd.f32 %v10019, %v9883
        %v10021 = vadd.f32 %v10020, %v9891
        %v10022 = vadd.f32 %v10021, %v9899
        %v10023 = vadd.f32 %v10022, %v9907
        %v10024 = vadd.f32 %v10023, %v9915
        %v10025 = vadd.f32 %v10024, %v9923
        %v10026 = vadd.f32 %v10025, %v9931
        %v10027 = vadd.f32 %v10026, %v9939
        %v10028 = vadd.f32 %v10027, %v9947
        %v10029 = vadd.f32 %v10028, %v9955
        %v10030 = vrot.slane %v10029, 4
        %v10031 = vadd.f32 %v10029, %v10030
        %v10032 = vrot.slane %v10031, 2
        %v10033 = vadd.f32 %v10031, %v10032
        %v10034 = vrot.slane %v10033, 1
        %v10035 = vadd.f32 %v10033, %v10034
        %v10036 = vadd.f32 %v9708, %v9716
        %v10037 = vadd.f32 %v10036, %v9724
        %v10038 = vadd.f32 %v10037, %v9732
        %v10039 = vadd.f32 %v10038, %v9740
        %v10040 = vadd.f32 %v10039, %v9748
        %v10041 = vadd.f32 %v10040, %v9756
        %v10042 = vadd.f32 %v10041, %v9764
        %v10043 = vadd.f32 %v10042, %v9772
        %v10044 = vadd.f32 %v10043, %v9780
        %v10045 = vadd.f32 %v10044, %v9788
        %v10046 = vadd.f32 %v10045, %v9796
        %v10047 = vadd.f32 %v10046, %v9804
        %v10048 = vadd.f32 %v10047, %v9812
        %v10049 = vadd.f32 %v10048, %v9820
        %v10050 = vadd.f32 %v10049, %v9828
        %v10051 = vadd.f32 %v10050, %v9836
        %v10052 = vadd.f32 %v10051, %v9844
        %v10053 = vadd.f32 %v10052, %v9852
        %v10054 = vadd.f32 %v10053, %v9860
        %v10055 = vadd.f32 %v10054, %v9868
        %v10056 = vadd.f32 %v10055, %v9876
        %v10057 = vadd.f32 %v10056, %v9884
        %v10058 = vadd.f32 %v10057, %v9892
        %v10059 = vadd.f32 %v10058, %v9900
        %v10060 = vadd.f32 %v10059, %v9908
        %v10061 = vadd.f32 %v10060, %v9916
        %v10062 = vadd.f32 %v10061, %v9924
        %v10063 = vadd.f32 %v10062, %v9932
        %v10064 = vadd.f32 %v10063, %v9940
        %v10065 = vadd.f32 %v10064, %v9948
        %v10066 = vadd.f32 %v10065, %v9956
        %v10067 = vrot.slane %v10066, 4
        %v10068 = vadd.f32 %v10066, %v10067
        %v10069 = vrot.slane %v10068, 2
        %v10070 = vadd.f32 %v10068, %v10069
        %v10071 = vrot.slane %v10070, 1
        %v10072 = vadd.f32 %v10070, %v10071
        %v10073 = vadd.f32 %v9709, %v9717
        %v10074 = vadd.f32 %v10073, %v9725
        %v10075 = vadd.f32 %v10074, %v9733
        %v10076 = vadd.f32 %v10075, %v9741
        %v10077 = vadd.f32 %v10076, %v9749
        %v10078 = vadd.f32 %v10077, %v9757
        %v10079 = vadd.f32 %v10078, %v9765
        %v10080 = vadd.f32 %v10079, %v9773
        %v10081 = vadd.f32 %v10080, %v9781
        %v10082 = vadd.f32 %v10081, %v9789
        %v10083 = vadd.f32 %v10082, %v9797
        %v10084 = vadd.f32 %v10083, %v9805
        %v10085 = vadd.f32 %v10084, %v9813
        %v10086 = vadd.f32 %v10085, %v9821
        %v10087 = vadd.f32 %v10086, %v9829
        %v10088 = vadd.f32 %v10087, %v9837
        %v10089 = vadd.f32 %v10088, %v9845
        %v10090 = vadd.f32 %v10089, %v9853
        %v10091 = vadd.f32 %v10090, %v9861
        %v10092 = vadd.f32 %v10091, %v9869
        %v10093 = vadd.f32 %v10092, %v9877
        %v10094 = vadd.f32 %v10093, %v9885
        %v10095 = vadd.f32 %v10094, %v9893
        %v10096 = vadd.f32 %v10095, %v9901
        %v10097 = vadd.f32 %v10096, %v9909
        %v10098 = vadd.f32 %v10097, %v9917
        %v10099 = vadd.f32 %v10098, %v9925
        %v10100 = vadd.f32 %v10099, %v9933
        %v10101 = vadd.f32 %v10100, %v9941
        %v10102 = vadd.f32 %v10101, %v9949
        %v10103 = vadd.f32 %v10102, %v9957
        %v10104 = vrot.slane %v10103, 4
        %v10105 = vadd.f32 %v10103, %v10104
        %v10106 = vrot.slane %v10105, 2
        %v10107 = vadd.f32 %v10105, %v10106
        %v10108 = vrot.slane %v10107, 1
        %v10109 = vadd.f32 %v10107, %v10108
        %v10110 = vadd.f32 %v9710, %v9718
        %v10111 = vadd.f32 %v10110, %v9726
        %v10112 = vadd.f32 %v10111, %v9734
        %v10113 = vadd.f32 %v10112, %v9742
        %v10114 = vadd.f32 %v10113, %v9750
        %v10115 = vadd.f32 %v10114, %v9758
        %v10116 = vadd.f32 %v10115, %v9766
        %v10117 = vadd.f32 %v10116, %v9774
        %v10118 = vadd.f32 %v10117, %v9782
        %v10119 = vadd.f32 %v10118, %v9790
        %v10120 = vadd.f32 %v10119, %v9798
        %v10121 = vadd.f32 %v10120, %v9806
        %v10122 = vadd.f32 %v10121, %v9814
        %v10123 = vadd.f32 %v10122, %v9822
        %v10124 = vadd.f32 %v10123, %v9830
        %v10125 = vadd.f32 %v10124, %v9838
        %v10126 = vadd.f32 %v10125, %v9846
        %v10127 = vadd.f32 %v10126, %v9854
        %v10128 = vadd.f32 %v10127, %v9862
        %v10129 = vadd.f32 %v10128, %v9870
        %v10130 = vadd.f32 %v10129, %v9878
        %v10131 = vadd.f32 %v10130, %v9886
        %v10132 = vadd.f32 %v10131, %v9894
        %v10133 = vadd.f32 %v10132, %v9902
        %v10134 = vadd.f32 %v10133, %v9910
        %v10135 = vadd.f32 %v10134, %v9918
        %v10136 = vadd.f32 %v10135, %v9926
        %v10137 = vadd.f32 %v10136, %v9934
        %v10138 = vadd.f32 %v10137, %v9942
        %v10139 = vadd.f32 %v10138, %v9950
        %v10140 = vadd.f32 %v10139, %v9958
        %v10141 = vrot.slane %v10140, 4
        %v10142 = vadd.f32 %v10140, %v10141
        %v10143 = vrot.slane %v10142, 2
        %v10144 = vadd.f32 %v10142, %v10143
        %v10145 = vrot.slane %v10144, 1
        %v10146 = vadd.f32 %v10144, %v10145
        %v10147 = vadd.f32 %v9711, %v9719
        %v10148 = vadd.f32 %v10147, %v9727
        %v10149 = vadd.f32 %v10148, %v9735
        %v10150 = vadd.f32 %v10149, %v9743
        %v10151 = vadd.f32 %v10150, %v9751
        %v10152 = vadd.f32 %v10151, %v9759
        %v10153 = vadd.f32 %v10152, %v9767
        %v10154 = vadd.f32 %v10153, %v9775
        %v10155 = vadd.f32 %v10154, %v9783
        %v10156 = vadd.f32 %v10155, %v9791
        %v10157 = vadd.f32 %v10156, %v9799
        %v10158 = vadd.f32 %v10157, %v9807
        %v10159 = vadd.f32 %v10158, %v9815
        %v10160 = vadd.f32 %v10159, %v9823
        %v10161 = vadd.f32 %v10160, %v9831
        %v10162 = vadd.f32 %v10161, %v9839
        %v10163 = vadd.f32 %v10162, %v9847
        %v10164 = vadd.f32 %v10163, %v9855
        %v10165 = vadd.f32 %v10164, %v9863
        %v10166 = vadd.f32 %v10165, %v9871
        %v10167 = vadd.f32 %v10166, %v9879
        %v10168 = vadd.f32 %v10167, %v9887
        %v10169 = vadd.f32 %v10168, %v9895
        %v10170 = vadd.f32 %v10169, %v9903
        %v10171 = vadd.f32 %v10170, %v9911
        %v10172 = vadd.f32 %v10171, %v9919
        %v10173 = vadd.f32 %v10172, %v9927
        %v10174 = vadd.f32 %v10173, %v9935
        %v10175 = vadd.f32 %v10174, %v9943
        %v10176 = vadd.f32 %v10175, %v9951
        %v10177 = vadd.f32 %v10176, %v9959
        %v10178 = vrot.slane %v10177, 4
        %v10179 = vadd.f32 %v10177, %v10178
        %v10180 = vrot.slane %v10179, 2
        %v10181 = vadd.f32 %v10179, %v10180
        %v10182 = vrot.slane %v10181, 1
        %v10183 = vadd.f32 %v10181, %v10182
        %v10184 = vadd.f32 %v9712, %v9720
        %v10185 = vadd.f32 %v10184, %v9728
        %v10186 = vadd.f32 %v10185, %v9736
        %v10187 = vadd.f32 %v10186, %v9744
        %v10188 = vadd.f32 %v10187, %v9752
        %v10189 = vadd.f32 %v10188, %v9760
        %v10190 = vadd.f32 %v10189, %v9768
        %v10191 = vadd.f32 %v10190, %v9776
        %v10192 = vadd.f32 %v10191, %v9784
        %v10193 = vadd.f32 %v10192, %v9792
        %v10194 = vadd.f32 %v10193, %v9800
        %v10195 = vadd.f32 %v10194, %v9808
        %v10196 = vadd.f32 %v10195, %v9816
        %v10197 = vadd.f32 %v10196, %v9824
        %v10198 = vadd.f32 %v10197, %v9832
        %v10199 = vadd.f32 %v10198, %v9840
        %v10200 = vadd.f32 %v10199, %v9848
        %v10201 = vadd.f32 %v10200, %v9856
        %v10202 = vadd.f32 %v10201, %v9864
        %v10203 = vadd.f32 %v10202, %v9872
        %v10204 = vadd.f32 %v10203, %v9880
        %v10205 = vadd.f32 %v10204, %v9888
        %v10206 = vadd.f32 %v10205, %v9896
        %v10207 = vadd.f32 %v10206, %v9904
        %v10208 = vadd.f32 %v10207, %v9912
        %v10209 = vadd.f32 %v10208, %v9920
        %v10210 = vadd.f32 %v10209, %v9928
        %v10211 = vadd.f32 %v10210, %v9936
        %v10212 = vadd.f32 %v10211, %v9944
        %v10213 = vadd.f32 %v10212, %v9952
        %v10214 = vadd.f32 %v10213, %v9960
        %v10215 = vrot.slane %v10214, 4
        %v10216 = vadd.f32 %v10214, %v10215
        %v10217 = vrot.slane %v10216, 2
        %v10218 = vadd.f32 %v10216, %v10217
        %v10219 = vrot.slane %v10218, 1
        %v10220 = vadd.f32 %v10218, %v10219
        %v10221 = vadd.f32 %v9713, %v9721
        %v10222 = vadd.f32 %v10221, %v9729
        %v10223 = vadd.f32 %v10222, %v9737
        %v10224 = vadd.f32 %v10223, %v9745
        %v10225 = vadd.f32 %v10224, %v9753
        %v10226 = vadd.f32 %v10225, %v9761
        %v10227 = vadd.f32 %v10226, %v9769
        %v10228 = vadd.f32 %v10227, %v9777
        %v10229 = vadd.f32 %v10228, %v9785
        %v10230 = vadd.f32 %v10229, %v9793
        %v10231 = vadd.f32 %v10230, %v9801
        %v10232 = vadd.f32 %v10231, %v9809
        %v10233 = vadd.f32 %v10232, %v9817
        %v10234 = vadd.f32 %v10233, %v9825
        %v10235 = vadd.f32 %v10234, %v9833
        %v10236 = vadd.f32 %v10235, %v9841
        %v10237 = vadd.f32 %v10236, %v9849
        %v10238 = vadd.f32 %v10237, %v9857
        %v10239 = vadd.f32 %v10238, %v9865
        %v10240 = vadd.f32 %v10239, %v9873
        %v10241 = vadd.f32 %v10240, %v9881
        %v10242 = vadd.f32 %v10241, %v9889
        %v10243 = vadd.f32 %v10242, %v9897
        %v10244 = vadd.f32 %v10243, %v9905
        %v10245 = vadd.f32 %v10244, %v9913
        %v10246 = vadd.f32 %v10245, %v9921
        %v10247 = vadd.f32 %v10246, %v9929
        %v10248 = vadd.f32 %v10247, %v9937
        %v10249 = vadd.f32 %v10248, %v9945
        %v10250 = vadd.f32 %v10249, %v9953
        %v10251 = vadd.f32 %v10250, %v9961
        %v10252 = vrot.slane %v10251, 4
        %v10253 = vadd.f32 %v10251, %v10252
        %v10254 = vrot.slane %v10253, 2
        %v10255 = vadd.f32 %v10253, %v10254
        %v10256 = vrot.slane %v10255, 1
        %v10257 = vadd.f32 %v10255, %v10256
        %v10258 = vmul.f32 %v9998, 0.00390625
        %v10259 = vmul.f32 %v10035, 0.00390625
        %v10260 = vmul.f32 %v10072, 0.00390625
        %v10261 = vmul.f32 %v10109, 0.00390625
        %v10262 = vmul.f32 %v10146, 0.00390625
        %v10263 = vmul.f32 %v10183, 0.00390625
        %v10264 = vmul.f32 %v10220, 0.00390625
        %v10265 = vmul.f32 %v10257, 0.00390625
        %v10266 = vsub.f32 %v9142, %v9698
        %v10267 = vsub.f32 %v9179, %v9699
        %v10268 = vsub.f32 %v9216, %v9700
        %v10269 = vsub.f32 %v9253, %v9701
        %v10270 = vsub.f32 %v9290, %v9702
        %v10271 = vsub.f32 %v9327, %v9703
        %v10272 = vsub.f32 %v9364, %v9704
        %v10273 = vsub.f32 %v9401, %v9705
        %v10274 = vmul.f32 %v9698, %v9698
        %v10275 = vmul.f32 %v9699, %v9699
        %v10276 = vmul.f32 %v9700, %v9700
        %v10277 = vmul.f32 %v9701, %v9701
        %v10278 = vmul.f32 %v9702, %v9702
        %v10279 = vmul.f32 %v9703, %v9703
        %v10280 = vmul.f32 %v9704, %v9704
        %v10281 = vmul.f32 %v9705, %v9705
        %v10282 = vsub.f32 %v10258, %v10274
        %v10283 = vsub.f32 %v10259, %v10275
        %v10284 = vsub.f32 %v10260, %v10276
        %v10285 = vsub.f32 %v10261, %v10277
        %v10286 = vsub.f32 %v10262, %v10278
        %v10287 = vsub.f32 %v10263, %v10279
        %v10288 = vsub.f32 %v10264, %v10280
        %v10289 = vsub.f32 %v10265, %v10281
        %v10290 = vadd.f32 %v10282, 1e-05
        %v10291 = vadd.f32 %v10283, 1e-05
        %v10292 = vadd.f32 %v10284, 1e-05
        %v10293 = vadd.f32 %v10285, 1e-05
        %v10294 = vadd.f32 %v10286, 1e-05
        %v10295 = vadd.f32 %v10287, 1e-05
        %v10296 = vadd.f32 %v10288, 1e-05
        %v10297 = vadd.f32 %v10289, 1e-05
        %v10298 = vrsqrt.pop %v10290
        %v10299 = vmul.f32 %v10298, %v10290
        %v10300 = vmul.f32 %v10299, %v10298
        %v10301 = vmul.f32 0.5, %v10300
        %v10302 = vsub.f32 1.5, %v10301
        %v10303 = vmul.f32 %v10298, %v10302
        %vm10304 = vweird.f32 %v10290
        %vm10305 = vweird.f32 %v10298
        %vm10306 = vmor %vm10304, %vm10305
        %v10307 = vsel %vm10306, %v10298, %v10303
        %v10308 = vrsqrt.pop %v10291
        %v10309 = vmul.f32 %v10308, %v10291
        %v10310 = vmul.f32 %v10309, %v10308
        %v10311 = vmul.f32 0.5, %v10310
        %v10312 = vsub.f32 1.5, %v10311
        %v10313 = vmul.f32 %v10308, %v10312
        %vm10314 = vweird.f32 %v10291
        %vm10315 = vweird.f32 %v10308
        %vm10316 = vmor %vm10314, %vm10315
        %v10317 = vsel %vm10316, %v10308, %v10313
        %v10318 = vrsqrt.pop %v10292
        %v10319 = vmul.f32 %v10318, %v10292
        %v10320 = vmul.f32 %v10319, %v10318
        %v10321 = vmul.f32 0.5, %v10320
        %v10322 = vsub.f32 1.5, %v10321
        %v10323 = vmul.f32 %v10318, %v10322
        %vm10324 = vweird.f32 %v10292
        %vm10325 = vweird.f32 %v10318
        %vm10326 = vmor %vm10324, %vm10325
        %v10327 = vsel %vm10326, %v10318, %v10323
        %v10328 = vrsqrt.pop %v10293
        %v10329 = vmul.f32 %v10328, %v10293
        %v10330 = vmul.f32 %v10329, %v10328
        %v10331 = vmul.f32 0.5, %v10330
        %v10332 = vsub.f32 1.5, %v10331
        %v10333 = vmul.f32 %v10328, %v10332
        %vm10334 = vweird.f32 %v10293
        %vm10335 = vweird.f32 %v10328
        %vm10336 = vmor %vm10334, %vm10335
        %v10337 = vsel %vm10336, %v10328, %v10333
        %v10338 = vrsqrt.pop %v10294
        %v10339 = vmul.f32 %v10338, %v10294
        %v10340 = vmul.f32 %v10339, %v10338
        %v10341 = vmul.f32 0.5, %v10340
        %v10342 = vsub.f32 1.5, %v10341
        %v10343 = vmul.f32 %v10338, %v10342
        %vm10344 = vweird.f32 %v10294
        %vm10345 = vweird.f32 %v10338
        %vm10346 = vmor %vm10344, %vm10345
        %v10347 = vsel %vm10346, %v10338, %v10343
        %v10348 = vrsqrt.pop %v10295
        %v10349 = vmul.f32 %v10348, %v10295
        %v10350 = vmul.f32 %v10349, %v10348
        %v10351 = vmul.f32 0.5, %v10350
        %v10352 = vsub.f32 1.5, %v10351
        %v10353 = vmul.f32 %v10348, %v10352
        %vm10354 = vweird.f32 %v10295
        %vm10355 = vweird.f32 %v10348
        %vm10356 = vmor %vm10354, %vm10355
        %v10357 = vsel %vm10356, %v10348, %v10353
        %v10358 = vrsqrt.pop %v10296
        %v10359 = vmul.f32 %v10358, %v10296
        %v10360 = vmul.f32 %v10359, %v10358
        %v10361 = vmul.f32 0.5, %v10360
        %v10362 = vsub.f32 1.5, %v10361
        %v10363 = vmul.f32 %v10358, %v10362
        %vm10364 = vweird.f32 %v10296
        %vm10365 = vweird.f32 %v10358
        %vm10366 = vmor %vm10364, %vm10365
        %v10367 = vsel %vm10366, %v10358, %v10363
        %v10368 = vrsqrt.pop %v10297
        %v10369 = vmul.f32 %v10368, %v10297
        %v10370 = vmul.f32 %v10369, %v10368
        %v10371 = vmul.f32 0.5, %v10370
        %v10372 = vsub.f32 1.5, %v10371
        %v10373 = vmul.f32 %v10368, %v10372
        %vm10374 = vweird.f32 %v10297
        %vm10375 = vweird.f32 %v10368
        %vm10376 = vmor %vm10374, %vm10375
        %v10377 = vsel %vm10376, %v10368, %v10373
        %v10378 = vmul.f32 %v10266, %v10307
        %v10379 = vmul.f32 %v10267, %v10317
        %v10380 = vmul.f32 %v10268, %v10327
        %v10381 = vmul.f32 %v10269, %v10337
        %v10382 = vmul.f32 %v10270, %v10347
        %v10383 = vmul.f32 %v10271, %v10357
        %v10384 = vmul.f32 %v10272, %v10367
        %v10385 = vmul.f32 %v10273, %v10377
        %v10394 = vrot.slane %v10379, 7
        %v10395 = vrot.slane %v10380, 6
        %v10396 = vrot.slane %v10381, 5
        %v10397 = vrot.slane %v10382, 4
        %v10398 = vrot.slane %v10383, 3
        %v10399 = vrot.slane %v10384, 2
        %v10400 = vrot.slane %v10385, 1
        %v10401 = vsel %vm801, %v10378, %v10394
        %vm10402 = vcmask 1042434
        %v10403 = vsel %vm10402, %v10395, %v10396
        %v10404 = vsel %vm802, %v10401, %v10403
        %vm10405 = vcmask 1044484
        %v10406 = vsel %vm10405, %v10397, %v10398
        %vm10407 = vcmask 1046534
        %v10408 = vsel %vm10407, %v10399, %v10400
        %vm10409 = vcmask 1045508
        %v10410 = vsel %vm10409, %v10406, %v10408
        %vm10411 = vcmask 1043456
        %v10412 = vsel %vm10411, %v10404, %v10410
        %10414 = vst [vmem:[%s694] sm:$0xff] %v10412
        %p10415 = scmp.lt.s32.totalorder %s35, 1
        %s10416 = scalar_select %p10415, %s35, 1
        %s10417 = smul.addr %s10416, 8
        %s10418 = scalar_lea.vmem %s20, %s10417
        %p10419 = scmp.lt.s32.totalorder %s35, 1
        %s10420 = scalar_select %p10419, %s35, 1
        %s10421 = scalar_lea.vmem %s21, %s10420
        // Predicated region
        $region109: #{pointnet_encoder_forward.1} parent=99 // pred_check
          %p10422 = pneg %p478
        $region110: #{pointnet_encoder_forward.1} parent=99 // pred_check_branch
          %10424 = sbr.rel (%p10422) target = $region112
        $region111: #{pointnet_encoder_forward.1} parent=99 // pred_region
          _
        $region112: #{pointnet_encoder_forward.1} parent=99 // pred_fallthru
          _
        // Predicated region
        $region113: #{pointnet_encoder_forward.1} parent=99 // pred_check
          %p10425 = pneg %p504
        $region114: #{pointnet_encoder_forward.1} parent=99 // pred_check_branch
          %10427 = sbr.rel (%p10425) target = $region116
        $region115: #{pointnet_encoder_forward.1} parent=99 // pred_region
          _
        $region116: #{pointnet_encoder_forward.1} parent=99 // pred_fallthru
          _
      $region100: #{pointnet_encoder_forward.1} parent=5 // pred_fallthru
        _
      %p10428 = scmp.le.s32.totalorder 2, %s30
      // Predicated region
      $region117: #{pointnet_encoder_forward.1} parent=5 // pred_check
        %p10429 = pneg %p10428
      $region118: #{pointnet_encoder_forward.1} parent=5 // pred_check_branch
        %10431 = sbr.rel (%p10429) target = $region120
      $region119: #{pointnet_encoder_forward.1} parent=5 // pred_region
        %s10432 = ssub.s32 %s30, 2
        // Predicated region
        $region121: #{pointnet_encoder_forward.1} parent=119 // pred_check
          %p10433 = pneg %p484
        $region122: #{pointnet_encoder_forward.1} parent=119 // pred_check_branch
          %10435 = sbr.rel (%p10433) target = $region124
        $region123: #{pointnet_encoder_forward.1} parent=119 // pred_region
          %p10436 = scmp.lt.s32.totalorder %s36, 1
          %s10437 = scalar_select %p10436, %s36, 1
          %s10438 = smul.addr %s10437, 8
          %s10439 = scalar_lea.vmem %s20, %s10438
        $region124: #{pointnet_encoder_forward.1} parent=119 // pred_fallthru
          _
        // Predicated region
        $region125: #{pointnet_encoder_forward.1} parent=119 // pred_check
          %p10440 = pneg %p510
        $region126: #{pointnet_encoder_forward.1} parent=119 // pred_check_branch
          %10442 = sbr.rel (%p10440) target = $region128
        $region127: #{pointnet_encoder_forward.1} parent=119 // pred_region
          %p10443 = scmp.lt.s32.totalorder %s36, 1
          %s10444 = scalar_select %p10443, %s36, 1
          %s10445 = scalar_lea.vmem %s21, %s10444
        $region128: #{pointnet_encoder_forward.1} parent=119 // pred_fallthru
          _
      $region120: #{pointnet_encoder_forward.1} parent=5 // pred_fallthru
        _
    $region6: #{pointnet_encoder_forward.1} parent=1 // loop_footer
      %s34 = sadd.s32 1, %s30
    $region7: #{pointnet_encoder_forward.1} parent=1 // loop_footer_branch
      %29 = sbr.rel target = $region3
    $region8: #{pointnet_encoder_forward.1} parent=1 // loop_exit
      _
    %10446 = vsyncpa [#allocation3], 1
    %s10447 = scalar_lea.sflag [#allocation3], 1
    %10448 = vsyncpa %s10447, 1
    %10449 = vsyncpa [#allocation5], 1

</llo_original>
